<compile_context>
chip_gen: v7x
topology: tpu7x:2x2x1
jax: 0.10.0
libtpu: 0.0.40
codegen_flags: <defaults>
</compile_context>

<pallas_src>
import jax
import jax.numpy as jnp
from jax.experimental import pallas as pl
from jax.experimental.pallas import tpu as pltpu

EPS = 1e-5
MXU_DTYPE = jnp.bfloat16      # matmul operand dtype; accumulation is f32.


# ----------------------------- in-kernel helpers ----------------------------

def _shift_lanes(x, off):
    """y[:, q] = x[:, (q + off) % Sp] -- static circular shift along lanes.

    In the padded-flat domain a 3x3x3 tap at offset (dd,dh,dw) is the flat
    shift dd*Hp*Wp + dh*Wp + dw; the circular wrap only pollutes halo-ring
    outputs, which are never consumed.
    """
    if off == 0:
        return x
    return jnp.concatenate([x[:, off:], x[:, :off]], axis=1)


def _make_conv_kernel(n_in, cins, offsets, prelu):
    """3x3x3 conv kernel: im2col in VMEM scratch + one (Cout,27*Cin)@(27*Cin,Sp) dot."""
    cin_tot = sum(cins)

    def kernel(*refs):
        mask_ref = refs[0]
        x_refs = refs[1:1 + n_in]
        w_ref = refs[1 + n_in]
        b_ref = refs[2 + n_in]
        if prelu:
            sc_ref, sh_ref = refs[3 + n_in], refs[4 + n_in]
        o_ref, st_ref, col_ref = refs[-3], refs[-2], refs[-1]

        mask = mask_ref[...]                              # (1, Sp): interior=1
        base = 0
        for i in range(n_in):
            x = x_refs[i][...]                            # (Ci, Sp) f32
            if prelu:
                # fused BatchNorm-affine + ReLU of the previous layer; the
                # mask re-zeroes the halo ring (it holds don't-care values).
                x = jnp.maximum(x * sc_ref[...] + sh_ref[...], 0.0) * mask
            for t, off in enumerate(offsets):             # build im2col rows
                col_ref[pl.ds(t * cin_tot + base, cins[i]), :] = \
                    _shift_lanes(x, off)
            base += cins[i]

        # single MXU contraction, bf16 operands, f32 accumulation.
        acc = jnp.dot(w_ref[...], col_ref[...].astype(MXU_DTYPE),
                      preferred_element_type=jnp.float32)   # (Cout, Sp)
        out = acc + b_ref[...]
        o_ref[...] = out

        # per-channel BN statistics over interior voxels only (f32).
        om = out * mask
        st_ref[...] = jnp.concatenate(
            [jnp.sum(om, axis=1, keepdims=True),
             jnp.sum(om * om, axis=1, keepdims=True)], axis=1)

    return kernel


def _upsample_kernel(x_ref, w_ref, b_ref, o_ref):
    # ConvTranspose3d(k=2, s=2) == one matmul: (8*Cout, Cin) @ (Cin, S0).
    o_ref[...] = jnp.dot(w_ref[...], x_ref[...],
                         preferred_element_type=jnp.float32) + b_ref[...]


def _scale_shift_relu_kernel(x_ref, sc_ref, sh_ref, o_ref):
    # BN affine (f32) + ReLU, lane-dense.
    o_ref[...] = jnp.maximum(x_ref[...] * sc_ref[...] + sh_ref[...], 0.0)


# ------------------------------- Pallas wrappers ----------------------------

def conv_transpose_2x(x, wt, bt):
    """ConvTranspose3d(k=2, s=2). x: (N, Cin, D0, H0, W0) -> (N, Cout, 2D0, 2H0, 2W0)."""
    N, Cin, D0, H0, W0 = x.shape
    Cout = wt.shape[1]
    S0 = D0 * H0 * W0
    # rows ordered ((i,j,k), c) so the wrapper reshape below is a pure split.
    wm = jnp.transpose(wt, (2, 3, 4, 1, 0)).reshape(8 * Cout, Cin)
    bm = jnp.tile(bt, 8).reshape(8 * Cout, 1)
    xf = x.reshape(N, Cin, S0)

    y = pl.pallas_call(
        _upsample_kernel,
        out_shape=jax.ShapeDtypeStruct((N, 8 * Cout, S0), jnp.float32),
        grid=(N,),
        in_specs=[pl.BlockSpec((None, Cin, S0), lambda n: (n, 0, 0)),
                  pl.BlockSpec((8 * Cout, Cin), lambda n: (0, 0)),
                  pl.BlockSpec((8 * Cout, 1), lambda n: (0, 0))],
        out_specs=pl.BlockSpec((None, 8 * Cout, S0), lambda n: (n, 0, 0)),
        compiler_params=pltpu.CompilerParams(
            dimension_semantics=("parallel",)),
    )(xf, wm, bm)

    # Interleave the 2x2x2 taps into the upsampled volume (single XLA copy
    # pass; fuses with the halo pad applied by the caller).
    y = y.reshape(N, 2, 2, 2, Cout, D0, H0, W0)
    y = jnp.transpose(y, (0, 4, 5, 1, 6, 2, 7, 3))
    return y.reshape(N, Cout, 2 * D0, 2 * H0, 2 * W0)


def conv_block(inputs, w, b, *, mask, pdims, prelu=None):
    """3x3x3 'same' conv in the padded-flat domain.

    inputs : list of (N, Ci, Sp) f32 activations whose channel concat is the
             conv input (concat is done in the kernel, never in HBM).
    w      : (Cout, sum(Ci), 3, 3, 3) PyTorch-layout weight; b: (Cout,).
    prelu  : optional (scale, shift) -> relu(x*scale + shift) prologue
             (fused BN+ReLU of the previous layer; single-input only).
    Returns (z, stats): z (N, Cout, Sp) pre-BN output (halo ring = don't-care),
    stats (N, Cout, 2) = per-batch-element [sum, sum_sq] over interior voxels.
    """
    Dp, Hp, Wp = pdims
    Sp = Dp * Hp * Wp
    N = inputs[0].shape[0]
    cins = [int(a.shape[1]) for a in inputs]
    cin_tot = sum(cins)
    Cout = w.shape[0]
    assert w.shape[1] == cin_tot and inputs[0].shape[2] == Sp
    assert prelu is None or len(inputs) == 1

    offsets = [(kd - 1) * Hp * Wp + (kh - 1) * Wp + (kw - 1)
               for kd in range(3) for kh in range(3) for kw in range(3)]

    # (Cout, 27*Cin): column order ((kd,kh,kw), cin) matches im2col row order.
    w27 = jnp.transpose(w, (0, 2, 3, 4, 1)).reshape(Cout, 27 * cin_tot)
    w27 = w27.astype(MXU_DTYPE)                    # pre-cast once for the MXU

    in_arrays = [mask]
    in_specs = [pl.BlockSpec((1, Sp), lambda n: (0, 0))]
    for a in inputs:
        ci = int(a.shape[1])
        in_arrays.append(a)
        in_specs.append(pl.BlockSpec((None, ci, Sp), lambda n: (n, 0, 0)))
    in_arrays += [w27, b.reshape(Cout, 1).astype(jnp.float32)]
    in_specs += [pl.BlockSpec((Cout, 27 * cin_tot), lambda n: (0, 0)),
                 pl.BlockSpec((Cout, 1), lambda n: (0, 0))]
    if prelu is not None:
        scale, shift = prelu
        in_arrays += [scale.reshape(cins[0], 1).astype(jnp.float32),
                      shift.reshape(cins[0], 1).astype(jnp.float32)]
        in_specs += [pl.BlockSpec((cins[0], 1), lambda n: (0, 0)),
                     pl.BlockSpec((cins[0], 1), lambda n: (0, 0))]

    kernel = _make_conv_kernel(len(inputs), cins, offsets, prelu is not None)
    z, stats = pl.pallas_call(
        kernel,
        out_shape=(jax.ShapeDtypeStruct((N, Cout, Sp), jnp.float32),
                   jax.ShapeDtypeStruct((N, Cout, 2), jnp.float32)),
        grid=(N,),
        in_specs=in_specs,
        out_specs=(pl.BlockSpec((None, Cout, Sp), lambda n: (n, 0, 0)),
                   pl.BlockSpec((None, Cout, 2), lambda n: (n, 0, 0))),
        scratch_shapes=[pltpu.VMEM((27 * cin_tot, Sp), jnp.float32)],
        compiler_params=pltpu.CompilerParams(
            dimension_semantics=("parallel",)),
    )(*in_arrays)
    return z, stats


def bn_relu_padded(x, scale, shift):
    """Per-channel affine + ReLU over the padded-flat activation (N, C, Sp)."""
    N, C, Sp = x.shape
    return pl.pallas_call(
        _scale_shift_relu_kernel,
        out_shape=jax.ShapeDtypeStruct((N, C, Sp), jnp.float32),
        grid=(N,),
        in_specs=[pl.BlockSpec((None, C, Sp), lambda n: (n, 0, 0)),
                  pl.BlockSpec((C, 1), lambda n: (0, 0)),
                  pl.BlockSpec((C, 1), lambda n: (0, 0))],
        out_specs=pl.BlockSpec((None, C, Sp), lambda n: (n, 0, 0)),
        compiler_params=pltpu.CompilerParams(
            dimension_semantics=("parallel",)),
    )(x, scale.reshape(C, 1), shift.reshape(C, 1))


def _bn_affine(stats, gamma, beta, count):
    """Training-mode BatchNorm affine (scale, shift) from [sum, sum_sq] stats."""
    s = jnp.sum(stats, axis=0)                  # (C, 2), f32
    mean = s[:, 0] / count
    var = s[:, 1] / count - mean * mean         # biased variance
    scale = gamma * jax.lax.rsqrt(var + EPS)
    shift = beta - mean * scale
    return scale, shift


# ---------------------------------- Up.forward ------------------------------

def up_forward(x, skip, params):
    """x: (N, Cin, D0, H0, W0); skip: (N, Cout, 2D0, 2H0, 2W0) -- NCDHW."""
    N, Cin, D0, H0, W0 = x.shape
    Cout = params["sample_w"].shape[1]
    D, H, W = 2 * D0, 2 * H0, 2 * W0
    Dp, Hp, Wp = D + 2, H + 2, W + 2
    Sp = Dp * Hp * Wp
    n_vox = float(N * D * H * W)

    # interior / halo mask in the padded-flat domain (1 = real voxel).
    mask = jnp.zeros((Dp, Hp, Wp), jnp.float32).at[1:-1, 1:-1, 1:-1].set(1.0)
    mask = mask.reshape(1, Sp)

    # ConvTranspose3d(k=2, s=2)
    up = conv_transpose_2x(x, params["sample_w"], params["sample_b"])

    # zero halo ring (the up-pad fuses with the interleave copy above).
    pad = ((0, 0), (0, 0), (1, 1), (1, 1), (1, 1))
    up_p = jnp.pad(up, pad).reshape(N, Cout, Sp)
    skip_p = jnp.pad(skip, pad).reshape(N, Cout, Sp)

    # conv1 over cat((upsampled, skip), dim=1) -- matches torch.cat((x, conv)).
    z1, st1 = conv_block([up_p, skip_p], params["conv1_w"], params["conv1_b"],
                         mask=mask, pdims=(Dp, Hp, Wp))
    sc1, sh1 = _bn_affine(st1, params["bn1_g"], params["bn1_b"], n_vox)

    # conv2 with BN1 + ReLU fused into its prologue (no extra HBM pass).
    z2, st2 = conv_block([z1], params["conv2_w"], params["conv2_b"],
                         mask=mask, pdims=(Dp, Hp, Wp), prelu=(sc1, sh1))
    sc2, sh2 = _bn_affine(st2, params["bn2_g"], params["bn2_b"], n_vox)

    # BN2 + ReLU, then drop the halo ring.
    out_p = bn_relu_padded(z2, sc2, sh2)
    out = out_p.reshape(N, Cout, Dp, Hp, Wp)[:, :, 1:-1, 1:-1, 1:-1]
    return out


# ------------------------------ pure-JAX reference --------------------------

def reference(x, skip, params):
    wt, bt = params["sample_w"], params["sample_b"]
    N, Cin, D0, H0, W0 = x.shape
    Cout = wt.shape[1]

    up = jnp.einsum("ncdhw,coijk->nodihjwk", x, wt)
    up = up.reshape(N, Cout, 2 * D0, 2 * H0, 2 * W0) + bt[None, :, None, None, None]
    xc = jnp.concatenate([up, skip], axis=1)

    def conv3(xx, w, b):
        yy = jax.lax.conv_general_dilated(
            xx, w, window_strides=(1, 1, 1),
            padding=((1, 1), (1, 1), (1, 1)),
            dimension_numbers=("NCDHW", "OIDHW", "NCDHW"))
        return yy + b[None, :, None, None, None]

    def bnr(xx, g, be):
        mean = xx.mean(axis=(0, 2, 3, 4), keepdims=True)
        var = xx.var(axis=(0, 2, 3, 4), keepdims=True)
        yy = (xx - mean) * jax.lax.rsqrt(var + EPS)
        yy = yy * g[None, :, None, None, None] + be[None, :, None, None, None]
        return jnp.maximum(yy, 0.0)

    z = bnr(conv3(xc, params["conv1_w"], params["conv1_b"]),
            params["bn1_g"], params["bn1_b"])
    z = bnr(conv3(z, params["conv2_w"], params["conv2_b"]),
            params["bn2_g"], params["bn2_b"])
    return z


# ------------------------------------- main ---------------------------------

if __name__ == "__main__":
    key = jax.random.PRNGKey(0)
    ks = jax.random.split(key, 12)

    N, Cin, Cout = 2, 8, 4          # Up(in_channels=8, out_channels=4)
    D0 = H0 = W0 = 4                # low-res input -> upsampled to 8^3

    x = jax.random.normal(ks[0], (N, Cin, D0, H0, W0), jnp.float32)
    skip = jax.random.normal(ks[1], (N, Cout, 2 * D0, 2 * H0, 2 * W0), jnp.float32)

    params = dict(
        sample_w=0.2 * jax.random.normal(ks[2], (Cin, Cout, 2, 2, 2), jnp.float32),
        sample_b=0.1 * jax.random.normal(ks[3], (Cout,), jnp.float32),
        conv1_w=0.1 * jax.random.normal(ks[4], (Cout, 2 * Cout, 3, 3, 3), jnp.float32),
        conv1_b=0.1 * jax.random.normal(ks[5], (Cout,), jnp.float32),
        bn1_g=1.0 + 0.1 * jax.random.normal(ks[6], (Cout,), jnp.float32),
        bn1_b=0.1 * jax.random.normal(ks[7], (Cout,), jnp.float32),
        conv2_w=0.2 * jax.random.normal(ks[8], (Cout, Cout, 3, 3, 3), jnp.float32),
        conv2_b=0.1 * jax.random.normal(ks[9], (Cout,), jnp.float32),
        bn2_g=1.0 + 0.1 * jax.random.normal(ks[10], (Cout,), jnp.float32),
        bn2_b=0.1 * jax.random.normal(ks[11], (Cout,), jnp.float32),
    )

    out = jax.jit(up_forward)(x, skip, params)
    out = jax.block_until_ready(out)

    assert out.shape == (N, Cout, 2 * D0, 2 * H0, 2 * W0)
    ref = reference(x, skip, params)
    # 5e-2 tolerance covers bf16 MXU-operand rounding through two conv+BN
    # stages (accumulation and BN math are f32; observed error is ~1e-2).
    err = float(jnp.max(jnp.abs(out - ref)))
    assert err < 5e-2, f"kernel/reference mismatch: max abs err = {err}"

    print("KERNEL_OK")
</pallas_src>

<mosaic_0001>
module attributes {stable_mosaic.version = 11 : i64} {
  func.func @_upsample_kernel(%arg0: i32, %arg1: memref<1x8x64xf32, #tpu.memory_space<vmem>>, %arg2: memref<32x8xf32, #tpu.memory_space<vmem>>, %arg3: memref<32x1xf32, #tpu.memory_space<vmem>>, %arg4: memref<1x32x64xf32, #tpu.memory_space<vmem>>) attributes {dimension_semantics = [#tpu.dimension_semantics<parallel>], iteration_bounds = array<i64: 2>, scalar_prefetch = 0 : i64, scratch_operands = 0 : i64, tpu.core_type = #tpu.core_type<tc>, window_params = [{transform_indices = @transform_0, window_bounds = array<i64: 1, 8, 64>}, {pipeline_mode = #tpu.pipeline_mode<synchronous>, transform_indices = @transform_1, window_bounds = array<i64: 32, 8>}, {pipeline_mode = #tpu.pipeline_mode<synchronous>, transform_indices = @transform_2, window_bounds = array<i64: 32, 1>}, {transform_indices = @transform_3, window_bounds = array<i64: 1, 32, 64>}]} {
    %c0 = arith.constant 0 : index
    %c0_0 = arith.constant 0 : index
    %0 = vector.load %arg2[%c0, %c0_0] : memref<32x8xf32, #tpu.memory_space<vmem>>, vector<32x8xf32>
    %c0_1 = arith.constant 0 : index
    %c0_2 = arith.constant 0 : index
    %c0_3 = arith.constant 0 : index
    %1 = vector.load %arg1[%c0_1, %c0_2, %c0_3] : memref<1x8x64xf32, #tpu.memory_space<vmem>>, vector<1x8x64xf32>
    %2 = vector.shape_cast %1 : vector<1x8x64xf32> to vector<8x64xf32>
    %cst = arith.constant dense<0.000000e+00> : vector<32x64xf32>
    %3 = tpu.matmul %0, %2, %cst {dimension_numbers = #tpu.dot_dimension_numbers<[1], [0], [0], [1], [0, 0, 1, 1], [], []>} : vector<32x8xf32>, vector<8x64xf32>, vector<32x64xf32> -> vector<32x64xf32>
    %c0_4 = arith.constant 0 : index
    %c0_5 = arith.constant 0 : index
    %4 = vector.load %arg3[%c0_4, %c0_5] : memref<32x1xf32, #tpu.memory_space<vmem>>, vector<32x1xf32>
    %5 = vector.broadcast %4 : vector<32x1xf32> to vector<32x64xf32>
    %6 = arith.addf %3, %5 : vector<32x64xf32>
    %c0_6 = arith.constant 0 : index
    %c0_7 = arith.constant 0 : index
    %c0_8 = arith.constant 0 : index
    %7 = vector.load %arg4[%c0_6, %c0_7, %c0_8] : memref<1x32x64xf32, #tpu.memory_space<vmem>>, vector<1x32x64xf32>
    %8 = vector.shape_cast %7 : vector<1x32x64xf32> to vector<32x64xf32>
    %9 = vector.shape_cast %6 : vector<32x64xf32> to vector<1x32x64xf32>
    tpu.vector_store %arg4[%c0_6, %c0_7, %c0_8], %9 {strides = array<i32>} : memref<1x32x64xf32, #tpu.memory_space<vmem>>, vector<1x32x64xf32>,
    return
  }
  func.func @transform_0(%arg0: i32) -> (i32, i32, i32) {
    %c0_i32 = arith.constant 0 : i32
    %c0_i32_0 = arith.constant 0 : i32
    %c0_i32_1 = arith.constant 0 : i32
    return %arg0, %c0_i32, %c0_i32_0 : i32, i32, i32
  }
  func.func @transform_1(%arg0: i32) -> (i32, i32) {
    %c0_i32 = arith.constant 0 : i32
    %c0_i32_0 = arith.constant 0 : i32
    %c0_i32_1 = arith.constant 0 : i32
    return %c0_i32, %c0_i32_0 : i32, i32
  }
  func.func @transform_2(%arg0: i32) -> (i32, i32) {
    %c0_i32 = arith.constant 0 : i32
    %c0_i32_0 = arith.constant 0 : i32
    %c0_i32_1 = arith.constant 0 : i32
    return %c0_i32, %c0_i32_0 : i32, i32
  }
  func.func @transform_3(%arg0: i32) -> (i32, i32, i32) {
    %c0_i32 = arith.constant 0 : i32
    %c0_i32_0 = arith.constant 0 : i32
    %c0_i32_1 = arith.constant 0 : i32
    return %arg0, %c0_i32, %c0_i32_0 : i32, i32, i32
  }
}

module attributes {stable_mosaic.version = 11 : i64} {
  func.func @kernel(%arg0: i32, %arg1: memref<1x1000xf32, #tpu.memory_space<vmem>>, %arg2: memref<1x4x1000xf32, #tpu.memory_space<vmem>>, %arg3: memref<1x4x1000xf32, #tpu.memory_space<vmem>>, %arg4: memref<4x216xbf16, #tpu.memory_space<vmem>>, %arg5: memref<4x1xf32, #tpu.memory_space<vmem>>, %arg6: memref<1x4x1000xf32, #tpu.memory_space<vmem>>, %arg7: memref<1x4x2xf32, #tpu.memory_space<vmem>>, %arg8: memref<216x1000xf32, #tpu.memory_space<vmem>>) attributes {dimension_semantics = [#tpu.dimension_semantics<parallel>], iteration_bounds = array<i64: 2>, scalar_prefetch = 0 : i64, scratch_operands = 1 : i64, tpu.core_type = #tpu.core_type<tc>, window_params = [{pipeline_mode = #tpu.pipeline_mode<synchronous>, transform_indices = @transform_0, window_bounds = array<i64: 1, 1000>}, {transform_indices = @transform_1, window_bounds = array<i64: 1, 4, 1000>}, {transform_indices = @transform_2, window_bounds = array<i64: 1, 4, 1000>}, {pipeline_mode = #tpu.pipeline_mode<synchronous>, transform_indices = @transform_3, window_bounds = array<i64: 4, 216>}, {pipeline_mode = #tpu.pipeline_mode<synchronous>, transform_indices = @transform_4, window_bounds = array<i64: 4, 1>}, {transform_indices = @transform_5, window_bounds = array<i64: 1, 4, 1000>}, {transform_indices = @transform_6, window_bounds = array<i64: 1, 4, 2>}]} {
    %c0 = arith.constant 0 : index
    %c0_0 = arith.constant 0 : index
    %0 = vector.load %arg1[%c0, %c0_0] : memref<1x1000xf32, #tpu.memory_space<vmem>>, vector<1x1000xf32>
    %c0_1 = arith.constant 0 : index
    %c0_2 = arith.constant 0 : index
    %c0_3 = arith.constant 0 : index
    %1 = vector.load %arg2[%c0_1, %c0_2, %c0_3] : memref<1x4x1000xf32, #tpu.memory_space<vmem>>, vector<1x4x1000xf32>
    %2 = vector.shape_cast %1 : vector<1x4x1000xf32> to vector<4x1000xf32>
    %3 = vector.extract_strided_slice %2 {offsets = [0, 889], sizes = [4, 111], strides = [1, 1]} : vector<4x1000xf32> to vector<4x111xf32>
    %4 = vector.extract_strided_slice %2 {offsets = [0, 0], sizes = [4, 889], strides = [1, 1]} : vector<4x1000xf32> to vector<4x889xf32>
    %5 = tpu.concatenate %3, %4 in 1 : vector<4x111xf32>, vector<4x889xf32> -> vector<4x1000xf32>
    %c0_4 = arith.constant 0 : index
    %c0_5 = arith.constant 0 : index
    %6 = vector.load %arg8[%c0_4, %c0_5] : memref<216x1000xf32, #tpu.memory_space<vmem>>, vector<4x1000xf32>
    tpu.vector_store %arg8[%c0_4, %c0_5], %5 {strides = array<i32>} : memref<216x1000xf32, #tpu.memory_space<vmem>>, vector<4x1000xf32>,
    %7 = vector.extract_strided_slice %2 {offsets = [0, 890], sizes = [4, 110], strides = [1, 1]} : vector<4x1000xf32> to vector<4x110xf32>
    %8 = vector.extract_strided_slice %2 {offsets = [0, 0], sizes = [4, 890], strides = [1, 1]} : vector<4x1000xf32> to vector<4x890xf32>
    %9 = tpu.concatenate %7, %8 in 1 : vector<4x110xf32>, vector<4x890xf32> -> vector<4x1000xf32>
    %c8 = arith.constant 8 : index
    %c0_6 = arith.constant 0 : index
    %10 = vector.load %arg8[%c8, %c0_6] : memref<216x1000xf32, #tpu.memory_space<vmem>>, vector<4x1000xf32>
    tpu.vector_store %arg8[%c8, %c0_6], %9 {strides = array<i32>} : memref<216x1000xf32, #tpu.memory_space<vmem>>, vector<4x1000xf32>,
    %11 = vector.extract_strided_slice %2 {offsets = [0, 891], sizes = [4, 109], strides = [1, 1]} : vector<4x1000xf32> to vector<4x109xf32>
    %12 = vector.extract_strided_slice %2 {offsets = [0, 0], sizes = [4, 891], strides = [1, 1]} : vector<4x1000xf32> to vector<4x891xf32>
    %13 = tpu.concatenate %11, %12 in 1 : vector<4x109xf32>, vector<4x891xf32> -> vector<4x1000xf32>
    %c16 = arith.constant 16 : index
    %c0_7 = arith.constant 0 : index
    %14 = vector.load %arg8[%c16, %c0_7] : memref<216x1000xf32, #tpu.memory_space<vmem>>, vector<4x1000xf32>
    tpu.vector_store %arg8[%c16, %c0_7], %13 {strides = array<i32>} : memref<216x1000xf32, #tpu.memory_space<vmem>>, vector<4x1000xf32>,
    %15 = vector.extract_strided_slice %2 {offsets = [0, 899], sizes = [4, 101], strides = [1, 1]} : vector<4x1000xf32> to vector<4x101xf32>
    %16 = vector.extract_strided_slice %2 {offsets = [0, 0], sizes = [4, 899], strides = [1, 1]} : vector<4x1000xf32> to vector<4x899xf32>
    %17 = tpu.concatenate %15, %16 in 1 : vector<4x101xf32>, vector<4x899xf32> -> vector<4x1000xf32>
    %c24 = arith.constant 24 : index
    %c0_8 = arith.constant 0 : index
    %18 = vector.load %arg8[%c24, %c0_8] : memref<216x1000xf32, #tpu.memory_space<vmem>>, vector<4x1000xf32>
    tpu.vector_store %arg8[%c24, %c0_8], %17 {strides = array<i32>} : memref<216x1000xf32, #tpu.memory_space<vmem>>, vector<4x1000xf32>,
    %19 = vector.extract_strided_slice %2 {offsets = [0, 900], sizes = [4, 100], strides = [1, 1]} : vector<4x1000xf32> to vector<4x100xf32>
    %20 = vector.extract_strided_slice %2 {offsets = [0, 0], sizes = [4, 900], strides = [1, 1]} : vector<4x1000xf32> to vector<4x900xf32>
    %21 = tpu.concatenate %19, %20 in 1 : vector<4x100xf32>, vector<4x900xf32> -> vector<4x1000xf32>
    %c32 = arith.constant 32 : index
    %c0_9 = arith.constant 0 : index
    %22 = vector.load %arg8[%c32, %c0_9] : memref<216x1000xf32, #tpu.memory_space<vmem>>, vector<4x1000xf32>
    tpu.vector_store %arg8[%c32, %c0_9], %21 {strides = array<i32>} : memref<216x1000xf32, #tpu.memory_space<vmem>>, vector<4x1000xf32>,
    %23 = vector.extract_strided_slice %2 {offsets = [0, 901], sizes = [4, 99], strides = [1, 1]} : vector<4x1000xf32> to vector<4x99xf32>
    %24 = vector.extract_strided_slice %2 {offsets = [0, 0], sizes = [4, 901], strides = [1, 1]} : vector<4x1000xf32> to vector<4x901xf32>
    %25 = tpu.concatenate %23, %24 in 1 : vector<4x99xf32>, vector<4x901xf32> -> vector<4x1000xf32>
    %c40 = arith.constant 40 : index
    %c0_10 = arith.constant 0 : index
    %26 = vector.load %arg8[%c40, %c0_10] : memref<216x1000xf32, #tpu.memory_space<vmem>>, vector<4x1000xf32>
    tpu.vector_store %arg8[%c40, %c0_10], %25 {strides = array<i32>} : memref<216x1000xf32, #tpu.memory_space<vmem>>, vector<4x1000xf32>,
    %27 = vector.extract_strided_slice %2 {offsets = [0, 909], sizes = [4, 91], strides = [1, 1]} : vector<4x1000xf32> to vector<4x91xf32>
    %28 = vector.extract_strided_slice %2 {offsets = [0, 0], sizes = [4, 909], strides = [1, 1]} : vector<4x1000xf32> to vector<4x909xf32>
    %29 = tpu.concatenate %27, %28 in 1 : vector<4x91xf32>, vector<4x909xf32> -> vector<4x1000xf32>
    %c48 = arith.constant 48 : index
    %c0_11 = arith.constant 0 : index
    %30 = vector.load %arg8[%c48, %c0_11] : memref<216x1000xf32, #tpu.memory_space<vmem>>, vector<4x1000xf32>
    tpu.vector_store %arg8[%c48, %c0_11], %29 {strides = array<i32>} : memref<216x1000xf32, #tpu.memory_space<vmem>>, vector<4x1000xf32>,
    %31 = vector.extract_strided_slice %2 {offsets = [0, 910], sizes = [4, 90], strides = [1, 1]} : vector<4x1000xf32> to vector<4x90xf32>
    %32 = vector.extract_strided_slice %2 {offsets = [0, 0], sizes = [4, 910], strides = [1, 1]} : vector<4x1000xf32> to vector<4x910xf32>
    %33 = tpu.concatenate %31, %32 in 1 : vector<4x90xf32>, vector<4x910xf32> -> vector<4x1000xf32>
    %c56 = arith.constant 56 : index
    %c0_12 = arith.constant 0 : index
    %34 = vector.load %arg8[%c56, %c0_12] : memref<216x1000xf32, #tpu.memory_space<vmem>>, vector<4x1000xf32>
    tpu.vector_store %arg8[%c56, %c0_12], %33 {strides = array<i32>} : memref<216x1000xf32, #tpu.memory_space<vmem>>, vector<4x1000xf32>,
    %35 = vector.extract_strided_slice %2 {offsets = [0, 911], sizes = [4, 89], strides = [1, 1]} : vector<4x1000xf32> to vector<4x89xf32>
    %36 = vector.extract_strided_slice %2 {offsets = [0, 0], sizes = [4, 911], strides = [1, 1]} : vector<4x1000xf32> to vector<4x911xf32>
    %37 = tpu.concatenate %35, %36 in 1 : vector<4x89xf32>, vector<4x911xf32> -> vector<4x1000xf32>
    %c64 = arith.constant 64 : index
    %c0_13 = arith.constant 0 : index
    %38 = vector.load %arg8[%c64, %c0_13] : memref<216x1000xf32, #tpu.memory_space<vmem>>, vector<4x1000xf32>
    tpu.vector_store %arg8[%c64, %c0_13], %37 {strides = array<i32>} : memref<216x1000xf32, #tpu.memory_space<vmem>>, vector<4x1000xf32>,
    %39 = vector.extract_strided_slice %2 {offsets = [0, 989], sizes = [4, 11], strides = [1, 1]} : vector<4x1000xf32> to vector<4x11xf32>
    %40 = vector.extract_strided_slice %2 {offsets = [0, 0], sizes = [4, 989], strides = [1, 1]} : vector<4x1000xf32> to vector<4x989xf32>
    %41 = tpu.concatenate %39, %40 in 1 : vector<4x11xf32>, vector<4x989xf32> -> vector<4x1000xf32>
    %c72 = arith.constant 72 : index
    %c0_14 = arith.constant 0 : index
    %42 = vector.load %arg8[%c72, %c0_14] : memref<216x1000xf32, #tpu.memory_space<vmem>>, vector<4x1000xf32>
    tpu.vector_store %arg8[%c72, %c0_14], %41 {strides = array<i32>} : memref<216x1000xf32, #tpu.memory_space<vmem>>, vector<4x1000xf32>,
    %43 = vector.extract_strided_slice %2 {offsets = [0, 990], sizes = [4, 10], strides = [1, 1]} : vector<4x1000xf32> to vector<4x10xf32>
    %44 = vector.extract_strided_slice %2 {offsets = [0, 0], sizes = [4, 990], strides = [1, 1]} : vector<4x1000xf32> to vector<4x990xf32>
    %45 = tpu.concatenate %43, %44 in 1 : vector<4x10xf32>, vector<4x990xf32> -> vector<4x1000xf32>
    %c80 = arith.constant 80 : index
    %c0_15 = arith.constant 0 : index
    %46 = vector.load %arg8[%c80, %c0_15] : memref<216x1000xf32, #tpu.memory_space<vmem>>, vector<4x1000xf32>
    tpu.vector_store %arg8[%c80, %c0_15], %45 {strides = array<i32>} : memref<216x1000xf32, #tpu.memory_space<vmem>>, vector<4x1000xf32>,
    %47 = vector.extract_strided_slice %2 {offsets = [0, 991], sizes = [4, 9], strides = [1, 1]} : vector<4x1000xf32> to vector<4x9xf32>
    %48 = vector.extract_strided_slice %2 {offsets = [0, 0], sizes = [4, 991], strides = [1, 1]} : vector<4x1000xf32> to vector<4x991xf32>
    %49 = tpu.concatenate %47, %48 in 1 : vector<4x9xf32>, vector<4x991xf32> -> vector<4x1000xf32>
    %c88 = arith.constant 88 : index
    %c0_16 = arith.constant 0 : index
    %50 = vector.load %arg8[%c88, %c0_16] : memref<216x1000xf32, #tpu.memory_space<vmem>>, vector<4x1000xf32>
    tpu.vector_store %arg8[%c88, %c0_16], %49 {strides = array<i32>} : memref<216x1000xf32, #tpu.memory_space<vmem>>, vector<4x1000xf32>,
    %51 = vector.extract_strided_slice %2 {offsets = [0, 999], sizes = [4, 1], strides = [1, 1]} : vector<4x1000xf32> to vector<4x1xf32>
    %52 = vector.extract_strided_slice %2 {offsets = [0, 0], sizes = [4, 999], strides = [1, 1]} : vector<4x1000xf32> to vector<4x999xf32>
    %53 = tpu.concatenate %51, %52 in 1 : vector<4x1xf32>, vector<4x999xf32> -> vector<4x1000xf32>
    %c96 = arith.constant 96 : index
    %c0_17 = arith.constant 0 : index
    %54 = vector.load %arg8[%c96, %c0_17] : memref<216x1000xf32, #tpu.memory_space<vmem>>, vector<4x1000xf32>
    tpu.vector_store %arg8[%c96, %c0_17], %53 {strides = array<i32>} : memref<216x1000xf32, #tpu.memory_space<vmem>>, vector<4x1000xf32>,
    %c104 = arith.constant 104 : index
    %c0_18 = arith.constant 0 : index
    %55 = vector.load %arg8[%c104, %c0_18] : memref<216x1000xf32, #tpu.memory_space<vmem>>, vector<4x1000xf32>
    tpu.vector_store %arg8[%c104, %c0_18], %2 {strides = array<i32>} : memref<216x1000xf32, #tpu.memory_space<vmem>>, vector<4x1000xf32>,
    %56 = vector.extract_strided_slice %2 {offsets = [0, 1], sizes = [4, 999], strides = [1, 1]} : vector<4x1000xf32> to vector<4x999xf32>
    %57 = vector.extract_strided_slice %2 {offsets = [0, 0], sizes = [4, 1], strides = [1, 1]} : vector<4x1000xf32> to vector<4x1xf32>
    %58 = tpu.concatenate %56, %57 in 1 : vector<4x999xf32>, vector<4x1xf32> -> vector<4x1000xf32>
    %c112 = arith.constant 112 : index
    %c0_19 = arith.constant 0 : index
    %59 = vector.load %arg8[%c112, %c0_19] : memref<216x1000xf32, #tpu.memory_space<vmem>>, vector<4x1000xf32>
    tpu.vector_store %arg8[%c112, %c0_19], %58 {strides = array<i32>} : memref<216x1000xf32, #tpu.memory_space<vmem>>, vector<4x1000xf32>,
    %60 = vector.extract_strided_slice %2 {offsets = [0, 9], sizes = [4, 991], strides = [1, 1]} : vector<4x1000xf32> to vector<4x991xf32>
    %61 = vector.extract_strided_slice %2 {offsets = [0, 0], sizes = [4, 9], strides = [1, 1]} : vector<4x1000xf32> to vector<4x9xf32>
    %62 = tpu.concatenate %60, %61 in 1 : vector<4x991xf32>, vector<4x9xf32> -> vector<4x1000xf32>
    %c120 = arith.constant 120 : index
    %c0_20 = arith.constant 0 : index
    %63 = vector.load %arg8[%c120, %c0_20] : memref<216x1000xf32, #tpu.memory_space<vmem>>, vector<4x1000xf32>
    tpu.vector_store %arg8[%c120, %c0_20], %62 {strides = array<i32>} : memref<216x1000xf32, #tpu.memory_space<vmem>>, vector<4x1000xf32>,
    %64 = vector.extract_strided_slice %2 {offsets = [0, 10], sizes = [4, 990], strides = [1, 1]} : vector<4x1000xf32> to vector<4x990xf32>
    %65 = vector.extract_strided_slice %2 {offsets = [0, 0], sizes = [4, 10], strides = [1, 1]} : vector<4x1000xf32> to vector<4x10xf32>
    %66 = tpu.concatenate %64, %65 in 1 : vector<4x990xf32>, vector<4x10xf32> -> vector<4x1000xf32>
    %c128 = arith.constant 128 : index
    %c0_21 = arith.constant 0 : index
    %67 = vector.load %arg8[%c128, %c0_21] : memref<216x1000xf32, #tpu.memory_space<vmem>>, vector<4x1000xf32>
    tpu.vector_store %arg8[%c128, %c0_21], %66 {strides = array<i32>} : memref<216x1000xf32, #tpu.memory_space<vmem>>, vector<4x1000xf32>,
    %68 = vector.extract_strided_slice %2 {offsets = [0, 11], sizes = [4, 989], strides = [1, 1]} : vector<4x1000xf32> to vector<4x989xf32>
    %69 = vector.extract_strided_slice %2 {offsets = [0, 0], sizes = [4, 11], strides = [1, 1]} : vector<4x1000xf32> to vector<4x11xf32>
    %70 = tpu.concatenate %68, %69 in 1 : vector<4x989xf32>, vector<4x11xf32> -> vector<4x1000xf32>
    %c136 = arith.constant 136 : index
    %c0_22 = arith.constant 0 : index
    %71 = vector.load %arg8[%c136, %c0_22] : memref<216x1000xf32, #tpu.memory_space<vmem>>, vector<4x1000xf32>
    tpu.vector_store %arg8[%c136, %c0_22], %70 {strides = array<i32>} : memref<216x1000xf32, #tpu.memory_space<vmem>>, vector<4x1000xf32>,
    %72 = vector.extract_strided_slice %2 {offsets = [0, 89], sizes = [4, 911], strides = [1, 1]} : vector<4x1000xf32> to vector<4x911xf32>
    %73 = vector.extract_strided_slice %2 {offsets = [0, 0], sizes = [4, 89], strides = [1, 1]} : vector<4x1000xf32> to vector<4x89xf32>
    %74 = tpu.concatenate %72, %73 in 1 : vector<4x911xf32>, vector<4x89xf32> -> vector<4x1000xf32>
    %c144 = arith.constant 144 : index
    %c0_23 = arith.constant 0 : index
    %75 = vector.load %arg8[%c144, %c0_23] : memref<216x1000xf32, #tpu.memory_space<vmem>>, vector<4x1000xf32>
    tpu.vector_store %arg8[%c144, %c0_23], %74 {strides = array<i32>} : memref<216x1000xf32, #tpu.memory_space<vmem>>, vector<4x1000xf32>,
    %76 = vector.extract_strided_slice %2 {offsets = [0, 90], sizes = [4, 910], strides = [1, 1]} : vector<4x1000xf32> to vector<4x910xf32>
    %77 = vector.extract_strided_slice %2 {offsets = [0, 0], sizes = [4, 90], strides = [1, 1]} : vector<4x1000xf32> to vector<4x90xf32>
    %78 = tpu.concatenate %76, %77 in 1 : vector<4x910xf32>, vector<4x90xf32> -> vector<4x1000xf32>
    %c152 = arith.constant 152 : index
    %c0_24 = arith.constant 0 : index
    %79 = vector.load %arg8[%c152, %c0_24] : memref<216x1000xf32, #tpu.memory_space<vmem>>, vector<4x1000xf32>
    tpu.vector_store %arg8[%c152, %c0_24], %78 {strides = array<i32>} : memref<216x1000xf32, #tpu.memory_space<vmem>>, vector<4x1000xf32>,
    %80 = vector.extract_strided_slice %2 {offsets = [0, 91], sizes = [4, 909], strides = [1, 1]} : vector<4x1000xf32> to vector<4x909xf32>
    %81 = vector.extract_strided_slice %2 {offsets = [0, 0], sizes = [4, 91], strides = [1, 1]} : vector<4x1000xf32> to vector<4x91xf32>
    %82 = tpu.concatenate %80, %81 in 1 : vector<4x909xf32>, vector<4x91xf32> -> vector<4x1000xf32>
    %c160 = arith.constant 160 : index
    %c0_25 = arith.constant 0 : index
    %83 = vector.load %arg8[%c160, %c0_25] : memref<216x1000xf32, #tpu.memory_space<vmem>>, vector<4x1000xf32>
    tpu.vector_store %arg8[%c160, %c0_25], %82 {strides = array<i32>} : memref<216x1000xf32, #tpu.memory_space<vmem>>, vector<4x1000xf32>,
    %84 = vector.extract_strided_slice %2 {offsets = [0, 99], sizes = [4, 901], strides = [1, 1]} : vector<4x1000xf32> to vector<4x901xf32>
    %85 = vector.extract_strided_slice %2 {offsets = [0, 0], sizes = [4, 99], strides = [1, 1]} : vector<4x1000xf32> to vector<4x99xf32>
    %86 = tpu.concatenate %84, %85 in 1 : vector<4x901xf32>, vector<4x99xf32> -> vector<4x1000xf32>
    %c168 = arith.constant 168 : index
    %c0_26 = arith.constant 0 : index
    %87 = vector.load %arg8[%c168, %c0_26] : memref<216x1000xf32, #tpu.memory_space<vmem>>, vector<4x1000xf32>
    tpu.vector_store %arg8[%c168, %c0_26], %86 {strides = array<i32>} : memref<216x1000xf32, #tpu.memory_space<vmem>>, vector<4x1000xf32>,
    %88 = vector.extract_strided_slice %2 {offsets = [0, 100], sizes = [4, 900], strides = [1, 1]} : vector<4x1000xf32> to vector<4x900xf32>
    %89 = vector.extract_strided_slice %2 {offsets = [0, 0], sizes = [4, 100], strides = [1, 1]} : vector<4x1000xf32> to vector<4x100xf32>
    %90 = tpu.concatenate %88, %89 in 1 : vector<4x900xf32>, vector<4x100xf32> -> vector<4x1000xf32>
    %c176 = arith.constant 176 : index
    %c0_27 = arith.constant 0 : index
    %91 = vector.load %arg8[%c176, %c0_27] : memref<216x1000xf32, #tpu.memory_space<vmem>>, vector<4x1000xf32>
    tpu.vector_store %arg8[%c176, %c0_27], %90 {strides = array<i32>} : memref<216x1000xf32, #tpu.memory_space<vmem>>, vector<4x1000xf32>,
    %92 = vector.extract_strided_slice %2 {offsets = [0, 101], sizes = [4, 899], strides = [1, 1]} : vector<4x1000xf32> to vector<4x899xf32>
    %93 = vector.extract_strided_slice %2 {offsets = [0, 0], sizes = [4, 101], strides = [1, 1]} : vector<4x1000xf32> to vector<4x101xf32>
    %94 = tpu.concatenate %92, %93 in 1 : vector<4x899xf32>, vector<4x101xf32> -> vector<4x1000xf32>
    %c184 = arith.constant 184 : index
    %c0_28 = arith.constant 0 : index
    %95 = vector.load %arg8[%c184, %c0_28] : memref<216x1000xf32, #tpu.memory_space<vmem>>, vector<4x1000xf32>
    tpu.vector_store %arg8[%c184, %c0_28], %94 {strides = array<i32>} : memref<216x1000xf32, #tpu.memory_space<vmem>>, vector<4x1000xf32>,
    %96 = vector.extract_strided_slice %2 {offsets = [0, 109], sizes = [4, 891], strides = [1, 1]} : vector<4x1000xf32> to vector<4x891xf32>
    %97 = vector.extract_strided_slice %2 {offsets = [0, 0], sizes = [4, 109], strides = [1, 1]} : vector<4x1000xf32> to vector<4x109xf32>
    %98 = tpu.concatenate %96, %97 in 1 : vector<4x891xf32>, vector<4x109xf32> -> vector<4x1000xf32>
    %c192 = arith.constant 192 : index
    %c0_29 = arith.constant 0 : index
    %99 = vector.load %arg8[%c192, %c0_29] : memref<216x1000xf32, #tpu.memory_space<vmem>>, vector<4x1000xf32>
    tpu.vector_store %arg8[%c192, %c0_29], %98 {strides = array<i32>} : memref<216x1000xf32, #tpu.memory_space<vmem>>, vector<4x1000xf32>,
    %100 = vector.extract_strided_slice %2 {offsets = [0, 110], sizes = [4, 890], strides = [1, 1]} : vector<4x1000xf32> to vector<4x890xf32>
    %101 = vector.extract_strided_slice %2 {offsets = [0, 0], sizes = [4, 110], strides = [1, 1]} : vector<4x1000xf32> to vector<4x110xf32>
    %102 = tpu.concatenate %100, %101 in 1 : vector<4x890xf32>, vector<4x110xf32> -> vector<4x1000xf32>
    %c200 = arith.constant 200 : index
    %c0_30 = arith.constant 0 : index
    %103 = vector.load %arg8[%c200, %c0_30] : memref<216x1000xf32, #tpu.memory_space<vmem>>, vector<4x1000xf32>
    tpu.vector_store %arg8[%c200, %c0_30], %102 {strides = array<i32>} : memref<216x1000xf32, #tpu.memory_space<vmem>>, vector<4x1000xf32>,
    %104 = vector.extract_strided_slice %2 {offsets = [0, 111], sizes = [4, 889], strides = [1, 1]} : vector<4x1000xf32> to vector<4x889xf32>
    %105 = vector.extract_strided_slice %2 {offsets = [0, 0], sizes = [4, 111], strides = [1, 1]} : vector<4x1000xf32> to vector<4x111xf32>
    %106 = tpu.concatenate %104, %105 in 1 : vector<4x889xf32>, vector<4x111xf32> -> vector<4x1000xf32>
    %c208 = arith.constant 208 : index
    %c0_31 = arith.constant 0 : index
    %107 = vector.load %arg8[%c208, %c0_31] : memref<216x1000xf32, #tpu.memory_space<vmem>>, vector<4x1000xf32>
    tpu.vector_store %arg8[%c208, %c0_31], %106 {strides = array<i32>} : memref<216x1000xf32, #tpu.memory_space<vmem>>, vector<4x1000xf32>,
    %c0_32 = arith.constant 0 : index
    %c0_33 = arith.constant 0 : index
    %c0_34 = arith.constant 0 : index
    %108 = vector.load %arg3[%c0_32, %c0_33, %c0_34] : memref<1x4x1000xf32, #tpu.memory_space<vmem>>, vector<1x4x1000xf32>
    %109 = vector.shape_cast %108 : vector<1x4x1000xf32> to vector<4x1000xf32>
    %110 = vector.extract_strided_slice %109 {offsets = [0, 889], sizes = [4, 111], strides = [1, 1]} : vector<4x1000xf32> to vector<4x111xf32>
    %111 = vector.extract_strided_slice %109 {offsets = [0, 0], sizes = [4, 889], strides = [1, 1]} : vector<4x1000xf32> to vector<4x889xf32>
    %112 = tpu.concatenate %110, %111 in 1 : vector<4x111xf32>, vector<4x889xf32> -> vector<4x1000xf32>
    %c4 = arith.constant 4 : index
    %c0_35 = arith.constant 0 : index
    %113 = vector.load %arg8[%c4, %c0_35] : memref<216x1000xf32, #tpu.memory_space<vmem>>, vector<4x1000xf32>
    tpu.vector_store %arg8[%c4, %c0_35], %112 {strides = array<i32>} : memref<216x1000xf32, #tpu.memory_space<vmem>>, vector<4x1000xf32>,
    %114 = vector.extract_strided_slice %109 {offsets = [0, 890], sizes = [4, 110], strides = [1, 1]} : vector<4x1000xf32> to vector<4x110xf32>
    %115 = vector.extract_strided_slice %109 {offsets = [0, 0], sizes = [4, 890], strides = [1, 1]} : vector<4x1000xf32> to vector<4x890xf32>
    %116 = tpu.concatenate %114, %115 in 1 : vector<4x110xf32>, vector<4x890xf32> -> vector<4x1000xf32>
    %c12 = arith.constant 12 : index
    %c0_36 = arith.constant 0 : index
    %117 = vector.load %arg8[%c12, %c0_36] : memref<216x1000xf32, #tpu.memory_space<vmem>>, vector<4x1000xf32>
    tpu.vector_store %arg8[%c12, %c0_36], %116 {strides = array<i32>} : memref<216x1000xf32, #tpu.memory_space<vmem>>, vector<4x1000xf32>,
    %118 = vector.extract_strided_slice %109 {offsets = [0, 891], sizes = [4, 109], strides = [1, 1]} : vector<4x1000xf32> to vector<4x109xf32>
    %119 = vector.extract_strided_slice %109 {offsets = [0, 0], sizes = [4, 891], strides = [1, 1]} : vector<4x1000xf32> to vector<4x891xf32>
    %120 = tpu.concatenate %118, %119 in 1 : vector<4x109xf32>, vector<4x891xf32> -> vector<4x1000xf32>
    %c20 = arith.constant 20 : index
    %c0_37 = arith.constant 0 : index
    %121 = vector.load %arg8[%c20, %c0_37] : memref<216x1000xf32, #tpu.memory_space<vmem>>, vector<4x1000xf32>
    tpu.vector_store %arg8[%c20, %c0_37], %120 {strides = array<i32>} : memref<216x1000xf32, #tpu.memory_space<vmem>>, vector<4x1000xf32>,
    %122 = vector.extract_strided_slice %109 {offsets = [0, 899], sizes = [4, 101], strides = [1, 1]} : vector<4x1000xf32> to vector<4x101xf32>
    %123 = vector.extract_strided_slice %109 {offsets = [0, 0], sizes = [4, 899], strides = [1, 1]} : vector<4x1000xf32> to vector<4x899xf32>
    %124 = tpu.concatenate %122, %123 in 1 : vector<4x101xf32>, vector<4x899xf32> -> vector<4x1000xf32>
    %c28 = arith.constant 28 : index
    %c0_38 = arith.constant 0 : index
    %125 = vector.load %arg8[%c28, %c0_38] : memref<216x1000xf32, #tpu.memory_space<vmem>>, vector<4x1000xf32>
    tpu.vector_store %arg8[%c28, %c0_38], %124 {strides = array<i32>} : memref<216x1000xf32, #tpu.memory_space<vmem>>, vector<4x1000xf32>,
    %126 = vector.extract_strided_slice %109 {offsets = [0, 900], sizes = [4, 100], strides = [1, 1]} : vector<4x1000xf32> to vector<4x100xf32>
    %127 = vector.extract_strided_slice %109 {offsets = [0, 0], sizes = [4, 900], strides = [1, 1]} : vector<4x1000xf32> to vector<4x900xf32>
    %128 = tpu.concatenate %126, %127 in 1 : vector<4x100xf32>, vector<4x900xf32> -> vector<4x1000xf32>
    %c36 = arith.constant 36 : index
    %c0_39 = arith.constant 0 : index
    %129 = vector.load %arg8[%c36, %c0_39] : memref<216x1000xf32, #tpu.memory_space<vmem>>, vector<4x1000xf32>
    tpu.vector_store %arg8[%c36, %c0_39], %128 {strides = array<i32>} : memref<216x1000xf32, #tpu.memory_space<vmem>>, vector<4x1000xf32>,
    %130 = vector.extract_strided_slice %109 {offsets = [0, 901], sizes = [4, 99], strides = [1, 1]} : vector<4x1000xf32> to vector<4x99xf32>
    %131 = vector.extract_strided_slice %109 {offsets = [0, 0], sizes = [4, 901], strides = [1, 1]} : vector<4x1000xf32> to vector<4x901xf32>
    %132 = tpu.concatenate %130, %131 in 1 : vector<4x99xf32>, vector<4x901xf32> -> vector<4x1000xf32>
    %c44 = arith.constant 44 : index
    %c0_40 = arith.constant 0 : index
    %133 = vector.load %arg8[%c44, %c0_40] : memref<216x1000xf32, #tpu.memory_space<vmem>>, vector<4x1000xf32>
    tpu.vector_store %arg8[%c44, %c0_40], %132 {strides = array<i32>} : memref<216x1000xf32, #tpu.memory_space<vmem>>, vector<4x1000xf32>,
    %134 = vector.extract_strided_slice %109 {offsets = [0, 909], sizes = [4, 91], strides = [1, 1]} : vector<4x1000xf32> to vector<4x91xf32>
    %135 = vector.extract_strided_slice %109 {offsets = [0, 0], sizes = [4, 909], strides = [1, 1]} : vector<4x1000xf32> to vector<4x909xf32>
    %136 = tpu.concatenate %134, %135 in 1 : vector<4x91xf32>, vector<4x909xf32> -> vector<4x1000xf32>
    %c52 = arith.constant 52 : index
    %c0_41 = arith.constant 0 : index
    %137 = vector.load %arg8[%c52, %c0_41] : memref<216x1000xf32, #tpu.memory_space<vmem>>, vector<4x1000xf32>
    tpu.vector_store %arg8[%c52, %c0_41], %136 {strides = array<i32>} : memref<216x1000xf32, #tpu.memory_space<vmem>>, vector<4x1000xf32>,
    %138 = vector.extract_strided_slice %109 {offsets = [0, 910], sizes = [4, 90], strides = [1, 1]} : vector<4x1000xf32> to vector<4x90xf32>
    %139 = vector.extract_strided_slice %109 {offsets = [0, 0], sizes = [4, 910], strides = [1, 1]} : vector<4x1000xf32> to vector<4x910xf32>
    %140 = tpu.concatenate %138, %139 in 1 : vector<4x90xf32>, vector<4x910xf32> -> vector<4x1000xf32>
    %c60 = arith.constant 60 : index
    %c0_42 = arith.constant 0 : index
    %141 = vector.load %arg8[%c60, %c0_42] : memref<216x1000xf32, #tpu.memory_space<vmem>>, vector<4x1000xf32>
    tpu.vector_store %arg8[%c60, %c0_42], %140 {strides = array<i32>} : memref<216x1000xf32, #tpu.memory_space<vmem>>, vector<4x1000xf32>,
    %142 = vector.extract_strided_slice %109 {offsets = [0, 911], sizes = [4, 89], strides = [1, 1]} : vector<4x1000xf32> to vector<4x89xf32>
    %143 = vector.extract_strided_slice %109 {offsets = [0, 0], sizes = [4, 911], strides = [1, 1]} : vector<4x1000xf32> to vector<4x911xf32>
    %144 = tpu.concatenate %142, %143 in 1 : vector<4x89xf32>, vector<4x911xf32> -> vector<4x1000xf32>
    %c68 = arith.constant 68 : index
    %c0_43 = arith.constant 0 : index
    %145 = vector.load %arg8[%c68, %c0_43] : memref<216x1000xf32, #tpu.memory_space<vmem>>, vector<4x1000xf32>
    tpu.vector_store %arg8[%c68, %c0_43], %144 {strides = array<i32>} : memref<216x1000xf32, #tpu.memory_space<vmem>>, vector<4x1000xf32>,
    %146 = vector.extract_strided_slice %109 {offsets = [0, 989], sizes = [4, 11], strides = [1, 1]} : vector<4x1000xf32> to vector<4x11xf32>
    %147 = vector.extract_strided_slice %109 {offsets = [0, 0], sizes = [4, 989], strides = [1, 1]} : vector<4x1000xf32> to vector<4x989xf32>
    %148 = tpu.concatenate %146, %147 in 1 : vector<4x11xf32>, vector<4x989xf32> -> vector<4x1000xf32>
    %c76 = arith.constant 76 : index
    %c0_44 = arith.constant 0 : index
    %149 = vector.load %arg8[%c76, %c0_44] : memref<216x1000xf32, #tpu.memory_space<vmem>>, vector<4x1000xf32>
    tpu.vector_store %arg8[%c76, %c0_44], %148 {strides = array<i32>} : memref<216x1000xf32, #tpu.memory_space<vmem>>, vector<4x1000xf32>,
    %150 = vector.extract_strided_slice %109 {offsets = [0, 990], sizes = [4, 10], strides = [1, 1]} : vector<4x1000xf32> to vector<4x10xf32>
    %151 = vector.extract_strided_slice %109 {offsets = [0, 0], sizes = [4, 990], strides = [1, 1]} : vector<4x1000xf32> to vector<4x990xf32>
    %152 = tpu.concatenate %150, %151 in 1 : vector<4x10xf32>, vector<4x990xf32> -> vector<4x1000xf32>
    %c84 = arith.constant 84 : index
    %c0_45 = arith.constant 0 : index
    %153 = vector.load %arg8[%c84, %c0_45] : memref<216x1000xf32, #tpu.memory_space<vmem>>, vector<4x1000xf32>
    tpu.vector_store %arg8[%c84, %c0_45], %152 {strides = array<i32>} : memref<216x1000xf32, #tpu.memory_space<vmem>>, vector<4x1000xf32>,
    %154 = vector.extract_strided_slice %109 {offsets = [0, 991], sizes = [4, 9], strides = [1, 1]} : vector<4x1000xf32> to vector<4x9xf32>
    %155 = vector.extract_strided_slice %109 {offsets = [0, 0], sizes = [4, 991], strides = [1, 1]} : vector<4x1000xf32> to vector<4x991xf32>
    %156 = tpu.concatenate %154, %155 in 1 : vector<4x9xf32>, vector<4x991xf32> -> vector<4x1000xf32>
    %c92 = arith.constant 92 : index
    %c0_46 = arith.constant 0 : index
    %157 = vector.load %arg8[%c92, %c0_46] : memref<216x1000xf32, #tpu.memory_space<vmem>>, vector<4x1000xf32>
    tpu.vector_store %arg8[%c92, %c0_46], %156 {strides = array<i32>} : memref<216x1000xf32, #tpu.memory_space<vmem>>, vector<4x1000xf32>,
    %158 = vector.extract_strided_slice %109 {offsets = [0, 999], sizes = [4, 1], strides = [1, 1]} : vector<4x1000xf32> to vector<4x1xf32>
    %159 = vector.extract_strided_slice %109 {offsets = [0, 0], sizes = [4, 999], strides = [1, 1]} : vector<4x1000xf32> to vector<4x999xf32>
    %160 = tpu.concatenate %158, %159 in 1 : vector<4x1xf32>, vector<4x999xf32> -> vector<4x1000xf32>
    %c100 = arith.constant 100 : index
    %c0_47 = arith.constant 0 : index
    %161 = vector.load %arg8[%c100, %c0_47] : memref<216x1000xf32, #tpu.memory_space<vmem>>, vector<4x1000xf32>
    tpu.vector_store %arg8[%c100, %c0_47], %160 {strides = array<i32>} : memref<216x1000xf32, #tpu.memory_space<vmem>>, vector<4x1000xf32>,
    %c108 = arith.constant 108 : index
    %c0_48 = arith.constant 0 : index
    %162 = vector.load %arg8[%c108, %c0_48] : memref<216x1000xf32, #tpu.memory_space<vmem>>, vector<4x1000xf32>
    tpu.vector_store %arg8[%c108, %c0_48], %109 {strides = array<i32>} : memref<216x1000xf32, #tpu.memory_space<vmem>>, vector<4x1000xf32>,
    %163 = vector.extract_strided_slice %109 {offsets = [0, 1], sizes = [4, 999], strides = [1, 1]} : vector<4x1000xf32> to vector<4x999xf32>
    %164 = vector.extract_strided_slice %109 {offsets = [0, 0], sizes = [4, 1], strides = [1, 1]} : vector<4x1000xf32> to vector<4x1xf32>
    %165 = tpu.concatenate %163, %164 in 1 : vector<4x999xf32>, vector<4x1xf32> -> vector<4x1000xf32>
    %c116 = arith.constant 116 : index
    %c0_49 = arith.constant 0 : index
    %166 = vector.load %arg8[%c116, %c0_49] : memref<216x1000xf32, #tpu.memory_space<vmem>>, vector<4x1000xf32>
    tpu.vector_store %arg8[%c116, %c0_49], %165 {strides = array<i32>} : memref<216x1000xf32, #tpu.memory_space<vmem>>, vector<4x1000xf32>,
    %167 = vector.extract_strided_slice %109 {offsets = [0, 9], sizes = [4, 991], strides = [1, 1]} : vector<4x1000xf32> to vector<4x991xf32>
    %168 = vector.extract_strided_slice %109 {offsets = [0, 0], sizes = [4, 9], strides = [1, 1]} : vector<4x1000xf32> to vector<4x9xf32>
    %169 = tpu.concatenate %167, %168 in 1 : vector<4x991xf32>, vector<4x9xf32> -> vector<4x1000xf32>
    %c124 = arith.constant 124 : index
    %c0_50 = arith.constant 0 : index
    %170 = vector.load %arg8[%c124, %c0_50] : memref<216x1000xf32, #tpu.memory_space<vmem>>, vector<4x1000xf32>
    tpu.vector_store %arg8[%c124, %c0_50], %169 {strides = array<i32>} : memref<216x1000xf32, #tpu.memory_space<vmem>>, vector<4x1000xf32>,
    %171 = vector.extract_strided_slice %109 {offsets = [0, 10], sizes = [4, 990], strides = [1, 1]} : vector<4x1000xf32> to vector<4x990xf32>
    %172 = vector.extract_strided_slice %109 {offsets = [0, 0], sizes = [4, 10], strides = [1, 1]} : vector<4x1000xf32> to vector<4x10xf32>
    %173 = tpu.concatenate %171, %172 in 1 : vector<4x990xf32>, vector<4x10xf32> -> vector<4x1000xf32>
    %c132 = arith.constant 132 : index
    %c0_51 = arith.constant 0 : index
    %174 = vector.load %arg8[%c132, %c0_51] : memref<216x1000xf32, #tpu.memory_space<vmem>>, vector<4x1000xf32>
    tpu.vector_store %arg8[%c132, %c0_51], %173 {strides = array<i32>} : memref<216x1000xf32, #tpu.memory_space<vmem>>, vector<4x1000xf32>,
    %175 = vector.extract_strided_slice %109 {offsets = [0, 11], sizes = [4, 989], strides = [1, 1]} : vector<4x1000xf32> to vector<4x989xf32>
    %176 = vector.extract_strided_slice %109 {offsets = [0, 0], sizes = [4, 11], strides = [1, 1]} : vector<4x1000xf32> to vector<4x11xf32>
    %177 = tpu.concatenate %175, %176 in 1 : vector<4x989xf32>, vector<4x11xf32> -> vector<4x1000xf32>
    %c140 = arith.constant 140 : index
    %c0_52 = arith.constant 0 : index
    %178 = vector.load %arg8[%c140, %c0_52] : memref<216x1000xf32, #tpu.memory_space<vmem>>, vector<4x1000xf32>
    tpu.vector_store %arg8[%c140, %c0_52], %177 {strides = array<i32>} : memref<216x1000xf32, #tpu.memory_space<vmem>>, vector<4x1000xf32>,
    %179 = vector.extract_strided_slice %109 {offsets = [0, 89], sizes = [4, 911], strides = [1, 1]} : vector<4x1000xf32> to vector<4x911xf32>
    %180 = vector.extract_strided_slice %109 {offsets = [0, 0], sizes = [4, 89], strides = [1, 1]} : vector<4x1000xf32> to vector<4x89xf32>
    %181 = tpu.concatenate %179, %180 in 1 : vector<4x911xf32>, vector<4x89xf32> -> vector<4x1000xf32>
    %c148 = arith.constant 148 : index
    %c0_53 = arith.constant 0 : index
    %182 = vector.load %arg8[%c148, %c0_53] : memref<216x1000xf32, #tpu.memory_space<vmem>>, vector<4x1000xf32>
    tpu.vector_store %arg8[%c148, %c0_53], %181 {strides = array<i32>} : memref<216x1000xf32, #tpu.memory_space<vmem>>, vector<4x1000xf32>,
    %183 = vector.extract_strided_slice %109 {offsets = [0, 90], sizes = [4, 910], strides = [1, 1]} : vector<4x1000xf32> to vector<4x910xf32>
    %184 = vector.extract_strided_slice %109 {offsets = [0, 0], sizes = [4, 90], strides = [1, 1]} : vector<4x1000xf32> to vector<4x90xf32>
    %185 = tpu.concatenate %183, %184 in 1 : vector<4x910xf32>, vector<4x90xf32> -> vector<4x1000xf32>
    %c156 = arith.constant 156 : index
    %c0_54 = arith.constant 0 : index
    %186 = vector.load %arg8[%c156, %c0_54] : memref<216x1000xf32, #tpu.memory_space<vmem>>, vector<4x1000xf32>
    tpu.vector_store %arg8[%c156, %c0_54], %185 {strides = array<i32>} : memref<216x1000xf32, #tpu.memory_space<vmem>>, vector<4x1000xf32>,
    %187 = vector.extract_strided_slice %109 {offsets = [0, 91], sizes = [4, 909], strides = [1, 1]} : vector<4x1000xf32> to vector<4x909xf32>
    %188 = vector.extract_strided_slice %109 {offsets = [0, 0], sizes = [4, 91], strides = [1, 1]} : vector<4x1000xf32> to vector<4x91xf32>
    %189 = tpu.concatenate %187, %188 in 1 : vector<4x909xf32>, vector<4x91xf32> -> vector<4x1000xf32>
    %c164 = arith.constant 164 : index
    %c0_55 = arith.constant 0 : index
    %190 = vector.load %arg8[%c164, %c0_55] : memref<216x1000xf32, #tpu.memory_space<vmem>>, vector<4x1000xf32>
    tpu.vector_store %arg8[%c164, %c0_55], %189 {strides = array<i32>} : memref<216x1000xf32, #tpu.memory_space<vmem>>, vector<4x1000xf32>,
    %191 = vector.extract_strided_slice %109 {offsets = [0, 99], sizes = [4, 901], strides = [1, 1]} : vector<4x1000xf32> to vector<4x901xf32>
    %192 = vector.extract_strided_slice %109 {offsets = [0, 0], sizes = [4, 99], strides = [1, 1]} : vector<4x1000xf32> to vector<4x99xf32>
    %193 = tpu.concatenate %191, %192 in 1 : vector<4x901xf32>, vector<4x99xf32> -> vector<4x1000xf32>
    %c172 = arith.constant 172 : index
    %c0_56 = arith.constant 0 : index
    %194 = vector.load %arg8[%c172, %c0_56] : memref<216x1000xf32, #tpu.memory_space<vmem>>, vector<4x1000xf32>
    tpu.vector_store %arg8[%c172, %c0_56], %193 {strides = array<i32>} : memref<216x1000xf32, #tpu.memory_space<vmem>>, vector<4x1000xf32>,
    %195 = vector.extract_strided_slice %109 {offsets = [0, 100], sizes = [4, 900], strides = [1, 1]} : vector<4x1000xf32> to vector<4x900xf32>
    %196 = vector.extract_strided_slice %109 {offsets = [0, 0], sizes = [4, 100], strides = [1, 1]} : vector<4x1000xf32> to vector<4x100xf32>
    %197 = tpu.concatenate %195, %196 in 1 : vector<4x900xf32>, vector<4x100xf32> -> vector<4x1000xf32>
    %c180 = arith.constant 180 : index
    %c0_57 = arith.constant 0 : index
    %198 = vector.load %arg8[%c180, %c0_57] : memref<216x1000xf32, #tpu.memory_space<vmem>>, vector<4x1000xf32>
    tpu.vector_store %arg8[%c180, %c0_57], %197 {strides = array<i32>} : memref<216x1000xf32, #tpu.memory_space<vmem>>, vector<4x1000xf32>,
    %199 = vector.extract_strided_slice %109 {offsets = [0, 101], sizes = [4, 899], strides = [1, 1]} : vector<4x1000xf32> to vector<4x899xf32>
    %200 = vector.extract_strided_slice %109 {offsets = [0, 0], sizes = [4, 101], strides = [1, 1]} : vector<4x1000xf32> to vector<4x101xf32>
    %201 = tpu.concatenate %199, %200 in 1 : vector<4x899xf32>, vector<4x101xf32> -> vector<4x1000xf32>
    %c188 = arith.constant 188 : index
    %c0_58 = arith.constant 0 : index
    %202 = vector.load %arg8[%c188, %c0_58] : memref<216x1000xf32, #tpu.memory_space<vmem>>, vector<4x1000xf32>
    tpu.vector_store %arg8[%c188, %c0_58], %201 {strides = array<i32>} : memref<216x1000xf32, #tpu.memory_space<vmem>>, vector<4x1000xf32>,
    %203 = vector.extract_strided_slice %109 {offsets = [0, 109], sizes = [4, 891], strides = [1, 1]} : vector<4x1000xf32> to vector<4x891xf32>
    %204 = vector.extract_strided_slice %109 {offsets = [0, 0], sizes = [4, 109], strides = [1, 1]} : vector<4x1000xf32> to vector<4x109xf32>
    %205 = tpu.concatenate %203, %204 in 1 : vector<4x891xf32>, vector<4x109xf32> -> vector<4x1000xf32>
    %c196 = arith.constant 196 : index
    %c0_59 = arith.constant 0 : index
    %206 = vector.load %arg8[%c196, %c0_59] : memref<216x1000xf32, #tpu.memory_space<vmem>>, vector<4x1000xf32>
    tpu.vector_store %arg8[%c196, %c0_59], %205 {strides = array<i32>} : memref<216x1000xf32, #tpu.memory_space<vmem>>, vector<4x1000xf32>,
    %207 = vector.extract_strided_slice %109 {offsets = [0, 110], sizes = [4, 890], strides = [1, 1]} : vector<4x1000xf32> to vector<4x890xf32>
    %208 = vector.extract_strided_slice %109 {offsets = [0, 0], sizes = [4, 110], strides = [1, 1]} : vector<4x1000xf32> to vector<4x110xf32>
    %209 = tpu.concatenate %207, %208 in 1 : vector<4x890xf32>, vector<4x110xf32> -> vector<4x1000xf32>
    %c204 = arith.constant 204 : index
    %c0_60 = arith.constant 0 : index
    %210 = vector.load %arg8[%c204, %c0_60] : memref<216x1000xf32, #tpu.memory_space<vmem>>, vector<4x1000xf32>
    tpu.vector_store %arg8[%c204, %c0_60], %209 {strides = array<i32>} : memref<216x1000xf32, #tpu.memory_space<vmem>>, vector<4x1000xf32>,
    %211 = vector.extract_strided_slice %109 {offsets = [0, 111], sizes = [4, 889], strides = [1, 1]} : vector<4x1000xf32> to vector<4x889xf32>
    %212 = vector.extract_strided_slice %109 {offsets = [0, 0], sizes = [4, 111], strides = [1, 1]} : vector<4x1000xf32> to vector<4x111xf32>
    %213 = tpu.concatenate %211, %212 in 1 : vector<4x889xf32>, vector<4x111xf32> -> vector<4x1000xf32>
    %c212 = arith.constant 212 : index
    %c0_61 = arith.constant 0 : index
    %214 = vector.load %arg8[%c212, %c0_61] : memref<216x1000xf32, #tpu.memory_space<vmem>>, vector<4x1000xf32>
    tpu.vector_store %arg8[%c212, %c0_61], %213 {strides = array<i32>} : memref<216x1000xf32, #tpu.memory_space<vmem>>, vector<4x1000xf32>,
    %c0_62 = arith.constant 0 : index
    %c0_63 = arith.constant 0 : index
    %215 = vector.load %arg4[%c0_62, %c0_63] : memref<4x216xbf16, #tpu.memory_space<vmem>>, vector<4x216xbf16>
    %c0_64 = arith.constant 0 : index
    %c0_65 = arith.constant 0 : index
    %216 = vector.load %arg8[%c0_64, %c0_65] : memref<216x1000xf32, #tpu.memory_space<vmem>>, vector<216x1000xf32>
    %217 = arith.truncf %216 : vector<216x1000xf32> to vector<216x1000xbf16>
    %cst = arith.constant dense<0.000000e+00> : vector<4x1000xf32>
    %218 = tpu.matmul %215, %217, %cst {dimension_numbers = #tpu.dot_dimension_numbers<[1], [0], [0], [1], [0, 0, 1, 1], [], []>} : vector<4x216xbf16>, vector<216x1000xbf16>, vector<4x1000xf32> -> vector<4x1000xf32>
    %c0_66 = arith.constant 0 : index
    %c0_67 = arith.constant 0 : index
    %219 = vector.load %arg5[%c0_66, %c0_67] : memref<4x1xf32, #tpu.memory_space<vmem>>, vector<4x1xf32>
    %220 = vector.broadcast %219 : vector<4x1xf32> to vector<4x1000xf32>
    %221 = arith.addf %218, %220 : vector<4x1000xf32>
    %c0_68 = arith.constant 0 : index
    %c0_69 = arith.constant 0 : index
    %c0_70 = arith.constant 0 : index
    %222 = vector.load %arg6[%c0_68, %c0_69, %c0_70] : memref<1x4x1000xf32, #tpu.memory_space<vmem>>, vector<1x4x1000xf32>
    %223 = vector.shape_cast %222 : vector<1x4x1000xf32> to vector<4x1000xf32>
    %224 = vector.shape_cast %221 : vector<4x1000xf32> to vector<1x4x1000xf32>
    tpu.vector_store %arg6[%c0_68, %c0_69, %c0_70], %224 {strides = array<i32>} : memref<1x4x1000xf32, #tpu.memory_space<vmem>>, vector<1x4x1000xf32>,
    %225 = vector.broadcast %0 : vector<1x1000xf32> to vector<4x1000xf32>
    %226 = arith.mulf %221, %225 : vector<4x1000xf32>
    %cst_71 = arith.constant dense<0.000000e+00> : vector<4xf32>
    %227 = vector.multi_reduction <add>, %226, %cst_71 [1] : vector<4x1000xf32> to vector<4xf32>
    %228 = vector.shape_cast %227 : vector<4xf32> to vector<4x1xf32>
    %229 = arith.mulf %226, %226 : vector<4x1000xf32>
    %cst_72 = arith.constant dense<0.000000e+00> : vector<4xf32>
    %230 = vector.multi_reduction <add>, %229, %cst_72 [1] : vector<4x1000xf32> to vector<4xf32>
    %231 = vector.shape_cast %230 : vector<4xf32> to vector<4x1xf32>
    %232 = tpu.concatenate %228, %231 in 1 : vector<4x1xf32>, vector<4x1xf32> -> vector<4x2xf32>
    %c0_73 = arith.constant 0 : index
    %c0_74 = arith.constant 0 : index
    %c0_75 = arith.constant 0 : index
    %233 = vector.load %arg7[%c0_73, %c0_74, %c0_75] : memref<1x4x2xf32, #tpu.memory_space<vmem>>, vector<1x4x2xf32>
    %234 = vector.shape_cast %233 : vector<1x4x2xf32> to vector<4x2xf32>
    %235 = vector.shape_cast %232 : vector<4x2xf32> to vector<1x4x2xf32>
    tpu.vector_store %arg7[%c0_73, %c0_74, %c0_75], %235 {strides = array<i32>} : memref<1x4x2xf32, #tpu.memory_space<vmem>>, vector<1x4x2xf32>,
    return
  }
  func.func @transform_0(%arg0: i32) -> (i32, i32) {
    %c0_i32 = arith.constant 0 : i32
    %c0_i32_0 = arith.constant 0 : i32
    %c0_i32_1 = arith.constant 0 : i32
    return %c0_i32, %c0_i32_0 : i32, i32
  }
  func.func @transform_1(%arg0: i32) -> (i32, i32, i32) {
    %c0_i32 = arith.constant 0 : i32
    %c0_i32_0 = arith.constant 0 : i32
    %c0_i32_1 = arith.constant 0 : i32
    return %arg0, %c0_i32, %c0_i32_0 : i32, i32, i32
  }
  func.func @transform_2(%arg0: i32) -> (i32, i32, i32) {
    %c0_i32 = arith.constant 0 : i32
    %c0_i32_0 = arith.constant 0 : i32
    %c0_i32_1 = arith.constant 0 : i32
    return %arg0, %c0_i32, %c0_i32_0 : i32, i32, i32
  }
  func.func @transform_3(%arg0: i32) -> (i32, i32) {
    %c0_i32 = arith.constant 0 : i32
    %c0_i32_0 = arith.constant 0 : i32
    %c0_i32_1 = arith.constant 0 : i32
    return %c0_i32, %c0_i32_0 : i32, i32
  }
  func.func @transform_4(%arg0: i32) -> (i32, i32) {
    %c0_i32 = arith.constant 0 : i32
    %c0_i32_0 = arith.constant 0 : i32
    %c0_i32_1 = arith.constant 0 : i32
    return %c0_i32, %c0_i32_0 : i32, i32
  }
  func.func @transform_5(%arg0: i32) -> (i32, i32, i32) {
    %c0_i32 = arith.constant 0 : i32
    %c0_i32_0 = arith.constant 0 : i32
    %c0_i32_1 = arith.constant 0 : i32
    return %arg0, %c0_i32, %c0_i32_0 : i32, i32, i32
  }
  func.func @transform_6(%arg0: i32) -> (i32, i32, i32) {
    %c0_i32 = arith.constant 0 : i32
    %c0_i32_0 = arith.constant 0 : i32
    %c0_i32_1 = arith.constant 0 : i32
    return %arg0, %c0_i32, %c0_i32_0 : i32, i32, i32
  }
}

module attributes {stable_mosaic.version = 11 : i64} {
  func.func @kernel(%arg0: i32, %arg1: memref<1x1000xf32, #tpu.memory_space<vmem>>, %arg2: memref<1x4x1000xf32, #tpu.memory_space<vmem>>, %arg3: memref<4x108xbf16, #tpu.memory_space<vmem>>, %arg4: memref<4x1xf32, #tpu.memory_space<vmem>>, %arg5: memref<4x1xf32, #tpu.memory_space<vmem>>, %arg6: memref<4x1xf32, #tpu.memory_space<vmem>>, %arg7: memref<1x4x1000xf32, #tpu.memory_space<vmem>>, %arg8: memref<1x4x2xf32, #tpu.memory_space<vmem>>, %arg9: memref<108x1000xf32, #tpu.memory_space<vmem>>) attributes {dimension_semantics = [#tpu.dimension_semantics<parallel>], iteration_bounds = array<i64: 2>, scalar_prefetch = 0 : i64, scratch_operands = 1 : i64, tpu.core_type = #tpu.core_type<tc>, window_params = [{pipeline_mode = #tpu.pipeline_mode<synchronous>, transform_indices = @transform_0, window_bounds = array<i64: 1, 1000>}, {transform_indices = @transform_1, window_bounds = array<i64: 1, 4, 1000>}, {pipeline_mode = #tpu.pipeline_mode<synchronous>, transform_indices = @transform_2, window_bounds = array<i64: 4, 108>}, {pipeline_mode = #tpu.pipeline_mode<synchronous>, transform_indices = @transform_3, window_bounds = array<i64: 4, 1>}, {pipeline_mode = #tpu.pipeline_mode<synchronous>, transform_indices = @transform_4, window_bounds = array<i64: 4, 1>}, {pipeline_mode = #tpu.pipeline_mode<synchronous>, transform_indices = @transform_5, window_bounds = array<i64: 4, 1>}, {transform_indices = @transform_6, window_bounds = array<i64: 1, 4, 1000>}, {transform_indices = @transform_7, window_bounds = array<i64: 1, 4, 2>}]} {
    %c0 = arith.constant 0 : index
    %c0_0 = arith.constant 0 : index
    %0 = vector.load %arg1[%c0, %c0_0] : memref<1x1000xf32, #tpu.memory_space<vmem>>, vector<1x1000xf32>
    %c0_1 = arith.constant 0 : index
    %c0_2 = arith.constant 0 : index
    %c0_3 = arith.constant 0 : index
    %1 = vector.load %arg2[%c0_1, %c0_2, %c0_3] : memref<1x4x1000xf32, #tpu.memory_space<vmem>>, vector<1x4x1000xf32>
    %2 = vector.shape_cast %1 : vector<1x4x1000xf32> to vector<4x1000xf32>
    %c0_4 = arith.constant 0 : index
    %c0_5 = arith.constant 0 : index
    %3 = vector.load %arg5[%c0_4, %c0_5] : memref<4x1xf32, #tpu.memory_space<vmem>>, vector<4x1xf32>
    %4 = vector.broadcast %3 : vector<4x1xf32> to vector<4x1000xf32>
    %5 = arith.mulf %2, %4 : vector<4x1000xf32>
    %c0_6 = arith.constant 0 : index
    %c0_7 = arith.constant 0 : index
    %6 = vector.load %arg6[%c0_6, %c0_7] : memref<4x1xf32, #tpu.memory_space<vmem>>, vector<4x1xf32>
    %7 = vector.broadcast %6 : vector<4x1xf32> to vector<4x1000xf32>
    %8 = arith.addf %5, %7 : vector<4x1000xf32>
    %cst = arith.constant 0.000000e+00 : f32
    %9 = vector.broadcast %cst : f32 to vector<4x1000xf32>
    %10 = arith.maximumf %8, %9 : vector<4x1000xf32>
    %11 = vector.broadcast %0 : vector<1x1000xf32> to vector<4x1000xf32>
    %12 = arith.mulf %10, %11 : vector<4x1000xf32>
    %13 = vector.extract_strided_slice %12 {offsets = [0, 889], sizes = [4, 111], strides = [1, 1]} : vector<4x1000xf32> to vector<4x111xf32>
    %14 = vector.extract_strided_slice %12 {offsets = [0, 0], sizes = [4, 889], strides = [1, 1]} : vector<4x1000xf32> to vector<4x889xf32>
    %15 = tpu.concatenate %13, %14 in 1 : vector<4x111xf32>, vector<4x889xf32> -> vector<4x1000xf32>
    %c0_8 = arith.constant 0 : index
    %c0_9 = arith.constant 0 : index
    %16 = vector.load %arg9[%c0_8, %c0_9] : memref<108x1000xf32, #tpu.memory_space<vmem>>, vector<4x1000xf32>
    tpu.vector_store %arg9[%c0_8, %c0_9], %15 {strides = array<i32>} : memref<108x1000xf32, #tpu.memory_space<vmem>>, vector<4x1000xf32>,
    %17 = vector.extract_strided_slice %12 {offsets = [0, 890], sizes = [4, 110], strides = [1, 1]} : vector<4x1000xf32> to vector<4x110xf32>
    %18 = vector.extract_strided_slice %12 {offsets = [0, 0], sizes = [4, 890], strides = [1, 1]} : vector<4x1000xf32> to vector<4x890xf32>
    %19 = tpu.concatenate %17, %18 in 1 : vector<4x110xf32>, vector<4x890xf32> -> vector<4x1000xf32>
    %c4 = arith.constant 4 : index
    %c0_10 = arith.constant 0 : index
    %20 = vector.load %arg9[%c4, %c0_10] : memref<108x1000xf32, #tpu.memory_space<vmem>>, vector<4x1000xf32>
    tpu.vector_store %arg9[%c4, %c0_10], %19 {strides = array<i32>} : memref<108x1000xf32, #tpu.memory_space<vmem>>, vector<4x1000xf32>,
    %21 = vector.extract_strided_slice %12 {offsets = [0, 891], sizes = [4, 109], strides = [1, 1]} : vector<4x1000xf32> to vector<4x109xf32>
    %22 = vector.extract_strided_slice %12 {offsets = [0, 0], sizes = [4, 891], strides = [1, 1]} : vector<4x1000xf32> to vector<4x891xf32>
    %23 = tpu.concatenate %21, %22 in 1 : vector<4x109xf32>, vector<4x891xf32> -> vector<4x1000xf32>
    %c8 = arith.constant 8 : index
    %c0_11 = arith.constant 0 : index
    %24 = vector.load %arg9[%c8, %c0_11] : memref<108x1000xf32, #tpu.memory_space<vmem>>, vector<4x1000xf32>
    tpu.vector_store %arg9[%c8, %c0_11], %23 {strides = array<i32>} : memref<108x1000xf32, #tpu.memory_space<vmem>>, vector<4x1000xf32>,
    %25 = vector.extract_strided_slice %12 {offsets = [0, 899], sizes = [4, 101], strides = [1, 1]} : vector<4x1000xf32> to vector<4x101xf32>
    %26 = vector.extract_strided_slice %12 {offsets = [0, 0], sizes = [4, 899], strides = [1, 1]} : vector<4x1000xf32> to vector<4x899xf32>
    %27 = tpu.concatenate %25, %26 in 1 : vector<4x101xf32>, vector<4x899xf32> -> vector<4x1000xf32>
    %c12 = arith.constant 12 : index
    %c0_12 = arith.constant 0 : index
    %28 = vector.load %arg9[%c12, %c0_12] : memref<108x1000xf32, #tpu.memory_space<vmem>>, vector<4x1000xf32>
    tpu.vector_store %arg9[%c12, %c0_12], %27 {strides = array<i32>} : memref<108x1000xf32, #tpu.memory_space<vmem>>, vector<4x1000xf32>,
    %29 = vector.extract_strided_slice %12 {offsets = [0, 900], sizes = [4, 100], strides = [1, 1]} : vector<4x1000xf32> to vector<4x100xf32>
    %30 = vector.extract_strided_slice %12 {offsets = [0, 0], sizes = [4, 900], strides = [1, 1]} : vector<4x1000xf32> to vector<4x900xf32>
    %31 = tpu.concatenate %29, %30 in 1 : vector<4x100xf32>, vector<4x900xf32> -> vector<4x1000xf32>
    %c16 = arith.constant 16 : index
    %c0_13 = arith.constant 0 : index
    %32 = vector.load %arg9[%c16, %c0_13] : memref<108x1000xf32, #tpu.memory_space<vmem>>, vector<4x1000xf32>
    tpu.vector_store %arg9[%c16, %c0_13], %31 {strides = array<i32>} : memref<108x1000xf32, #tpu.memory_space<vmem>>, vector<4x1000xf32>,
    %33 = vector.extract_strided_slice %12 {offsets = [0, 901], sizes = [4, 99], strides = [1, 1]} : vector<4x1000xf32> to vector<4x99xf32>
    %34 = vector.extract_strided_slice %12 {offsets = [0, 0], sizes = [4, 901], strides = [1, 1]} : vector<4x1000xf32> to vector<4x901xf32>
    %35 = tpu.concatenate %33, %34 in 1 : vector<4x99xf32>, vector<4x901xf32> -> vector<4x1000xf32>
    %c20 = arith.constant 20 : index
    %c0_14 = arith.constant 0 : index
    %36 = vector.load %arg9[%c20, %c0_14] : memref<108x1000xf32, #tpu.memory_space<vmem>>, vector<4x1000xf32>
    tpu.vector_store %arg9[%c20, %c0_14], %35 {strides = array<i32>} : memref<108x1000xf32, #tpu.memory_space<vmem>>, vector<4x1000xf32>,
    %37 = vector.extract_strided_slice %12 {offsets = [0, 909], sizes = [4, 91], strides = [1, 1]} : vector<4x1000xf32> to vector<4x91xf32>
    %38 = vector.extract_strided_slice %12 {offsets = [0, 0], sizes = [4, 909], strides = [1, 1]} : vector<4x1000xf32> to vector<4x909xf32>
    %39 = tpu.concatenate %37, %38 in 1 : vector<4x91xf32>, vector<4x909xf32> -> vector<4x1000xf32>
    %c24 = arith.constant 24 : index
    %c0_15 = arith.constant 0 : index
    %40 = vector.load %arg9[%c24, %c0_15] : memref<108x1000xf32, #tpu.memory_space<vmem>>, vector<4x1000xf32>
    tpu.vector_store %arg9[%c24, %c0_15], %39 {strides = array<i32>} : memref<108x1000xf32, #tpu.memory_space<vmem>>, vector<4x1000xf32>,
    %41 = vector.extract_strided_slice %12 {offsets = [0, 910], sizes = [4, 90], strides = [1, 1]} : vector<4x1000xf32> to vector<4x90xf32>
    %42 = vector.extract_strided_slice %12 {offsets = [0, 0], sizes = [4, 910], strides = [1, 1]} : vector<4x1000xf32> to vector<4x910xf32>
    %43 = tpu.concatenate %41, %42 in 1 : vector<4x90xf32>, vector<4x910xf32> -> vector<4x1000xf32>
    %c28 = arith.constant 28 : index
    %c0_16 = arith.constant 0 : index
    %44 = vector.load %arg9[%c28, %c0_16] : memref<108x1000xf32, #tpu.memory_space<vmem>>, vector<4x1000xf32>
    tpu.vector_store %arg9[%c28, %c0_16], %43 {strides = array<i32>} : memref<108x1000xf32, #tpu.memory_space<vmem>>, vector<4x1000xf32>,
    %45 = vector.extract_strided_slice %12 {offsets = [0, 911], sizes = [4, 89], strides = [1, 1]} : vector<4x1000xf32> to vector<4x89xf32>
    %46 = vector.extract_strided_slice %12 {offsets = [0, 0], sizes = [4, 911], strides = [1, 1]} : vector<4x1000xf32> to vector<4x911xf32>
    %47 = tpu.concatenate %45, %46 in 1 : vector<4x89xf32>, vector<4x911xf32> -> vector<4x1000xf32>
    %c32 = arith.constant 32 : index
    %c0_17 = arith.constant 0 : index
    %48 = vector.load %arg9[%c32, %c0_17] : memref<108x1000xf32, #tpu.memory_space<vmem>>, vector<4x1000xf32>
    tpu.vector_store %arg9[%c32, %c0_17], %47 {strides = array<i32>} : memref<108x1000xf32, #tpu.memory_space<vmem>>, vector<4x1000xf32>,
    %49 = vector.extract_strided_slice %12 {offsets = [0, 989], sizes = [4, 11], strides = [1, 1]} : vector<4x1000xf32> to vector<4x11xf32>
    %50 = vector.extract_strided_slice %12 {offsets = [0, 0], sizes = [4, 989], strides = [1, 1]} : vector<4x1000xf32> to vector<4x989xf32>
    %51 = tpu.concatenate %49, %50 in 1 : vector<4x11xf32>, vector<4x989xf32> -> vector<4x1000xf32>
    %c36 = arith.constant 36 : index
    %c0_18 = arith.constant 0 : index
    %52 = vector.load %arg9[%c36, %c0_18] : memref<108x1000xf32, #tpu.memory_space<vmem>>, vector<4x1000xf32>
    tpu.vector_store %arg9[%c36, %c0_18], %51 {strides = array<i32>} : memref<108x1000xf32, #tpu.memory_space<vmem>>, vector<4x1000xf32>,
    %53 = vector.extract_strided_slice %12 {offsets = [0, 990], sizes = [4, 10], strides = [1, 1]} : vector<4x1000xf32> to vector<4x10xf32>
    %54 = vector.extract_strided_slice %12 {offsets = [0, 0], sizes = [4, 990], strides = [1, 1]} : vector<4x1000xf32> to vector<4x990xf32>
    %55 = tpu.concatenate %53, %54 in 1 : vector<4x10xf32>, vector<4x990xf32> -> vector<4x1000xf32>
    %c40 = arith.constant 40 : index
    %c0_19 = arith.constant 0 : index
    %56 = vector.load %arg9[%c40, %c0_19] : memref<108x1000xf32, #tpu.memory_space<vmem>>, vector<4x1000xf32>
    tpu.vector_store %arg9[%c40, %c0_19], %55 {strides = array<i32>} : memref<108x1000xf32, #tpu.memory_space<vmem>>, vector<4x1000xf32>,
    %57 = vector.extract_strided_slice %12 {offsets = [0, 991], sizes = [4, 9], strides = [1, 1]} : vector<4x1000xf32> to vector<4x9xf32>
    %58 = vector.extract_strided_slice %12 {offsets = [0, 0], sizes = [4, 991], strides = [1, 1]} : vector<4x1000xf32> to vector<4x991xf32>
    %59 = tpu.concatenate %57, %58 in 1 : vector<4x9xf32>, vector<4x991xf32> -> vector<4x1000xf32>
    %c44 = arith.constant 44 : index
    %c0_20 = arith.constant 0 : index
    %60 = vector.load %arg9[%c44, %c0_20] : memref<108x1000xf32, #tpu.memory_space<vmem>>, vector<4x1000xf32>
    tpu.vector_store %arg9[%c44, %c0_20], %59 {strides = array<i32>} : memref<108x1000xf32, #tpu.memory_space<vmem>>, vector<4x1000xf32>,
    %61 = vector.extract_strided_slice %12 {offsets = [0, 999], sizes = [4, 1], strides = [1, 1]} : vector<4x1000xf32> to vector<4x1xf32>
    %62 = vector.extract_strided_slice %12 {offsets = [0, 0], sizes = [4, 999], strides = [1, 1]} : vector<4x1000xf32> to vector<4x999xf32>
    %63 = tpu.concatenate %61, %62 in 1 : vector<4x1xf32>, vector<4x999xf32> -> vector<4x1000xf32>
    %c48 = arith.constant 48 : index
    %c0_21 = arith.constant 0 : index
    %64 = vector.load %arg9[%c48, %c0_21] : memref<108x1000xf32, #tpu.memory_space<vmem>>, vector<4x1000xf32>
    tpu.vector_store %arg9[%c48, %c0_21], %63 {strides = array<i32>} : memref<108x1000xf32, #tpu.memory_space<vmem>>, vector<4x1000xf32>,
    %c52 = arith.constant 52 : index
    %c0_22 = arith.constant 0 : index
    %65 = vector.load %arg9[%c52, %c0_22] : memref<108x1000xf32, #tpu.memory_space<vmem>>, vector<4x1000xf32>
    tpu.vector_store %arg9[%c52, %c0_22], %12 {strides = array<i32>} : memref<108x1000xf32, #tpu.memory_space<vmem>>, vector<4x1000xf32>,
    %66 = vector.extract_strided_slice %12 {offsets = [0, 1], sizes = [4, 999], strides = [1, 1]} : vector<4x1000xf32> to vector<4x999xf32>
    %67 = vector.extract_strided_slice %12 {offsets = [0, 0], sizes = [4, 1], strides = [1, 1]} : vector<4x1000xf32> to vector<4x1xf32>
    %68 = tpu.concatenate %66, %67 in 1 : vector<4x999xf32>, vector<4x1xf32> -> vector<4x1000xf32>
    %c56 = arith.constant 56 : index
    %c0_23 = arith.constant 0 : index
    %69 = vector.load %arg9[%c56, %c0_23] : memref<108x1000xf32, #tpu.memory_space<vmem>>, vector<4x1000xf32>
    tpu.vector_store %arg9[%c56, %c0_23], %68 {strides = array<i32>} : memref<108x1000xf32, #tpu.memory_space<vmem>>, vector<4x1000xf32>,
    %70 = vector.extract_strided_slice %12 {offsets = [0, 9], sizes = [4, 991], strides = [1, 1]} : vector<4x1000xf32> to vector<4x991xf32>
    %71 = vector.extract_strided_slice %12 {offsets = [0, 0], sizes = [4, 9], strides = [1, 1]} : vector<4x1000xf32> to vector<4x9xf32>
    %72 = tpu.concatenate %70, %71 in 1 : vector<4x991xf32>, vector<4x9xf32> -> vector<4x1000xf32>
    %c60 = arith.constant 60 : index
    %c0_24 = arith.constant 0 : index
    %73 = vector.load %arg9[%c60, %c0_24] : memref<108x1000xf32, #tpu.memory_space<vmem>>, vector<4x1000xf32>
    tpu.vector_store %arg9[%c60, %c0_24], %72 {strides = array<i32>} : memref<108x1000xf32, #tpu.memory_space<vmem>>, vector<4x1000xf32>,
    %74 = vector.extract_strided_slice %12 {offsets = [0, 10], sizes = [4, 990], strides = [1, 1]} : vector<4x1000xf32> to vector<4x990xf32>
    %75 = vector.extract_strided_slice %12 {offsets = [0, 0], sizes = [4, 10], strides = [1, 1]} : vector<4x1000xf32> to vector<4x10xf32>
    %76 = tpu.concatenate %74, %75 in 1 : vector<4x990xf32>, vector<4x10xf32> -> vector<4x1000xf32>
    %c64 = arith.constant 64 : index
    %c0_25 = arith.constant 0 : index
    %77 = vector.load %arg9[%c64, %c0_25] : memref<108x1000xf32, #tpu.memory_space<vmem>>, vector<4x1000xf32>
    tpu.vector_store %arg9[%c64, %c0_25], %76 {strides = array<i32>} : memref<108x1000xf32, #tpu.memory_space<vmem>>, vector<4x1000xf32>,
    %78 = vector.extract_strided_slice %12 {offsets = [0, 11], sizes = [4, 989], strides = [1, 1]} : vector<4x1000xf32> to vector<4x989xf32>
    %79 = vector.extract_strided_slice %12 {offsets = [0, 0], sizes = [4, 11], strides = [1, 1]} : vector<4x1000xf32> to vector<4x11xf32>
    %80 = tpu.concatenate %78, %79 in 1 : vector<4x989xf32>, vector<4x11xf32> -> vector<4x1000xf32>
    %c68 = arith.constant 68 : index
    %c0_26 = arith.constant 0 : index
    %81 = vector.load %arg9[%c68, %c0_26] : memref<108x1000xf32, #tpu.memory_space<vmem>>, vector<4x1000xf32>
    tpu.vector_store %arg9[%c68, %c0_26], %80 {strides = array<i32>} : memref<108x1000xf32, #tpu.memory_space<vmem>>, vector<4x1000xf32>,
    %82 = vector.extract_strided_slice %12 {offsets = [0, 89], sizes = [4, 911], strides = [1, 1]} : vector<4x1000xf32> to vector<4x911xf32>
    %83 = vector.extract_strided_slice %12 {offsets = [0, 0], sizes = [4, 89], strides = [1, 1]} : vector<4x1000xf32> to vector<4x89xf32>
    %84 = tpu.concatenate %82, %83 in 1 : vector<4x911xf32>, vector<4x89xf32> -> vector<4x1000xf32>
    %c72 = arith.constant 72 : index
    %c0_27 = arith.constant 0 : index
    %85 = vector.load %arg9[%c72, %c0_27] : memref<108x1000xf32, #tpu.memory_space<vmem>>, vector<4x1000xf32>
    tpu.vector_store %arg9[%c72, %c0_27], %84 {strides = array<i32>} : memref<108x1000xf32, #tpu.memory_space<vmem>>, vector<4x1000xf32>,
    %86 = vector.extract_strided_slice %12 {offsets = [0, 90], sizes = [4, 910], strides = [1, 1]} : vector<4x1000xf32> to vector<4x910xf32>
    %87 = vector.extract_strided_slice %12 {offsets = [0, 0], sizes = [4, 90], strides = [1, 1]} : vector<4x1000xf32> to vector<4x90xf32>
    %88 = tpu.concatenate %86, %87 in 1 : vector<4x910xf32>, vector<4x90xf32> -> vector<4x1000xf32>
    %c76 = arith.constant 76 : index
    %c0_28 = arith.constant 0 : index
    %89 = vector.load %arg9[%c76, %c0_28] : memref<108x1000xf32, #tpu.memory_space<vmem>>, vector<4x1000xf32>
    tpu.vector_store %arg9[%c76, %c0_28], %88 {strides = array<i32>} : memref<108x1000xf32, #tpu.memory_space<vmem>>, vector<4x1000xf32>,
    %90 = vector.extract_strided_slice %12 {offsets = [0, 91], sizes = [4, 909], strides = [1, 1]} : vector<4x1000xf32> to vector<4x909xf32>
    %91 = vector.extract_strided_slice %12 {offsets = [0, 0], sizes = [4, 91], strides = [1, 1]} : vector<4x1000xf32> to vector<4x91xf32>
    %92 = tpu.concatenate %90, %91 in 1 : vector<4x909xf32>, vector<4x91xf32> -> vector<4x1000xf32>
    %c80 = arith.constant 80 : index
    %c0_29 = arith.constant 0 : index
    %93 = vector.load %arg9[%c80, %c0_29] : memref<108x1000xf32, #tpu.memory_space<vmem>>, vector<4x1000xf32>
    tpu.vector_store %arg9[%c80, %c0_29], %92 {strides = array<i32>} : memref<108x1000xf32, #tpu.memory_space<vmem>>, vector<4x1000xf32>,
    %94 = vector.extract_strided_slice %12 {offsets = [0, 99], sizes = [4, 901], strides = [1, 1]} : vector<4x1000xf32> to vector<4x901xf32>
    %95 = vector.extract_strided_slice %12 {offsets = [0, 0], sizes = [4, 99], strides = [1, 1]} : vector<4x1000xf32> to vector<4x99xf32>
    %96 = tpu.concatenate %94, %95 in 1 : vector<4x901xf32>, vector<4x99xf32> -> vector<4x1000xf32>
    %c84 = arith.constant 84 : index
    %c0_30 = arith.constant 0 : index
    %97 = vector.load %arg9[%c84, %c0_30] : memref<108x1000xf32, #tpu.memory_space<vmem>>, vector<4x1000xf32>
    tpu.vector_store %arg9[%c84, %c0_30], %96 {strides = array<i32>} : memref<108x1000xf32, #tpu.memory_space<vmem>>, vector<4x1000xf32>,
    %98 = vector.extract_strided_slice %12 {offsets = [0, 100], sizes = [4, 900], strides = [1, 1]} : vector<4x1000xf32> to vector<4x900xf32>
    %99 = vector.extract_strided_slice %12 {offsets = [0, 0], sizes = [4, 100], strides = [1, 1]} : vector<4x1000xf32> to vector<4x100xf32>
    %100 = tpu.concatenate %98, %99 in 1 : vector<4x900xf32>, vector<4x100xf32> -> vector<4x1000xf32>
    %c88 = arith.constant 88 : index
    %c0_31 = arith.constant 0 : index
    %101 = vector.load %arg9[%c88, %c0_31] : memref<108x1000xf32, #tpu.memory_space<vmem>>, vector<4x1000xf32>
    tpu.vector_store %arg9[%c88, %c0_31], %100 {strides = array<i32>} : memref<108x1000xf32, #tpu.memory_space<vmem>>, vector<4x1000xf32>,
    %102 = vector.extract_strided_slice %12 {offsets = [0, 101], sizes = [4, 899], strides = [1, 1]} : vector<4x1000xf32> to vector<4x899xf32>
    %103 = vector.extract_strided_slice %12 {offsets = [0, 0], sizes = [4, 101], strides = [1, 1]} : vector<4x1000xf32> to vector<4x101xf32>
    %104 = tpu.concatenate %102, %103 in 1 : vector<4x899xf32>, vector<4x101xf32> -> vector<4x1000xf32>
    %c92 = arith.constant 92 : index
    %c0_32 = arith.constant 0 : index
    %105 = vector.load %arg9[%c92, %c0_32] : memref<108x1000xf32, #tpu.memory_space<vmem>>, vector<4x1000xf32>
    tpu.vector_store %arg9[%c92, %c0_32], %104 {strides = array<i32>} : memref<108x1000xf32, #tpu.memory_space<vmem>>, vector<4x1000xf32>,
    %106 = vector.extract_strided_slice %12 {offsets = [0, 109], sizes = [4, 891], strides = [1, 1]} : vector<4x1000xf32> to vector<4x891xf32>
    %107 = vector.extract_strided_slice %12 {offsets = [0, 0], sizes = [4, 109], strides = [1, 1]} : vector<4x1000xf32> to vector<4x109xf32>
    %108 = tpu.concatenate %106, %107 in 1 : vector<4x891xf32>, vector<4x109xf32> -> vector<4x1000xf32>
    %c96 = arith.constant 96 : index
    %c0_33 = arith.constant 0 : index
    %109 = vector.load %arg9[%c96, %c0_33] : memref<108x1000xf32, #tpu.memory_space<vmem>>, vector<4x1000xf32>
    tpu.vector_store %arg9[%c96, %c0_33], %108 {strides = array<i32>} : memref<108x1000xf32, #tpu.memory_space<vmem>>, vector<4x1000xf32>,
    %110 = vector.extract_strided_slice %12 {offsets = [0, 110], sizes = [4, 890], strides = [1, 1]} : vector<4x1000xf32> to vector<4x890xf32>
    %111 = vector.extract_strided_slice %12 {offsets = [0, 0], sizes = [4, 110], strides = [1, 1]} : vector<4x1000xf32> to vector<4x110xf32>
    %112 = tpu.concatenate %110, %111 in 1 : vector<4x890xf32>, vector<4x110xf32> -> vector<4x1000xf32>
    %c100 = arith.constant 100 : index
    %c0_34 = arith.constant 0 : index
    %113 = vector.load %arg9[%c100, %c0_34] : memref<108x1000xf32, #tpu.memory_space<vmem>>, vector<4x1000xf32>
    tpu.vector_store %arg9[%c100, %c0_34], %112 {strides = array<i32>} : memref<108x1000xf32, #tpu.memory_space<vmem>>, vector<4x1000xf32>,
    %114 = vector.extract_strided_slice %12 {offsets = [0, 111], sizes = [4, 889], strides = [1, 1]} : vector<4x1000xf32> to vector<4x889xf32>
    %115 = vector.extract_strided_slice %12 {offsets = [0, 0], sizes = [4, 111], strides = [1, 1]} : vector<4x1000xf32> to vector<4x111xf32>
    %116 = tpu.concatenate %114, %115 in 1 : vector<4x889xf32>, vector<4x111xf32> -> vector<4x1000xf32>
    %c104 = arith.constant 104 : index
    %c0_35 = arith.constant 0 : index
    %117 = vector.load %arg9[%c104, %c0_35] : memref<108x1000xf32, #tpu.memory_space<vmem>>, vector<4x1000xf32>
    tpu.vector_store %arg9[%c104, %c0_35], %116 {strides = array<i32>} : memref<108x1000xf32, #tpu.memory_space<vmem>>, vector<4x1000xf32>,
    %c0_36 = arith.constant 0 : index
    %c0_37 = arith.constant 0 : index
    %118 = vector.load %arg3[%c0_36, %c0_37] : memref<4x108xbf16, #tpu.memory_space<vmem>>, vector<4x108xbf16>
    %c0_38 = arith.constant 0 : index
    %c0_39 = arith.constant 0 : index
    %119 = vector.load %arg9[%c0_38, %c0_39] : memref<108x1000xf32, #tpu.memory_space<vmem>>, vector<108x1000xf32>
    %120 = arith.truncf %119 : vector<108x1000xf32> to vector<108x1000xbf16>
    %cst_40 = arith.constant dense<0.000000e+00> : vector<4x1000xf32>
    %121 = tpu.matmul %118, %120, %cst_40 {dimension_numbers = #tpu.dot_dimension_numbers<[1], [0], [0], [1], [0, 0, 1, 1], [], []>} : vector<4x108xbf16>, vector<108x1000xbf16>, vector<4x1000xf32> -> vector<4x1000xf32>
    %c0_41 = arith.constant 0 : index
    %c0_42 = arith.constant 0 : index
    %122 = vector.load %arg4[%c0_41, %c0_42] : memref<4x1xf32, #tpu.memory_space<vmem>>, vector<4x1xf32>
    %123 = vector.broadcast %122 : vector<4x1xf32> to vector<4x1000xf32>
    %124 = arith.addf %121, %123 : vector<4x1000xf32>
    %c0_43 = arith.constant 0 : index
    %c0_44 = arith.constant 0 : index
    %c0_45 = arith.constant 0 : index
    %125 = vector.load %arg7[%c0_43, %c0_44, %c0_45] : memref<1x4x1000xf32, #tpu.memory_space<vmem>>, vector<1x4x1000xf32>
    %126 = vector.shape_cast %125 : vector<1x4x1000xf32> to vector<4x1000xf32>
    %127 = vector.shape_cast %124 : vector<4x1000xf32> to vector<1x4x1000xf32>
    tpu.vector_store %arg7[%c0_43, %c0_44, %c0_45], %127 {strides = array<i32>} : memref<1x4x1000xf32, #tpu.memory_space<vmem>>, vector<1x4x1000xf32>,
    %128 = vector.broadcast %0 : vector<1x1000xf32> to vector<4x1000xf32>
    %129 = arith.mulf %124, %128 : vector<4x1000xf32>
    %cst_46 = arith.constant dense<0.000000e+00> : vector<4xf32>
    %130 = vector.multi_reduction <add>, %129, %cst_46 [1] : vector<4x1000xf32> to vector<4xf32>
    %131 = vector.shape_cast %130 : vector<4xf32> to vector<4x1xf32>
    %132 = arith.mulf %129, %129 : vector<4x1000xf32>
    %cst_47 = arith.constant dense<0.000000e+00> : vector<4xf32>
    %133 = vector.multi_reduction <add>, %132, %cst_47 [1] : vector<4x1000xf32> to vector<4xf32>
    %134 = vector.shape_cast %133 : vector<4xf32> to vector<4x1xf32>
    %135 = tpu.concatenate %131, %134 in 1 : vector<4x1xf32>, vector<4x1xf32> -> vector<4x2xf32>
    %c0_48 = arith.constant 0 : index
    %c0_49 = arith.constant 0 : index
    %c0_50 = arith.constant 0 : index
    %136 = vector.load %arg8[%c0_48, %c0_49, %c0_50] : memref<1x4x2xf32, #tpu.memory_space<vmem>>, vector<1x4x2xf32>
    %137 = vector.shape_cast %136 : vector<1x4x2xf32> to vector<4x2xf32>
    %138 = vector.shape_cast %135 : vector<4x2xf32> to vector<1x4x2xf32>
    tpu.vector_store %arg8[%c0_48, %c0_49, %c0_50], %138 {strides = array<i32>} : memref<1x4x2xf32, #tpu.memory_space<vmem>>, vector<1x4x2xf32>,
    return
  }
  func.func @transform_0(%arg0: i32) -> (i32, i32) {
    %c0_i32 = arith.constant 0 : i32
    %c0_i32_0 = arith.constant 0 : i32
    %c0_i32_1 = arith.constant 0 : i32
    return %c0_i32, %c0_i32_0 : i32, i32
  }
  func.func @transform_1(%arg0: i32) -> (i32, i32, i32) {
    %c0_i32 = arith.constant 0 : i32
    %c0_i32_0 = arith.constant 0 : i32
    %c0_i32_1 = arith.constant 0 : i32
    return %arg0, %c0_i32, %c0_i32_0 : i32, i32, i32
  }
  func.func @transform_2(%arg0: i32) -> (i32, i32) {
    %c0_i32 = arith.constant 0 : i32
    %c0_i32_0 = arith.constant 0 : i32
    %c0_i32_1 = arith.constant 0 : i32
    return %c0_i32, %c0_i32_0 : i32, i32
  }
  func.func @transform_3(%arg0: i32) -> (i32, i32) {
    %c0_i32 = arith.constant 0 : i32
    %c0_i32_0 = arith.constant 0 : i32
    %c0_i32_1 = arith.constant 0 : i32
    return %c0_i32, %c0_i32_0 : i32, i32
  }
  func.func @transform_4(%arg0: i32) -> (i32, i32) {
    %c0_i32 = arith.constant 0 : i32
    %c0_i32_0 = arith.constant 0 : i32
    %c0_i32_1 = arith.constant 0 : i32
    return %c0_i32, %c0_i32_0 : i32, i32
  }
  func.func @transform_5(%arg0: i32) -> (i32, i32) {
    %c0_i32 = arith.constant 0 : i32
    %c0_i32_0 = arith.constant 0 : i32
    %c0_i32_1 = arith.constant 0 : i32
    return %c0_i32, %c0_i32_0 : i32, i32
  }
  func.func @transform_6(%arg0: i32) -> (i32, i32, i32) {
    %c0_i32 = arith.constant 0 : i32
    %c0_i32_0 = arith.constant 0 : i32
    %c0_i32_1 = arith.constant 0 : i32
    return %arg0, %c0_i32, %c0_i32_0 : i32, i32, i32
  }
  func.func @transform_7(%arg0: i32) -> (i32, i32, i32) {
    %c0_i32 = arith.constant 0 : i32
    %c0_i32_0 = arith.constant 0 : i32
    %c0_i32_1 = arith.constant 0 : i32
    return %arg0, %c0_i32, %c0_i32_0 : i32, i32, i32
  }
}

module attributes {stable_mosaic.version = 11 : i64} {
  func.func @_scale_shift_relu_kernel(%arg0: i32, %arg1: memref<1x4x1000xf32, #tpu.memory_space<vmem>>, %arg2: memref<4x1xf32, #tpu.memory_space<vmem>>, %arg3: memref<4x1xf32, #tpu.memory_space<vmem>>, %arg4: memref<1x4x1000xf32, #tpu.memory_space<vmem>>) attributes {dimension_semantics = [#tpu.dimension_semantics<parallel>], iteration_bounds = array<i64: 2>, scalar_prefetch = 0 : i64, scratch_operands = 0 : i64, tpu.core_type = #tpu.core_type<tc>, window_params = [{transform_indices = @transform_0, window_bounds = array<i64: 1, 4, 1000>}, {pipeline_mode = #tpu.pipeline_mode<synchronous>, transform_indices = @transform_1, window_bounds = array<i64: 4, 1>}, {pipeline_mode = #tpu.pipeline_mode<synchronous>, transform_indices = @transform_2, window_bounds = array<i64: 4, 1>}, {transform_indices = @transform_3, window_bounds = array<i64: 1, 4, 1000>}]} {
    %c0 = arith.constant 0 : index
    %c0_0 = arith.constant 0 : index
    %c0_1 = arith.constant 0 : index
    %0 = vector.load %arg1[%c0, %c0_0, %c0_1] : memref<1x4x1000xf32, #tpu.memory_space<vmem>>, vector<1x4x1000xf32>
    %1 = vector.shape_cast %0 : vector<1x4x1000xf32> to vector<4x1000xf32>
    %c0_2 = arith.constant 0 : index
    %c0_3 = arith.constant 0 : index
    %2 = vector.load %arg2[%c0_2, %c0_3] : memref<4x1xf32, #tpu.memory_space<vmem>>, vector<4x1xf32>
    %3 = vector.broadcast %2 : vector<4x1xf32> to vector<4x1000xf32>
    %4 = arith.mulf %1, %3 : vector<4x1000xf32>
    %c0_4 = arith.constant 0 : index
    %c0_5 = arith.constant 0 : index
    %5 = vector.load %arg3[%c0_4, %c0_5] : memref<4x1xf32, #tpu.memory_space<vmem>>, vector<4x1xf32>
    %6 = vector.broadcast %5 : vector<4x1xf32> to vector<4x1000xf32>
    %7 = arith.addf %4, %6 : vector<4x1000xf32>
    %cst = arith.constant 0.000000e+00 : f32
    %8 = vector.broadcast %cst : f32 to vector<4x1000xf32>
    %9 = arith.maximumf %7, %8 : vector<4x1000xf32>
    %c0_6 = arith.constant 0 : index
    %c0_7 = arith.constant 0 : index
    %c0_8 = arith.constant 0 : index
    %10 = vector.load %arg4[%c0_6, %c0_7, %c0_8] : memref<1x4x1000xf32, #tpu.memory_space<vmem>>, vector<1x4x1000xf32>
    %11 = vector.shape_cast %10 : vector<1x4x1000xf32> to vector<4x1000xf32>
    %12 = vector.shape_cast %9 : vector<4x1000xf32> to vector<1x4x1000xf32>
    tpu.vector_store %arg4[%c0_6, %c0_7, %c0_8], %12 {strides = array<i32>} : memref<1x4x1000xf32, #tpu.memory_space<vmem>>, vector<1x4x1000xf32>,
    return
  }
  func.func @transform_0(%arg0: i32) -> (i32, i32, i32) {
    %c0_i32 = arith.constant 0 : i32
    %c0_i32_0 = arith.constant 0 : i32
    %c0_i32_1 = arith.constant 0 : i32
    return %arg0, %c0_i32, %c0_i32_0 : i32, i32, i32
  }
  func.func @transform_1(%arg0: i32) -> (i32, i32) {
    %c0_i32 = arith.constant 0 : i32
    %c0_i32_0 = arith.constant 0 : i32
    %c0_i32_1 = arith.constant 0 : i32
    return %c0_i32, %c0_i32_0 : i32, i32
  }
  func.func @transform_2(%arg0: i32) -> (i32, i32) {
    %c0_i32 = arith.constant 0 : i32
    %c0_i32_0 = arith.constant 0 : i32
    %c0_i32_1 = arith.constant 0 : i32
    return %c0_i32, %c0_i32_0 : i32, i32
  }
  func.func @transform_3(%arg0: i32) -> (i32, i32, i32) {
    %c0_i32 = arith.constant 0 : i32
    %c0_i32_0 = arith.constant 0 : i32
    %c0_i32_1 = arith.constant 0 : i32
    return %arg0, %c0_i32, %c0_i32_0 : i32, i32, i32
  }
}

</mosaic_0001>

<llo_original>
// kernel: tile.8
$region0: #{tile.8}
  #allocation0 [shape = 's32[1]{0}', space=sflag, size = 0x4, scoped, tag = 'scoped memory for tile.8']
  %s0 = inlined_call_operand.vmem [shape: f32[4], index: 0, kind: input, shape index: {}]
  %s1 = inlined_call_operand.vmem [shape: f32[8,4], index: 1, kind: output, shape index: {}]
  // Predicated region
  $region2: #{tile.8} parent=0 // pred_check
    _
  $region3: #{tile.8} parent=0 // pred_check_branch
    %3 = sbr.rel (0) target = $region5
  $region4: #{tile.8} parent=0 // pred_region
    _
  $region5: #{tile.8} parent=0 // pred_fallthru
    _
  %v4 = vld [vmem:[%s0] ss:$0 sm:$0xff]
  %5 = vst [vmem:[%s1] sm:$0xff] %v4

// kernel: tile.0
$region0: #{tile.0}
  %s0 = inlined_call_operand.vmem [shape: f32[8,4], index: 0, kind: input, shape index: {}]
  %s1 = inlined_call_operand.vmem [shape: f32[32,1], index: 1, kind: output, shape index: {}]
  %v2 = vld [vmem:[%s0] sm:$0xff]
  %vm3 = vcmask 7168
  %4 = vst.msk [vmem:[%s1] ss:$4 sm:$0xff] %vm3, %v2
  %v5 = vld [vmem:[%s0] sm:$0xff]
  %6 = vrot.lane.b32.xlu0 %v5, 127
  %v7 = vpop.permute.xlu0 %6
  %vm8 = vcmask 7168
  %s9 = scalar_lea.vmem %s1, 1
  %10 = vst.msk [vmem:[%s9] ss:$4 sm:$0xff] %vm8, %v7
  %v11 = vld [vmem:[%s0] sm:$0xff]
  %12 = vrot.lane.b32.xlu0 %v11, 126
  %v13 = vpop.permute.xlu0 %12
  %vm14 = vcmask 7168
  %s15 = scalar_lea.vmem %s1, 2
  %16 = vst.msk [vmem:[%s15] ss:$4 sm:$0xff] %vm14, %v13
  %v17 = vld [vmem:[%s0] sm:$0xff]
  %18 = vrot.lane.b32.xlu0 %v17, 125
  %v19 = vpop.permute.xlu0 %18
  %vm20 = vcmask 7168
  %s21 = scalar_lea.vmem %s1, 3
  %22 = vst.msk [vmem:[%s21] ss:$4 sm:$0xff] %vm20, %v19

// kernel: up_forward.4
$region0: #{up_forward.4}
  #allocation0 [shape = 'u32[]', space=smem, size = 0x4, offset = 0x4, fixed_abs, tag = 'smem constant byte address 0x4 - core index']
  #allocation1 [shape = 'u32[144,128]{1,0:T(1,128)}', space=vmem, size = 0x12000, scoped, tag = 'internal scratch']
  %s0 = inlined_call_operand.vmem [shape: f32[2,8,64], index: 0, kind: input, shape index: {}]
  %s1 = inlined_call_operand.vmem [shape: f32[32,8], index: 1, kind: input, shape index: {}]
  %s2 = inlined_call_operand.vmem [shape: f32[32,1], index: 2, kind: input, shape index: {}]
  %s3 = inlined_call_operand.vmem [shape: f32[2,32,64], index: 3, kind: output, shape index: {}]
  %s4 = sld [smem:[#allocation0]]
  $region45: #{up_forward.4} parent=0
    _
  %s6 = ssub.s32 1, %s4
  %s7 = scalar_select 0, %s6, %s4
  loop: start=0, step=1, limit=4
  $region2: #{up_forward.4} parent=0 // loop_pre_header
    _
  $region3: #{up_forward.4} parent=0 // loop_header
    %s9 = sphi 0, %s13
    %p10 = scmp.ge.s32.totalorder %s9, 4
    %s19 = sphi 0, %s21
    %s22 = sphi 0, %s19
    %s23 = sphi 0, %s22
    %s39 = sphi 0, %s23
    %s43 = sphi 0, %s43
    %s45 = sphi 0, %s43
    %s46 = sphi 0, %s45
    %s60 = sphi 0, %s46
    %s64 = sphi 0, %s64
    %s66 = sphi 0, %s64
    %s67 = sphi 0, %s66
    %s81 = sphi 0, %s67
    %s87 = sphi 0, %s89
    %s90 = sphi 0, %s87
    %s91 = sphi 0, %s90
    %s107 = sphi 0, %s91
  $region4: #{up_forward.4} parent=0 // loop_header_branch
    %12 = sbr.rel (%p10) target = $region8
  $region5: #{up_forward.4} parent=0 // loop_body
    %s14 = ssub.s32 %s9, 1
    %s15 = ssub.s32 %s9, 2
    %s16 = sadd.s32 %s9, 1
    %s17 = ssub.s32 %s9, %s16
    %p18 = scmp.eq.s32.totalorder %s17, 0
    %s20 = sadd.s32 %s19, 1
    %s21 = scalar_select %p18, %s19, %s20
    %p24 = pneg %p18
    %p25 = scmp.eq.s32.totalorder %s9, 1
    %p26 = por %p24, %p25
    %p27 = scmp.ne.s32.totalorder %s19, %s22
    %p28 = scmp.eq.s32.totalorder %s9, 0
    %p29 = por %p27, %p28
    %p30 = scmp.ne.s32.totalorder %s19, %s22
    %p31 = scmp.eq.s32.totalorder %s14, 1
    %p32 = por %p30, %p31
    %p33 = scmp.ne.s32.totalorder %s22, %s23
    %p34 = scmp.eq.s32.totalorder %s14, 0
    %p35 = por %p33, %p34
    %p36 = scmp.ne.s32.totalorder %s22, %s23
    %p37 = scmp.eq.s32.totalorder %s15, 1
    %p38 = por %p36, %p37
    %p40 = scmp.ne.s32.totalorder %s23, %s39
    %p41 = scmp.eq.s32.totalorder %s15, 0
    %p42 = por %p40, %p41
    %s44 = sadd.s32 %s43, 1
    %p47 = scmp.eq.s32.totalorder %s9, 1
    %p48 = scmp.ne.s32.totalorder %s43, %s45
    %p49 = scmp.eq.s32.totalorder %s9, 0
    %p50 = por %p48, %p49
    %p51 = scmp.ne.s32.totalorder %s43, %s45
    %p52 = scmp.eq.s32.totalorder %s14, 1
    %p53 = por %p51, %p52
    %p54 = scmp.ne.s32.totalorder %s45, %s46
    %p55 = scmp.eq.s32.totalorder %s14, 0
    %p56 = por %p54, %p55
    %p57 = scmp.ne.s32.totalorder %s45, %s46
    %p58 = scmp.eq.s32.totalorder %s15, 1
    %p59 = por %p57, %p58
    %p61 = scmp.ne.s32.totalorder %s46, %s60
    %p62 = scmp.eq.s32.totalorder %s15, 0
    %p63 = por %p61, %p62
    %s65 = sadd.s32 %s64, 1
    %p68 = scmp.eq.s32.totalorder %s9, 1
    %p69 = scmp.ne.s32.totalorder %s64, %s66
    %p70 = scmp.eq.s32.totalorder %s9, 0
    %p71 = por %p69, %p70
    %p72 = scmp.ne.s32.totalorder %s64, %s66
    %p73 = scmp.eq.s32.totalorder %s14, 1
    %p74 = por %p72, %p73
    %p75 = scmp.ne.s32.totalorder %s66, %s67
    %p76 = scmp.eq.s32.totalorder %s14, 0
    %p77 = por %p75, %p76
    %p78 = scmp.ne.s32.totalorder %s66, %s67
    %p79 = scmp.eq.s32.totalorder %s15, 1
    %p80 = por %p78, %p79
    %p82 = scmp.ne.s32.totalorder %s67, %s81
    %p83 = scmp.eq.s32.totalorder %s15, 0
    %p84 = por %p82, %p83
    %s85 = ssub.s32 %s9, %s16
    %p86 = scmp.eq.s32.totalorder %s85, 0
    %s88 = sadd.s32 %s87, 1
    %s89 = scalar_select %p86, %s87, %s88
    %p92 = pneg %p86
    %p93 = scmp.eq.s32.totalorder %s9, 1
    %p94 = por %p92, %p93
    %p95 = scmp.ne.s32.totalorder %s87, %s90
    %p96 = scmp.eq.s32.totalorder %s9, 0
    %p97 = por %p95, %p96
    %p98 = scmp.ne.s32.totalorder %s87, %s90
    %p99 = scmp.eq.s32.totalorder %s14, 1
    %p100 = por %p98, %p99
    %p101 = scmp.ne.s32.totalorder %s90, %s91
    %p102 = scmp.eq.s32.totalorder %s14, 0
    %p103 = por %p101, %p102
    %p104 = scmp.ne.s32.totalorder %s90, %s91
    %p105 = scmp.eq.s32.totalorder %s15, 1
    %p106 = por %p104, %p105
    %p108 = scmp.ne.s32.totalorder %s91, %s107
    %p109 = scmp.eq.s32.totalorder %s15, 0
    %p110 = por %p108, %p109
    %p111 = scmp.le.s32.totalorder 1, %s9
    %p112 = scmp.lt.s32.totalorder %s9, 3
    %p113 = pnand %p111, %p112
    %p114 = pneg %p113
    // Predicated region
    $region9: #{up_forward.4} parent=5 // pred_check
      _
    $region10: #{up_forward.4} parent=5 // pred_check_branch
      %116 = sbr.rel (%p113) target = $region12
    $region11: #{up_forward.4} parent=5 // pred_region
      %s117 = ssub.s32 %s9, 1
      // Predicated region
      $region13: #{up_forward.4} parent=11 // pred_check
        %p118 = pneg %p56
      $region14: #{up_forward.4} parent=11 // pred_check_branch
        %120 = sbr.rel (%p118) target = $region16
      $region15: #{up_forward.4} parent=11 // pred_region
        _
      $region16: #{up_forward.4} parent=11 // pred_fallthru
        _
      // Predicated region
      $region17: #{up_forward.4} parent=11 // pred_check
        %p121 = pneg %p77
      $region18: #{up_forward.4} parent=11 // pred_check_branch
        %123 = sbr.rel (%p121) target = $region20
      $region19: #{up_forward.4} parent=11 // pred_region
        _
      $region20: #{up_forward.4} parent=11 // pred_fallthru
        _
    $region12: #{up_forward.4} parent=5 // pred_fallthru
      _
    %p124 = scmp.lt.s32.totalorder %s9, 2
    // Predicated region
    $region21: #{up_forward.4} parent=5 // pred_check
      %p125 = pneg %p124
    $region22: #{up_forward.4} parent=5 // pred_check_branch
      %127 = sbr.rel (%p125) target = $region24
    $region23: #{up_forward.4} parent=5 // pred_region
      // Predicated region
      $region25: #{up_forward.4} parent=23 // pred_check
        %p128 = pneg %p29
      $region26: #{up_forward.4} parent=23 // pred_check_branch
        %130 = sbr.rel (%p128) target = $region28
      $region27: #{up_forward.4} parent=23 // pred_region
        %p131 = scmp.lt.s32.totalorder %s9, 1
        %s132 = scalar_select %p131, %s9, 1
        %s133 = smul.addr %s132, 8
        %s134 = scalar_lea.vmem %s0, %s133
      $region28: #{up_forward.4} parent=23 // pred_fallthru
        _
    $region24: #{up_forward.4} parent=5 // pred_fallthru
      _
    %p135 = scmp.le.s32.totalorder 1, %s9
    %p136 = scmp.lt.s32.totalorder %s9, 3
    %p137 = pnand %p135, %p136
    %p138 = pneg %p137
    // Predicated region
    $region29: #{up_forward.4} parent=5 // pred_check
      _
    $region30: #{up_forward.4} parent=5 // pred_check_branch
      %140 = sbr.rel (%p137) target = $region32
    $region31: #{up_forward.4} parent=5 // pred_region
      %s141 = ssub.s32 %s9, 1
      %p142 = scmp.lt.s32.totalorder %s14, 1
      %s143 = scalar_select %p142, %s14, 1
      %s144 = smul.addr %s143, 8
      %s145 = scalar_lea.vmem %s0, %s144
      %p146 = pneg %p35
      %p147 = pneg %p32
      %p148 = pneg %p56
      %p149 = pneg %p53
      %p150 = pneg %p77
      %p151 = pneg %p74
      %p152 = pneg %p103
      %p153 = pneg %p100
      %p154 = scmp.lt.s32.totalorder %s14, 1
      %s155 = scalar_select %p154, %s14, 1
      %s156 = smul.addr %s155, 4
      %s157 = smul.addr %s156, 8
      %s158 = scalar_lea.vmem %s3, %s157
      %p159 = scmp.lt.s32.totalorder %s14, 1
      %s160 = scalar_select %p159, %s14, 1
      %s161 = smul.addr %s160, 8
      %s162 = scalar_lea.vmem %s0, %s161
      %p163 = scmp.lt.s32.totalorder %s14, 1
      %s164 = scalar_select %p163, %s14, 1
      %s165 = smul.addr %s164, 4
      %s166 = smul.addr %s165, 8
      %s167 = scalar_lea.vmem %s3, %s166
      %v168 = vld [vmem:[%s1] sm:$0xff]
      %v169 = vld [vmem:[%s1 + $0x8] sm:$0xff]
      %v170 = vld [vmem:[%s1 + $0x10] sm:$0xff]
      %v171 = vld [vmem:[%s1 + $0x18] sm:$0xff]
      %v172 = vld [vmem:[%s162] sm:$0xff]
      %v173 = vld [vmem:[%s2] sm:$0xff]
      %v174 = vld [vmem:[%s2 + $0x8] sm:$0xff]
      %v175 = vld [vmem:[%s2 + $0x10] sm:$0xff]
      %v176 = vld [vmem:[%s2 + $0x18] sm:$0xff]
      %178 = vset.pattern.permute.xlu0 0
      %179 = vperm.xlu0 %178, %v173
      %v180 = vpop.permute.xlu0 %179
      %183 = vset.pattern.permute.xlu0 0
      %184 = vperm.xlu0 %183, %v174
      %v185 = vpop.permute.xlu0 %184
      %188 = vset.pattern.permute.xlu0 0
      %189 = vperm.xlu0 %188, %v175
      %v190 = vpop.permute.xlu0 %189
      %193 = vset.pattern.permute.xlu0 0
      %194 = vperm.xlu0 %193, %v176
      %v195 = vpop.permute.xlu0 %194
      %vm197 = vcmask 64512
      %v199 = vsel %vm197, %v168, 0
      %v202 = vsel %vm197, %v169, 0
      %v205 = vsel %vm197, %v170, 0
      %v208 = vsel %vm197, %v171, 0
      %210 = vmatprep.subr.mxu0 0.0
      %211 = vmatpush1.msra.mxu0 %v172
      %212 = vmatprep.subr.mxu0 0.0
      %213 = vmatpush1.msra.mxu0 0.0
      %214 = vmatprep.subr.mxu0 0.0
      %215 = vmatpush1.msra.mxu0 0.0
      %216 = vmatprep.subr.mxu0 0.0
      %217 = vmatpush1.msra.mxu0 0.0
      %218 = vmatprep.subr.mxu0 0.0
      %219 = vmatpush1.msra.mxu0 0.0
      %220 = vmatprep.subr.mxu0 0.0
      %221 = vmatpush1.msra.mxu0 0.0
      %222 = vmatprep.subr.mxu0 0.0
      %223 = vmatpush1.msra.mxu0 0.0
      %224 = vmatprep.subr.mxu0 0.0
      %225 = vmatpush1.msra.mxu0 0.0
      %226 = vmatprep.subr.mxu0 0.0
      %227 = vmatpush1.msra.mxu0 0.0
      %228 = vmatprep.subr.mxu0 0.0
      %229 = vmatpush1.msra.mxu0 0.0
      %230 = vmatprep.subr.mxu0 0.0
      %231 = vmatpush1.msra.mxu0 0.0
      %232 = vmatprep.subr.mxu0 0.0
      %233 = vmatpush1.msra.mxu0 0.0
      %234 = vmatprep.subr.mxu0 0.0
      %235 = vmatpush1.msra.mxu0 0.0
      %236 = vmatprep.subr.mxu0 0.0
      %237 = vmatpush1.msra.mxu0 0.0
      %238 = vmatprep.subr.mxu0 0.0
      %239 = vmatpush1.msra.mxu0 0.0
      %240 = vmatprep.subr.mxu0 0.0
      %241 = vmatpush1.msra.mxu0 0.0
      %242 = vmatprep.subr.mxu0 0.0
      %243 = vmatpush1.msra.mxu0 0.0
      %244 = vmatprep.subr.mxu0 0.0
      %245 = vmatpush1.msra.mxu0 0.0
      %246 = vmatprep.subr.mxu0 0.0
      %247 = vmatpush1.msra.mxu0 0.0
      %248 = vmatprep.subr.mxu0 0.0
      %249 = vmatpush1.msra.mxu0 0.0
      %250 = vmatprep.subr.mxu0 0.0
      %251 = vmatpush1.msra.mxu0 0.0
      %252 = vmatprep.subr.mxu0 0.0
      %253 = vmatpush1.msra.mxu0 0.0
      %254 = vmatprep.subr.mxu0 0.0
      %255 = vmatpush1.msra.mxu0 0.0
      %256 = vmatprep.subr.mxu0 0.0
      %257 = vmatpush1.msra.mxu0 0.0
      %258 = vmatprep.subr.mxu0 0.0
      %259 = vmatpush1.msra.mxu0 0.0
      %260 = vmatprep.subr.mxu0 0.0
      %261 = vmatpush1.msra.mxu0 0.0
      %262 = vmatprep.subr.mxu0 0.0
      %263 = vmatpush1.msra.mxu0 0.0
      %264 = vmatprep.subr.mxu0 0.0
      %265 = vmatpush1.msra.mxu0 0.0
      %266 = vmatprep.subr.mxu0 0.0
      %267 = vmatpush1.msra.mxu0 0.0
      %268 = vmatprep.subr.mxu0 0.0
      %269 = vmatpush1.msra.mxu0 0.0
      %270 = vmatprep.subr.mxu0 0.0
      %271 = vmatpush1.msra.mxu0 0.0
      %272 = vmatprep.subr.mxu0 0.0
      %273 = vmatpush1.msra.mxu0 0.0
      %274 = vmatprep.mubr.f32.mxu0 0.0
      %275 = vmatmul.mubr.f32.gmra.mrb[0].mxu0 %v199
      %v276 = vpop.f32.mrb[0].mxu0
      %v277 = vadd.f32 %v180, %v276
      %v278 = vpop.f32.mrb[0].mxu0
      %279 = vmatprep.mubr.f32.mxu0 0.0
      %280 = vmatmul.mubr.f32.gmra.mrb[0].mxu0 %v202
      %v281 = vpop.f32.mrb[0].mxu0
      %v282 = vadd.f32 %v185, %v281
      %v283 = vpop.f32.mrb[0].mxu0
      %284 = vmatprep.mubr.f32.mxu0 0.0
      %285 = vmatmul.mubr.f32.gmra.mrb[0].mxu0 %v205
      %v286 = vpop.f32.mrb[0].mxu0
      %v287 = vadd.f32 %v190, %v286
      %v288 = vpop.f32.mrb[0].mxu0
      %289 = vmatprep.mubr.f32.mxu0 0.0
      %290 = vmatmul.mubr.f32.gmra.mrb[0].mxu0 %v208
      %v291 = vpop.f32.mrb[0].mxu0
      %v292 = vadd.f32 %v195, %v291
      %v293 = vpop.f32.mrb[0].mxu0
      %294 = vdwg.mxu0
      %vm295 = vcmask 523264
      %296 = vst.msk [vmem:[%s167] sm:$0xff] %vm295, %v277
      %297 = vst.msk [vmem:[%s167 + $0x8] sm:$0xff] %vm295, %v282
      %298 = vst.msk [vmem:[%s167 + $0x10] sm:$0xff] %vm295, %v287
      %299 = vst.msk [vmem:[%s167 + $0x18] sm:$0xff] %vm295, %v292
      %p300 = scmp.lt.s32.totalorder %s14, 1
      %s301 = scalar_select %p300, %s14, 1
      %s302 = smul.addr %s301, 4
      %s303 = smul.addr %s302, 8
      %s304 = scalar_lea.vmem %s3, %s303
      // Predicated region
      $region33: #{up_forward.4} parent=31 // pred_check
        %p305 = pneg %p100
      $region34: #{up_forward.4} parent=31 // pred_check_branch
        %307 = sbr.rel (%p305) target = $region36
      $region35: #{up_forward.4} parent=31 // pred_region
        _
      $region36: #{up_forward.4} parent=31 // pred_fallthru
        _
    $region32: #{up_forward.4} parent=5 // pred_fallthru
      _
    %p308 = scmp.le.s32.totalorder 2, %s9
    // Predicated region
    $region37: #{up_forward.4} parent=5 // pred_check
      %p309 = pneg %p308
    $region38: #{up_forward.4} parent=5 // pred_check_branch
      %311 = sbr.rel (%p309) target = $region40
    $region39: #{up_forward.4} parent=5 // pred_region
      %s312 = ssub.s32 %s9, 2
      // Predicated region
      $region41: #{up_forward.4} parent=39 // pred_check
        %p313 = pneg %p106
      $region42: #{up_forward.4} parent=39 // pred_check_branch
        %315 = sbr.rel (%p313) target = $region44
      $region43: #{up_forward.4} parent=39 // pred_region
        %p316 = scmp.lt.s32.totalorder %s15, 1
        %s317 = scalar_select %p316, %s15, 1
        %s318 = smul.addr %s317, 4
        %s319 = smul.addr %s318, 8
        %s320 = scalar_lea.vmem %s3, %s319
      $region44: #{up_forward.4} parent=39 // pred_fallthru
        _
    $region40: #{up_forward.4} parent=5 // pred_fallthru
      _
  $region6: #{up_forward.4} parent=0 // loop_footer
    %s13 = sadd.s32 1, %s9
  $region7: #{up_forward.4} parent=0 // loop_footer_branch
    %8 = sbr.rel target = $region3
  $region8: #{up_forward.4} parent=0 // loop_exit
    _

// kernel: up_forward.7
$region0: #{up_forward.7}
  #allocation0 [shape = 'u32[]', space=smem, size = 0x4, offset = 0x4, fixed_abs, tag = 'smem constant byte address 0x4 - core index']
  #allocation1 [shape = 'u32[144,128]{1,0:T(1,128)}', space=vmem, size = 0x12000, scoped, tag = 'internal scratch']
  %s0 = inlined_call_operand.vmem [shape: f32[2,4,1000], index: 0, kind: input, shape index: {}]
  %s1 = inlined_call_operand.vmem [shape: f32[4,1], index: 1, kind: input, shape index: {}]
  %s2 = inlined_call_operand.vmem [shape: f32[4,1], index: 2, kind: input, shape index: {}]
  %s3 = inlined_call_operand.vmem [shape: f32[2,4,1000], index: 3, kind: output, shape index: {}]
  %s4 = sld [smem:[#allocation0]]
  $region45: #{up_forward.7} parent=0
    _
  %s6 = ssub.s32 1, %s4
  %s7 = scalar_select 0, %s6, %s4
  loop: start=0, step=1, limit=4
  $region2: #{up_forward.7} parent=0 // loop_pre_header
    _
  $region3: #{up_forward.7} parent=0 // loop_header
    %s9 = sphi 0, %s13
    %p10 = scmp.ge.s32.totalorder %s9, 4
    %s19 = sphi 0, %s21
    %s22 = sphi 0, %s19
    %s23 = sphi 0, %s22
    %s39 = sphi 0, %s23
    %s43 = sphi 0, %s43
    %s45 = sphi 0, %s43
    %s46 = sphi 0, %s45
    %s60 = sphi 0, %s46
    %s64 = sphi 0, %s64
    %s66 = sphi 0, %s64
    %s67 = sphi 0, %s66
    %s81 = sphi 0, %s67
    %s87 = sphi 0, %s89
    %s90 = sphi 0, %s87
    %s91 = sphi 0, %s90
    %s107 = sphi 0, %s91
  $region4: #{up_forward.7} parent=0 // loop_header_branch
    %12 = sbr.rel (%p10) target = $region8
  $region5: #{up_forward.7} parent=0 // loop_body
    %s14 = ssub.s32 %s9, 1
    %s15 = ssub.s32 %s9, 2
    %s16 = sadd.s32 %s9, 1
    %s17 = ssub.s32 %s9, %s16
    %p18 = scmp.eq.s32.totalorder %s17, 0
    %s20 = sadd.s32 %s19, 1
    %s21 = scalar_select %p18, %s19, %s20
    %p24 = pneg %p18
    %p25 = scmp.eq.s32.totalorder %s9, 1
    %p26 = por %p24, %p25
    %p27 = scmp.ne.s32.totalorder %s19, %s22
    %p28 = scmp.eq.s32.totalorder %s9, 0
    %p29 = por %p27, %p28
    %p30 = scmp.ne.s32.totalorder %s19, %s22
    %p31 = scmp.eq.s32.totalorder %s14, 1
    %p32 = por %p30, %p31
    %p33 = scmp.ne.s32.totalorder %s22, %s23
    %p34 = scmp.eq.s32.totalorder %s14, 0
    %p35 = por %p33, %p34
    %p36 = scmp.ne.s32.totalorder %s22, %s23
    %p37 = scmp.eq.s32.totalorder %s15, 1
    %p38 = por %p36, %p37
    %p40 = scmp.ne.s32.totalorder %s23, %s39
    %p41 = scmp.eq.s32.totalorder %s15, 0
    %p42 = por %p40, %p41
    %s44 = sadd.s32 %s43, 1
    %p47 = scmp.eq.s32.totalorder %s9, 1
    %p48 = scmp.ne.s32.totalorder %s43, %s45
    %p49 = scmp.eq.s32.totalorder %s9, 0
    %p50 = por %p48, %p49
    %p51 = scmp.ne.s32.totalorder %s43, %s45
    %p52 = scmp.eq.s32.totalorder %s14, 1
    %p53 = por %p51, %p52
    %p54 = scmp.ne.s32.totalorder %s45, %s46
    %p55 = scmp.eq.s32.totalorder %s14, 0
    %p56 = por %p54, %p55
    %p57 = scmp.ne.s32.totalorder %s45, %s46
    %p58 = scmp.eq.s32.totalorder %s15, 1
    %p59 = por %p57, %p58
    %p61 = scmp.ne.s32.totalorder %s46, %s60
    %p62 = scmp.eq.s32.totalorder %s15, 0
    %p63 = por %p61, %p62
    %s65 = sadd.s32 %s64, 1
    %p68 = scmp.eq.s32.totalorder %s9, 1
    %p69 = scmp.ne.s32.totalorder %s64, %s66
    %p70 = scmp.eq.s32.totalorder %s9, 0
    %p71 = por %p69, %p70
    %p72 = scmp.ne.s32.totalorder %s64, %s66
    %p73 = scmp.eq.s32.totalorder %s14, 1
    %p74 = por %p72, %p73
    %p75 = scmp.ne.s32.totalorder %s66, %s67
    %p76 = scmp.eq.s32.totalorder %s14, 0
    %p77 = por %p75, %p76
    %p78 = scmp.ne.s32.totalorder %s66, %s67
    %p79 = scmp.eq.s32.totalorder %s15, 1
    %p80 = por %p78, %p79
    %p82 = scmp.ne.s32.totalorder %s67, %s81
    %p83 = scmp.eq.s32.totalorder %s15, 0
    %p84 = por %p82, %p83
    %s85 = ssub.s32 %s9, %s16
    %p86 = scmp.eq.s32.totalorder %s85, 0
    %s88 = sadd.s32 %s87, 1
    %s89 = scalar_select %p86, %s87, %s88
    %p92 = pneg %p86
    %p93 = scmp.eq.s32.totalorder %s9, 1
    %p94 = por %p92, %p93
    %p95 = scmp.ne.s32.totalorder %s87, %s90
    %p96 = scmp.eq.s32.totalorder %s9, 0
    %p97 = por %p95, %p96
    %p98 = scmp.ne.s32.totalorder %s87, %s90
    %p99 = scmp.eq.s32.totalorder %s14, 1
    %p100 = por %p98, %p99
    %p101 = scmp.ne.s32.totalorder %s90, %s91
    %p102 = scmp.eq.s32.totalorder %s14, 0
    %p103 = por %p101, %p102
    %p104 = scmp.ne.s32.totalorder %s90, %s91
    %p105 = scmp.eq.s32.totalorder %s15, 1
    %p106 = por %p104, %p105
    %p108 = scmp.ne.s32.totalorder %s91, %s107
    %p109 = scmp.eq.s32.totalorder %s15, 0
    %p110 = por %p108, %p109
    %p111 = scmp.le.s32.totalorder 1, %s9
    %p112 = scmp.lt.s32.totalorder %s9, 3
    %p113 = pnand %p111, %p112
    %p114 = pneg %p113
    // Predicated region
    $region9: #{up_forward.7} parent=5 // pred_check
      _
    $region10: #{up_forward.7} parent=5 // pred_check_branch
      %116 = sbr.rel (%p113) target = $region12
    $region11: #{up_forward.7} parent=5 // pred_region
      %s117 = ssub.s32 %s9, 1
      // Predicated region
      $region13: #{up_forward.7} parent=11 // pred_check
        %p118 = pneg %p56
      $region14: #{up_forward.7} parent=11 // pred_check_branch
        %120 = sbr.rel (%p118) target = $region16
      $region15: #{up_forward.7} parent=11 // pred_region
        _
      $region16: #{up_forward.7} parent=11 // pred_fallthru
        _
      // Predicated region
      $region17: #{up_forward.7} parent=11 // pred_check
        %p121 = pneg %p77
      $region18: #{up_forward.7} parent=11 // pred_check_branch
        %123 = sbr.rel (%p121) target = $region20
      $region19: #{up_forward.7} parent=11 // pred_region
        _
      $region20: #{up_forward.7} parent=11 // pred_fallthru
        _
    $region12: #{up_forward.7} parent=5 // pred_fallthru
      _
    %p124 = scmp.lt.s32.totalorder %s9, 2
    // Predicated region
    $region21: #{up_forward.7} parent=5 // pred_check
      %p125 = pneg %p124
    $region22: #{up_forward.7} parent=5 // pred_check_branch
      %127 = sbr.rel (%p125) target = $region24
    $region23: #{up_forward.7} parent=5 // pred_region
      // Predicated region
      $region25: #{up_forward.7} parent=23 // pred_check
        %p128 = pneg %p29
      $region26: #{up_forward.7} parent=23 // pred_check_branch
        %130 = sbr.rel (%p128) target = $region28
      $region27: #{up_forward.7} parent=23 // pred_region
        %p131 = scmp.lt.s32.totalorder %s9, 1
        %s132 = scalar_select %p131, %s9, 1
        %s133 = smul.addr %s132, 8
        %s134 = smul.addr %s133, 4
        %s135 = scalar_lea.vmem %s0, %s134
      $region28: #{up_forward.7} parent=23 // pred_fallthru
        _
    $region24: #{up_forward.7} parent=5 // pred_fallthru
      _
    %p136 = scmp.le.s32.totalorder 1, %s9
    %p137 = scmp.lt.s32.totalorder %s9, 3
    %p138 = pnand %p136, %p137
    %p139 = pneg %p138
    // Predicated region
    $region29: #{up_forward.7} parent=5 // pred_check
      _
    $region30: #{up_forward.7} parent=5 // pred_check_branch
      %141 = sbr.rel (%p138) target = $region32
    $region31: #{up_forward.7} parent=5 // pred_region
      %s142 = ssub.s32 %s9, 1
      %p143 = scmp.lt.s32.totalorder %s14, 1
      %s144 = scalar_select %p143, %s14, 1
      %s145 = smul.addr %s144, 8
      %s146 = smul.addr %s145, 4
      %s147 = scalar_lea.vmem %s0, %s146
      %p148 = pneg %p35
      %p149 = pneg %p32
      %p150 = pneg %p56
      %p151 = pneg %p53
      %p152 = pneg %p77
      %p153 = pneg %p74
      %p154 = pneg %p103
      %p155 = pneg %p100
      %p156 = scmp.lt.s32.totalorder %s14, 1
      %s157 = scalar_select %p156, %s14, 1
      %s158 = smul.addr %s157, 8
      %s159 = smul.addr %s158, 4
      %s160 = scalar_lea.vmem %s3, %s159
      %p161 = scmp.lt.s32.totalorder %s14, 1
      %s162 = scalar_select %p161, %s14, 1
      %s163 = smul.addr %s162, 8
      %s164 = smul.addr %s163, 4
      %s165 = scalar_lea.vmem %s0, %s164
      %p166 = scmp.lt.s32.totalorder %s14, 1
      %s167 = scalar_select %p166, %s14, 1
      %s168 = smul.addr %s167, 8
      %s169 = smul.addr %s168, 4
      %s170 = scalar_lea.vmem %s3, %s169
      %v171 = vld [vmem:[%s165] sm:$0xff]
      %v172 = vld [vmem:[%s165 + $0x8] sm:$0xff]
      %v173 = vld [vmem:[%s165 + $0x10] sm:$0xff]
      %v174 = vld [vmem:[%s165 + $0x18] sm:$0xff]
      %v175 = vld [vmem:[%s1] sm:$0xf]
      %177 = vset.pattern.permute.xlu0 0
      %178 = vperm.xlu0 %177, %v175
      %v179 = vpop.permute.xlu0 %178
      %v181 = vunpack.c.l.s4 839922192
      %v182 = vunpack.c.0.s8 %v181
      %v183 = vlaneseq
      %v184 = vshrl.u32 %v183, 7
      %v185 = vsub.s32 %v182, %v184
      %v186 = vrot.slane %v179, %v185
      %v188 = vmul.f32 %v171, %v186
      %v189 = vmul.f32 %v172, %v186
      %v190 = vmul.f32 %v173, %v186
      %v191 = vmul.f32 %v174, %v186
      %v192 = vld [vmem:[%s2] sm:$0xf]
      %194 = vset.pattern.permute.xlu0 0
      %195 = vperm.xlu0 %194, %v192
      %v196 = vpop.permute.xlu0 %195
      %v198 = vunpack.c.l.s4 839922192
      %v199 = vunpack.c.0.s8 %v198
      %v200 = vlaneseq
      %v201 = vshrl.u32 %v200, 7
      %v202 = vsub.s32 %v199, %v201
      %v203 = vrot.slane %v196, %v202
      %v205 = vadd.f32 %v188, %v203
      %v206 = vadd.f32 %v189, %v203
      %v207 = vadd.f32 %v190, %v203
      %v208 = vadd.f32 %v191, %v203
      %v209 = vmax.f32 %v205, 0.0
      %v210 = vmax.f32 %v206, 0.0
      %v211 = vmax.f32 %v207, 0.0
      %v212 = vmax.f32 %v208, 0.0
      %213 = vst [vmem:[%s170] sm:$0xff] %v209
      %214 = vst [vmem:[%s170 + $0x8] sm:$0xff] %v210
      %215 = vst [vmem:[%s170 + $0x10] sm:$0xff] %v211
      %vm216 = vcmask 1043456
      %vm217 = vcmask 850948
      %vm218 = vmor %vm217, %vm216
      %219 = vst.msk [vmem:[%s170 + $0x18] sm:$0xff] %vm218, %v212
      %p220 = scmp.lt.s32.totalorder %s14, 1
      %s221 = scalar_select %p220, %s14, 1
      %s222 = smul.addr %s221, 8
      %s223 = smul.addr %s222, 4
      %s224 = scalar_lea.vmem %s3, %s223
      // Predicated region
      $region33: #{up_forward.7} parent=31 // pred_check
        %p225 = pneg %p100
      $region34: #{up_forward.7} parent=31 // pred_check_branch
        %227 = sbr.rel (%p225) target = $region36
      $region35: #{up_forward.7} parent=31 // pred_region
        _
      $region36: #{up_forward.7} parent=31 // pred_fallthru
        _
    $region32: #{up_forward.7} parent=5 // pred_fallthru
      _
    %p228 = scmp.le.s32.totalorder 2, %s9
    // Predicated region
    $region37: #{up_forward.7} parent=5 // pred_check
      %p229 = pneg %p228
    $region38: #{up_forward.7} parent=5 // pred_check_branch
      %231 = sbr.rel (%p229) target = $region40
    $region39: #{up_forward.7} parent=5 // pred_region
      %s232 = ssub.s32 %s9, 2
      // Predicated region
      $region41: #{up_forward.7} parent=39 // pred_check
        %p233 = pneg %p106
      $region42: #{up_forward.7} parent=39 // pred_check_branch
        %235 = sbr.rel (%p233) target = $region44
      $region43: #{up_forward.7} parent=39 // pred_region
        %p236 = scmp.lt.s32.totalorder %s15, 1
        %s237 = scalar_select %p236, %s15, 1
        %s238 = smul.addr %s237, 8
        %s239 = smul.addr %s238, 4
        %s240 = scalar_lea.vmem %s3, %s239
      $region44: #{up_forward.7} parent=39 // pred_fallthru
        _
    $region40: #{up_forward.7} parent=5 // pred_fallthru
      _
  $region6: #{up_forward.7} parent=0 // loop_footer
    %s13 = sadd.s32 1, %s9
  $region7: #{up_forward.7} parent=0 // loop_footer_branch
    %8 = sbr.rel target = $region3
  $region8: #{up_forward.7} parent=0 // loop_exit
    _

// kernel: up_forward.6
$region0: #{up_forward.6}
  #allocation0 [shape = 'u32[]', space=smem, size = 0x4, offset = 0x4, fixed_abs, tag = 'smem constant byte address 0x4 - core index']
  #allocation1 [shape = 'u32[144,128]{1,0:T(1,128)}', space=vmem, size = 0x12000, scoped, tag = 'internal scratch']
  #allocation2 [shape = 'f32[108,1000]{1,0:T(8,128)}', space=vmem, size = 0x70000, scoped, tag = 'scratch operand']
  %s0 = inlined_call_operand.vmem [shape: f32[1,1000], index: 0, kind: input, shape index: {}]
  %s1 = inlined_call_operand.vmem [shape: f32[2,4,1000], index: 1, kind: input, shape index: {}]
  %s2 = inlined_call_operand.vmem [shape: bf16[4,108], index: 2, kind: input, shape index: {}]
  %s3 = inlined_call_operand.vmem [shape: f32[4,1], index: 3, kind: input, shape index: {}]
  %s4 = inlined_call_operand.vmem [shape: f32[4,1], index: 4, kind: input, shape index: {}]
  %s5 = inlined_call_operand.vmem [shape: f32[4,1], index: 5, kind: input, shape index: {}]
  %s6 = inlined_call_operand.vmem [shape: f32[2,4,1000], index: 6, kind: output, shape index: {0}]
  %s7 = inlined_call_operand.vmem [shape: f32[2,4,2], index: 7, kind: output, shape index: {1}]
  %8 = xla_tuple %s6, %s7
  %s9 = sld [smem:[#allocation0]]
  $region65: #{up_forward.6} parent=0
    _
  %s11 = ssub.s32 1, %s9
  %s12 = scalar_select 0, %s11, %s9
  loop: start=0, step=1, limit=4
  $region2: #{up_forward.6} parent=0 // loop_pre_header
    _
  $region3: #{up_forward.6} parent=0 // loop_header
    %s14 = sphi 0, %s18
    %p15 = scmp.ge.s32.totalorder %s14, 4
    %s22 = sphi 0, %s22
    %s24 = sphi 0, %s22
    %s25 = sphi 0, %s24
    %s39 = sphi 0, %s25
    %s45 = sphi 0, %s47
    %s48 = sphi 0, %s45
    %s49 = sphi 0, %s48
    %s65 = sphi 0, %s49
    %s69 = sphi 0, %s69
    %s71 = sphi 0, %s69
    %s72 = sphi 0, %s71
    %s86 = sphi 0, %s72
    %s90 = sphi 0, %s90
    %s92 = sphi 0, %s90
    %s93 = sphi 0, %s92
    %s107 = sphi 0, %s93
    %s111 = sphi 0, %s111
    %s113 = sphi 0, %s111
    %s114 = sphi 0, %s113
    %s128 = sphi 0, %s114
    %s132 = sphi 0, %s132
    %s134 = sphi 0, %s132
    %s135 = sphi 0, %s134
    %s149 = sphi 0, %s135
    %s155 = sphi 0, %s157
    %s158 = sphi 0, %s155
    %s159 = sphi 0, %s158
    %s175 = sphi 0, %s159
    %s181 = sphi 0, %s183
    %s184 = sphi 0, %s181
    %s185 = sphi 0, %s184
    %s201 = sphi 0, %s185
  $region4: #{up_forward.6} parent=0 // loop_header_branch
    %17 = sbr.rel (%p15) target = $region8
  $region5: #{up_forward.6} parent=0 // loop_body
    %s19 = ssub.s32 %s14, 1
    %s20 = ssub.s32 %s14, 2
    %s21 = sadd.s32 %s14, 1
    %s23 = sadd.s32 %s22, 1
    %p26 = scmp.eq.s32.totalorder %s14, 1
    %p27 = scmp.ne.s32.totalorder %s22, %s24
    %p28 = scmp.eq.s32.totalorder %s14, 0
    %p29 = por %p27, %p28
    %p30 = scmp.ne.s32.totalorder %s22, %s24
    %p31 = scmp.eq.s32.totalorder %s19, 1
    %p32 = por %p30, %p31
    %p33 = scmp.ne.s32.totalorder %s24, %s25
    %p34 = scmp.eq.s32.totalorder %s19, 0
    %p35 = por %p33, %p34
    %p36 = scmp.ne.s32.totalorder %s24, %s25
    %p37 = scmp.eq.s32.totalorder %s20, 1
    %p38 = por %p36, %p37
    %p40 = scmp.ne.s32.totalorder %s25, %s39
    %p41 = scmp.eq.s32.totalorder %s20, 0
    %p42 = por %p40, %p41
    %s43 = ssub.s32 %s14, %s21
    %p44 = scmp.eq.s32.totalorder %s43, 0
    %s46 = sadd.s32 %s45, 1
    %s47 = scalar_select %p44, %s45, %s46
    %p50 = pneg %p44
    %p51 = scmp.eq.s32.totalorder %s14, 1
    %p52 = por %p50, %p51
    %p53 = scmp.ne.s32.totalorder %s45, %s48
    %p54 = scmp.eq.s32.totalorder %s14, 0
    %p55 = por %p53, %p54
    %p56 = scmp.ne.s32.totalorder %s45, %s48
    %p57 = scmp.eq.s32.totalorder %s19, 1
    %p58 = por %p56, %p57
    %p59 = scmp.ne.s32.totalorder %s48, %s49
    %p60 = scmp.eq.s32.totalorder %s19, 0
    %p61 = por %p59, %p60
    %p62 = scmp.ne.s32.totalorder %s48, %s49
    %p63 = scmp.eq.s32.totalorder %s20, 1
    %p64 = por %p62, %p63
    %p66 = scmp.ne.s32.totalorder %s49, %s65
    %p67 = scmp.eq.s32.totalorder %s20, 0
    %p68 = por %p66, %p67
    %s70 = sadd.s32 %s69, 1
    %p73 = scmp.eq.s32.totalorder %s14, 1
    %p74 = scmp.ne.s32.totalorder %s69, %s71
    %p75 = scmp.eq.s32.totalorder %s14, 0
    %p76 = por %p74, %p75
    %p77 = scmp.ne.s32.totalorder %s69, %s71
    %p78 = scmp.eq.s32.totalorder %s19, 1
    %p79 = por %p77, %p78
    %p80 = scmp.ne.s32.totalorder %s71, %s72
    %p81 = scmp.eq.s32.totalorder %s19, 0
    %p82 = por %p80, %p81
    %p83 = scmp.ne.s32.totalorder %s71, %s72
    %p84 = scmp.eq.s32.totalorder %s20, 1
    %p85 = por %p83, %p84
    %p87 = scmp.ne.s32.totalorder %s72, %s86
    %p88 = scmp.eq.s32.totalorder %s20, 0
    %p89 = por %p87, %p88
    %s91 = sadd.s32 %s90, 1
    %p94 = scmp.eq.s32.totalorder %s14, 1
    %p95 = scmp.ne.s32.totalorder %s90, %s92
    %p96 = scmp.eq.s32.totalorder %s14, 0
    %p97 = por %p95, %p96
    %p98 = scmp.ne.s32.totalorder %s90, %s92
    %p99 = scmp.eq.s32.totalorder %s19, 1
    %p100 = por %p98, %p99
    %p101 = scmp.ne.s32.totalorder %s92, %s93
    %p102 = scmp.eq.s32.totalorder %s19, 0
    %p103 = por %p101, %p102
    %p104 = scmp.ne.s32.totalorder %s92, %s93
    %p105 = scmp.eq.s32.totalorder %s20, 1
    %p106 = por %p104, %p105
    %p108 = scmp.ne.s32.totalorder %s93, %s107
    %p109 = scmp.eq.s32.totalorder %s20, 0
    %p110 = por %p108, %p109
    %s112 = sadd.s32 %s111, 1
    %p115 = scmp.eq.s32.totalorder %s14, 1
    %p116 = scmp.ne.s32.totalorder %s111, %s113
    %p117 = scmp.eq.s32.totalorder %s14, 0
    %p118 = por %p116, %p117
    %p119 = scmp.ne.s32.totalorder %s111, %s113
    %p120 = scmp.eq.s32.totalorder %s19, 1
    %p121 = por %p119, %p120
    %p122 = scmp.ne.s32.totalorder %s113, %s114
    %p123 = scmp.eq.s32.totalorder %s19, 0
    %p124 = por %p122, %p123
    %p125 = scmp.ne.s32.totalorder %s113, %s114
    %p126 = scmp.eq.s32.totalorder %s20, 1
    %p127 = por %p125, %p126
    %p129 = scmp.ne.s32.totalorder %s114, %s128
    %p130 = scmp.eq.s32.totalorder %s20, 0
    %p131 = por %p129, %p130
    %s133 = sadd.s32 %s132, 1
    %p136 = scmp.eq.s32.totalorder %s14, 1
    %p137 = scmp.ne.s32.totalorder %s132, %s134
    %p138 = scmp.eq.s32.totalorder %s14, 0
    %p139 = por %p137, %p138
    %p140 = scmp.ne.s32.totalorder %s132, %s134
    %p141 = scmp.eq.s32.totalorder %s19, 1
    %p142 = por %p140, %p141
    %p143 = scmp.ne.s32.totalorder %s134, %s135
    %p144 = scmp.eq.s32.totalorder %s19, 0
    %p145 = por %p143, %p144
    %p146 = scmp.ne.s32.totalorder %s134, %s135
    %p147 = scmp.eq.s32.totalorder %s20, 1
    %p148 = por %p146, %p147
    %p150 = scmp.ne.s32.totalorder %s135, %s149
    %p151 = scmp.eq.s32.totalorder %s20, 0
    %p152 = por %p150, %p151
    %s153 = ssub.s32 %s14, %s21
    %p154 = scmp.eq.s32.totalorder %s153, 0
    %s156 = sadd.s32 %s155, 1
    %s157 = scalar_select %p154, %s155, %s156
    %p160 = pneg %p154
    %p161 = scmp.eq.s32.totalorder %s14, 1
    %p162 = por %p160, %p161
    %p163 = scmp.ne.s32.totalorder %s155, %s158
    %p164 = scmp.eq.s32.totalorder %s14, 0
    %p165 = por %p163, %p164
    %p166 = scmp.ne.s32.totalorder %s155, %s158
    %p167 = scmp.eq.s32.totalorder %s19, 1
    %p168 = por %p166, %p167
    %p169 = scmp.ne.s32.totalorder %s158, %s159
    %p170 = scmp.eq.s32.totalorder %s19, 0
    %p171 = por %p169, %p170
    %p172 = scmp.ne.s32.totalorder %s158, %s159
    %p173 = scmp.eq.s32.totalorder %s20, 1
    %p174 = por %p172, %p173
    %p176 = scmp.ne.s32.totalorder %s159, %s175
    %p177 = scmp.eq.s32.totalorder %s20, 0
    %p178 = por %p176, %p177
    %s179 = ssub.s32 %s14, %s21
    %p180 = scmp.eq.s32.totalorder %s179, 0
    %s182 = sadd.s32 %s181, 1
    %s183 = scalar_select %p180, %s181, %s182
    %p186 = pneg %p180
    %p187 = scmp.eq.s32.totalorder %s14, 1
    %p188 = por %p186, %p187
    %p189 = scmp.ne.s32.totalorder %s181, %s184
    %p190 = scmp.eq.s32.totalorder %s14, 0
    %p191 = por %p189, %p190
    %p192 = scmp.ne.s32.totalorder %s181, %s184
    %p193 = scmp.eq.s32.totalorder %s19, 1
    %p194 = por %p192, %p193
    %p195 = scmp.ne.s32.totalorder %s184, %s185
    %p196 = scmp.eq.s32.totalorder %s19, 0
    %p197 = por %p195, %p196
    %p198 = scmp.ne.s32.totalorder %s184, %s185
    %p199 = scmp.eq.s32.totalorder %s20, 1
    %p200 = por %p198, %p199
    %p202 = scmp.ne.s32.totalorder %s185, %s201
    %p203 = scmp.eq.s32.totalorder %s20, 0
    %p204 = por %p202, %p203
    %p205 = scmp.le.s32.totalorder 1, %s14
    %p206 = scmp.lt.s32.totalorder %s14, 3
    %p207 = pnand %p205, %p206
    %p208 = pneg %p207
    // Predicated region
    $region9: #{up_forward.6} parent=5 // pred_check
      _
    $region10: #{up_forward.6} parent=5 // pred_check_branch
      %210 = sbr.rel (%p207) target = $region12
    $region11: #{up_forward.6} parent=5 // pred_region
      %s211 = ssub.s32 %s14, 1
      // Predicated region
      $region13: #{up_forward.6} parent=11 // pred_check
        %p212 = pneg %p35
      $region14: #{up_forward.6} parent=11 // pred_check_branch
        %214 = sbr.rel (%p212) target = $region16
      $region15: #{up_forward.6} parent=11 // pred_region
        _
      $region16: #{up_forward.6} parent=11 // pred_fallthru
        _
      // Predicated region
      $region17: #{up_forward.6} parent=11 // pred_check
        %p215 = pneg %p82
      $region18: #{up_forward.6} parent=11 // pred_check_branch
        %217 = sbr.rel (%p215) target = $region20
      $region19: #{up_forward.6} parent=11 // pred_region
        _
      $region20: #{up_forward.6} parent=11 // pred_fallthru
        _
      // Predicated region
      $region21: #{up_forward.6} parent=11 // pred_check
        %p218 = pneg %p103
      $region22: #{up_forward.6} parent=11 // pred_check_branch
        %220 = sbr.rel (%p218) target = $region24
      $region23: #{up_forward.6} parent=11 // pred_region
        _
      $region24: #{up_forward.6} parent=11 // pred_fallthru
        _
      // Predicated region
      $region25: #{up_forward.6} parent=11 // pred_check
        %p221 = pneg %p124
      $region26: #{up_forward.6} parent=11 // pred_check_branch
        %223 = sbr.rel (%p221) target = $region28
      $region27: #{up_forward.6} parent=11 // pred_region
        _
      $region28: #{up_forward.6} parent=11 // pred_fallthru
        _
      // Predicated region
      $region29: #{up_forward.6} parent=11 // pred_check
        %p224 = pneg %p145
      $region30: #{up_forward.6} parent=11 // pred_check_branch
        %226 = sbr.rel (%p224) target = $region32
      $region31: #{up_forward.6} parent=11 // pred_region
        _
      $region32: #{up_forward.6} parent=11 // pred_fallthru
        _
    $region12: #{up_forward.6} parent=5 // pred_fallthru
      _
    %p227 = scmp.lt.s32.totalorder %s14, 2
    // Predicated region
    $region33: #{up_forward.6} parent=5 // pred_check
      %p228 = pneg %p227
    $region34: #{up_forward.6} parent=5 // pred_check_branch
      %230 = sbr.rel (%p228) target = $region36
    $region35: #{up_forward.6} parent=5 // pred_region
      // Predicated region
      $region37: #{up_forward.6} parent=35 // pred_check
        %p231 = pneg %p55
      $region38: #{up_forward.6} parent=35 // pred_check_branch
        %233 = sbr.rel (%p231) target = $region40
      $region39: #{up_forward.6} parent=35 // pred_region
        %p234 = scmp.lt.s32.totalorder %s14, 1
        %s235 = scalar_select %p234, %s14, 1
        %s236 = smul.addr %s235, 8
        %s237 = smul.addr %s236, 4
        %s238 = scalar_lea.vmem %s1, %s237
      $region40: #{up_forward.6} parent=35 // pred_fallthru
        _
    $region36: #{up_forward.6} parent=5 // pred_fallthru
      _
    %p239 = scmp.le.s32.totalorder 1, %s14
    %p240 = scmp.lt.s32.totalorder %s14, 3
    %p241 = pnand %p239, %p240
    %p242 = pneg %p241
    // Predicated region
    $region41: #{up_forward.6} parent=5 // pred_check
      _
    $region42: #{up_forward.6} parent=5 // pred_check_branch
      %244 = sbr.rel (%p241) target = $region44
    $region43: #{up_forward.6} parent=5 // pred_region
      %s245 = ssub.s32 %s14, 1
      %p246 = pneg %p35
      %p247 = pneg %p32
      %p248 = scmp.lt.s32.totalorder %s19, 1
      %s249 = scalar_select %p248, %s19, 1
      %s250 = smul.addr %s249, 8
      %s251 = smul.addr %s250, 4
      %s252 = scalar_lea.vmem %s1, %s251
      %p253 = pneg %p61
      %p254 = pneg %p58
      %p255 = pneg %p82
      %p256 = pneg %p79
      %p257 = pneg %p103
      %p258 = pneg %p100
      %p259 = pneg %p124
      %p260 = pneg %p121
      %p261 = pneg %p145
      %p262 = pneg %p142
      %p263 = pneg %p171
      %p264 = pneg %p168
      %p265 = scmp.lt.s32.totalorder %s19, 1
      %s266 = scalar_select %p265, %s19, 1
      %s267 = smul.addr %s266, 8
      %s268 = smul.addr %s267, 4
      %s269 = scalar_lea.vmem %s6, %s268
      %p270 = pneg %p197
      %p271 = pneg %p194
      %p272 = scmp.lt.s32.totalorder %s19, 1
      %s273 = scalar_select %p272, %s19, 1
      %s274 = smul.addr %s273, 4
      %s275 = scalar_lea.vmem %s7, %s274
      %p276 = scmp.lt.s32.totalorder %s19, 1
      %s277 = scalar_select %p276, %s19, 1
      %s278 = smul.addr %s277, 8
      %s279 = smul.addr %s278, 4
      %s280 = scalar_lea.vmem %s1, %s279
      %p281 = scmp.lt.s32.totalorder %s19, 1
      %s282 = scalar_select %p281, %s19, 1
      %s283 = smul.addr %s282, 8
      %s284 = smul.addr %s283, 4
      %s285 = scalar_lea.vmem %s6, %s284
      %p286 = scmp.lt.s32.totalorder %s19, 1
      %s287 = scalar_select %p286, %s19, 1
      %s288 = smul.addr %s287, 4
      %s289 = scalar_lea.vmem %s7, %s288
      %v291 = vld [vmem:[%s0] sm:$0xff]
      %v292 = vld [vmem:[%s280] sm:$0xff]
      %v293 = vld [vmem:[%s280 + $0x8] sm:$0xff]
      %v294 = vld [vmem:[%s280 + $0x10] sm:$0xff]
      %v295 = vld [vmem:[%s280 + $0x18] sm:$0xff]
      %v296 = vld [vmem:[%s4] sm:$0xf]
      %298 = vset.pattern.permute.xlu0 0
      %299 = vperm.xlu0 %298, %v296
      %v300 = vpop.permute.xlu0 %299
      %v302 = vunpack.c.l.s4 839922192
      %v303 = vunpack.c.0.s8 %v302
      %v304 = vlaneseq
      %v305 = vshrl.u32 %v304, 7
      %v306 = vsub.s32 %v303, %v305
      %v307 = vrot.slane %v300, %v306
      %v309 = vmul.f32 %v292, %v307
      %v310 = vmul.f32 %v293, %v307
      %v311 = vmul.f32 %v294, %v307
      %v312 = vmul.f32 %v295, %v307
      %v313 = vld [vmem:[%s5] sm:$0xf]
      %315 = vset.pattern.permute.xlu0 0
      %316 = vperm.xlu0 %315, %v313
      %v317 = vpop.permute.xlu0 %316
      %v319 = vunpack.c.l.s4 839922192
      %v320 = vunpack.c.0.s8 %v319
      %v321 = vlaneseq
      %v322 = vshrl.u32 %v321, 7
      %v323 = vsub.s32 %v320, %v322
      %v324 = vrot.slane %v317, %v323
      %v326 = vadd.f32 %v309, %v324
      %v327 = vadd.f32 %v310, %v324
      %v328 = vadd.f32 %v311, %v324
      %v329 = vadd.f32 %v312, %v324
      %v330 = vmax.f32 %v326, 0.0
      %v331 = vmax.f32 %v327, 0.0
      %v332 = vmax.f32 %v328, 0.0
      %v333 = vmax.f32 %v329, 0.0
      %v335 = vlaneseq
      %v336 = vshrl.u32 %v335, 7
      %v337 = vsub.s32 0, %v336
      %v338 = vrot.slane %v291, %v337
      %v339 = vlaneseq
      %v340 = vshrl.u32 %v339, 7
      %v341 = vsub.s32 1, %v340
      %v342 = vrot.slane %v291, %v341
      %v343 = vlaneseq
      %v344 = vshrl.u32 %v343, 7
      %v345 = vsub.s32 2, %v344
      %v346 = vrot.slane %v291, %v345
      %v347 = vlaneseq
      %v348 = vshrl.u32 %v347, 7
      %v349 = vsub.s32 3, %v348
      %v350 = vrot.slane %v291, %v349
      %v351 = vlaneseq
      %v352 = vshrl.u32 %v351, 7
      %v353 = vsub.s32 4, %v352
      %v354 = vrot.slane %v291, %v353
      %v355 = vlaneseq
      %v356 = vshrl.u32 %v355, 7
      %v357 = vsub.s32 5, %v356
      %v358 = vrot.slane %v291, %v357
      %v359 = vlaneseq
      %v360 = vshrl.u32 %v359, 7
      %v361 = vsub.s32 6, %v360
      %v362 = vrot.slane %v291, %v361
      %v363 = vlaneseq
      %v364 = vshrl.u32 %v363, 7
      %v365 = vsub.s32 7, %v364
      %v366 = vrot.slane %v291, %v365
      %v375 = vcombine.low %v338, %v342
      %v376 = vcombine.low %v346, %v350
      %v377 = vcombine.low %v354, %v358
      %v378 = vcombine.low %v362, %v366
      %v383 = vmul.f32 %v330, %v375
      %v384 = vmul.f32 %v331, %v376
      %v385 = vmul.f32 %v332, %v377
      %v386 = vmul.f32 %v333, %v378
      %v388 = vcombine.high %v386, %v386
      %389 = vrot.lane.b32.xlu0 %v386, 7
      %v390 = vpop.permute.xlu0 %389
      %391 = vrot.lane.b32.xlu0 %v388, 7
      %v392 = vpop.permute.xlu0 %391
      %vm393 = vcmask 56320
      %v394 = vsel %vm393, %v390, %v392
      %v399 = vcombine.high %v383, %v383
      %v400 = vcombine.high %v384, %v384
      %v401 = vcombine.high %v385, %v385
      %402 = vrot.lane.b32.xlu0 %v383, 111
      %v403 = vpop.permute.xlu0 %402
      %404 = vrot.lane.b32.xlu0 %v399, 111
      %v405 = vpop.permute.xlu0 %404
      %406 = vrot.lane.b32.xlu0 %v384, 111
      %v407 = vpop.permute.xlu0 %406
      %408 = vrot.lane.b32.xlu0 %v400, 111
      %v409 = vpop.permute.xlu0 %408
      %410 = vrot.lane.b32.xlu0 %v385, 111
      %v411 = vpop.permute.xlu0 %410
      %412 = vrot.lane.b32.xlu0 %v401, 111
      %v413 = vpop.permute.xlu0 %412
      %414 = vrot.lane.b32.xlu0 %v386, 111
      %v415 = vpop.permute.xlu0 %414
      %vm416 = vcmask 908288
      %v417 = vsel %vm416, %v403, %v405
      %v418 = vsel %vm416, %v405, %v407
      %v419 = vsel %vm416, %v407, %v409
      %v420 = vsel %vm416, %v409, %v411
      %v421 = vsel %vm416, %v411, %v413
      %v422 = vsel %vm416, %v413, %v415
      %v431 = vsel %vm416, %v394, %v403
      %432 = vst [vmem:[#allocation2] sm:$0xf] %v431
      %433 = vst [vmem:[#allocation2 + $0x8] sm:$0xf] %v417
      %434 = vst [vmem:[#allocation2 + $0x10] sm:$0xf] %v418
      %435 = vst [vmem:[#allocation2 + $0x18] sm:$0xf] %v419
      %436 = vst [vmem:[#allocation2 + $0x20] sm:$0xf] %v420
      %437 = vst [vmem:[#allocation2 + $0x28] sm:$0xf] %v421
      %438 = vst [vmem:[#allocation2 + $0x30] sm:$0xf] %v422
      %vm439 = vcmask 846848
      %440 = vst.msk [vmem:[#allocation2 + $0x38] sm:$0xf] %vm439, %v415
      %441 = vrot.lane.b32.xlu0 %v386, 6
      %v442 = vpop.permute.xlu0 %441
      %443 = vrot.lane.b32.xlu0 %v388, 6
      %v444 = vpop.permute.xlu0 %443
      %vm445 = vcmask 48128
      %v446 = vsel %vm445, %v442, %v444
      %448 = vrot.lane.b32.xlu0 %v383, 110
      %v449 = vpop.permute.xlu0 %448
      %450 = vrot.lane.b32.xlu0 %v399, 110
      %v451 = vpop.permute.xlu0 %450
      %452 = vrot.lane.b32.xlu0 %v384, 110
      %v453 = vpop.permute.xlu0 %452
      %454 = vrot.lane.b32.xlu0 %v400, 110
      %v455 = vpop.permute.xlu0 %454
      %456 = vrot.lane.b32.xlu0 %v385, 110
      %v457 = vpop.permute.xlu0 %456
      %458 = vrot.lane.b32.xlu0 %v401, 110
      %v459 = vpop.permute.xlu0 %458
      %460 = vrot.lane.b32.xlu0 %v386, 110
      %v461 = vpop.permute.xlu0 %460
      %vm462 = vcmask 900096
      %v463 = vsel %vm462, %v449, %v451
      %v464 = vsel %vm462, %v451, %v453
      %v465 = vsel %vm462, %v453, %v455
      %v466 = vsel %vm462, %v455, %v457
      %v467 = vsel %vm462, %v457, %v459
      %v468 = vsel %vm462, %v459, %v461
      %v470 = vsel %vm462, %v446, %v449
      %v472 = vrot.slane %v470, 4
      %v473 = vrot.slane %v463, 4
      %v474 = vrot.slane %v464, 4
      %v475 = vrot.slane %v465, 4
      %v476 = vrot.slane %v466, 4
      %v477 = vrot.slane %v467, 4
      %v478 = vrot.slane %v468, 4
      %v479 = vrot.slane %v461, 4
      %488 = vst [vmem:[#allocation2] sm:$0xf0] %v472
      %489 = vst [vmem:[#allocation2 + $0x8] sm:$0xf0] %v473
      %490 = vst [vmem:[#allocation2 + $0x10] sm:$0xf0] %v474
      %491 = vst [vmem:[#allocation2 + $0x18] sm:$0xf0] %v475
      %492 = vst [vmem:[#allocation2 + $0x20] sm:$0xf0] %v476
      %493 = vst [vmem:[#allocation2 + $0x28] sm:$0xf0] %v477
      %494 = vst [vmem:[#allocation2 + $0x30] sm:$0xf0] %v478
      %vm495 = vcmask 850948
      %496 = vst.msk [vmem:[#allocation2 + $0x38] sm:$0xf0] %vm495, %v479
      %497 = vrot.lane.b32.xlu0 %v386, 5
      %v498 = vpop.permute.xlu0 %497
      %499 = vrot.lane.b32.xlu0 %v388, 5
      %v500 = vpop.permute.xlu0 %499
      %vm501 = vcmask 39936
      %v502 = vsel %vm501, %v498, %v500
      %504 = vrot.lane.b32.xlu0 %v383, 109
      %v505 = vpop.permute.xlu0 %504
      %506 = vrot.lane.b32.xlu0 %v399, 109
      %v507 = vpop.permute.xlu0 %506
      %508 = vrot.lane.b32.xlu0 %v384, 109
      %v509 = vpop.permute.xlu0 %508
      %510 = vrot.lane.b32.xlu0 %v400, 109
      %v511 = vpop.permute.xlu0 %510
      %512 = vrot.lane.b32.xlu0 %v385, 109
      %v513 = vpop.permute.xlu0 %512
      %514 = vrot.lane.b32.xlu0 %v401, 109
      %v515 = vpop.permute.xlu0 %514
      %516 = vrot.lane.b32.xlu0 %v386, 109
      %v517 = vpop.permute.xlu0 %516
      %vm518 = vcmask 891904
      %v519 = vsel %vm518, %v505, %v507
      %v520 = vsel %vm518, %v507, %v509
      %v521 = vsel %vm518, %v509, %v511
      %v522 = vsel %vm518, %v511, %v513
      %v523 = vsel %vm518, %v513, %v515
      %v524 = vsel %vm518, %v515, %v517
      %v533 = vsel %vm518, %v502, %v505
      %534 = vst [vmem:[#allocation2 + $0x40] sm:$0xf] %v533
      %535 = vst [vmem:[#allocation2 + $0x48] sm:$0xf] %v519
      %536 = vst [vmem:[#allocation2 + $0x50] sm:$0xf] %v520
      %537 = vst [vmem:[#allocation2 + $0x58] sm:$0xf] %v521
      %538 = vst [vmem:[#allocation2 + $0x60] sm:$0xf] %v522
      %539 = vst [vmem:[#allocation2 + $0x68] sm:$0xf] %v523
      %540 = vst [vmem:[#allocation2 + $0x70] sm:$0xf] %v524
      %541 = vst.msk [vmem:[#allocation2 + $0x78] sm:$0xf] %vm439, %v517
      %542 = vrot.lane.b32.xlu0 %v388, 125
      %v543 = vpop.permute.xlu0 %542
      %545 = vrot.lane.b32.xlu0 %v383, 101
      %v546 = vpop.permute.xlu0 %545
      %547 = vrot.lane.b32.xlu0 %v399, 101
      %v548 = vpop.permute.xlu0 %547
      %549 = vrot.lane.b32.xlu0 %v384, 101
      %v550 = vpop.permute.xlu0 %549
      %551 = vrot.lane.b32.xlu0 %v400, 101
      %v552 = vpop.permute.xlu0 %551
      %553 = vrot.lane.b32.xlu0 %v385, 101
      %v554 = vpop.permute.xlu0 %553
      %555 = vrot.lane.b32.xlu0 %v401, 101
      %v556 = vpop.permute.xlu0 %555
      %557 = vrot.lane.b32.xlu0 %v386, 101
      %v558 = vpop.permute.xlu0 %557
      %559 = vrot.lane.b32.xlu0 %v388, 101
      %v560 = vpop.permute.xlu0 %559
      %vm561 = vcmask 826368
      %v562 = vsel %vm561, %v546, %v548
      %v563 = vsel %vm561, %v548, %v550
      %v564 = vsel %vm561, %v550, %v552
      %v565 = vsel %vm561, %v552, %v554
      %v566 = vsel %vm561, %v554, %v556
      %v567 = vsel %vm561, %v556, %v558
      %v568 = vsel %vm561, %v558, %v560
      %v570 = vsel %vm561, %v543, %v546
      %v572 = vrot.slane %v570, 4
      %v573 = vrot.slane %v562, 4
      %v574 = vrot.slane %v563, 4
      %v575 = vrot.slane %v564, 4
      %v576 = vrot.slane %v565, 4
      %v577 = vrot.slane %v566, 4
      %v578 = vrot.slane %v567, 4
      %v579 = vrot.slane %v568, 4
      %588 = vst [vmem:[#allocation2 + $0x40] sm:$0xf0] %v572
      %589 = vst [vmem:[#allocation2 + $0x48] sm:$0xf0] %v573
      %590 = vst [vmem:[#allocation2 + $0x50] sm:$0xf0] %v574
      %591 = vst [vmem:[#allocation2 + $0x58] sm:$0xf0] %v575
      %592 = vst [vmem:[#allocation2 + $0x60] sm:$0xf0] %v576
      %593 = vst [vmem:[#allocation2 + $0x68] sm:$0xf0] %v577
      %594 = vst [vmem:[#allocation2 + $0x70] sm:$0xf0] %v578
      %595 = vst.msk [vmem:[#allocation2 + $0x78] sm:$0xf0] %vm495, %v579
      %596 = vrot.lane.b32.xlu0 %v388, 124
      %v597 = vpop.permute.xlu0 %596
      %599 = vrot.lane.b32.xlu0 %v383, 100
      %v600 = vpop.permute.xlu0 %599
      %601 = vrot.lane.b32.xlu0 %v399, 100
      %v602 = vpop.permute.xlu0 %601
      %603 = vrot.lane.b32.xlu0 %v384, 100
      %v604 = vpop.permute.xlu0 %603
      %605 = vrot.lane.b32.xlu0 %v400, 100
      %v606 = vpop.permute.xlu0 %605
      %607 = vrot.lane.b32.xlu0 %v385, 100
      %v608 = vpop.permute.xlu0 %607
      %609 = vrot.lane.b32.xlu0 %v401, 100
      %v610 = vpop.permute.xlu0 %609
      %611 = vrot.lane.b32.xlu0 %v386, 100
      %v612 = vpop.permute.xlu0 %611
      %613 = vrot.lane.b32.xlu0 %v388, 100
      %v614 = vpop.permute.xlu0 %613
      %vm615 = vcmask 818176
      %v616 = vsel %vm615, %v600, %v602
      %v617 = vsel %vm615, %v602, %v604
      %v618 = vsel %vm615, %v604, %v606
      %v619 = vsel %vm615, %v606, %v608
      %v620 = vsel %vm615, %v608, %v610
      %v621 = vsel %vm615, %v610, %v612
      %v622 = vsel %vm615, %v612, %v614
      %v631 = vsel %vm615, %v597, %v600
      %632 = vst [vmem:[#allocation2 + $0x80] sm:$0xf] %v631
      %633 = vst [vmem:[#allocation2 + $0x88] sm:$0xf] %v616
      %634 = vst [vmem:[#allocation2 + $0x90] sm:$0xf] %v617
      %635 = vst [vmem:[#allocation2 + $0x98] sm:$0xf] %v618
      %636 = vst [vmem:[#allocation2 + $0xa0] sm:$0xf] %v619
      %637 = vst [vmem:[#allocation2 + $0xa8] sm:$0xf] %v620
      %638 = vst [vmem:[#allocation2 + $0xb0] sm:$0xf] %v621
      %639 = vst.msk [vmem:[#allocation2 + $0xb8] sm:$0xf] %vm439, %v622
      %640 = vrot.lane.b32.xlu0 %v388, 123
      %v641 = vpop.permute.xlu0 %640
      %643 = vrot.lane.b32.xlu0 %v383, 99
      %v644 = vpop.permute.xlu0 %643
      %645 = vrot.lane.b32.xlu0 %v399, 99
      %v646 = vpop.permute.xlu0 %645
      %647 = vrot.lane.b32.xlu0 %v384, 99
      %v648 = vpop.permute.xlu0 %647
      %649 = vrot.lane.b32.xlu0 %v400, 99
      %v650 = vpop.permute.xlu0 %649
      %651 = vrot.lane.b32.xlu0 %v385, 99
      %v652 = vpop.permute.xlu0 %651
      %653 = vrot.lane.b32.xlu0 %v401, 99
      %v654 = vpop.permute.xlu0 %653
      %655 = vrot.lane.b32.xlu0 %v386, 99
      %v656 = vpop.permute.xlu0 %655
      %657 = vrot.lane.b32.xlu0 %v388, 99
      %v658 = vpop.permute.xlu0 %657
      %vm659 = vcmask 809984
      %v660 = vsel %vm659, %v644, %v646
      %v661 = vsel %vm659, %v646, %v648
      %v662 = vsel %vm659, %v648, %v650
      %v663 = vsel %vm659, %v650, %v652
      %v664 = vsel %vm659, %v652, %v654
      %v665 = vsel %vm659, %v654, %v656
      %v666 = vsel %vm659, %v656, %v658
      %v668 = vsel %vm659, %v641, %v644
      %v670 = vrot.slane %v668, 4
      %v671 = vrot.slane %v660, 4
      %v672 = vrot.slane %v661, 4
      %v673 = vrot.slane %v662, 4
      %v674 = vrot.slane %v663, 4
      %v675 = vrot.slane %v664, 4
      %v676 = vrot.slane %v665, 4
      %v677 = vrot.slane %v666, 4
      %686 = vst [vmem:[#allocation2 + $0x80] sm:$0xf0] %v670
      %687 = vst [vmem:[#allocation2 + $0x88] sm:$0xf0] %v671
      %688 = vst [vmem:[#allocation2 + $0x90] sm:$0xf0] %v672
      %689 = vst [vmem:[#allocation2 + $0x98] sm:$0xf0] %v673
      %690 = vst [vmem:[#allocation2 + $0xa0] sm:$0xf0] %v674
      %691 = vst [vmem:[#allocation2 + $0xa8] sm:$0xf0] %v675
      %692 = vst [vmem:[#allocation2 + $0xb0] sm:$0xf0] %v676
      %693 = vst.msk [vmem:[#allocation2 + $0xb8] sm:$0xf0] %vm495, %v677
      %694 = vrot.lane.b32.xlu0 %v388, 115
      %v695 = vpop.permute.xlu0 %694
      %697 = vrot.lane.b32.xlu0 %v383, 91
      %v698 = vpop.permute.xlu0 %697
      %699 = vrot.lane.b32.xlu0 %v399, 91
      %v700 = vpop.permute.xlu0 %699
      %701 = vrot.lane.b32.xlu0 %v384, 91
      %v702 = vpop.permute.xlu0 %701
      %703 = vrot.lane.b32.xlu0 %v400, 91
      %v704 = vpop.permute.xlu0 %703
      %705 = vrot.lane.b32.xlu0 %v385, 91
      %v706 = vpop.permute.xlu0 %705
      %707 = vrot.lane.b32.xlu0 %v401, 91
      %v708 = vpop.permute.xlu0 %707
      %709 = vrot.lane.b32.xlu0 %v386, 91
      %v710 = vpop.permute.xlu0 %709
      %711 = vrot.lane.b32.xlu0 %v388, 91
      %v712 = vpop.permute.xlu0 %711
      %vm713 = vcmask 744448
      %v714 = vsel %vm713, %v698, %v700
      %v715 = vsel %vm713, %v700, %v702
      %v716 = vsel %vm713, %v702, %v704
      %v717 = vsel %vm713, %v704, %v706
      %v718 = vsel %vm713, %v706, %v708
      %v719 = vsel %vm713, %v708, %v710
      %v720 = vsel %vm713, %v710, %v712
      %v729 = vsel %vm713, %v695, %v698
      %730 = vst [vmem:[#allocation2 + $0xc0] sm:$0xf] %v729
      %731 = vst [vmem:[#allocation2 + $0xc8] sm:$0xf] %v714
      %732 = vst [vmem:[#allocation2 + $0xd0] sm:$0xf] %v715
      %733 = vst [vmem:[#allocation2 + $0xd8] sm:$0xf] %v716
      %734 = vst [vmem:[#allocation2 + $0xe0] sm:$0xf] %v717
      %735 = vst [vmem:[#allocation2 + $0xe8] sm:$0xf] %v718
      %736 = vst [vmem:[#allocation2 + $0xf0] sm:$0xf] %v719
      %737 = vst.msk [vmem:[#allocation2 + $0xf8] sm:$0xf] %vm439, %v720
      %738 = vrot.lane.b32.xlu0 %v388, 114
      %v739 = vpop.permute.xlu0 %738
      %741 = vrot.lane.b32.xlu0 %v383, 90
      %v742 = vpop.permute.xlu0 %741
      %743 = vrot.lane.b32.xlu0 %v399, 90
      %v744 = vpop.permute.xlu0 %743
      %745 = vrot.lane.b32.xlu0 %v384, 90
      %v746 = vpop.permute.xlu0 %745
      %747 = vrot.lane.b32.xlu0 %v400, 90
      %v748 = vpop.permute.xlu0 %747
      %749 = vrot.lane.b32.xlu0 %v385, 90
      %v750 = vpop.permute.xlu0 %749
      %751 = vrot.lane.b32.xlu0 %v401, 90
      %v752 = vpop.permute.xlu0 %751
      %753 = vrot.lane.b32.xlu0 %v386, 90
      %v754 = vpop.permute.xlu0 %753
      %755 = vrot.lane.b32.xlu0 %v388, 90
      %v756 = vpop.permute.xlu0 %755
      %vm757 = vcmask 736256
      %v758 = vsel %vm757, %v742, %v744
      %v759 = vsel %vm757, %v744, %v746
      %v760 = vsel %vm757, %v746, %v748
      %v761 = vsel %vm757, %v748, %v750
      %v762 = vsel %vm757, %v750, %v752
      %v763 = vsel %vm757, %v752, %v754
      %v764 = vsel %vm757, %v754, %v756
      %v766 = vsel %vm757, %v739, %v742
      %v768 = vrot.slane %v766, 4
      %v769 = vrot.slane %v758, 4
      %v770 = vrot.slane %v759, 4
      %v771 = vrot.slane %v760, 4
      %v772 = vrot.slane %v761, 4
      %v773 = vrot.slane %v762, 4
      %v774 = vrot.slane %v763, 4
      %v775 = vrot.slane %v764, 4
      %784 = vst [vmem:[#allocation2 + $0xc0] sm:$0xf0] %v768
      %785 = vst [vmem:[#allocation2 + $0xc8] sm:$0xf0] %v769
      %786 = vst [vmem:[#allocation2 + $0xd0] sm:$0xf0] %v770
      %787 = vst [vmem:[#allocation2 + $0xd8] sm:$0xf0] %v771
      %788 = vst [vmem:[#allocation2 + $0xe0] sm:$0xf0] %v772
      %789 = vst [vmem:[#allocation2 + $0xe8] sm:$0xf0] %v773
      %790 = vst [vmem:[#allocation2 + $0xf0] sm:$0xf0] %v774
      %791 = vst.msk [vmem:[#allocation2 + $0xf8] sm:$0xf0] %vm495, %v775
      %792 = vrot.lane.b32.xlu0 %v388, 113
      %v793 = vpop.permute.xlu0 %792
      %795 = vrot.lane.b32.xlu0 %v383, 89
      %v796 = vpop.permute.xlu0 %795
      %797 = vrot.lane.b32.xlu0 %v399, 89
      %v798 = vpop.permute.xlu0 %797
      %799 = vrot.lane.b32.xlu0 %v384, 89
      %v800 = vpop.permute.xlu0 %799
      %801 = vrot.lane.b32.xlu0 %v400, 89
      %v802 = vpop.permute.xlu0 %801
      %803 = vrot.lane.b32.xlu0 %v385, 89
      %v804 = vpop.permute.xlu0 %803
      %805 = vrot.lane.b32.xlu0 %v401, 89
      %v806 = vpop.permute.xlu0 %805
      %807 = vrot.lane.b32.xlu0 %v386, 89
      %v808 = vpop.permute.xlu0 %807
      %809 = vrot.lane.b32.xlu0 %v388, 89
      %v810 = vpop.permute.xlu0 %809
      %vm811 = vcmask 728064
      %v812 = vsel %vm811, %v796, %v798
      %v813 = vsel %vm811, %v798, %v800
      %v814 = vsel %vm811, %v800, %v802
      %v815 = vsel %vm811, %v802, %v804
      %v816 = vsel %vm811, %v804, %v806
      %v817 = vsel %vm811, %v806, %v808
      %v818 = vsel %vm811, %v808, %v810
      %v827 = vsel %vm811, %v793, %v796
      %828 = vst [vmem:[#allocation2 + $0x100] sm:$0xf] %v827
      %829 = vst [vmem:[#allocation2 + $0x108] sm:$0xf] %v812
      %830 = vst [vmem:[#allocation2 + $0x110] sm:$0xf] %v813
      %831 = vst [vmem:[#allocation2 + $0x118] sm:$0xf] %v814
      %832 = vst [vmem:[#allocation2 + $0x120] sm:$0xf] %v815
      %833 = vst [vmem:[#allocation2 + $0x128] sm:$0xf] %v816
      %834 = vst [vmem:[#allocation2 + $0x130] sm:$0xf] %v817
      %835 = vst.msk [vmem:[#allocation2 + $0x138] sm:$0xf] %vm439, %v818
      %836 = vrot.lane.b32.xlu0 %v388, 35
      %v837 = vpop.permute.xlu0 %836
      %839 = vrot.lane.b32.xlu0 %v383, 11
      %v840 = vpop.permute.xlu0 %839
      %841 = vrot.lane.b32.xlu0 %v399, 11
      %v842 = vpop.permute.xlu0 %841
      %843 = vrot.lane.b32.xlu0 %v384, 11
      %v844 = vpop.permute.xlu0 %843
      %845 = vrot.lane.b32.xlu0 %v400, 11
      %v846 = vpop.permute.xlu0 %845
      %847 = vrot.lane.b32.xlu0 %v385, 11
      %v848 = vpop.permute.xlu0 %847
      %849 = vrot.lane.b32.xlu0 %v401, 11
      %v850 = vpop.permute.xlu0 %849
      %851 = vrot.lane.b32.xlu0 %v386, 11
      %v852 = vpop.permute.xlu0 %851
      %853 = vrot.lane.b32.xlu0 %v388, 11
      %v854 = vpop.permute.xlu0 %853
      %vm855 = vcmask 89088
      %v856 = vsel %vm855, %v840, %v842
      %v857 = vsel %vm855, %v842, %v844
      %v858 = vsel %vm855, %v844, %v846
      %v859 = vsel %vm855, %v846, %v848
      %v860 = vsel %vm855, %v848, %v850
      %v861 = vsel %vm855, %v850, %v852
      %v862 = vsel %vm855, %v852, %v854
      %v864 = vsel %vm855, %v837, %v840
      %v866 = vrot.slane %v864, 4
      %v867 = vrot.slane %v856, 4
      %v868 = vrot.slane %v857, 4
      %v869 = vrot.slane %v858, 4
      %v870 = vrot.slane %v859, 4
      %v871 = vrot.slane %v860, 4
      %v872 = vrot.slane %v861, 4
      %v873 = vrot.slane %v862, 4
      %882 = vst [vmem:[#allocation2 + $0x100] sm:$0xf0] %v866
      %883 = vst [vmem:[#allocation2 + $0x108] sm:$0xf0] %v867
      %884 = vst [vmem:[#allocation2 + $0x110] sm:$0xf0] %v868
      %885 = vst [vmem:[#allocation2 + $0x118] sm:$0xf0] %v869
      %886 = vst [vmem:[#allocation2 + $0x120] sm:$0xf0] %v870
      %887 = vst [vmem:[#allocation2 + $0x128] sm:$0xf0] %v871
      %888 = vst [vmem:[#allocation2 + $0x130] sm:$0xf0] %v872
      %889 = vst.msk [vmem:[#allocation2 + $0x138] sm:$0xf0] %vm495, %v873
      %890 = vrot.lane.b32.xlu0 %v388, 34
      %v891 = vpop.permute.xlu0 %890
      %893 = vrot.lane.b32.xlu0 %v383, 10
      %v894 = vpop.permute.xlu0 %893
      %895 = vrot.lane.b32.xlu0 %v399, 10
      %v896 = vpop.permute.xlu0 %895
      %897 = vrot.lane.b32.xlu0 %v384, 10
      %v898 = vpop.permute.xlu0 %897
      %899 = vrot.lane.b32.xlu0 %v400, 10
      %v900 = vpop.permute.xlu0 %899
      %901 = vrot.lane.b32.xlu0 %v385, 10
      %v902 = vpop.permute.xlu0 %901
      %903 = vrot.lane.b32.xlu0 %v401, 10
      %v904 = vpop.permute.xlu0 %903
      %905 = vrot.lane.b32.xlu0 %v386, 10
      %v906 = vpop.permute.xlu0 %905
      %907 = vrot.lane.b32.xlu0 %v388, 10
      %v908 = vpop.permute.xlu0 %907
      %vm909 = vcmask 80896
      %v910 = vsel %vm909, %v894, %v896
      %v911 = vsel %vm909, %v896, %v898
      %v912 = vsel %vm909, %v898, %v900
      %v913 = vsel %vm909, %v900, %v902
      %v914 = vsel %vm909, %v902, %v904
      %v915 = vsel %vm909, %v904, %v906
      %v916 = vsel %vm909, %v906, %v908
      %v925 = vsel %vm909, %v891, %v894
      %926 = vst [vmem:[#allocation2 + $0x140] sm:$0xf] %v925
      %927 = vst [vmem:[#allocation2 + $0x148] sm:$0xf] %v910
      %928 = vst [vmem:[#allocation2 + $0x150] sm:$0xf] %v911
      %929 = vst [vmem:[#allocation2 + $0x158] sm:$0xf] %v912
      %930 = vst [vmem:[#allocation2 + $0x160] sm:$0xf] %v913
      %931 = vst [vmem:[#allocation2 + $0x168] sm:$0xf] %v914
      %932 = vst [vmem:[#allocation2 + $0x170] sm:$0xf] %v915
      %933 = vst.msk [vmem:[#allocation2 + $0x178] sm:$0xf] %vm439, %v916
      %934 = vrot.lane.b32.xlu0 %v388, 33
      %v935 = vpop.permute.xlu0 %934
      %937 = vrot.lane.b32.xlu0 %v383, 9
      %v938 = vpop.permute.xlu0 %937
      %939 = vrot.lane.b32.xlu0 %v399, 9
      %v940 = vpop.permute.xlu0 %939
      %941 = vrot.lane.b32.xlu0 %v384, 9
      %v942 = vpop.permute.xlu0 %941
      %943 = vrot.lane.b32.xlu0 %v400, 9
      %v944 = vpop.permute.xlu0 %943
      %945 = vrot.lane.b32.xlu0 %v385, 9
      %v946 = vpop.permute.xlu0 %945
      %947 = vrot.lane.b32.xlu0 %v401, 9
      %v948 = vpop.permute.xlu0 %947
      %949 = vrot.lane.b32.xlu0 %v386, 9
      %v950 = vpop.permute.xlu0 %949
      %951 = vrot.lane.b32.xlu0 %v388, 9
      %v952 = vpop.permute.xlu0 %951
      %vm953 = vcmask 72704
      %v954 = vsel %vm953, %v938, %v940
      %v955 = vsel %vm953, %v940, %v942
      %v956 = vsel %vm953, %v942, %v944
      %v957 = vsel %vm953, %v944, %v946
      %v958 = vsel %vm953, %v946, %v948
      %v959 = vsel %vm953, %v948, %v950
      %v960 = vsel %vm953, %v950, %v952
      %v962 = vsel %vm953, %v935, %v938
      %v964 = vrot.slane %v962, 4
      %v965 = vrot.slane %v954, 4
      %v966 = vrot.slane %v955, 4
      %v967 = vrot.slane %v956, 4
      %v968 = vrot.slane %v957, 4
      %v969 = vrot.slane %v958, 4
      %v970 = vrot.slane %v959, 4
      %v971 = vrot.slane %v960, 4
      %980 = vst [vmem:[#allocation2 + $0x140] sm:$0xf0] %v964
      %981 = vst [vmem:[#allocation2 + $0x148] sm:$0xf0] %v965
      %982 = vst [vmem:[#allocation2 + $0x150] sm:$0xf0] %v966
      %983 = vst [vmem:[#allocation2 + $0x158] sm:$0xf0] %v967
      %984 = vst [vmem:[#allocation2 + $0x160] sm:$0xf0] %v968
      %985 = vst [vmem:[#allocation2 + $0x168] sm:$0xf0] %v969
      %986 = vst [vmem:[#allocation2 + $0x170] sm:$0xf0] %v970
      %987 = vst.msk [vmem:[#allocation2 + $0x178] sm:$0xf0] %vm495, %v971
      %988 = vrot.lane.b32.xlu0 %v388, 25
      %v989 = vpop.permute.xlu0 %988
      %991 = vrot.lane.b32.xlu0 %v383, 1
      %v992 = vpop.permute.xlu0 %991
      %993 = vrot.lane.b32.xlu0 %v399, 1
      %v994 = vpop.permute.xlu0 %993
      %995 = vrot.lane.b32.xlu0 %v384, 1
      %v996 = vpop.permute.xlu0 %995
      %997 = vrot.lane.b32.xlu0 %v400, 1
      %v998 = vpop.permute.xlu0 %997
      %999 = vrot.lane.b32.xlu0 %v385, 1
      %v1000 = vpop.permute.xlu0 %999
      %1001 = vrot.lane.b32.xlu0 %v401, 1
      %v1002 = vpop.permute.xlu0 %1001
      %1003 = vrot.lane.b32.xlu0 %v386, 1
      %v1004 = vpop.permute.xlu0 %1003
      %1005 = vrot.lane.b32.xlu0 %v388, 1
      %v1006 = vpop.permute.xlu0 %1005
      %vm1007 = vcmask 7168
      %v1008 = vsel %vm1007, %v992, %v994
      %v1009 = vsel %vm1007, %v994, %v996
      %v1010 = vsel %vm1007, %v996, %v998
      %v1011 = vsel %vm1007, %v998, %v1000
      %v1012 = vsel %vm1007, %v1000, %v1002
      %v1013 = vsel %vm1007, %v1002, %v1004
      %v1014 = vsel %vm1007, %v1004, %v1006
      %v1023 = vsel %vm1007, %v989, %v992
      %1024 = vst [vmem:[#allocation2 + $0x180] sm:$0xf] %v1023
      %1025 = vst [vmem:[#allocation2 + $0x188] sm:$0xf] %v1008
      %1026 = vst [vmem:[#allocation2 + $0x190] sm:$0xf] %v1009
      %1027 = vst [vmem:[#allocation2 + $0x198] sm:$0xf] %v1010
      %1028 = vst [vmem:[#allocation2 + $0x1a0] sm:$0xf] %v1011
      %1029 = vst [vmem:[#allocation2 + $0x1a8] sm:$0xf] %v1012
      %1030 = vst [vmem:[#allocation2 + $0x1b0] sm:$0xf] %v1013
      %1031 = vst.msk [vmem:[#allocation2 + $0x1b8] sm:$0xf] %vm439, %v1014
      %v1032 = vcombine.low %v383, %v383
      %v1033 = vcombine.low %v384, %v384
      %v1034 = vcombine.low %v385, %v385
      %v1035 = vcombine.low %v386, %v386
      %1040 = vst [vmem:[#allocation2 + $0x180] sm:$0xf0] %v1032
      %1041 = vst [vmem:[#allocation2 + $0x188] sm:$0xf0] %v383
      %1042 = vst [vmem:[#allocation2 + $0x190] sm:$0xf0] %v1033
      %1043 = vst [vmem:[#allocation2 + $0x198] sm:$0xf0] %v384
      %1044 = vst [vmem:[#allocation2 + $0x1a0] sm:$0xf0] %v1034
      %1045 = vst [vmem:[#allocation2 + $0x1a8] sm:$0xf0] %v385
      %1046 = vst [vmem:[#allocation2 + $0x1b0] sm:$0xf0] %v1035
      %1047 = vst.msk [vmem:[#allocation2 + $0x1b8] sm:$0xf0] %vm495, %v386
      %1048 = vrot.lane.b32.xlu0 %v383, 127
      %v1049 = vpop.permute.xlu0 %1048
      %1050 = vrot.lane.b32.xlu0 %v399, 127
      %v1051 = vpop.permute.xlu0 %1050
      %1052 = vrot.lane.b32.xlu0 %v384, 127
      %v1053 = vpop.permute.xlu0 %1052
      %1054 = vrot.lane.b32.xlu0 %v400, 127
      %v1055 = vpop.permute.xlu0 %1054
      %1056 = vrot.lane.b32.xlu0 %v385, 127
      %v1057 = vpop.permute.xlu0 %1056
      %1058 = vrot.lane.b32.xlu0 %v401, 127
      %v1059 = vpop.permute.xlu0 %1058
      %1060 = vrot.lane.b32.xlu0 %v386, 127
      %v1061 = vpop.permute.xlu0 %1060
      %1062 = vrot.lane.b32.xlu0 %v388, 127
      %v1063 = vpop.permute.xlu0 %1062
      %vm1064 = vcmask 1039360
      %v1065 = vsel %vm1064, %v1049, %v1051
      %v1066 = vsel %vm1064, %v1051, %v1053
      %v1067 = vsel %vm1064, %v1053, %v1055
      %v1068 = vsel %vm1064, %v1055, %v1057
      %v1069 = vsel %vm1064, %v1057, %v1059
      %v1070 = vsel %vm1064, %v1059, %v1061
      %v1071 = vsel %vm1064, %v1061, %v1063
      %1080 = vrot.lane.b32.xlu0 %v383, 103
      %v1081 = vpop.permute.xlu0 %1080
      %vm1083 = vcmask 842752
      %v1084 = vsel %vm1083, %v1063, %v1081
      %1085 = vst [vmem:[#allocation2 + $0x1c0] sm:$0xf] %v1065
      %1086 = vst [vmem:[#allocation2 + $0x1c8] sm:$0xf] %v1066
      %1087 = vst [vmem:[#allocation2 + $0x1d0] sm:$0xf] %v1067
      %1088 = vst [vmem:[#allocation2 + $0x1d8] sm:$0xf] %v1068
      %1089 = vst [vmem:[#allocation2 + $0x1e0] sm:$0xf] %v1069
      %1090 = vst [vmem:[#allocation2 + $0x1e8] sm:$0xf] %v1070
      %1091 = vst [vmem:[#allocation2 + $0x1f0] sm:$0xf] %v1071
      %1092 = vst.msk [vmem:[#allocation2 + $0x1f8] sm:$0xf] %vm439, %v1084
      %1093 = vrot.lane.b32.xlu0 %v383, 119
      %v1094 = vpop.permute.xlu0 %1093
      %1095 = vrot.lane.b32.xlu0 %v399, 119
      %v1096 = vpop.permute.xlu0 %1095
      %1097 = vrot.lane.b32.xlu0 %v384, 119
      %v1098 = vpop.permute.xlu0 %1097
      %1099 = vrot.lane.b32.xlu0 %v400, 119
      %v1100 = vpop.permute.xlu0 %1099
      %1101 = vrot.lane.b32.xlu0 %v385, 119
      %v1102 = vpop.permute.xlu0 %1101
      %1103 = vrot.lane.b32.xlu0 %v401, 119
      %v1104 = vpop.permute.xlu0 %1103
      %1105 = vrot.lane.b32.xlu0 %v386, 119
      %v1106 = vpop.permute.xlu0 %1105
      %1107 = vrot.lane.b32.xlu0 %v388, 119
      %v1108 = vpop.permute.xlu0 %1107
      %vm1109 = vcmask 973824
      %v1110 = vsel %vm1109, %v1094, %v1096
      %v1111 = vsel %vm1109, %v1096, %v1098
      %v1112 = vsel %vm1109, %v1098, %v1100
      %v1113 = vsel %vm1109, %v1100, %v1102
      %v1114 = vsel %vm1109, %v1102, %v1104
      %v1115 = vsel %vm1109, %v1104, %v1106
      %v1116 = vsel %vm1109, %v1106, %v1108
      %1118 = vrot.lane.b32.xlu0 %v383, 95
      %v1119 = vpop.permute.xlu0 %1118
      %vm1121 = vcmask 777216
      %v1122 = vsel %vm1121, %v1108, %v1119
      %v1124 = vrot.slane %v1110, 4
      %v1125 = vrot.slane %v1111, 4
      %v1126 = vrot.slane %v1112, 4
      %v1127 = vrot.slane %v1113, 4
      %v1128 = vrot.slane %v1114, 4
      %v1129 = vrot.slane %v1115, 4
      %v1130 = vrot.slane %v1116, 4
      %v1131 = vrot.slane %v1122, 4
      %1140 = vst [vmem:[#allocation2 + $0x1c0] sm:$0xf0] %v1124
      %1141 = vst [vmem:[#allocation2 + $0x1c8] sm:$0xf0] %v1125
      %1142 = vst [vmem:[#allocation2 + $0x1d0] sm:$0xf0] %v1126
      %1143 = vst [vmem:[#allocation2 + $0x1d8] sm:$0xf0] %v1127
      %1144 = vst [vmem:[#allocation2 + $0x1e0] sm:$0xf0] %v1128
      %1145 = vst [vmem:[#allocation2 + $0x1e8] sm:$0xf0] %v1129
      %1146 = vst [vmem:[#allocation2 + $0x1f0] sm:$0xf0] %v1130
      %1147 = vst.msk [vmem:[#allocation2 + $0x1f8] sm:$0xf0] %vm495, %v1131
      %1148 = vrot.lane.b32.xlu0 %v383, 118
      %v1149 = vpop.permute.xlu0 %1148
      %1150 = vrot.lane.b32.xlu0 %v399, 118
      %v1151 = vpop.permute.xlu0 %1150
      %1152 = vrot.lane.b32.xlu0 %v384, 118
      %v1153 = vpop.permute.xlu0 %1152
      %1154 = vrot.lane.b32.xlu0 %v400, 118
      %v1155 = vpop.permute.xlu0 %1154
      %1156 = vrot.lane.b32.xlu0 %v385, 118
      %v1157 = vpop.permute.xlu0 %1156
      %1158 = vrot.lane.b32.xlu0 %v401, 118
      %v1159 = vpop.permute.xlu0 %1158
      %1160 = vrot.lane.b32.xlu0 %v386, 118
      %v1161 = vpop.permute.xlu0 %1160
      %1162 = vrot.lane.b32.xlu0 %v388, 118
      %v1163 = vpop.permute.xlu0 %1162
      %vm1164 = vcmask 965632
      %v1165 = vsel %vm1164, %v1149, %v1151
      %v1166 = vsel %vm1164, %v1151, %v1153
      %v1167 = vsel %vm1164, %v1153, %v1155
      %v1168 = vsel %vm1164, %v1155, %v1157
      %v1169 = vsel %vm1164, %v1157, %v1159
      %v1170 = vsel %vm1164, %v1159, %v1161
      %v1171 = vsel %vm1164, %v1161, %v1163
      %1180 = vrot.lane.b32.xlu0 %v383, 94
      %v1181 = vpop.permute.xlu0 %1180
      %vm1183 = vcmask 769024
      %v1184 = vsel %vm1183, %v1163, %v1181
      %1185 = vst [vmem:[#allocation2 + $0x200] sm:$0xf] %v1165
      %1186 = vst [vmem:[#allocation2 + $0x208] sm:$0xf] %v1166
      %1187 = vst [vmem:[#allocation2 + $0x210] sm:$0xf] %v1167
      %1188 = vst [vmem:[#allocation2 + $0x218] sm:$0xf] %v1168
      %1189 = vst [vmem:[#allocation2 + $0x220] sm:$0xf] %v1169
      %1190 = vst [vmem:[#allocation2 + $0x228] sm:$0xf] %v1170
      %1191 = vst [vmem:[#allocation2 + $0x230] sm:$0xf] %v1171
      %1192 = vst.msk [vmem:[#allocation2 + $0x238] sm:$0xf] %vm439, %v1184
      %1193 = vrot.lane.b32.xlu0 %v383, 117
      %v1194 = vpop.permute.xlu0 %1193
      %1195 = vrot.lane.b32.xlu0 %v399, 117
      %v1196 = vpop.permute.xlu0 %1195
      %1197 = vrot.lane.b32.xlu0 %v384, 117
      %v1198 = vpop.permute.xlu0 %1197
      %1199 = vrot.lane.b32.xlu0 %v400, 117
      %v1200 = vpop.permute.xlu0 %1199
      %1201 = vrot.lane.b32.xlu0 %v385, 117
      %v1202 = vpop.permute.xlu0 %1201
      %1203 = vrot.lane.b32.xlu0 %v401, 117
      %v1204 = vpop.permute.xlu0 %1203
      %1205 = vrot.lane.b32.xlu0 %v386, 117
      %v1206 = vpop.permute.xlu0 %1205
      %1207 = vrot.lane.b32.xlu0 %v388, 117
      %v1208 = vpop.permute.xlu0 %1207
      %vm1209 = vcmask 957440
      %v1210 = vsel %vm1209, %v1194, %v1196
      %v1211 = vsel %vm1209, %v1196, %v1198
      %v1212 = vsel %vm1209, %v1198, %v1200
      %v1213 = vsel %vm1209, %v1200, %v1202
      %v1214 = vsel %vm1209, %v1202, %v1204
      %v1215 = vsel %vm1209, %v1204, %v1206
      %v1216 = vsel %vm1209, %v1206, %v1208
      %1218 = vrot.lane.b32.xlu0 %v383, 93
      %v1219 = vpop.permute.xlu0 %1218
      %vm1221 = vcmask 760832
      %v1222 = vsel %vm1221, %v1208, %v1219
      %v1224 = vrot.slane %v1210, 4
      %v1225 = vrot.slane %v1211, 4
      %v1226 = vrot.slane %v1212, 4
      %v1227 = vrot.slane %v1213, 4
      %v1228 = vrot.slane %v1214, 4
      %v1229 = vrot.slane %v1215, 4
      %v1230 = vrot.slane %v1216, 4
      %v1231 = vrot.slane %v1222, 4
      %1240 = vst [vmem:[#allocation2 + $0x200] sm:$0xf0] %v1224
      %1241 = vst [vmem:[#allocation2 + $0x208] sm:$0xf0] %v1225
      %1242 = vst [vmem:[#allocation2 + $0x210] sm:$0xf0] %v1226
      %1243 = vst [vmem:[#allocation2 + $0x218] sm:$0xf0] %v1227
      %1244 = vst [vmem:[#allocation2 + $0x220] sm:$0xf0] %v1228
      %1245 = vst [vmem:[#allocation2 + $0x228] sm:$0xf0] %v1229
      %1246 = vst [vmem:[#allocation2 + $0x230] sm:$0xf0] %v1230
      %1247 = vst.msk [vmem:[#allocation2 + $0x238] sm:$0xf0] %vm495, %v1231
      %1248 = vrot.lane.b32.xlu0 %v383, 39
      %v1249 = vpop.permute.xlu0 %1248
      %1250 = vrot.lane.b32.xlu0 %v399, 39
      %v1251 = vpop.permute.xlu0 %1250
      %1252 = vrot.lane.b32.xlu0 %v384, 39
      %v1253 = vpop.permute.xlu0 %1252
      %1254 = vrot.lane.b32.xlu0 %v400, 39
      %v1255 = vpop.permute.xlu0 %1254
      %1256 = vrot.lane.b32.xlu0 %v385, 39
      %v1257 = vpop.permute.xlu0 %1256
      %1258 = vrot.lane.b32.xlu0 %v401, 39
      %v1259 = vpop.permute.xlu0 %1258
      %1260 = vrot.lane.b32.xlu0 %v386, 39
      %v1261 = vpop.permute.xlu0 %1260
      %1262 = vrot.lane.b32.xlu0 %v388, 39
      %v1263 = vpop.permute.xlu0 %1262
      %vm1264 = vcmask 318464
      %v1265 = vsel %vm1264, %v1249, %v1251
      %v1266 = vsel %vm1264, %v1251, %v1253
      %v1267 = vsel %vm1264, %v1253, %v1255
      %v1268 = vsel %vm1264, %v1255, %v1257
      %v1269 = vsel %vm1264, %v1257, %v1259
      %v1270 = vsel %vm1264, %v1259, %v1261
      %v1271 = vsel %vm1264, %v1261, %v1263
      %1280 = vrot.lane.b32.xlu0 %v383, 15
      %v1281 = vpop.permute.xlu0 %1280
      %vm1283 = vcmask 121856
      %v1284 = vsel %vm1283, %v1263, %v1281
      %1285 = vst [vmem:[#allocation2 + $0x240] sm:$0xf] %v1265
      %1286 = vst [vmem:[#allocation2 + $0x248] sm:$0xf] %v1266
      %1287 = vst [vmem:[#allocation2 + $0x250] sm:$0xf] %v1267
      %1288 = vst [vmem:[#allocation2 + $0x258] sm:$0xf] %v1268
      %1289 = vst [vmem:[#allocation2 + $0x260] sm:$0xf] %v1269
      %1290 = vst [vmem:[#allocation2 + $0x268] sm:$0xf] %v1270
      %1291 = vst [vmem:[#allocation2 + $0x270] sm:$0xf] %v1271
      %1292 = vst.msk [vmem:[#allocation2 + $0x278] sm:$0xf] %vm439, %v1284
      %1293 = vrot.lane.b32.xlu0 %v383, 38
      %v1294 = vpop.permute.xlu0 %1293
      %1295 = vrot.lane.b32.xlu0 %v399, 38
      %v1296 = vpop.permute.xlu0 %1295
      %1297 = vrot.lane.b32.xlu0 %v384, 38
      %v1298 = vpop.permute.xlu0 %1297
      %1299 = vrot.lane.b32.xlu0 %v400, 38
      %v1300 = vpop.permute.xlu0 %1299
      %1301 = vrot.lane.b32.xlu0 %v385, 38
      %v1302 = vpop.permute.xlu0 %1301
      %1303 = vrot.lane.b32.xlu0 %v401, 38
      %v1304 = vpop.permute.xlu0 %1303
      %1305 = vrot.lane.b32.xlu0 %v386, 38
      %v1306 = vpop.permute.xlu0 %1305
      %1307 = vrot.lane.b32.xlu0 %v388, 38
      %v1308 = vpop.permute.xlu0 %1307
      %vm1309 = vcmask 310272
      %v1310 = vsel %vm1309, %v1294, %v1296
      %v1311 = vsel %vm1309, %v1296, %v1298
      %v1312 = vsel %vm1309, %v1298, %v1300
      %v1313 = vsel %vm1309, %v1300, %v1302
      %v1314 = vsel %vm1309, %v1302, %v1304
      %v1315 = vsel %vm1309, %v1304, %v1306
      %v1316 = vsel %vm1309, %v1306, %v1308
      %1318 = vrot.lane.b32.xlu0 %v383, 14
      %v1319 = vpop.permute.xlu0 %1318
      %vm1321 = vcmask 113664
      %v1322 = vsel %vm1321, %v1308, %v1319
      %v1324 = vrot.slane %v1310, 4
      %v1325 = vrot.slane %v1311, 4
      %v1326 = vrot.slane %v1312, 4
      %v1327 = vrot.slane %v1313, 4
      %v1328 = vrot.slane %v1314, 4
      %v1329 = vrot.slane %v1315, 4
      %v1330 = vrot.slane %v1316, 4
      %v1331 = vrot.slane %v1322, 4
      %1340 = vst [vmem:[#allocation2 + $0x240] sm:$0xf0] %v1324
      %1341 = vst [vmem:[#allocation2 + $0x248] sm:$0xf0] %v1325
      %1342 = vst [vmem:[#allocation2 + $0x250] sm:$0xf0] %v1326
      %1343 = vst [vmem:[#allocation2 + $0x258] sm:$0xf0] %v1327
      %1344 = vst [vmem:[#allocation2 + $0x260] sm:$0xf0] %v1328
      %1345 = vst [vmem:[#allocation2 + $0x268] sm:$0xf0] %v1329
      %1346 = vst [vmem:[#allocation2 + $0x270] sm:$0xf0] %v1330
      %1347 = vst.msk [vmem:[#allocation2 + $0x278] sm:$0xf0] %vm495, %v1331
      %1348 = vrot.lane.b32.xlu0 %v383, 37
      %v1349 = vpop.permute.xlu0 %1348
      %1350 = vrot.lane.b32.xlu0 %v399, 37
      %v1351 = vpop.permute.xlu0 %1350
      %1352 = vrot.lane.b32.xlu0 %v384, 37
      %v1353 = vpop.permute.xlu0 %1352
      %1354 = vrot.lane.b32.xlu0 %v400, 37
      %v1355 = vpop.permute.xlu0 %1354
      %1356 = vrot.lane.b32.xlu0 %v385, 37
      %v1357 = vpop.permute.xlu0 %1356
      %1358 = vrot.lane.b32.xlu0 %v401, 37
      %v1359 = vpop.permute.xlu0 %1358
      %1360 = vrot.lane.b32.xlu0 %v386, 37
      %v1361 = vpop.permute.xlu0 %1360
      %1362 = vrot.lane.b32.xlu0 %v388, 37
      %v1363 = vpop.permute.xlu0 %1362
      %vm1364 = vcmask 302080
      %v1365 = vsel %vm1364, %v1349, %v1351
      %v1366 = vsel %vm1364, %v1351, %v1353
      %v1367 = vsel %vm1364, %v1353, %v1355
      %v1368 = vsel %vm1364, %v1355, %v1357
      %v1369 = vsel %vm1364, %v1357, %v1359
      %v1370 = vsel %vm1364, %v1359, %v1361
      %v1371 = vsel %vm1364, %v1361, %v1363
      %1380 = vrot.lane.b32.xlu0 %v383, 13
      %v1381 = vpop.permute.xlu0 %1380
      %vm1383 = vcmask 105472
      %v1384 = vsel %vm1383, %v1363, %v1381
      %1385 = vst [vmem:[#allocation2 + $0x280] sm:$0xf] %v1365
      %1386 = vst [vmem:[#allocation2 + $0x288] sm:$0xf] %v1366
      %1387 = vst [vmem:[#allocation2 + $0x290] sm:$0xf] %v1367
      %1388 = vst [vmem:[#allocation2 + $0x298] sm:$0xf] %v1368
      %1389 = vst [vmem:[#allocation2 + $0x2a0] sm:$0xf] %v1369
      %1390 = vst [vmem:[#allocation2 + $0x2a8] sm:$0xf] %v1370
      %1391 = vst [vmem:[#allocation2 + $0x2b0] sm:$0xf] %v1371
      %1392 = vst.msk [vmem:[#allocation2 + $0x2b8] sm:$0xf] %vm439, %v1384
      %1393 = vrot.lane.b32.xlu0 %v383, 29
      %v1394 = vpop.permute.xlu0 %1393
      %1395 = vrot.lane.b32.xlu0 %v399, 29
      %v1396 = vpop.permute.xlu0 %1395
      %1397 = vrot.lane.b32.xlu0 %v384, 29
      %v1398 = vpop.permute.xlu0 %1397
      %1399 = vrot.lane.b32.xlu0 %v400, 29
      %v1400 = vpop.permute.xlu0 %1399
      %1401 = vrot.lane.b32.xlu0 %v385, 29
      %v1402 = vpop.permute.xlu0 %1401
      %1403 = vrot.lane.b32.xlu0 %v401, 29
      %v1404 = vpop.permute.xlu0 %1403
      %1405 = vrot.lane.b32.xlu0 %v386, 29
      %v1406 = vpop.permute.xlu0 %1405
      %1407 = vrot.lane.b32.xlu0 %v388, 29
      %v1408 = vpop.permute.xlu0 %1407
      %vm1409 = vcmask 236544
      %v1410 = vsel %vm1409, %v1394, %v1396
      %v1411 = vsel %vm1409, %v1396, %v1398
      %v1412 = vsel %vm1409, %v1398, %v1400
      %v1413 = vsel %vm1409, %v1400, %v1402
      %v1414 = vsel %vm1409, %v1402, %v1404
      %v1415 = vsel %vm1409, %v1404, %v1406
      %v1416 = vsel %vm1409, %v1406, %v1408
      %1418 = vrot.lane.b32.xlu0 %v383, 5
      %v1419 = vpop.permute.xlu0 %1418
      %v1421 = vsel %vm501, %v1408, %v1419
      %v1423 = vrot.slane %v1410, 4
      %v1424 = vrot.slane %v1411, 4
      %v1425 = vrot.slane %v1412, 4
      %v1426 = vrot.slane %v1413, 4
      %v1427 = vrot.slane %v1414, 4
      %v1428 = vrot.slane %v1415, 4
      %v1429 = vrot.slane %v1416, 4
      %v1430 = vrot.slane %v1421, 4
      %1439 = vst [vmem:[#allocation2 + $0x280] sm:$0xf0] %v1423
      %1440 = vst [vmem:[#allocation2 + $0x288] sm:$0xf0] %v1424
      %1441 = vst [vmem:[#allocation2 + $0x290] sm:$0xf0] %v1425
      %1442 = vst [vmem:[#allocation2 + $0x298] sm:$0xf0] %v1426
      %1443 = vst [vmem:[#allocation2 + $0x2a0] sm:$0xf0] %v1427
      %1444 = vst [vmem:[#allocation2 + $0x2a8] sm:$0xf0] %v1428
      %1445 = vst [vmem:[#allocation2 + $0x2b0] sm:$0xf0] %v1429
      %1446 = vst.msk [vmem:[#allocation2 + $0x2b8] sm:$0xf0] %vm495, %v1430
      %1447 = vrot.lane.b32.xlu0 %v383, 28
      %v1448 = vpop.permute.xlu0 %1447
      %1449 = vrot.lane.b32.xlu0 %v399, 28
      %v1450 = vpop.permute.xlu0 %1449
      %1451 = vrot.lane.b32.xlu0 %v384, 28
      %v1452 = vpop.permute.xlu0 %1451
      %1453 = vrot.lane.b32.xlu0 %v400, 28
      %v1454 = vpop.permute.xlu0 %1453
      %1455 = vrot.lane.b32.xlu0 %v385, 28
      %v1456 = vpop.permute.xlu0 %1455
      %1457 = vrot.lane.b32.xlu0 %v401, 28
      %v1458 = vpop.permute.xlu0 %1457
      %1459 = vrot.lane.b32.xlu0 %v386, 28
      %v1460 = vpop.permute.xlu0 %1459
      %1461 = vrot.lane.b32.xlu0 %v388, 28
      %v1462 = vpop.permute.xlu0 %1461
      %vm1463 = vcmask 228352
      %v1464 = vsel %vm1463, %v1448, %v1450
      %v1465 = vsel %vm1463, %v1450, %v1452
      %v1466 = vsel %vm1463, %v1452, %v1454
      %v1467 = vsel %vm1463, %v1454, %v1456
      %v1468 = vsel %vm1463, %v1456, %v1458
      %v1469 = vsel %vm1463, %v1458, %v1460
      %v1470 = vsel %vm1463, %v1460, %v1462
      %1479 = vrot.lane.b32.xlu0 %v383, 4
      %v1480 = vpop.permute.xlu0 %1479
      %vm1482 = vcmask 31744
      %v1483 = vsel %vm1482, %v1462, %v1480
      %1484 = vst [vmem:[#allocation2 + $0x2c0] sm:$0xf] %v1464
      %1485 = vst [vmem:[#allocation2 + $0x2c8] sm:$0xf] %v1465
      %1486 = vst [vmem:[#allocation2 + $0x2d0] sm:$0xf] %v1466
      %1487 = vst [vmem:[#allocation2 + $0x2d8] sm:$0xf] %v1467
      %1488 = vst [vmem:[#allocation2 + $0x2e0] sm:$0xf] %v1468
      %1489 = vst [vmem:[#allocation2 + $0x2e8] sm:$0xf] %v1469
      %1490 = vst [vmem:[#allocation2 + $0x2f0] sm:$0xf] %v1470
      %1491 = vst.msk [vmem:[#allocation2 + $0x2f8] sm:$0xf] %vm439, %v1483
      %1492 = vrot.lane.b32.xlu0 %v383, 27
      %v1493 = vpop.permute.xlu0 %1492
      %1494 = vrot.lane.b32.xlu0 %v399, 27
      %v1495 = vpop.permute.xlu0 %1494
      %1496 = vrot.lane.b32.xlu0 %v384, 27
      %v1497 = vpop.permute.xlu0 %1496
      %1498 = vrot.lane.b32.xlu0 %v400, 27
      %v1499 = vpop.permute.xlu0 %1498
      %1500 = vrot.lane.b32.xlu0 %v385, 27
      %v1501 = vpop.permute.xlu0 %1500
      %1502 = vrot.lane.b32.xlu0 %v401, 27
      %v1503 = vpop.permute.xlu0 %1502
      %1504 = vrot.lane.b32.xlu0 %v386, 27
      %v1505 = vpop.permute.xlu0 %1504
      %1506 = vrot.lane.b32.xlu0 %v388, 27
      %v1507 = vpop.permute.xlu0 %1506
      %vm1508 = vcmask 220160
      %v1509 = vsel %vm1508, %v1493, %v1495
      %v1510 = vsel %vm1508, %v1495, %v1497
      %v1511 = vsel %vm1508, %v1497, %v1499
      %v1512 = vsel %vm1508, %v1499, %v1501
      %v1513 = vsel %vm1508, %v1501, %v1503
      %v1514 = vsel %vm1508, %v1503, %v1505
      %v1515 = vsel %vm1508, %v1505, %v1507
      %1517 = vrot.lane.b32.xlu0 %v383, 3
      %v1518 = vpop.permute.xlu0 %1517
      %vm1520 = vcmask 23552
      %v1521 = vsel %vm1520, %v1507, %v1518
      %v1523 = vrot.slane %v1509, 4
      %v1524 = vrot.slane %v1510, 4
      %v1525 = vrot.slane %v1511, 4
      %v1526 = vrot.slane %v1512, 4
      %v1527 = vrot.slane %v1513, 4
      %v1528 = vrot.slane %v1514, 4
      %v1529 = vrot.slane %v1515, 4
      %v1530 = vrot.slane %v1521, 4
      %1539 = vst [vmem:[#allocation2 + $0x2c0] sm:$0xf0] %v1523
      %1540 = vst [vmem:[#allocation2 + $0x2c8] sm:$0xf0] %v1524
      %1541 = vst [vmem:[#allocation2 + $0x2d0] sm:$0xf0] %v1525
      %1542 = vst [vmem:[#allocation2 + $0x2d8] sm:$0xf0] %v1526
      %1543 = vst [vmem:[#allocation2 + $0x2e0] sm:$0xf0] %v1527
      %1544 = vst [vmem:[#allocation2 + $0x2e8] sm:$0xf0] %v1528
      %1545 = vst [vmem:[#allocation2 + $0x2f0] sm:$0xf0] %v1529
      %1546 = vst.msk [vmem:[#allocation2 + $0x2f8] sm:$0xf0] %vm495, %v1530
      %1547 = vrot.lane.b32.xlu0 %v383, 19
      %v1548 = vpop.permute.xlu0 %1547
      %1549 = vrot.lane.b32.xlu0 %v399, 19
      %v1550 = vpop.permute.xlu0 %1549
      %1551 = vrot.lane.b32.xlu0 %v384, 19
      %v1552 = vpop.permute.xlu0 %1551
      %1553 = vrot.lane.b32.xlu0 %v400, 19
      %v1554 = vpop.permute.xlu0 %1553
      %1555 = vrot.lane.b32.xlu0 %v385, 19
      %v1556 = vpop.permute.xlu0 %1555
      %1557 = vrot.lane.b32.xlu0 %v401, 19
      %v1558 = vpop.permute.xlu0 %1557
      %1559 = vrot.lane.b32.xlu0 %v386, 19
      %v1560 = vpop.permute.xlu0 %1559
      %1561 = vrot.lane.b32.xlu0 %v388, 19
      %v1562 = vpop.permute.xlu0 %1561
      %vm1563 = vcmask 154624
      %v1564 = vsel %vm1563, %v1548, %v1550
      %v1565 = vsel %vm1563, %v1550, %v1552
      %v1566 = vsel %vm1563, %v1552, %v1554
      %v1567 = vsel %vm1563, %v1554, %v1556
      %v1568 = vsel %vm1563, %v1556, %v1558
      %v1569 = vsel %vm1563, %v1558, %v1560
      %v1570 = vsel %vm1563, %v1560, %v1562
      %1578 = vrot.lane.b32.xlu0 %v383, 123
      %v1579 = vpop.permute.xlu0 %1578
      %vm1581 = vcmask 1006592
      %v1582 = vsel %vm1581, %v1570, %v1579
      %1583 = vst [vmem:[#allocation2 + $0x300] sm:$0xf] %v1564
      %1584 = vst [vmem:[#allocation2 + $0x308] sm:$0xf] %v1565
      %1585 = vst [vmem:[#allocation2 + $0x310] sm:$0xf] %v1566
      %1586 = vst [vmem:[#allocation2 + $0x318] sm:$0xf] %v1567
      %1587 = vst [vmem:[#allocation2 + $0x320] sm:$0xf] %v1568
      %1588 = vst [vmem:[#allocation2 + $0x328] sm:$0xf] %v1569
      %1589 = vst [vmem:[#allocation2 + $0x330] sm:$0xf] %v1582
      %1590 = vst.msk [vmem:[#allocation2 + $0x338] sm:$0xf] %vm439, %v1579
      %1591 = vrot.lane.b32.xlu0 %v383, 18
      %v1592 = vpop.permute.xlu0 %1591
      %1593 = vrot.lane.b32.xlu0 %v399, 18
      %v1594 = vpop.permute.xlu0 %1593
      %1595 = vrot.lane.b32.xlu0 %v384, 18
      %v1596 = vpop.permute.xlu0 %1595
      %1597 = vrot.lane.b32.xlu0 %v400, 18
      %v1598 = vpop.permute.xlu0 %1597
      %1599 = vrot.lane.b32.xlu0 %v385, 18
      %v1600 = vpop.permute.xlu0 %1599
      %1601 = vrot.lane.b32.xlu0 %v401, 18
      %v1602 = vpop.permute.xlu0 %1601
      %1603 = vrot.lane.b32.xlu0 %v386, 18
      %v1604 = vpop.permute.xlu0 %1603
      %1605 = vrot.lane.b32.xlu0 %v388, 18
      %v1606 = vpop.permute.xlu0 %1605
      %vm1607 = vcmask 146432
      %v1608 = vsel %vm1607, %v1592, %v1594
      %v1609 = vsel %vm1607, %v1594, %v1596
      %v1610 = vsel %vm1607, %v1596, %v1598
      %v1611 = vsel %vm1607, %v1598, %v1600
      %v1612 = vsel %vm1607, %v1600, %v1602
      %v1613 = vsel %vm1607, %v1602, %v1604
      %v1614 = vsel %vm1607, %v1604, %v1606
      %1616 = vrot.lane.b32.xlu0 %v383, 122
      %v1617 = vpop.permute.xlu0 %1616
      %vm1619 = vcmask 998400
      %v1620 = vsel %vm1619, %v1614, %v1617
      %v1622 = vrot.slane %v1608, 4
      %v1623 = vrot.slane %v1609, 4
      %v1624 = vrot.slane %v1610, 4
      %v1625 = vrot.slane %v1611, 4
      %v1626 = vrot.slane %v1612, 4
      %v1627 = vrot.slane %v1613, 4
      %v1628 = vrot.slane %v1620, 4
      %v1629 = vrot.slane %v1617, 4
      %1638 = vst [vmem:[#allocation2 + $0x300] sm:$0xf0] %v1622
      %1639 = vst [vmem:[#allocation2 + $0x308] sm:$0xf0] %v1623
      %1640 = vst [vmem:[#allocation2 + $0x310] sm:$0xf0] %v1624
      %1641 = vst [vmem:[#allocation2 + $0x318] sm:$0xf0] %v1625
      %1642 = vst [vmem:[#allocation2 + $0x320] sm:$0xf0] %v1626
      %1643 = vst [vmem:[#allocation2 + $0x328] sm:$0xf0] %v1627
      %1644 = vst [vmem:[#allocation2 + $0x330] sm:$0xf0] %v1628
      %1645 = vst.msk [vmem:[#allocation2 + $0x338] sm:$0xf0] %vm495, %v1629
      %1646 = vrot.lane.b32.xlu0 %v383, 17
      %v1647 = vpop.permute.xlu0 %1646
      %1648 = vrot.lane.b32.xlu0 %v399, 17
      %v1649 = vpop.permute.xlu0 %1648
      %1650 = vrot.lane.b32.xlu0 %v384, 17
      %v1651 = vpop.permute.xlu0 %1650
      %1652 = vrot.lane.b32.xlu0 %v400, 17
      %v1653 = vpop.permute.xlu0 %1652
      %1654 = vrot.lane.b32.xlu0 %v385, 17
      %v1655 = vpop.permute.xlu0 %1654
      %1656 = vrot.lane.b32.xlu0 %v401, 17
      %v1657 = vpop.permute.xlu0 %1656
      %1658 = vrot.lane.b32.xlu0 %v386, 17
      %v1659 = vpop.permute.xlu0 %1658
      %1660 = vrot.lane.b32.xlu0 %v388, 17
      %v1661 = vpop.permute.xlu0 %1660
      %vm1662 = vcmask 138240
      %v1663 = vsel %vm1662, %v1647, %v1649
      %v1664 = vsel %vm1662, %v1649, %v1651
      %v1665 = vsel %vm1662, %v1651, %v1653
      %v1666 = vsel %vm1662, %v1653, %v1655
      %v1667 = vsel %vm1662, %v1655, %v1657
      %v1668 = vsel %vm1662, %v1657, %v1659
      %v1669 = vsel %vm1662, %v1659, %v1661
      %1677 = vrot.lane.b32.xlu0 %v383, 121
      %v1678 = vpop.permute.xlu0 %1677
      %vm1680 = vcmask 990208
      %v1681 = vsel %vm1680, %v1669, %v1678
      %1682 = vst [vmem:[#allocation2 + $0x340] sm:$0xf] %v1663
      %1683 = vst [vmem:[#allocation2 + $0x348] sm:$0xf] %v1664
      %1684 = vst [vmem:[#allocation2 + $0x350] sm:$0xf] %v1665
      %1685 = vst [vmem:[#allocation2 + $0x358] sm:$0xf] %v1666
      %1686 = vst [vmem:[#allocation2 + $0x360] sm:$0xf] %v1667
      %1687 = vst [vmem:[#allocation2 + $0x368] sm:$0xf] %v1668
      %1688 = vst [vmem:[#allocation2 + $0x370] sm:$0xf] %v1681
      %1689 = vst.msk [vmem:[#allocation2 + $0x378] sm:$0xf] %vm439, %v1678
      %v1690 = vld [vmem:[%s2] sm:$0x3]
      %v1691 = vld [vmem:[#allocation2] sm:$0xff]
      %v1692 = vld [vmem:[#allocation2 + $0x8] sm:$0xff]
      %v1693 = vld [vmem:[#allocation2 + $0x10] sm:$0xff]
      %v1694 = vld [vmem:[#allocation2 + $0x18] sm:$0xff]
      %v1695 = vld [vmem:[#allocation2 + $0x20] sm:$0xff]
      %v1696 = vld [vmem:[#allocation2 + $0x28] sm:$0xff]
      %v1697 = vld [vmem:[#allocation2 + $0x30] sm:$0xff]
      %v1698 = vld [vmem:[#allocation2 + $0x38] sm:$0xff]
      %v1699 = vld [vmem:[#allocation2 + $0x40] sm:$0xff]
      %v1700 = vld [vmem:[#allocation2 + $0x48] sm:$0xff]
      %v1701 = vld [vmem:[#allocation2 + $0x50] sm:$0xff]
      %v1702 = vld [vmem:[#allocation2 + $0x58] sm:$0xff]
      %v1703 = vld [vmem:[#allocation2 + $0x60] sm:$0xff]
      %v1704 = vld [vmem:[#allocation2 + $0x68] sm:$0xff]
      %v1705 = vld [vmem:[#allocation2 + $0x70] sm:$0xff]
      %v1706 = vld [vmem:[#allocation2 + $0x78] sm:$0xff]
      %v1707 = vld [vmem:[#allocation2 + $0x80] sm:$0xff]
      %v1708 = vld [vmem:[#allocation2 + $0x88] sm:$0xff]
      %v1709 = vld [vmem:[#allocation2 + $0x90] sm:$0xff]
      %v1710 = vld [vmem:[#allocation2 + $0x98] sm:$0xff]
      %v1711 = vld [vmem:[#allocation2 + $0xa0] sm:$0xff]
      %v1712 = vld [vmem:[#allocation2 + $0xa8] sm:$0xff]
      %v1713 = vld [vmem:[#allocation2 + $0xb0] sm:$0xff]
      %v1714 = vld [vmem:[#allocation2 + $0xb8] sm:$0xff]
      %v1715 = vld [vmem:[#allocation2 + $0xc0] sm:$0xff]
      %v1716 = vld [vmem:[#allocation2 + $0xc8] sm:$0xff]
      %v1717 = vld [vmem:[#allocation2 + $0xd0] sm:$0xff]
      %v1718 = vld [vmem:[#allocation2 + $0xd8] sm:$0xff]
      %v1719 = vld [vmem:[#allocation2 + $0xe0] sm:$0xff]
      %v1720 = vld [vmem:[#allocation2 + $0xe8] sm:$0xff]
      %v1721 = vld [vmem:[#allocation2 + $0xf0] sm:$0xff]
      %v1722 = vld [vmem:[#allocation2 + $0xf8] sm:$0xff]
      %v1723 = vld [vmem:[#allocation2 + $0x100] sm:$0xff]
      %v1724 = vld [vmem:[#allocation2 + $0x108] sm:$0xff]
      %v1725 = vld [vmem:[#allocation2 + $0x110] sm:$0xff]
      %v1726 = vld [vmem:[#allocation2 + $0x118] sm:$0xff]
      %v1727 = vld [vmem:[#allocation2 + $0x120] sm:$0xff]
      %v1728 = vld [vmem:[#allocation2 + $0x128] sm:$0xff]
      %v1729 = vld [vmem:[#allocation2 + $0x130] sm:$0xff]
      %v1730 = vld [vmem:[#allocation2 + $0x138] sm:$0xff]
      %v1731 = vld [vmem:[#allocation2 + $0x140] sm:$0xff]
      %v1732 = vld [vmem:[#allocation2 + $0x148] sm:$0xff]
      %v1733 = vld [vmem:[#allocation2 + $0x150] sm:$0xff]
      %v1734 = vld [vmem:[#allocation2 + $0x158] sm:$0xff]
      %v1735 = vld [vmem:[#allocation2 + $0x160] sm:$0xff]
      %v1736 = vld [vmem:[#allocation2 + $0x168] sm:$0xff]
      %v1737 = vld [vmem:[#allocation2 + $0x170] sm:$0xff]
      %v1738 = vld [vmem:[#allocation2 + $0x178] sm:$0xff]
      %v1739 = vld [vmem:[#allocation2 + $0x180] sm:$0xff]
      %v1740 = vld [vmem:[#allocation2 + $0x188] sm:$0xff]
      %v1741 = vld [vmem:[#allocation2 + $0x190] sm:$0xff]
      %v1742 = vld [vmem:[#allocation2 + $0x198] sm:$0xff]
      %v1743 = vld [vmem:[#allocation2 + $0x1a0] sm:$0xff]
      %v1744 = vld [vmem:[#allocation2 + $0x1a8] sm:$0xff]
      %v1745 = vld [vmem:[#allocation2 + $0x1b0] sm:$0xff]
      %v1746 = vld [vmem:[#allocation2 + $0x1b8] sm:$0xff]
      %v1747 = vld [vmem:[#allocation2 + $0x1c0] sm:$0xff]
      %v1748 = vld [vmem:[#allocation2 + $0x1c8] sm:$0xff]
      %v1749 = vld [vmem:[#allocation2 + $0x1d0] sm:$0xff]
      %v1750 = vld [vmem:[#allocation2 + $0x1d8] sm:$0xff]
      %v1751 = vld [vmem:[#allocation2 + $0x1e0] sm:$0xff]
      %v1752 = vld [vmem:[#allocation2 + $0x1e8] sm:$0xff]
      %v1753 = vld [vmem:[#allocation2 + $0x1f0] sm:$0xff]
      %v1754 = vld [vmem:[#allocation2 + $0x1f8] sm:$0xff]
      %v1755 = vld [vmem:[#allocation2 + $0x200] sm:$0xff]
      %v1756 = vld [vmem:[#allocation2 + $0x208] sm:$0xff]
      %v1757 = vld [vmem:[#allocation2 + $0x210] sm:$0xff]
      %v1758 = vld [vmem:[#allocation2 + $0x218] sm:$0xff]
      %v1759 = vld [vmem:[#allocation2 + $0x220] sm:$0xff]
      %v1760 = vld [vmem:[#allocation2 + $0x228] sm:$0xff]
      %v1761 = vld [vmem:[#allocation2 + $0x230] sm:$0xff]
      %v1762 = vld [vmem:[#allocation2 + $0x238] sm:$0xff]
      %v1763 = vld [vmem:[#allocation2 + $0x240] sm:$0xff]
      %v1764 = vld [vmem:[#allocation2 + $0x248] sm:$0xff]
      %v1765 = vld [vmem:[#allocation2 + $0x250] sm:$0xff]
      %v1766 = vld [vmem:[#allocation2 + $0x258] sm:$0xff]
      %v1767 = vld [vmem:[#allocation2 + $0x260] sm:$0xff]
      %v1768 = vld [vmem:[#allocation2 + $0x268] sm:$0xff]
      %v1769 = vld [vmem:[#allocation2 + $0x270] sm:$0xff]
      %v1770 = vld [vmem:[#allocation2 + $0x278] sm:$0xff]
      %v1771 = vld [vmem:[#allocation2 + $0x280] sm:$0xff]
      %v1772 = vld [vmem:[#allocation2 + $0x288] sm:$0xff]
      %v1773 = vld [vmem:[#allocation2 + $0x290] sm:$0xff]
      %v1774 = vld [vmem:[#allocation2 + $0x298] sm:$0xff]
      %v1775 = vld [vmem:[#allocation2 + $0x2a0] sm:$0xff]
      %v1776 = vld [vmem:[#allocation2 + $0x2a8] sm:$0xff]
      %v1777 = vld [vmem:[#allocation2 + $0x2b0] sm:$0xff]
      %v1778 = vld [vmem:[#allocation2 + $0x2b8] sm:$0xff]
      %v1779 = vld [vmem:[#allocation2 + $0x2c0] sm:$0xff]
      %v1780 = vld [vmem:[#allocation2 + $0x2c8] sm:$0xff]
      %v1781 = vld [vmem:[#allocation2 + $0x2d0] sm:$0xff]
      %v1782 = vld [vmem:[#allocation2 + $0x2d8] sm:$0xff]
      %v1783 = vld [vmem:[#allocation2 + $0x2e0] sm:$0xff]
      %v1784 = vld [vmem:[#allocation2 + $0x2e8] sm:$0xff]
      %v1785 = vld [vmem:[#allocation2 + $0x2f0] sm:$0xff]
      %v1786 = vld [vmem:[#allocation2 + $0x2f8] sm:$0xff]
      %v1787 = vld [vmem:[#allocation2 + $0x300] sm:$0xff]
      %v1788 = vld [vmem:[#allocation2 + $0x308] sm:$0xff]
      %v1789 = vld [vmem:[#allocation2 + $0x310] sm:$0xff]
      %v1790 = vld [vmem:[#allocation2 + $0x318] sm:$0xff]
      %v1791 = vld [vmem:[#allocation2 + $0x320] sm:$0xff]
      %v1792 = vld [vmem:[#allocation2 + $0x328] sm:$0xff]
      %v1793 = vld [vmem:[#allocation2 + $0x330] sm:$0xff]
      %v1794 = vld [vmem:[#allocation2 + $0x338] sm:$0xff]
      %v1795 = vld [vmem:[#allocation2 + $0x340] sm:$0xf]
      %v1796 = vld [vmem:[#allocation2 + $0x348] sm:$0xf]
      %v1797 = vld [vmem:[#allocation2 + $0x350] sm:$0xf]
      %v1798 = vld [vmem:[#allocation2 + $0x358] sm:$0xf]
      %v1799 = vld [vmem:[#allocation2 + $0x360] sm:$0xf]
      %v1800 = vld [vmem:[#allocation2 + $0x368] sm:$0xf]
      %v1801 = vld [vmem:[#allocation2 + $0x370] sm:$0xf]
      %v1802 = vld [vmem:[#allocation2 + $0x378] sm:$0xf]
      %v1803 = vpack.c.bf16 %v1699, %v1691
      %v1804 = vpack.c.bf16 %v1700, %v1692
      %v1805 = vpack.c.bf16 %v1701, %v1693
      %v1806 = vpack.c.bf16 %v1702, %v1694
      %v1807 = vpack.c.bf16 %v1703, %v1695
      %v1808 = vpack.c.bf16 %v1704, %v1696
      %v1809 = vpack.c.bf16 %v1705, %v1697
      %v1810 = vpack.c.bf16 %v1706, %v1698
      %v1811 = vpack.c.bf16 %v1715, %v1707
      %v1812 = vpack.c.bf16 %v1716, %v1708
      %v1813 = vpack.c.bf16 %v1717, %v1709
      %v1814 = vpack.c.bf16 %v1718, %v1710
      %v1815 = vpack.c.bf16 %v1719, %v1711
      %v1816 = vpack.c.bf16 %v1720, %v1712
      %v1817 = vpack.c.bf16 %v1721, %v1713
      %v1818 = vpack.c.bf16 %v1722, %v1714
      %v1819 = vpack.c.bf16 %v1731, %v1723
      %v1820 = vpack.c.bf16 %v1732, %v1724
      %v1821 = vpack.c.bf16 %v1733, %v1725
      %v1822 = vpack.c.bf16 %v1734, %v1726
      %v1823 = vpack.c.bf16 %v1735, %v1727
      %v1824 = vpack.c.bf16 %v1736, %v1728
      %v1825 = vpack.c.bf16 %v1737, %v1729
      %v1826 = vpack.c.bf16 %v1738, %v1730
      %v1827 = vpack.c.bf16 %v1747, %v1739
      %v1828 = vpack.c.bf16 %v1748, %v1740
      %v1829 = vpack.c.bf16 %v1749, %v1741
      %v1830 = vpack.c.bf16 %v1750, %v1742
      %v1831 = vpack.c.bf16 %v1751, %v1743
      %v1832 = vpack.c.bf16 %v1752, %v1744
      %v1833 = vpack.c.bf16 %v1753, %v1745
      %v1834 = vpack.c.bf16 %v1754, %v1746
      %v1835 = vpack.c.bf16 %v1763, %v1755
      %v1836 = vpack.c.bf16 %v1764, %v1756
      %v1837 = vpack.c.bf16 %v1765, %v1757
      %v1838 = vpack.c.bf16 %v1766, %v1758
      %v1839 = vpack.c.bf16 %v1767, %v1759
      %v1840 = vpack.c.bf16 %v1768, %v1760
      %v1841 = vpack.c.bf16 %v1769, %v1761
      %v1842 = vpack.c.bf16 %v1770, %v1762
      %v1843 = vpack.c.bf16 %v1779, %v1771
      %v1844 = vpack.c.bf16 %v1780, %v1772
      %v1845 = vpack.c.bf16 %v1781, %v1773
      %v1846 = vpack.c.bf16 %v1782, %v1774
      %v1847 = vpack.c.bf16 %v1783, %v1775
      %v1848 = vpack.c.bf16 %v1784, %v1776
      %v1849 = vpack.c.bf16 %v1785, %v1777
      %v1850 = vpack.c.bf16 %v1786, %v1778
      %v1851 = vpack.c.bf16 %v1795, %v1787
      %v1852 = vpack.c.bf16 %v1796, %v1788
      %v1853 = vpack.c.bf16 %v1797, %v1789
      %v1854 = vpack.c.bf16 %v1798, %v1790
      %v1855 = vpack.c.bf16 %v1799, %v1791
      %v1856 = vpack.c.bf16 %v1800, %v1792
      %v1857 = vpack.c.bf16 %v1801, %v1793
      %v1858 = vpack.c.bf16 %v1802, %v1794
      %v1859 = vld [vmem:[%s3] sm:$0xf]
      %1861 = vset.pattern.permute.xlu0 0
      %1862 = vperm.xlu0 %1861, %v1859
      %v1863 = vpop.permute.xlu0 %1862
      %vm1865 = vcmask 883712
      %v1867 = vsel %vm1865, %v1690, 0
      %vm1869 = vcmask 1045504
      %v1871 = vsel %vm1869, %v1851, 0
      %v1874 = vsel %vm1869, %v1852, 0
      %v1877 = vsel %vm1869, %v1853, 0
      %v1880 = vsel %vm1869, %v1854, 0
      %v1883 = vsel %vm1869, %v1855, 0
      %v1886 = vsel %vm1869, %v1856, 0
      %v1889 = vsel %vm1869, %v1857, 0
      %v1892 = vsel %vm1869, %v1858, 0
      %1894 = vmatprep.subr.bf16.mxu0 %v1804
      %1895 = vmatpush1.bf16.msra.mxu0 %v1803
      %1896 = vmatprep.subr.bf16.mxu0 %v1812
      %1897 = vmatpush1.bf16.msra.mxu0 %v1811
      %1898 = vmatprep.subr.bf16.mxu0 %v1820
      %1899 = vmatpush1.bf16.msra.mxu0 %v1819
      %1900 = vmatprep.subr.bf16.mxu0 %v1828
      %1901 = vmatpush1.bf16.msra.mxu0 %v1827
      %1902 = vmatprep.subr.bf16.mxu0 %v1836
      %1903 = vmatpush1.bf16.msra.mxu0 %v1835
      %1904 = vmatprep.subr.bf16.mxu0 %v1844
      %1905 = vmatpush1.bf16.msra.mxu0 %v1843
      %1906 = vmatprep.subr.bf16.mxu0 %v1874
      %1907 = vmatpush1.bf16.msra.mxu0 %v1871
      %1908 = vmatprep.subr.bf16.mxu0 0
      %1909 = vmatpush1.bf16.msra.mxu0 0
      %1910 = vmatprep.subr.bf16.mxu0 0
      %1911 = vmatpush1.bf16.msra.mxu0 0
      %1912 = vmatprep.subr.bf16.mxu0 0
      %1913 = vmatpush1.bf16.msra.mxu0 0
      %1914 = vmatprep.subr.bf16.mxu0 0
      %1915 = vmatpush1.bf16.msra.mxu0 0
      %1916 = vmatprep.subr.bf16.mxu0 0
      %1917 = vmatpush1.bf16.msra.mxu0 0
      %1918 = vmatprep.subr.bf16.mxu0 0
      %1919 = vmatpush1.bf16.msra.mxu0 0
      %1920 = vmatprep.subr.bf16.mxu0 0
      %1921 = vmatpush1.bf16.msra.mxu0 0
      %1922 = vmatprep.subr.bf16.mxu0 0
      %1923 = vmatpush1.bf16.msra.mxu0 0
      %1924 = vmatprep.subr.bf16.mxu0 0
      %1925 = vmatpush1.bf16.msra.mxu0 0
      %1926 = vmatprep.mubr.bf16.mxu0 0
      %1927 = vmatmul.mubr.bf16.gmra.mrb[0].mxu0 %v1867
      %v1928 = vpop.f32.mrb[0].mxu0
      %v1929 = vadd.f32 %v1863, %v1928
      %v1930 = vpop.f32.mrb[0].mxu0
      %v1931 = vadd.f32 %v1863, %v1930
      %v1932 = vpop.f32.mrb[0].mxu0
      %v1933 = vpop.f32.mrb[0].mxu0
      %1934 = vdwg.mxu0
      %1935 = vmatprep.subr.bf16.mxu0 %v1806
      %1936 = vmatpush1.bf16.msra.mxu0 %v1805
      %1937 = vmatprep.subr.bf16.mxu0 %v1814
      %1938 = vmatpush1.bf16.msra.mxu0 %v1813
      %1939 = vmatprep.subr.bf16.mxu0 %v1822
      %1940 = vmatpush1.bf16.msra.mxu0 %v1821
      %1941 = vmatprep.subr.bf16.mxu0 %v1830
      %1942 = vmatpush1.bf16.msra.mxu0 %v1829
      %1943 = vmatprep.subr.bf16.mxu0 %v1838
      %1944 = vmatpush1.bf16.msra.mxu0 %v1837
      %1945 = vmatprep.subr.bf16.mxu0 %v1846
      %1946 = vmatpush1.bf16.msra.mxu0 %v1845
      %1947 = vmatprep.subr.bf16.mxu0 %v1880
      %1948 = vmatpush1.bf16.msra.mxu0 %v1877
      %1949 = vmatprep.subr.bf16.mxu0 0
      %1950 = vmatpush1.bf16.msra.mxu0 0
      %1951 = vmatprep.subr.bf16.mxu0 0
      %1952 = vmatpush1.bf16.msra.mxu0 0
      %1953 = vmatprep.subr.bf16.mxu0 0
      %1954 = vmatpush1.bf16.msra.mxu0 0
      %1955 = vmatprep.subr.bf16.mxu0 0
      %1956 = vmatpush1.bf16.msra.mxu0 0
      %1957 = vmatprep.subr.bf16.mxu0 0
      %1958 = vmatpush1.bf16.msra.mxu0 0
      %1959 = vmatprep.subr.bf16.mxu0 0
      %1960 = vmatpush1.bf16.msra.mxu0 0
      %1961 = vmatprep.subr.bf16.mxu0 0
      %1962 = vmatpush1.bf16.msra.mxu0 0
      %1963 = vmatprep.subr.bf16.mxu0 0
      %1964 = vmatpush1.bf16.msra.mxu0 0
      %1965 = vmatprep.subr.bf16.mxu0 0
      %1966 = vmatpush1.bf16.msra.mxu0 0
      %1967 = vmatprep.mubr.bf16.mxu0 0
      %1968 = vmatmul.mubr.bf16.gmra.mrb[0].mxu0 %v1867
      %v1969 = vpop.f32.mrb[0].mxu0
      %v1970 = vadd.f32 %v1863, %v1969
      %v1971 = vpop.f32.mrb[0].mxu0
      %v1972 = vadd.f32 %v1863, %v1971
      %v1973 = vpop.f32.mrb[0].mxu0
      %v1974 = vpop.f32.mrb[0].mxu0
      %1975 = vdwg.mxu0
      %1976 = vmatprep.subr.bf16.mxu0 %v1808
      %1977 = vmatpush1.bf16.msra.mxu0 %v1807
      %1978 = vmatprep.subr.bf16.mxu0 %v1816
      %1979 = vmatpush1.bf16.msra.mxu0 %v1815
      %1980 = vmatprep.subr.bf16.mxu0 %v1824
      %1981 = vmatpush1.bf16.msra.mxu0 %v1823
      %1982 = vmatprep.subr.bf16.mxu0 %v1832
      %1983 = vmatpush1.bf16.msra.mxu0 %v1831
      %1984 = vmatprep.subr.bf16.mxu0 %v1840
      %1985 = vmatpush1.bf16.msra.mxu0 %v1839
      %1986 = vmatprep.subr.bf16.mxu0 %v1848
      %1987 = vmatpush1.bf16.msra.mxu0 %v1847
      %1988 = vmatprep.subr.bf16.mxu0 %v1886
      %1989 = vmatpush1.bf16.msra.mxu0 %v1883
      %1990 = vmatprep.subr.bf16.mxu0 0
      %1991 = vmatpush1.bf16.msra.mxu0 0
      %1992 = vmatprep.subr.bf16.mxu0 0
      %1993 = vmatpush1.bf16.msra.mxu0 0
      %1994 = vmatprep.subr.bf16.mxu0 0
      %1995 = vmatpush1.bf16.msra.mxu0 0
      %1996 = vmatprep.subr.bf16.mxu0 0
      %1997 = vmatpush1.bf16.msra.mxu0 0
      %1998 = vmatprep.subr.bf16.mxu0 0
      %1999 = vmatpush1.bf16.msra.mxu0 0
      %2000 = vmatprep.subr.bf16.mxu0 0
      %2001 = vmatpush1.bf16.msra.mxu0 0
      %2002 = vmatprep.subr.bf16.mxu0 0
      %2003 = vmatpush1.bf16.msra.mxu0 0
      %2004 = vmatprep.subr.bf16.mxu0 0
      %2005 = vmatpush1.bf16.msra.mxu0 0
      %2006 = vmatprep.subr.bf16.mxu0 0
      %2007 = vmatpush1.bf16.msra.mxu0 0
      %2008 = vmatprep.mubr.bf16.mxu0 0
      %2009 = vmatmul.mubr.bf16.gmra.mrb[0].mxu0 %v1867
      %v2010 = vpop.f32.mrb[0].mxu0
      %v2011 = vadd.f32 %v1863, %v2010
      %v2012 = vpop.f32.mrb[0].mxu0
      %v2013 = vadd.f32 %v1863, %v2012
      %v2014 = vpop.f32.mrb[0].mxu0
      %v2015 = vpop.f32.mrb[0].mxu0
      %2016 = vdwg.mxu0
      %2017 = vmatprep.subr.bf16.mxu0 %v1810
      %2018 = vmatpush1.bf16.msra.mxu0 %v1809
      %2019 = vmatprep.subr.bf16.mxu0 %v1818
      %2020 = vmatpush1.bf16.msra.mxu0 %v1817
      %2021 = vmatprep.subr.bf16.mxu0 %v1826
      %2022 = vmatpush1.bf16.msra.mxu0 %v1825
      %2023 = vmatprep.subr.bf16.mxu0 %v1834
      %2024 = vmatpush1.bf16.msra.mxu0 %v1833
      %2025 = vmatprep.subr.bf16.mxu0 %v1842
      %2026 = vmatpush1.bf16.msra.mxu0 %v1841
      %2027 = vmatprep.subr.bf16.mxu0 %v1850
      %2028 = vmatpush1.bf16.msra.mxu0 %v1849
      %2029 = vmatprep.subr.bf16.mxu0 %v1892
      %2030 = vmatpush1.bf16.msra.mxu0 %v1889
      %2031 = vmatprep.subr.bf16.mxu0 0
      %2032 = vmatpush1.bf16.msra.mxu0 0
      %2033 = vmatprep.subr.bf16.mxu0 0
      %2034 = vmatpush1.bf16.msra.mxu0 0
      %2035 = vmatprep.subr.bf16.mxu0 0
      %2036 = vmatpush1.bf16.msra.mxu0 0
      %2037 = vmatprep.subr.bf16.mxu0 0
      %2038 = vmatpush1.bf16.msra.mxu0 0
      %2039 = vmatprep.subr.bf16.mxu0 0
      %2040 = vmatpush1.bf16.msra.mxu0 0
      %2041 = vmatprep.subr.bf16.mxu0 0
      %2042 = vmatpush1.bf16.msra.mxu0 0
      %2043 = vmatprep.subr.bf16.mxu0 0
      %2044 = vmatpush1.bf16.msra.mxu0 0
      %2045 = vmatprep.subr.bf16.mxu0 0
      %2046 = vmatpush1.bf16.msra.mxu0 0
      %2047 = vmatprep.subr.bf16.mxu0 0
      %2048 = vmatpush1.bf16.msra.mxu0 0
      %2049 = vmatprep.mubr.bf16.mxu0 0
      %2050 = vmatmul.mubr.bf16.gmra.mrb[0].mxu0 %v1867
      %v2051 = vpop.f32.mrb[0].mxu0
      %v2052 = vadd.f32 %v1863, %v2051
      %v2053 = vpop.f32.mrb[0].mxu0
      %v2054 = vadd.f32 %v1863, %v2053
      %v2055 = vpop.f32.mrb[0].mxu0
      %v2056 = vpop.f32.mrb[0].mxu0
      %2057 = vdwg.mxu0
      %v2066 = vcombine.low %v1929, %v1931
      %v2067 = vcombine.low %v1970, %v1972
      %v2068 = vcombine.low %v2011, %v2013
      %v2069 = vcombine.low %v2052, %v2054
      %2074 = vst [vmem:[%s285] sm:$0xff] %v2066
      %2075 = vst [vmem:[%s285 + $0x8] sm:$0xff] %v2067
      %2076 = vst [vmem:[%s285 + $0x10] sm:$0xff] %v2068
      %vm2077 = vcmask 1043456
      %vm2078 = vmor %vm495, %vm2077
      %2079 = vst.msk [vmem:[%s285 + $0x18] sm:$0xff] %vm2078, %v2069
      %v2080 = vmul.f32 %v1929, %v338
      %v2081 = vmul.f32 %v1931, %v342
      %v2082 = vmul.f32 %v1970, %v346
      %v2083 = vmul.f32 %v1972, %v350
      %v2084 = vmul.f32 %v2011, %v354
      %v2085 = vmul.f32 %v2013, %v358
      %v2086 = vmul.f32 %v2052, %v362
      %v2087 = vmul.f32 %v2054, %v366
      %v2088 = vsel %vm2077, %v2080, 0.0
      %v2089 = vsel %vm2077, %v2081, 0.0
      %v2090 = vadd.f32 %v2088, %v2089
      %v2091 = vsel %vm2077, %v2082, 0.0
      %v2092 = vadd.f32 %v2090, %v2091
      %v2093 = vsel %vm2077, %v2083, 0.0
      %v2094 = vadd.f32 %v2092, %v2093
      %v2095 = vsel %vm2077, %v2084, 0.0
      %v2096 = vadd.f32 %v2094, %v2095
      %v2097 = vsel %vm2077, %v2085, 0.0
      %v2098 = vadd.f32 %v2096, %v2097
      %v2099 = vsel %vm2077, %v2086, 0.0
      %v2100 = vadd.f32 %v2098, %v2099
      %v2101 = vsel %vm439, %v2087, 0.0
      %v2102 = vadd.f32 %v2100, %v2101
      %2103 = vadd.xlane.f32.xlu0 %v2102
      %v2104 = vpop.xlane.xlu0 %2103
      %v2105 = vmul.f32 %v2080, %v2080
      %v2106 = vmul.f32 %v2081, %v2081
      %v2107 = vmul.f32 %v2082, %v2082
      %v2108 = vmul.f32 %v2083, %v2083
      %v2109 = vmul.f32 %v2084, %v2084
      %v2110 = vmul.f32 %v2085, %v2085
      %v2111 = vmul.f32 %v2086, %v2086
      %v2112 = vmul.f32 %v2087, %v2087
      %v2113 = vsel %vm2077, %v2105, 0.0
      %v2114 = vsel %vm2077, %v2106, 0.0
      %v2115 = vadd.f32 %v2113, %v2114
      %v2116 = vsel %vm2077, %v2107, 0.0
      %v2117 = vadd.f32 %v2115, %v2116
      %v2118 = vsel %vm2077, %v2108, 0.0
      %v2119 = vadd.f32 %v2117, %v2118
      %v2120 = vsel %vm2077, %v2109, 0.0
      %v2121 = vadd.f32 %v2119, %v2120
      %v2122 = vsel %vm2077, %v2110, 0.0
      %v2123 = vadd.f32 %v2121, %v2122
      %v2124 = vsel %vm2077, %v2111, 0.0
      %v2125 = vadd.f32 %v2123, %v2124
      %v2126 = vsel %vm439, %v2112, 0.0
      %v2127 = vadd.f32 %v2125, %v2126
      %2128 = vadd.xlane.f32.xlu0 %v2127
      %v2129 = vpop.xlane.xlu0 %2128
      %v2130 = vsel %vm1007, %v2104, %v2129
      %vm2131 = vcmask 11264
      %2132 = vst.msk [vmem:[%s289] sm:$0xf] %vm2131, %v2130
      %p2133 = scmp.lt.s32.totalorder %s19, 1
      %s2134 = scalar_select %p2133, %s19, 1
      %s2135 = smul.addr %s2134, 8
      %s2136 = smul.addr %s2135, 4
      %s2137 = scalar_lea.vmem %s6, %s2136
      %p2138 = scmp.lt.s32.totalorder %s19, 1
      %s2139 = scalar_select %p2138, %s19, 1
      %s2140 = smul.addr %s2139, 4
      %s2141 = scalar_lea.vmem %s7, %s2140
      // Predicated region
      $region45: #{up_forward.6} parent=43 // pred_check
        %p2142 = pneg %p168
      $region46: #{up_forward.6} parent=43 // pred_check_branch
        %2144 = sbr.rel (%p2142) target = $region48
      $region47: #{up_forward.6} parent=43 // pred_region
        _
      $region48: #{up_forward.6} parent=43 // pred_fallthru
        _
      // Predicated region
      $region49: #{up_forward.6} parent=43 // pred_check
        %p2145 = pneg %p194
      $region50: #{up_forward.6} parent=43 // pred_check_branch
        %2147 = sbr.rel (%p2145) target = $region52
      $region51: #{up_forward.6} parent=43 // pred_region
        _
      $region52: #{up_forward.6} parent=43 // pred_fallthru
        _
    $region44: #{up_forward.6} parent=5 // pred_fallthru
      _
    %p2148 = scmp.le.s32.totalorder 2, %s14
    // Predicated region
    $region53: #{up_forward.6} parent=5 // pred_check
      %p2149 = pneg %p2148
    $region54: #{up_forward.6} parent=5 // pred_check_branch
      %2151 = sbr.rel (%p2149) target = $region56
    $region55: #{up_forward.6} parent=5 // pred_region
      %s2152 = ssub.s32 %s14, 2
      // Predicated region
      $region57: #{up_forward.6} parent=55 // pred_check
        %p2153 = pneg %p174
      $region58: #{up_forward.6} parent=55 // pred_check_branch
        %2155 = sbr.rel (%p2153) target = $region60
      $region59: #{up_forward.6} parent=55 // pred_region
        %p2156 = scmp.lt.s32.totalorder %s20, 1
        %s2157 = scalar_select %p2156, %s20, 1
        %s2158 = smul.addr %s2157, 8
        %s2159 = smul.addr %s2158, 4
        %s2160 = scalar_lea.vmem %s6, %s2159
      $region60: #{up_forward.6} parent=55 // pred_fallthru
        _
      // Predicated region
      $region61: #{up_forward.6} parent=55 // pred_check
        %p2161 = pneg %p200
      $region62: #{up_forward.6} parent=55 // pred_check_branch
        %2163 = sbr.rel (%p2161) target = $region64
      $region63: #{up_forward.6} parent=55 // pred_region
        %p2164 = scmp.lt.s32.totalorder %s20, 1
        %s2165 = scalar_select %p2164, %s20, 1
        %s2166 = smul.addr %s2165, 4
        %s2167 = scalar_lea.vmem %s7, %s2166
      $region64: #{up_forward.6} parent=55 // pred_fallthru
        _
    $region56: #{up_forward.6} parent=5 // pred_fallthru
      _
  $region6: #{up_forward.6} parent=0 // loop_footer
    %s18 = sadd.s32 1, %s14
  $region7: #{up_forward.6} parent=0 // loop_footer_branch
    %13 = sbr.rel target = $region3
  $region8: #{up_forward.6} parent=0 // loop_exit
    _

// kernel: up_forward.5
$region0: #{up_forward.5}
  #allocation0 [shape = 'u32[]', space=smem, size = 0x4, offset = 0x4, fixed_abs, tag = 'smem constant byte address 0x4 - core index']
  #allocation1 [shape = 'u32[144,128]{1,0:T(1,128)}', space=vmem, size = 0x12000, scoped, tag = 'internal scratch']
  #allocation2 [shape = 'f32[216,1000]{1,0:T(8,128)}', space=vmem, size = 0xd8000, scoped, tag = 'scratch operand']
  %s0 = inlined_call_operand.vmem [shape: f32[1,1000], index: 0, kind: input, shape index: {}]
  %s1 = inlined_call_operand.vmem [shape: f32[2,4,1000], index: 1, kind: input, shape index: {}]
  %s2 = inlined_call_operand.vmem [shape: f32[2,4,1000], index: 2, kind: input, shape index: {}]
  %s3 = inlined_call_operand.vmem [shape: bf16[4,216], index: 3, kind: input, shape index: {}]
  %s4 = inlined_call_operand.vmem [shape: f32[4,1], index: 4, kind: input, shape index: {}]
  %s5 = inlined_call_operand.vmem [shape: f32[2,4,1000], index: 5, kind: output, shape index: {0}]
  %s6 = inlined_call_operand.vmem [shape: f32[2,4,2], index: 6, kind: output, shape index: {1}]
  %7 = xla_tuple %s5, %s6
  %s8 = sld [smem:[#allocation0]]
  $region61: #{up_forward.5} parent=0
    _
  %s10 = ssub.s32 1, %s8
  %s11 = scalar_select 0, %s10, %s8
  loop: start=0, step=1, limit=4
  $region2: #{up_forward.5} parent=0 // loop_pre_header
    _
  $region3: #{up_forward.5} parent=0 // loop_header
    %s13 = sphi 0, %s17
    %p14 = scmp.ge.s32.totalorder %s13, 4
    %s21 = sphi 0, %s21
    %s23 = sphi 0, %s21
    %s24 = sphi 0, %s23
    %s38 = sphi 0, %s24
    %s44 = sphi 0, %s46
    %s47 = sphi 0, %s44
    %s48 = sphi 0, %s47
    %s64 = sphi 0, %s48
    %s70 = sphi 0, %s72
    %s73 = sphi 0, %s70
    %s74 = sphi 0, %s73
    %s90 = sphi 0, %s74
    %s94 = sphi 0, %s94
    %s96 = sphi 0, %s94
    %s97 = sphi 0, %s96
    %s111 = sphi 0, %s97
    %s115 = sphi 0, %s115
    %s117 = sphi 0, %s115
    %s118 = sphi 0, %s117
    %s132 = sphi 0, %s118
    %s138 = sphi 0, %s140
    %s141 = sphi 0, %s138
    %s142 = sphi 0, %s141
    %s158 = sphi 0, %s142
    %s164 = sphi 0, %s166
    %s167 = sphi 0, %s164
    %s168 = sphi 0, %s167
    %s184 = sphi 0, %s168
  $region4: #{up_forward.5} parent=0 // loop_header_branch
    %16 = sbr.rel (%p14) target = $region8
  $region5: #{up_forward.5} parent=0 // loop_body
    %s18 = ssub.s32 %s13, 1
    %s19 = ssub.s32 %s13, 2
    %s20 = sadd.s32 %s13, 1
    %s22 = sadd.s32 %s21, 1
    %p25 = scmp.eq.s32.totalorder %s13, 1
    %p26 = scmp.ne.s32.totalorder %s21, %s23
    %p27 = scmp.eq.s32.totalorder %s13, 0
    %p28 = por %p26, %p27
    %p29 = scmp.ne.s32.totalorder %s21, %s23
    %p30 = scmp.eq.s32.totalorder %s18, 1
    %p31 = por %p29, %p30
    %p32 = scmp.ne.s32.totalorder %s23, %s24
    %p33 = scmp.eq.s32.totalorder %s18, 0
    %p34 = por %p32, %p33
    %p35 = scmp.ne.s32.totalorder %s23, %s24
    %p36 = scmp.eq.s32.totalorder %s19, 1
    %p37 = por %p35, %p36
    %p39 = scmp.ne.s32.totalorder %s24, %s38
    %p40 = scmp.eq.s32.totalorder %s19, 0
    %p41 = por %p39, %p40
    %s42 = ssub.s32 %s13, %s20
    %p43 = scmp.eq.s32.totalorder %s42, 0
    %s45 = sadd.s32 %s44, 1
    %s46 = scalar_select %p43, %s44, %s45
    %p49 = pneg %p43
    %p50 = scmp.eq.s32.totalorder %s13, 1
    %p51 = por %p49, %p50
    %p52 = scmp.ne.s32.totalorder %s44, %s47
    %p53 = scmp.eq.s32.totalorder %s13, 0
    %p54 = por %p52, %p53
    %p55 = scmp.ne.s32.totalorder %s44, %s47
    %p56 = scmp.eq.s32.totalorder %s18, 1
    %p57 = por %p55, %p56
    %p58 = scmp.ne.s32.totalorder %s47, %s48
    %p59 = scmp.eq.s32.totalorder %s18, 0
    %p60 = por %p58, %p59
    %p61 = scmp.ne.s32.totalorder %s47, %s48
    %p62 = scmp.eq.s32.totalorder %s19, 1
    %p63 = por %p61, %p62
    %p65 = scmp.ne.s32.totalorder %s48, %s64
    %p66 = scmp.eq.s32.totalorder %s19, 0
    %p67 = por %p65, %p66
    %s68 = ssub.s32 %s13, %s20
    %p69 = scmp.eq.s32.totalorder %s68, 0
    %s71 = sadd.s32 %s70, 1
    %s72 = scalar_select %p69, %s70, %s71
    %p75 = pneg %p69
    %p76 = scmp.eq.s32.totalorder %s13, 1
    %p77 = por %p75, %p76
    %p78 = scmp.ne.s32.totalorder %s70, %s73
    %p79 = scmp.eq.s32.totalorder %s13, 0
    %p80 = por %p78, %p79
    %p81 = scmp.ne.s32.totalorder %s70, %s73
    %p82 = scmp.eq.s32.totalorder %s18, 1
    %p83 = por %p81, %p82
    %p84 = scmp.ne.s32.totalorder %s73, %s74
    %p85 = scmp.eq.s32.totalorder %s18, 0
    %p86 = por %p84, %p85
    %p87 = scmp.ne.s32.totalorder %s73, %s74
    %p88 = scmp.eq.s32.totalorder %s19, 1
    %p89 = por %p87, %p88
    %p91 = scmp.ne.s32.totalorder %s74, %s90
    %p92 = scmp.eq.s32.totalorder %s19, 0
    %p93 = por %p91, %p92
    %s95 = sadd.s32 %s94, 1
    %p98 = scmp.eq.s32.totalorder %s13, 1
    %p99 = scmp.ne.s32.totalorder %s94, %s96
    %p100 = scmp.eq.s32.totalorder %s13, 0
    %p101 = por %p99, %p100
    %p102 = scmp.ne.s32.totalorder %s94, %s96
    %p103 = scmp.eq.s32.totalorder %s18, 1
    %p104 = por %p102, %p103
    %p105 = scmp.ne.s32.totalorder %s96, %s97
    %p106 = scmp.eq.s32.totalorder %s18, 0
    %p107 = por %p105, %p106
    %p108 = scmp.ne.s32.totalorder %s96, %s97
    %p109 = scmp.eq.s32.totalorder %s19, 1
    %p110 = por %p108, %p109
    %p112 = scmp.ne.s32.totalorder %s97, %s111
    %p113 = scmp.eq.s32.totalorder %s19, 0
    %p114 = por %p112, %p113
    %s116 = sadd.s32 %s115, 1
    %p119 = scmp.eq.s32.totalorder %s13, 1
    %p120 = scmp.ne.s32.totalorder %s115, %s117
    %p121 = scmp.eq.s32.totalorder %s13, 0
    %p122 = por %p120, %p121
    %p123 = scmp.ne.s32.totalorder %s115, %s117
    %p124 = scmp.eq.s32.totalorder %s18, 1
    %p125 = por %p123, %p124
    %p126 = scmp.ne.s32.totalorder %s117, %s118
    %p127 = scmp.eq.s32.totalorder %s18, 0
    %p128 = por %p126, %p127
    %p129 = scmp.ne.s32.totalorder %s117, %s118
    %p130 = scmp.eq.s32.totalorder %s19, 1
    %p131 = por %p129, %p130
    %p133 = scmp.ne.s32.totalorder %s118, %s132
    %p134 = scmp.eq.s32.totalorder %s19, 0
    %p135 = por %p133, %p134
    %s136 = ssub.s32 %s13, %s20
    %p137 = scmp.eq.s32.totalorder %s136, 0
    %s139 = sadd.s32 %s138, 1
    %s140 = scalar_select %p137, %s138, %s139
    %p143 = pneg %p137
    %p144 = scmp.eq.s32.totalorder %s13, 1
    %p145 = por %p143, %p144
    %p146 = scmp.ne.s32.totalorder %s138, %s141
    %p147 = scmp.eq.s32.totalorder %s13, 0
    %p148 = por %p146, %p147
    %p149 = scmp.ne.s32.totalorder %s138, %s141
    %p150 = scmp.eq.s32.totalorder %s18, 1
    %p151 = por %p149, %p150
    %p152 = scmp.ne.s32.totalorder %s141, %s142
    %p153 = scmp.eq.s32.totalorder %s18, 0
    %p154 = por %p152, %p153
    %p155 = scmp.ne.s32.totalorder %s141, %s142
    %p156 = scmp.eq.s32.totalorder %s19, 1
    %p157 = por %p155, %p156
    %p159 = scmp.ne.s32.totalorder %s142, %s158
    %p160 = scmp.eq.s32.totalorder %s19, 0
    %p161 = por %p159, %p160
    %s162 = ssub.s32 %s13, %s20
    %p163 = scmp.eq.s32.totalorder %s162, 0
    %s165 = sadd.s32 %s164, 1
    %s166 = scalar_select %p163, %s164, %s165
    %p169 = pneg %p163
    %p170 = scmp.eq.s32.totalorder %s13, 1
    %p171 = por %p169, %p170
    %p172 = scmp.ne.s32.totalorder %s164, %s167
    %p173 = scmp.eq.s32.totalorder %s13, 0
    %p174 = por %p172, %p173
    %p175 = scmp.ne.s32.totalorder %s164, %s167
    %p176 = scmp.eq.s32.totalorder %s18, 1
    %p177 = por %p175, %p176
    %p178 = scmp.ne.s32.totalorder %s167, %s168
    %p179 = scmp.eq.s32.totalorder %s18, 0
    %p180 = por %p178, %p179
    %p181 = scmp.ne.s32.totalorder %s167, %s168
    %p182 = scmp.eq.s32.totalorder %s19, 1
    %p183 = por %p181, %p182
    %p185 = scmp.ne.s32.totalorder %s168, %s184
    %p186 = scmp.eq.s32.totalorder %s19, 0
    %p187 = por %p185, %p186
    %p188 = scmp.le.s32.totalorder 1, %s13
    %p189 = scmp.lt.s32.totalorder %s13, 3
    %p190 = pnand %p188, %p189
    %p191 = pneg %p190
    // Predicated region
    $region9: #{up_forward.5} parent=5 // pred_check
      _
    $region10: #{up_forward.5} parent=5 // pred_check_branch
      %193 = sbr.rel (%p190) target = $region12
    $region11: #{up_forward.5} parent=5 // pred_region
      %s194 = ssub.s32 %s13, 1
      // Predicated region
      $region13: #{up_forward.5} parent=11 // pred_check
        %p195 = pneg %p34
      $region14: #{up_forward.5} parent=11 // pred_check_branch
        %197 = sbr.rel (%p195) target = $region16
      $region15: #{up_forward.5} parent=11 // pred_region
        _
      $region16: #{up_forward.5} parent=11 // pred_fallthru
        _
      // Predicated region
      $region17: #{up_forward.5} parent=11 // pred_check
        %p198 = pneg %p107
      $region18: #{up_forward.5} parent=11 // pred_check_branch
        %200 = sbr.rel (%p198) target = $region20
      $region19: #{up_forward.5} parent=11 // pred_region
        _
      $region20: #{up_forward.5} parent=11 // pred_fallthru
        _
      // Predicated region
      $region21: #{up_forward.5} parent=11 // pred_check
        %p201 = pneg %p128
      $region22: #{up_forward.5} parent=11 // pred_check_branch
        %203 = sbr.rel (%p201) target = $region24
      $region23: #{up_forward.5} parent=11 // pred_region
        _
      $region24: #{up_forward.5} parent=11 // pred_fallthru
        _
    $region12: #{up_forward.5} parent=5 // pred_fallthru
      _
    %p204 = scmp.lt.s32.totalorder %s13, 2
    // Predicated region
    $region25: #{up_forward.5} parent=5 // pred_check
      %p205 = pneg %p204
    $region26: #{up_forward.5} parent=5 // pred_check_branch
      %207 = sbr.rel (%p205) target = $region28
    $region27: #{up_forward.5} parent=5 // pred_region
      // Predicated region
      $region29: #{up_forward.5} parent=27 // pred_check
        %p208 = pneg %p54
      $region30: #{up_forward.5} parent=27 // pred_check_branch
        %210 = sbr.rel (%p208) target = $region32
      $region31: #{up_forward.5} parent=27 // pred_region
        %p211 = scmp.lt.s32.totalorder %s13, 1
        %s212 = scalar_select %p211, %s13, 1
        %s213 = smul.addr %s212, 8
        %s214 = smul.addr %s213, 4
        %s215 = scalar_lea.vmem %s1, %s214
      $region32: #{up_forward.5} parent=27 // pred_fallthru
        _
      // Predicated region
      $region33: #{up_forward.5} parent=27 // pred_check
        %p216 = pneg %p80
      $region34: #{up_forward.5} parent=27 // pred_check_branch
        %218 = sbr.rel (%p216) target = $region36
      $region35: #{up_forward.5} parent=27 // pred_region
        %p219 = scmp.lt.s32.totalorder %s13, 1
        %s220 = scalar_select %p219, %s13, 1
        %s221 = smul.addr %s220, 8
        %s222 = smul.addr %s221, 4
        %s223 = scalar_lea.vmem %s2, %s222
      $region36: #{up_forward.5} parent=27 // pred_fallthru
        _
    $region28: #{up_forward.5} parent=5 // pred_fallthru
      _
    %p224 = scmp.le.s32.totalorder 1, %s13
    %p225 = scmp.lt.s32.totalorder %s13, 3
    %p226 = pnand %p224, %p225
    %p227 = pneg %p226
    // Predicated region
    $region37: #{up_forward.5} parent=5 // pred_check
      _
    $region38: #{up_forward.5} parent=5 // pred_check_branch
      %229 = sbr.rel (%p226) target = $region40
    $region39: #{up_forward.5} parent=5 // pred_region
      %s230 = ssub.s32 %s13, 1
      %p231 = pneg %p34
      %p232 = pneg %p31
      %p233 = scmp.lt.s32.totalorder %s18, 1
      %s234 = scalar_select %p233, %s18, 1
      %s235 = smul.addr %s234, 8
      %s236 = smul.addr %s235, 4
      %s237 = scalar_lea.vmem %s1, %s236
      %p238 = pneg %p60
      %p239 = pneg %p57
      %p240 = scmp.lt.s32.totalorder %s18, 1
      %s241 = scalar_select %p240, %s18, 1
      %s242 = smul.addr %s241, 8
      %s243 = smul.addr %s242, 4
      %s244 = scalar_lea.vmem %s2, %s243
      %p245 = pneg %p86
      %p246 = pneg %p83
      %p247 = pneg %p107
      %p248 = pneg %p104
      %p249 = pneg %p128
      %p250 = pneg %p125
      %p251 = pneg %p154
      %p252 = pneg %p151
      %p253 = scmp.lt.s32.totalorder %s18, 1
      %s254 = scalar_select %p253, %s18, 1
      %s255 = smul.addr %s254, 8
      %s256 = smul.addr %s255, 4
      %s257 = scalar_lea.vmem %s5, %s256
      %p258 = pneg %p180
      %p259 = pneg %p177
      %p260 = scmp.lt.s32.totalorder %s18, 1
      %s261 = scalar_select %p260, %s18, 1
      %s262 = smul.addr %s261, 4
      %s263 = scalar_lea.vmem %s6, %s262
      %p264 = scmp.lt.s32.totalorder %s18, 1
      %s265 = scalar_select %p264, %s18, 1
      %s266 = smul.addr %s265, 8
      %s267 = smul.addr %s266, 4
      %s268 = scalar_lea.vmem %s1, %s267
      %p269 = scmp.lt.s32.totalorder %s18, 1
      %s270 = scalar_select %p269, %s18, 1
      %s271 = smul.addr %s270, 8
      %s272 = smul.addr %s271, 4
      %s273 = scalar_lea.vmem %s2, %s272
      %p274 = scmp.lt.s32.totalorder %s18, 1
      %s275 = scalar_select %p274, %s18, 1
      %s276 = smul.addr %s275, 8
      %s277 = smul.addr %s276, 4
      %s278 = scalar_lea.vmem %s5, %s277
      %p279 = scmp.lt.s32.totalorder %s18, 1
      %s280 = scalar_select %p279, %s18, 1
      %s281 = smul.addr %s280, 4
      %s282 = scalar_lea.vmem %s6, %s281
      %v284 = vld [vmem:[%s0] sm:$0xff]
      %v285 = vld [vmem:[%s268] sm:$0xff]
      %v286 = vld [vmem:[%s268 + $0x8] sm:$0xff]
      %v287 = vld [vmem:[%s268 + $0x10] sm:$0xff]
      %v288 = vld [vmem:[%s268 + $0x18] sm:$0xff]
      %v290 = vcombine.high %v288, %v288
      %291 = vrot.lane.b32.xlu0 %v288, 7
      %v292 = vpop.permute.xlu0 %291
      %293 = vrot.lane.b32.xlu0 %v290, 7
      %v294 = vpop.permute.xlu0 %293
      %vm295 = vcmask 56320
      %v296 = vsel %vm295, %v292, %v294
      %v301 = vcombine.high %v285, %v285
      %v302 = vcombine.high %v286, %v286
      %v303 = vcombine.high %v287, %v287
      %304 = vrot.lane.b32.xlu0 %v285, 111
      %v305 = vpop.permute.xlu0 %304
      %306 = vrot.lane.b32.xlu0 %v301, 111
      %v307 = vpop.permute.xlu0 %306
      %308 = vrot.lane.b32.xlu0 %v286, 111
      %v309 = vpop.permute.xlu0 %308
      %310 = vrot.lane.b32.xlu0 %v302, 111
      %v311 = vpop.permute.xlu0 %310
      %312 = vrot.lane.b32.xlu0 %v287, 111
      %v313 = vpop.permute.xlu0 %312
      %314 = vrot.lane.b32.xlu0 %v303, 111
      %v315 = vpop.permute.xlu0 %314
      %316 = vrot.lane.b32.xlu0 %v288, 111
      %v317 = vpop.permute.xlu0 %316
      %vm318 = vcmask 908288
      %v319 = vsel %vm318, %v305, %v307
      %v320 = vsel %vm318, %v307, %v309
      %v321 = vsel %vm318, %v309, %v311
      %v322 = vsel %vm318, %v311, %v313
      %v323 = vsel %vm318, %v313, %v315
      %v324 = vsel %vm318, %v315, %v317
      %v333 = vsel %vm318, %v296, %v305
      %334 = vst [vmem:[#allocation2] sm:$0xf] %v333
      %335 = vst [vmem:[#allocation2 + $0x8] sm:$0xf] %v319
      %336 = vst [vmem:[#allocation2 + $0x10] sm:$0xf] %v320
      %337 = vst [vmem:[#allocation2 + $0x18] sm:$0xf] %v321
      %338 = vst [vmem:[#allocation2 + $0x20] sm:$0xf] %v322
      %339 = vst [vmem:[#allocation2 + $0x28] sm:$0xf] %v323
      %340 = vst [vmem:[#allocation2 + $0x30] sm:$0xf] %v324
      %vm341 = vcmask 846848
      %342 = vst.msk [vmem:[#allocation2 + $0x38] sm:$0xf] %vm341, %v317
      %343 = vrot.lane.b32.xlu0 %v288, 6
      %v344 = vpop.permute.xlu0 %343
      %345 = vrot.lane.b32.xlu0 %v290, 6
      %v346 = vpop.permute.xlu0 %345
      %vm347 = vcmask 48128
      %v348 = vsel %vm347, %v344, %v346
      %350 = vrot.lane.b32.xlu0 %v285, 110
      %v351 = vpop.permute.xlu0 %350
      %352 = vrot.lane.b32.xlu0 %v301, 110
      %v353 = vpop.permute.xlu0 %352
      %354 = vrot.lane.b32.xlu0 %v286, 110
      %v355 = vpop.permute.xlu0 %354
      %356 = vrot.lane.b32.xlu0 %v302, 110
      %v357 = vpop.permute.xlu0 %356
      %358 = vrot.lane.b32.xlu0 %v287, 110
      %v359 = vpop.permute.xlu0 %358
      %360 = vrot.lane.b32.xlu0 %v303, 110
      %v361 = vpop.permute.xlu0 %360
      %362 = vrot.lane.b32.xlu0 %v288, 110
      %v363 = vpop.permute.xlu0 %362
      %vm364 = vcmask 900096
      %v365 = vsel %vm364, %v351, %v353
      %v366 = vsel %vm364, %v353, %v355
      %v367 = vsel %vm364, %v355, %v357
      %v368 = vsel %vm364, %v357, %v359
      %v369 = vsel %vm364, %v359, %v361
      %v370 = vsel %vm364, %v361, %v363
      %v379 = vsel %vm364, %v348, %v351
      %380 = vst [vmem:[#allocation2 + $0x40] sm:$0xf] %v379
      %381 = vst [vmem:[#allocation2 + $0x48] sm:$0xf] %v365
      %382 = vst [vmem:[#allocation2 + $0x50] sm:$0xf] %v366
      %383 = vst [vmem:[#allocation2 + $0x58] sm:$0xf] %v367
      %384 = vst [vmem:[#allocation2 + $0x60] sm:$0xf] %v368
      %385 = vst [vmem:[#allocation2 + $0x68] sm:$0xf] %v369
      %386 = vst [vmem:[#allocation2 + $0x70] sm:$0xf] %v370
      %387 = vst.msk [vmem:[#allocation2 + $0x78] sm:$0xf] %vm341, %v363
      %388 = vrot.lane.b32.xlu0 %v288, 5
      %v389 = vpop.permute.xlu0 %388
      %390 = vrot.lane.b32.xlu0 %v290, 5
      %v391 = vpop.permute.xlu0 %390
      %vm392 = vcmask 39936
      %v393 = vsel %vm392, %v389, %v391
      %395 = vrot.lane.b32.xlu0 %v285, 109
      %v396 = vpop.permute.xlu0 %395
      %397 = vrot.lane.b32.xlu0 %v301, 109
      %v398 = vpop.permute.xlu0 %397
      %399 = vrot.lane.b32.xlu0 %v286, 109
      %v400 = vpop.permute.xlu0 %399
      %401 = vrot.lane.b32.xlu0 %v302, 109
      %v402 = vpop.permute.xlu0 %401
      %403 = vrot.lane.b32.xlu0 %v287, 109
      %v404 = vpop.permute.xlu0 %403
      %405 = vrot.lane.b32.xlu0 %v303, 109
      %v406 = vpop.permute.xlu0 %405
      %407 = vrot.lane.b32.xlu0 %v288, 109
      %v408 = vpop.permute.xlu0 %407
      %vm409 = vcmask 891904
      %v410 = vsel %vm409, %v396, %v398
      %v411 = vsel %vm409, %v398, %v400
      %v412 = vsel %vm409, %v400, %v402
      %v413 = vsel %vm409, %v402, %v404
      %v414 = vsel %vm409, %v404, %v406
      %v415 = vsel %vm409, %v406, %v408
      %v424 = vsel %vm409, %v393, %v396
      %425 = vst [vmem:[#allocation2 + $0x80] sm:$0xf] %v424
      %426 = vst [vmem:[#allocation2 + $0x88] sm:$0xf] %v410
      %427 = vst [vmem:[#allocation2 + $0x90] sm:$0xf] %v411
      %428 = vst [vmem:[#allocation2 + $0x98] sm:$0xf] %v412
      %429 = vst [vmem:[#allocation2 + $0xa0] sm:$0xf] %v413
      %430 = vst [vmem:[#allocation2 + $0xa8] sm:$0xf] %v414
      %431 = vst [vmem:[#allocation2 + $0xb0] sm:$0xf] %v415
      %432 = vst.msk [vmem:[#allocation2 + $0xb8] sm:$0xf] %vm341, %v408
      %433 = vrot.lane.b32.xlu0 %v290, 125
      %v434 = vpop.permute.xlu0 %433
      %436 = vrot.lane.b32.xlu0 %v285, 101
      %v437 = vpop.permute.xlu0 %436
      %438 = vrot.lane.b32.xlu0 %v301, 101
      %v439 = vpop.permute.xlu0 %438
      %440 = vrot.lane.b32.xlu0 %v286, 101
      %v441 = vpop.permute.xlu0 %440
      %442 = vrot.lane.b32.xlu0 %v302, 101
      %v443 = vpop.permute.xlu0 %442
      %444 = vrot.lane.b32.xlu0 %v287, 101
      %v445 = vpop.permute.xlu0 %444
      %446 = vrot.lane.b32.xlu0 %v303, 101
      %v447 = vpop.permute.xlu0 %446
      %448 = vrot.lane.b32.xlu0 %v288, 101
      %v449 = vpop.permute.xlu0 %448
      %450 = vrot.lane.b32.xlu0 %v290, 101
      %v451 = vpop.permute.xlu0 %450
      %vm452 = vcmask 826368
      %v453 = vsel %vm452, %v437, %v439
      %v454 = vsel %vm452, %v439, %v441
      %v455 = vsel %vm452, %v441, %v443
      %v456 = vsel %vm452, %v443, %v445
      %v457 = vsel %vm452, %v445, %v447
      %v458 = vsel %vm452, %v447, %v449
      %v459 = vsel %vm452, %v449, %v451
      %v468 = vsel %vm452, %v434, %v437
      %469 = vst [vmem:[#allocation2 + $0xc0] sm:$0xf] %v468
      %470 = vst [vmem:[#allocation2 + $0xc8] sm:$0xf] %v453
      %471 = vst [vmem:[#allocation2 + $0xd0] sm:$0xf] %v454
      %472 = vst [vmem:[#allocation2 + $0xd8] sm:$0xf] %v455
      %473 = vst [vmem:[#allocation2 + $0xe0] sm:$0xf] %v456
      %474 = vst [vmem:[#allocation2 + $0xe8] sm:$0xf] %v457
      %475 = vst [vmem:[#allocation2 + $0xf0] sm:$0xf] %v458
      %476 = vst.msk [vmem:[#allocation2 + $0xf8] sm:$0xf] %vm341, %v459
      %477 = vrot.lane.b32.xlu0 %v290, 124
      %v478 = vpop.permute.xlu0 %477
      %480 = vrot.lane.b32.xlu0 %v285, 100
      %v481 = vpop.permute.xlu0 %480
      %482 = vrot.lane.b32.xlu0 %v301, 100
      %v483 = vpop.permute.xlu0 %482
      %484 = vrot.lane.b32.xlu0 %v286, 100
      %v485 = vpop.permute.xlu0 %484
      %486 = vrot.lane.b32.xlu0 %v302, 100
      %v487 = vpop.permute.xlu0 %486
      %488 = vrot.lane.b32.xlu0 %v287, 100
      %v489 = vpop.permute.xlu0 %488
      %490 = vrot.lane.b32.xlu0 %v303, 100
      %v491 = vpop.permute.xlu0 %490
      %492 = vrot.lane.b32.xlu0 %v288, 100
      %v493 = vpop.permute.xlu0 %492
      %494 = vrot.lane.b32.xlu0 %v290, 100
      %v495 = vpop.permute.xlu0 %494
      %vm496 = vcmask 818176
      %v497 = vsel %vm496, %v481, %v483
      %v498 = vsel %vm496, %v483, %v485
      %v499 = vsel %vm496, %v485, %v487
      %v500 = vsel %vm496, %v487, %v489
      %v501 = vsel %vm496, %v489, %v491
      %v502 = vsel %vm496, %v491, %v493
      %v503 = vsel %vm496, %v493, %v495
      %v512 = vsel %vm496, %v478, %v481
      %513 = vst [vmem:[#allocation2 + $0x100] sm:$0xf] %v512
      %514 = vst [vmem:[#allocation2 + $0x108] sm:$0xf] %v497
      %515 = vst [vmem:[#allocation2 + $0x110] sm:$0xf] %v498
      %516 = vst [vmem:[#allocation2 + $0x118] sm:$0xf] %v499
      %517 = vst [vmem:[#allocation2 + $0x120] sm:$0xf] %v500
      %518 = vst [vmem:[#allocation2 + $0x128] sm:$0xf] %v501
      %519 = vst [vmem:[#allocation2 + $0x130] sm:$0xf] %v502
      %520 = vst.msk [vmem:[#allocation2 + $0x138] sm:$0xf] %vm341, %v503
      %521 = vrot.lane.b32.xlu0 %v290, 123
      %v522 = vpop.permute.xlu0 %521
      %524 = vrot.lane.b32.xlu0 %v285, 99
      %v525 = vpop.permute.xlu0 %524
      %526 = vrot.lane.b32.xlu0 %v301, 99
      %v527 = vpop.permute.xlu0 %526
      %528 = vrot.lane.b32.xlu0 %v286, 99
      %v529 = vpop.permute.xlu0 %528
      %530 = vrot.lane.b32.xlu0 %v302, 99
      %v531 = vpop.permute.xlu0 %530
      %532 = vrot.lane.b32.xlu0 %v287, 99
      %v533 = vpop.permute.xlu0 %532
      %534 = vrot.lane.b32.xlu0 %v303, 99
      %v535 = vpop.permute.xlu0 %534
      %536 = vrot.lane.b32.xlu0 %v288, 99
      %v537 = vpop.permute.xlu0 %536
      %538 = vrot.lane.b32.xlu0 %v290, 99
      %v539 = vpop.permute.xlu0 %538
      %vm540 = vcmask 809984
      %v541 = vsel %vm540, %v525, %v527
      %v542 = vsel %vm540, %v527, %v529
      %v543 = vsel %vm540, %v529, %v531
      %v544 = vsel %vm540, %v531, %v533
      %v545 = vsel %vm540, %v533, %v535
      %v546 = vsel %vm540, %v535, %v537
      %v547 = vsel %vm540, %v537, %v539
      %v556 = vsel %vm540, %v522, %v525
      %557 = vst [vmem:[#allocation2 + $0x140] sm:$0xf] %v556
      %558 = vst [vmem:[#allocation2 + $0x148] sm:$0xf] %v541
      %559 = vst [vmem:[#allocation2 + $0x150] sm:$0xf] %v542
      %560 = vst [vmem:[#allocation2 + $0x158] sm:$0xf] %v543
      %561 = vst [vmem:[#allocation2 + $0x160] sm:$0xf] %v544
      %562 = vst [vmem:[#allocation2 + $0x168] sm:$0xf] %v545
      %563 = vst [vmem:[#allocation2 + $0x170] sm:$0xf] %v546
      %564 = vst.msk [vmem:[#allocation2 + $0x178] sm:$0xf] %vm341, %v547
      %565 = vrot.lane.b32.xlu0 %v290, 115
      %v566 = vpop.permute.xlu0 %565
      %568 = vrot.lane.b32.xlu0 %v285, 91
      %v569 = vpop.permute.xlu0 %568
      %570 = vrot.lane.b32.xlu0 %v301, 91
      %v571 = vpop.permute.xlu0 %570
      %572 = vrot.lane.b32.xlu0 %v286, 91
      %v573 = vpop.permute.xlu0 %572
      %574 = vrot.lane.b32.xlu0 %v302, 91
      %v575 = vpop.permute.xlu0 %574
      %576 = vrot.lane.b32.xlu0 %v287, 91
      %v577 = vpop.permute.xlu0 %576
      %578 = vrot.lane.b32.xlu0 %v303, 91
      %v579 = vpop.permute.xlu0 %578
      %580 = vrot.lane.b32.xlu0 %v288, 91
      %v581 = vpop.permute.xlu0 %580
      %582 = vrot.lane.b32.xlu0 %v290, 91
      %v583 = vpop.permute.xlu0 %582
      %vm584 = vcmask 744448
      %v585 = vsel %vm584, %v569, %v571
      %v586 = vsel %vm584, %v571, %v573
      %v587 = vsel %vm584, %v573, %v575
      %v588 = vsel %vm584, %v575, %v577
      %v589 = vsel %vm584, %v577, %v579
      %v590 = vsel %vm584, %v579, %v581
      %v591 = vsel %vm584, %v581, %v583
      %v600 = vsel %vm584, %v566, %v569
      %601 = vst [vmem:[#allocation2 + $0x180] sm:$0xf] %v600
      %602 = vst [vmem:[#allocation2 + $0x188] sm:$0xf] %v585
      %603 = vst [vmem:[#allocation2 + $0x190] sm:$0xf] %v586
      %604 = vst [vmem:[#allocation2 + $0x198] sm:$0xf] %v587
      %605 = vst [vmem:[#allocation2 + $0x1a0] sm:$0xf] %v588
      %606 = vst [vmem:[#allocation2 + $0x1a8] sm:$0xf] %v589
      %607 = vst [vmem:[#allocation2 + $0x1b0] sm:$0xf] %v590
      %608 = vst.msk [vmem:[#allocation2 + $0x1b8] sm:$0xf] %vm341, %v591
      %609 = vrot.lane.b32.xlu0 %v290, 114
      %v610 = vpop.permute.xlu0 %609
      %612 = vrot.lane.b32.xlu0 %v285, 90
      %v613 = vpop.permute.xlu0 %612
      %614 = vrot.lane.b32.xlu0 %v301, 90
      %v615 = vpop.permute.xlu0 %614
      %616 = vrot.lane.b32.xlu0 %v286, 90
      %v617 = vpop.permute.xlu0 %616
      %618 = vrot.lane.b32.xlu0 %v302, 90
      %v619 = vpop.permute.xlu0 %618
      %620 = vrot.lane.b32.xlu0 %v287, 90
      %v621 = vpop.permute.xlu0 %620
      %622 = vrot.lane.b32.xlu0 %v303, 90
      %v623 = vpop.permute.xlu0 %622
      %624 = vrot.lane.b32.xlu0 %v288, 90
      %v625 = vpop.permute.xlu0 %624
      %626 = vrot.lane.b32.xlu0 %v290, 90
      %v627 = vpop.permute.xlu0 %626
      %vm628 = vcmask 736256
      %v629 = vsel %vm628, %v613, %v615
      %v630 = vsel %vm628, %v615, %v617
      %v631 = vsel %vm628, %v617, %v619
      %v632 = vsel %vm628, %v619, %v621
      %v633 = vsel %vm628, %v621, %v623
      %v634 = vsel %vm628, %v623, %v625
      %v635 = vsel %vm628, %v625, %v627
      %v644 = vsel %vm628, %v610, %v613
      %645 = vst [vmem:[#allocation2 + $0x1c0] sm:$0xf] %v644
      %646 = vst [vmem:[#allocation2 + $0x1c8] sm:$0xf] %v629
      %647 = vst [vmem:[#allocation2 + $0x1d0] sm:$0xf] %v630
      %648 = vst [vmem:[#allocation2 + $0x1d8] sm:$0xf] %v631
      %649 = vst [vmem:[#allocation2 + $0x1e0] sm:$0xf] %v632
      %650 = vst [vmem:[#allocation2 + $0x1e8] sm:$0xf] %v633
      %651 = vst [vmem:[#allocation2 + $0x1f0] sm:$0xf] %v634
      %652 = vst.msk [vmem:[#allocation2 + $0x1f8] sm:$0xf] %vm341, %v635
      %653 = vrot.lane.b32.xlu0 %v290, 113
      %v654 = vpop.permute.xlu0 %653
      %656 = vrot.lane.b32.xlu0 %v285, 89
      %v657 = vpop.permute.xlu0 %656
      %658 = vrot.lane.b32.xlu0 %v301, 89
      %v659 = vpop.permute.xlu0 %658
      %660 = vrot.lane.b32.xlu0 %v286, 89
      %v661 = vpop.permute.xlu0 %660
      %662 = vrot.lane.b32.xlu0 %v302, 89
      %v663 = vpop.permute.xlu0 %662
      %664 = vrot.lane.b32.xlu0 %v287, 89
      %v665 = vpop.permute.xlu0 %664
      %666 = vrot.lane.b32.xlu0 %v303, 89
      %v667 = vpop.permute.xlu0 %666
      %668 = vrot.lane.b32.xlu0 %v288, 89
      %v669 = vpop.permute.xlu0 %668
      %670 = vrot.lane.b32.xlu0 %v290, 89
      %v671 = vpop.permute.xlu0 %670
      %vm672 = vcmask 728064
      %v673 = vsel %vm672, %v657, %v659
      %v674 = vsel %vm672, %v659, %v661
      %v675 = vsel %vm672, %v661, %v663
      %v676 = vsel %vm672, %v663, %v665
      %v677 = vsel %vm672, %v665, %v667
      %v678 = vsel %vm672, %v667, %v669
      %v679 = vsel %vm672, %v669, %v671
      %v688 = vsel %vm672, %v654, %v657
      %689 = vst [vmem:[#allocation2 + $0x200] sm:$0xf] %v688
      %690 = vst [vmem:[#allocation2 + $0x208] sm:$0xf] %v673
      %691 = vst [vmem:[#allocation2 + $0x210] sm:$0xf] %v674
      %692 = vst [vmem:[#allocation2 + $0x218] sm:$0xf] %v675
      %693 = vst [vmem:[#allocation2 + $0x220] sm:$0xf] %v676
      %694 = vst [vmem:[#allocation2 + $0x228] sm:$0xf] %v677
      %695 = vst [vmem:[#allocation2 + $0x230] sm:$0xf] %v678
      %696 = vst.msk [vmem:[#allocation2 + $0x238] sm:$0xf] %vm341, %v679
      %697 = vrot.lane.b32.xlu0 %v290, 35
      %v698 = vpop.permute.xlu0 %697
      %700 = vrot.lane.b32.xlu0 %v285, 11
      %v701 = vpop.permute.xlu0 %700
      %702 = vrot.lane.b32.xlu0 %v301, 11
      %v703 = vpop.permute.xlu0 %702
      %704 = vrot.lane.b32.xlu0 %v286, 11
      %v705 = vpop.permute.xlu0 %704
      %706 = vrot.lane.b32.xlu0 %v302, 11
      %v707 = vpop.permute.xlu0 %706
      %708 = vrot.lane.b32.xlu0 %v287, 11
      %v709 = vpop.permute.xlu0 %708
      %710 = vrot.lane.b32.xlu0 %v303, 11
      %v711 = vpop.permute.xlu0 %710
      %712 = vrot.lane.b32.xlu0 %v288, 11
      %v713 = vpop.permute.xlu0 %712
      %714 = vrot.lane.b32.xlu0 %v290, 11
      %v715 = vpop.permute.xlu0 %714
      %vm716 = vcmask 89088
      %v717 = vsel %vm716, %v701, %v703
      %v718 = vsel %vm716, %v703, %v705
      %v719 = vsel %vm716, %v705, %v707
      %v720 = vsel %vm716, %v707, %v709
      %v721 = vsel %vm716, %v709, %v711
      %v722 = vsel %vm716, %v711, %v713
      %v723 = vsel %vm716, %v713, %v715
      %v732 = vsel %vm716, %v698, %v701
      %733 = vst [vmem:[#allocation2 + $0x240] sm:$0xf] %v732
      %734 = vst [vmem:[#allocation2 + $0x248] sm:$0xf] %v717
      %735 = vst [vmem:[#allocation2 + $0x250] sm:$0xf] %v718
      %736 = vst [vmem:[#allocation2 + $0x258] sm:$0xf] %v719
      %737 = vst [vmem:[#allocation2 + $0x260] sm:$0xf] %v720
      %738 = vst [vmem:[#allocation2 + $0x268] sm:$0xf] %v721
      %739 = vst [vmem:[#allocation2 + $0x270] sm:$0xf] %v722
      %740 = vst.msk [vmem:[#allocation2 + $0x278] sm:$0xf] %vm341, %v723
      %741 = vrot.lane.b32.xlu0 %v290, 34
      %v742 = vpop.permute.xlu0 %741
      %744 = vrot.lane.b32.xlu0 %v285, 10
      %v745 = vpop.permute.xlu0 %744
      %746 = vrot.lane.b32.xlu0 %v301, 10
      %v747 = vpop.permute.xlu0 %746
      %748 = vrot.lane.b32.xlu0 %v286, 10
      %v749 = vpop.permute.xlu0 %748
      %750 = vrot.lane.b32.xlu0 %v302, 10
      %v751 = vpop.permute.xlu0 %750
      %752 = vrot.lane.b32.xlu0 %v287, 10
      %v753 = vpop.permute.xlu0 %752
      %754 = vrot.lane.b32.xlu0 %v303, 10
      %v755 = vpop.permute.xlu0 %754
      %756 = vrot.lane.b32.xlu0 %v288, 10
      %v757 = vpop.permute.xlu0 %756
      %758 = vrot.lane.b32.xlu0 %v290, 10
      %v759 = vpop.permute.xlu0 %758
      %vm760 = vcmask 80896
      %v761 = vsel %vm760, %v745, %v747
      %v762 = vsel %vm760, %v747, %v749
      %v763 = vsel %vm760, %v749, %v751
      %v764 = vsel %vm760, %v751, %v753
      %v765 = vsel %vm760, %v753, %v755
      %v766 = vsel %vm760, %v755, %v757
      %v767 = vsel %vm760, %v757, %v759
      %v776 = vsel %vm760, %v742, %v745
      %777 = vst [vmem:[#allocation2 + $0x280] sm:$0xf] %v776
      %778 = vst [vmem:[#allocation2 + $0x288] sm:$0xf] %v761
      %779 = vst [vmem:[#allocation2 + $0x290] sm:$0xf] %v762
      %780 = vst [vmem:[#allocation2 + $0x298] sm:$0xf] %v763
      %781 = vst [vmem:[#allocation2 + $0x2a0] sm:$0xf] %v764
      %782 = vst [vmem:[#allocation2 + $0x2a8] sm:$0xf] %v765
      %783 = vst [vmem:[#allocation2 + $0x2b0] sm:$0xf] %v766
      %784 = vst.msk [vmem:[#allocation2 + $0x2b8] sm:$0xf] %vm341, %v767
      %785 = vrot.lane.b32.xlu0 %v290, 33
      %v786 = vpop.permute.xlu0 %785
      %788 = vrot.lane.b32.xlu0 %v285, 9
      %v789 = vpop.permute.xlu0 %788
      %790 = vrot.lane.b32.xlu0 %v301, 9
      %v791 = vpop.permute.xlu0 %790
      %792 = vrot.lane.b32.xlu0 %v286, 9
      %v793 = vpop.permute.xlu0 %792
      %794 = vrot.lane.b32.xlu0 %v302, 9
      %v795 = vpop.permute.xlu0 %794
      %796 = vrot.lane.b32.xlu0 %v287, 9
      %v797 = vpop.permute.xlu0 %796
      %798 = vrot.lane.b32.xlu0 %v303, 9
      %v799 = vpop.permute.xlu0 %798
      %800 = vrot.lane.b32.xlu0 %v288, 9
      %v801 = vpop.permute.xlu0 %800
      %802 = vrot.lane.b32.xlu0 %v290, 9
      %v803 = vpop.permute.xlu0 %802
      %vm804 = vcmask 72704
      %v805 = vsel %vm804, %v789, %v791
      %v806 = vsel %vm804, %v791, %v793
      %v807 = vsel %vm804, %v793, %v795
      %v808 = vsel %vm804, %v795, %v797
      %v809 = vsel %vm804, %v797, %v799
      %v810 = vsel %vm804, %v799, %v801
      %v811 = vsel %vm804, %v801, %v803
      %v820 = vsel %vm804, %v786, %v789
      %821 = vst [vmem:[#allocation2 + $0x2c0] sm:$0xf] %v820
      %822 = vst [vmem:[#allocation2 + $0x2c8] sm:$0xf] %v805
      %823 = vst [vmem:[#allocation2 + $0x2d0] sm:$0xf] %v806
      %824 = vst [vmem:[#allocation2 + $0x2d8] sm:$0xf] %v807
      %825 = vst [vmem:[#allocation2 + $0x2e0] sm:$0xf] %v808
      %826 = vst [vmem:[#allocation2 + $0x2e8] sm:$0xf] %v809
      %827 = vst [vmem:[#allocation2 + $0x2f0] sm:$0xf] %v810
      %828 = vst.msk [vmem:[#allocation2 + $0x2f8] sm:$0xf] %vm341, %v811
      %829 = vrot.lane.b32.xlu0 %v290, 25
      %v830 = vpop.permute.xlu0 %829
      %832 = vrot.lane.b32.xlu0 %v285, 1
      %v833 = vpop.permute.xlu0 %832
      %834 = vrot.lane.b32.xlu0 %v301, 1
      %v835 = vpop.permute.xlu0 %834
      %836 = vrot.lane.b32.xlu0 %v286, 1
      %v837 = vpop.permute.xlu0 %836
      %838 = vrot.lane.b32.xlu0 %v302, 1
      %v839 = vpop.permute.xlu0 %838
      %840 = vrot.lane.b32.xlu0 %v287, 1
      %v841 = vpop.permute.xlu0 %840
      %842 = vrot.lane.b32.xlu0 %v303, 1
      %v843 = vpop.permute.xlu0 %842
      %844 = vrot.lane.b32.xlu0 %v288, 1
      %v845 = vpop.permute.xlu0 %844
      %846 = vrot.lane.b32.xlu0 %v290, 1
      %v847 = vpop.permute.xlu0 %846
      %vm848 = vcmask 7168
      %v849 = vsel %vm848, %v833, %v835
      %v850 = vsel %vm848, %v835, %v837
      %v851 = vsel %vm848, %v837, %v839
      %v852 = vsel %vm848, %v839, %v841
      %v853 = vsel %vm848, %v841, %v843
      %v854 = vsel %vm848, %v843, %v845
      %v855 = vsel %vm848, %v845, %v847
      %v864 = vsel %vm848, %v830, %v833
      %865 = vst [vmem:[#allocation2 + $0x300] sm:$0xf] %v864
      %866 = vst [vmem:[#allocation2 + $0x308] sm:$0xf] %v849
      %867 = vst [vmem:[#allocation2 + $0x310] sm:$0xf] %v850
      %868 = vst [vmem:[#allocation2 + $0x318] sm:$0xf] %v851
      %869 = vst [vmem:[#allocation2 + $0x320] sm:$0xf] %v852
      %870 = vst [vmem:[#allocation2 + $0x328] sm:$0xf] %v853
      %871 = vst [vmem:[#allocation2 + $0x330] sm:$0xf] %v854
      %872 = vst.msk [vmem:[#allocation2 + $0x338] sm:$0xf] %vm341, %v855
      %877 = vst [vmem:[#allocation2 + $0x340] sm:$0xf] %v285
      %878 = vst [vmem:[#allocation2 + $0x348] sm:$0xf] %v301
      %879 = vst [vmem:[#allocation2 + $0x350] sm:$0xf] %v286
      %880 = vst [vmem:[#allocation2 + $0x358] sm:$0xf] %v302
      %881 = vst [vmem:[#allocation2 + $0x360] sm:$0xf] %v287
      %882 = vst [vmem:[#allocation2 + $0x368] sm:$0xf] %v303
      %883 = vst [vmem:[#allocation2 + $0x370] sm:$0xf] %v288
      %884 = vst.msk [vmem:[#allocation2 + $0x378] sm:$0xf] %vm341, %v290
      %885 = vrot.lane.b32.xlu0 %v285, 127
      %v886 = vpop.permute.xlu0 %885
      %887 = vrot.lane.b32.xlu0 %v301, 127
      %v888 = vpop.permute.xlu0 %887
      %889 = vrot.lane.b32.xlu0 %v286, 127
      %v890 = vpop.permute.xlu0 %889
      %891 = vrot.lane.b32.xlu0 %v302, 127
      %v892 = vpop.permute.xlu0 %891
      %893 = vrot.lane.b32.xlu0 %v287, 127
      %v894 = vpop.permute.xlu0 %893
      %895 = vrot.lane.b32.xlu0 %v303, 127
      %v896 = vpop.permute.xlu0 %895
      %897 = vrot.lane.b32.xlu0 %v288, 127
      %v898 = vpop.permute.xlu0 %897
      %899 = vrot.lane.b32.xlu0 %v290, 127
      %v900 = vpop.permute.xlu0 %899
      %vm901 = vcmask 1039360
      %v902 = vsel %vm901, %v886, %v888
      %v903 = vsel %vm901, %v888, %v890
      %v904 = vsel %vm901, %v890, %v892
      %v905 = vsel %vm901, %v892, %v894
      %v906 = vsel %vm901, %v894, %v896
      %v907 = vsel %vm901, %v896, %v898
      %v908 = vsel %vm901, %v898, %v900
      %917 = vrot.lane.b32.xlu0 %v285, 103
      %v918 = vpop.permute.xlu0 %917
      %vm920 = vcmask 842752
      %v921 = vsel %vm920, %v900, %v918
      %922 = vst [vmem:[#allocation2 + $0x380] sm:$0xf] %v902
      %923 = vst [vmem:[#allocation2 + $0x388] sm:$0xf] %v903
      %924 = vst [vmem:[#allocation2 + $0x390] sm:$0xf] %v904
      %925 = vst [vmem:[#allocation2 + $0x398] sm:$0xf] %v905
      %926 = vst [vmem:[#allocation2 + $0x3a0] sm:$0xf] %v906
      %927 = vst [vmem:[#allocation2 + $0x3a8] sm:$0xf] %v907
      %928 = vst [vmem:[#allocation2 + $0x3b0] sm:$0xf] %v908
      %929 = vst.msk [vmem:[#allocation2 + $0x3b8] sm:$0xf] %vm341, %v921
      %930 = vrot.lane.b32.xlu0 %v285, 119
      %v931 = vpop.permute.xlu0 %930
      %932 = vrot.lane.b32.xlu0 %v301, 119
      %v933 = vpop.permute.xlu0 %932
      %934 = vrot.lane.b32.xlu0 %v286, 119
      %v935 = vpop.permute.xlu0 %934
      %936 = vrot.lane.b32.xlu0 %v302, 119
      %v937 = vpop.permute.xlu0 %936
      %938 = vrot.lane.b32.xlu0 %v287, 119
      %v939 = vpop.permute.xlu0 %938
      %940 = vrot.lane.b32.xlu0 %v303, 119
      %v941 = vpop.permute.xlu0 %940
      %942 = vrot.lane.b32.xlu0 %v288, 119
      %v943 = vpop.permute.xlu0 %942
      %944 = vrot.lane.b32.xlu0 %v290, 119
      %v945 = vpop.permute.xlu0 %944
      %vm946 = vcmask 973824
      %v947 = vsel %vm946, %v931, %v933
      %v948 = vsel %vm946, %v933, %v935
      %v949 = vsel %vm946, %v935, %v937
      %v950 = vsel %vm946, %v937, %v939
      %v951 = vsel %vm946, %v939, %v941
      %v952 = vsel %vm946, %v941, %v943
      %v953 = vsel %vm946, %v943, %v945
      %962 = vrot.lane.b32.xlu0 %v285, 95
      %v963 = vpop.permute.xlu0 %962
      %vm965 = vcmask 777216
      %v966 = vsel %vm965, %v945, %v963
      %967 = vst [vmem:[#allocation2 + $0x3c0] sm:$0xf] %v947
      %968 = vst [vmem:[#allocation2 + $0x3c8] sm:$0xf] %v948
      %969 = vst [vmem:[#allocation2 + $0x3d0] sm:$0xf] %v949
      %970 = vst [vmem:[#allocation2 + $0x3d8] sm:$0xf] %v950
      %971 = vst [vmem:[#allocation2 + $0x3e0] sm:$0xf] %v951
      %972 = vst [vmem:[#allocation2 + $0x3e8] sm:$0xf] %v952
      %973 = vst [vmem:[#allocation2 + $0x3f0] sm:$0xf] %v953
      %974 = vst.msk [vmem:[#allocation2 + $0x3f8] sm:$0xf] %vm341, %v966
      %975 = vrot.lane.b32.xlu0 %v285, 118
      %v976 = vpop.permute.xlu0 %975
      %977 = vrot.lane.b32.xlu0 %v301, 118
      %v978 = vpop.permute.xlu0 %977
      %979 = vrot.lane.b32.xlu0 %v286, 118
      %v980 = vpop.permute.xlu0 %979
      %981 = vrot.lane.b32.xlu0 %v302, 118
      %v982 = vpop.permute.xlu0 %981
      %983 = vrot.lane.b32.xlu0 %v287, 118
      %v984 = vpop.permute.xlu0 %983
      %985 = vrot.lane.b32.xlu0 %v303, 118
      %v986 = vpop.permute.xlu0 %985
      %987 = vrot.lane.b32.xlu0 %v288, 118
      %v988 = vpop.permute.xlu0 %987
      %989 = vrot.lane.b32.xlu0 %v290, 118
      %v990 = vpop.permute.xlu0 %989
      %vm991 = vcmask 965632
      %v992 = vsel %vm991, %v976, %v978
      %v993 = vsel %vm991, %v978, %v980
      %v994 = vsel %vm991, %v980, %v982
      %v995 = vsel %vm991, %v982, %v984
      %v996 = vsel %vm991, %v984, %v986
      %v997 = vsel %vm991, %v986, %v988
      %v998 = vsel %vm991, %v988, %v990
      %1007 = vrot.lane.b32.xlu0 %v285, 94
      %v1008 = vpop.permute.xlu0 %1007
      %vm1010 = vcmask 769024
      %v1011 = vsel %vm1010, %v990, %v1008
      %1012 = vst [vmem:[#allocation2 + $0x400] sm:$0xf] %v992
      %1013 = vst [vmem:[#allocation2 + $0x408] sm:$0xf] %v993
      %1014 = vst [vmem:[#allocation2 + $0x410] sm:$0xf] %v994
      %1015 = vst [vmem:[#allocation2 + $0x418] sm:$0xf] %v995
      %1016 = vst [vmem:[#allocation2 + $0x420] sm:$0xf] %v996
      %1017 = vst [vmem:[#allocation2 + $0x428] sm:$0xf] %v997
      %1018 = vst [vmem:[#allocation2 + $0x430] sm:$0xf] %v998
      %1019 = vst.msk [vmem:[#allocation2 + $0x438] sm:$0xf] %vm341, %v1011
      %1020 = vrot.lane.b32.xlu0 %v285, 117
      %v1021 = vpop.permute.xlu0 %1020
      %1022 = vrot.lane.b32.xlu0 %v301, 117
      %v1023 = vpop.permute.xlu0 %1022
      %1024 = vrot.lane.b32.xlu0 %v286, 117
      %v1025 = vpop.permute.xlu0 %1024
      %1026 = vrot.lane.b32.xlu0 %v302, 117
      %v1027 = vpop.permute.xlu0 %1026
      %1028 = vrot.lane.b32.xlu0 %v287, 117
      %v1029 = vpop.permute.xlu0 %1028
      %1030 = vrot.lane.b32.xlu0 %v303, 117
      %v1031 = vpop.permute.xlu0 %1030
      %1032 = vrot.lane.b32.xlu0 %v288, 117
      %v1033 = vpop.permute.xlu0 %1032
      %1034 = vrot.lane.b32.xlu0 %v290, 117
      %v1035 = vpop.permute.xlu0 %1034
      %vm1036 = vcmask 957440
      %v1037 = vsel %vm1036, %v1021, %v1023
      %v1038 = vsel %vm1036, %v1023, %v1025
      %v1039 = vsel %vm1036, %v1025, %v1027
      %v1040 = vsel %vm1036, %v1027, %v1029
      %v1041 = vsel %vm1036, %v1029, %v1031
      %v1042 = vsel %vm1036, %v1031, %v1033
      %v1043 = vsel %vm1036, %v1033, %v1035
      %1052 = vrot.lane.b32.xlu0 %v285, 93
      %v1053 = vpop.permute.xlu0 %1052
      %vm1055 = vcmask 760832
      %v1056 = vsel %vm1055, %v1035, %v1053
      %1057 = vst [vmem:[#allocation2 + $0x440] sm:$0xf] %v1037
      %1058 = vst [vmem:[#allocation2 + $0x448] sm:$0xf] %v1038
      %1059 = vst [vmem:[#allocation2 + $0x450] sm:$0xf] %v1039
      %1060 = vst [vmem:[#allocation2 + $0x458] sm:$0xf] %v1040
      %1061 = vst [vmem:[#allocation2 + $0x460] sm:$0xf] %v1041
      %1062 = vst [vmem:[#allocation2 + $0x468] sm:$0xf] %v1042
      %1063 = vst [vmem:[#allocation2 + $0x470] sm:$0xf] %v1043
      %1064 = vst.msk [vmem:[#allocation2 + $0x478] sm:$0xf] %vm341, %v1056
      %1065 = vrot.lane.b32.xlu0 %v285, 39
      %v1066 = vpop.permute.xlu0 %1065
      %1067 = vrot.lane.b32.xlu0 %v301, 39
      %v1068 = vpop.permute.xlu0 %1067
      %1069 = vrot.lane.b32.xlu0 %v286, 39
      %v1070 = vpop.permute.xlu0 %1069
      %1071 = vrot.lane.b32.xlu0 %v302, 39
      %v1072 = vpop.permute.xlu0 %1071
      %1073 = vrot.lane.b32.xlu0 %v287, 39
      %v1074 = vpop.permute.xlu0 %1073
      %1075 = vrot.lane.b32.xlu0 %v303, 39
      %v1076 = vpop.permute.xlu0 %1075
      %1077 = vrot.lane.b32.xlu0 %v288, 39
      %v1078 = vpop.permute.xlu0 %1077
      %1079 = vrot.lane.b32.xlu0 %v290, 39
      %v1080 = vpop.permute.xlu0 %1079
      %vm1081 = vcmask 318464
      %v1082 = vsel %vm1081, %v1066, %v1068
      %v1083 = vsel %vm1081, %v1068, %v1070
      %v1084 = vsel %vm1081, %v1070, %v1072
      %v1085 = vsel %vm1081, %v1072, %v1074
      %v1086 = vsel %vm1081, %v1074, %v1076
      %v1087 = vsel %vm1081, %v1076, %v1078
      %v1088 = vsel %vm1081, %v1078, %v1080
      %1097 = vrot.lane.b32.xlu0 %v285, 15
      %v1098 = vpop.permute.xlu0 %1097
      %vm1100 = vcmask 121856
      %v1101 = vsel %vm1100, %v1080, %v1098
      %1102 = vst [vmem:[#allocation2 + $0x480] sm:$0xf] %v1082
      %1103 = vst [vmem:[#allocation2 + $0x488] sm:$0xf] %v1083
      %1104 = vst [vmem:[#allocation2 + $0x490] sm:$0xf] %v1084
      %1105 = vst [vmem:[#allocation2 + $0x498] sm:$0xf] %v1085
      %1106 = vst [vmem:[#allocation2 + $0x4a0] sm:$0xf] %v1086
      %1107 = vst [vmem:[#allocation2 + $0x4a8] sm:$0xf] %v1087
      %1108 = vst [vmem:[#allocation2 + $0x4b0] sm:$0xf] %v1088
      %1109 = vst.msk [vmem:[#allocation2 + $0x4b8] sm:$0xf] %vm341, %v1101
      %1110 = vrot.lane.b32.xlu0 %v285, 38
      %v1111 = vpop.permute.xlu0 %1110
      %1112 = vrot.lane.b32.xlu0 %v301, 38
      %v1113 = vpop.permute.xlu0 %1112
      %1114 = vrot.lane.b32.xlu0 %v286, 38
      %v1115 = vpop.permute.xlu0 %1114
      %1116 = vrot.lane.b32.xlu0 %v302, 38
      %v1117 = vpop.permute.xlu0 %1116
      %1118 = vrot.lane.b32.xlu0 %v287, 38
      %v1119 = vpop.permute.xlu0 %1118
      %1120 = vrot.lane.b32.xlu0 %v303, 38
      %v1121 = vpop.permute.xlu0 %1120
      %1122 = vrot.lane.b32.xlu0 %v288, 38
      %v1123 = vpop.permute.xlu0 %1122
      %1124 = vrot.lane.b32.xlu0 %v290, 38
      %v1125 = vpop.permute.xlu0 %1124
      %vm1126 = vcmask 310272
      %v1127 = vsel %vm1126, %v1111, %v1113
      %v1128 = vsel %vm1126, %v1113, %v1115
      %v1129 = vsel %vm1126, %v1115, %v1117
      %v1130 = vsel %vm1126, %v1117, %v1119
      %v1131 = vsel %vm1126, %v1119, %v1121
      %v1132 = vsel %vm1126, %v1121, %v1123
      %v1133 = vsel %vm1126, %v1123, %v1125
      %1142 = vrot.lane.b32.xlu0 %v285, 14
      %v1143 = vpop.permute.xlu0 %1142
      %vm1145 = vcmask 113664
      %v1146 = vsel %vm1145, %v1125, %v1143
      %1147 = vst [vmem:[#allocation2 + $0x4c0] sm:$0xf] %v1127
      %1148 = vst [vmem:[#allocation2 + $0x4c8] sm:$0xf] %v1128
      %1149 = vst [vmem:[#allocation2 + $0x4d0] sm:$0xf] %v1129
      %1150 = vst [vmem:[#allocation2 + $0x4d8] sm:$0xf] %v1130
      %1151 = vst [vmem:[#allocation2 + $0x4e0] sm:$0xf] %v1131
      %1152 = vst [vmem:[#allocation2 + $0x4e8] sm:$0xf] %v1132
      %1153 = vst [vmem:[#allocation2 + $0x4f0] sm:$0xf] %v1133
      %1154 = vst.msk [vmem:[#allocation2 + $0x4f8] sm:$0xf] %vm341, %v1146
      %1155 = vrot.lane.b32.xlu0 %v285, 37
      %v1156 = vpop.permute.xlu0 %1155
      %1157 = vrot.lane.b32.xlu0 %v301, 37
      %v1158 = vpop.permute.xlu0 %1157
      %1159 = vrot.lane.b32.xlu0 %v286, 37
      %v1160 = vpop.permute.xlu0 %1159
      %1161 = vrot.lane.b32.xlu0 %v302, 37
      %v1162 = vpop.permute.xlu0 %1161
      %1163 = vrot.lane.b32.xlu0 %v287, 37
      %v1164 = vpop.permute.xlu0 %1163
      %1165 = vrot.lane.b32.xlu0 %v303, 37
      %v1166 = vpop.permute.xlu0 %1165
      %1167 = vrot.lane.b32.xlu0 %v288, 37
      %v1168 = vpop.permute.xlu0 %1167
      %1169 = vrot.lane.b32.xlu0 %v290, 37
      %v1170 = vpop.permute.xlu0 %1169
      %vm1171 = vcmask 302080
      %v1172 = vsel %vm1171, %v1156, %v1158
      %v1173 = vsel %vm1171, %v1158, %v1160
      %v1174 = vsel %vm1171, %v1160, %v1162
      %v1175 = vsel %vm1171, %v1162, %v1164
      %v1176 = vsel %vm1171, %v1164, %v1166
      %v1177 = vsel %vm1171, %v1166, %v1168
      %v1178 = vsel %vm1171, %v1168, %v1170
      %1187 = vrot.lane.b32.xlu0 %v285, 13
      %v1188 = vpop.permute.xlu0 %1187
      %vm1190 = vcmask 105472
      %v1191 = vsel %vm1190, %v1170, %v1188
      %1192 = vst [vmem:[#allocation2 + $0x500] sm:$0xf] %v1172
      %1193 = vst [vmem:[#allocation2 + $0x508] sm:$0xf] %v1173
      %1194 = vst [vmem:[#allocation2 + $0x510] sm:$0xf] %v1174
      %1195 = vst [vmem:[#allocation2 + $0x518] sm:$0xf] %v1175
      %1196 = vst [vmem:[#allocation2 + $0x520] sm:$0xf] %v1176
      %1197 = vst [vmem:[#allocation2 + $0x528] sm:$0xf] %v1177
      %1198 = vst [vmem:[#allocation2 + $0x530] sm:$0xf] %v1178
      %1199 = vst.msk [vmem:[#allocation2 + $0x538] sm:$0xf] %vm341, %v1191
      %1200 = vrot.lane.b32.xlu0 %v285, 29
      %v1201 = vpop.permute.xlu0 %1200
      %1202 = vrot.lane.b32.xlu0 %v301, 29
      %v1203 = vpop.permute.xlu0 %1202
      %1204 = vrot.lane.b32.xlu0 %v286, 29
      %v1205 = vpop.permute.xlu0 %1204
      %1206 = vrot.lane.b32.xlu0 %v302, 29
      %v1207 = vpop.permute.xlu0 %1206
      %1208 = vrot.lane.b32.xlu0 %v287, 29
      %v1209 = vpop.permute.xlu0 %1208
      %1210 = vrot.lane.b32.xlu0 %v303, 29
      %v1211 = vpop.permute.xlu0 %1210
      %1212 = vrot.lane.b32.xlu0 %v288, 29
      %v1213 = vpop.permute.xlu0 %1212
      %1214 = vrot.lane.b32.xlu0 %v290, 29
      %v1215 = vpop.permute.xlu0 %1214
      %vm1216 = vcmask 236544
      %v1217 = vsel %vm1216, %v1201, %v1203
      %v1218 = vsel %vm1216, %v1203, %v1205
      %v1219 = vsel %vm1216, %v1205, %v1207
      %v1220 = vsel %vm1216, %v1207, %v1209
      %v1221 = vsel %vm1216, %v1209, %v1211
      %v1222 = vsel %vm1216, %v1211, %v1213
      %v1223 = vsel %vm1216, %v1213, %v1215
      %1232 = vrot.lane.b32.xlu0 %v285, 5
      %v1233 = vpop.permute.xlu0 %1232
      %v1235 = vsel %vm392, %v1215, %v1233
      %1236 = vst [vmem:[#allocation2 + $0x540] sm:$0xf] %v1217
      %1237 = vst [vmem:[#allocation2 + $0x548] sm:$0xf] %v1218
      %1238 = vst [vmem:[#allocation2 + $0x550] sm:$0xf] %v1219
      %1239 = vst [vmem:[#allocation2 + $0x558] sm:$0xf] %v1220
      %1240 = vst [vmem:[#allocation2 + $0x560] sm:$0xf] %v1221
      %1241 = vst [vmem:[#allocation2 + $0x568] sm:$0xf] %v1222
      %1242 = vst [vmem:[#allocation2 + $0x570] sm:$0xf] %v1223
      %1243 = vst.msk [vmem:[#allocation2 + $0x578] sm:$0xf] %vm341, %v1235
      %1244 = vrot.lane.b32.xlu0 %v285, 28
      %v1245 = vpop.permute.xlu0 %1244
      %1246 = vrot.lane.b32.xlu0 %v301, 28
      %v1247 = vpop.permute.xlu0 %1246
      %1248 = vrot.lane.b32.xlu0 %v286, 28
      %v1249 = vpop.permute.xlu0 %1248
      %1250 = vrot.lane.b32.xlu0 %v302, 28
      %v1251 = vpop.permute.xlu0 %1250
      %1252 = vrot.lane.b32.xlu0 %v287, 28
      %v1253 = vpop.permute.xlu0 %1252
      %1254 = vrot.lane.b32.xlu0 %v303, 28
      %v1255 = vpop.permute.xlu0 %1254
      %1256 = vrot.lane.b32.xlu0 %v288, 28
      %v1257 = vpop.permute.xlu0 %1256
      %1258 = vrot.lane.b32.xlu0 %v290, 28
      %v1259 = vpop.permute.xlu0 %1258
      %vm1260 = vcmask 228352
      %v1261 = vsel %vm1260, %v1245, %v1247
      %v1262 = vsel %vm1260, %v1247, %v1249
      %v1263 = vsel %vm1260, %v1249, %v1251
      %v1264 = vsel %vm1260, %v1251, %v1253
      %v1265 = vsel %vm1260, %v1253, %v1255
      %v1266 = vsel %vm1260, %v1255, %v1257
      %v1267 = vsel %vm1260, %v1257, %v1259
      %1276 = vrot.lane.b32.xlu0 %v285, 4
      %v1277 = vpop.permute.xlu0 %1276
      %vm1279 = vcmask 31744
      %v1280 = vsel %vm1279, %v1259, %v1277
      %1281 = vst [vmem:[#allocation2 + $0x580] sm:$0xf] %v1261
      %1282 = vst [vmem:[#allocation2 + $0x588] sm:$0xf] %v1262
      %1283 = vst [vmem:[#allocation2 + $0x590] sm:$0xf] %v1263
      %1284 = vst [vmem:[#allocation2 + $0x598] sm:$0xf] %v1264
      %1285 = vst [vmem:[#allocation2 + $0x5a0] sm:$0xf] %v1265
      %1286 = vst [vmem:[#allocation2 + $0x5a8] sm:$0xf] %v1266
      %1287 = vst [vmem:[#allocation2 + $0x5b0] sm:$0xf] %v1267
      %1288 = vst.msk [vmem:[#allocation2 + $0x5b8] sm:$0xf] %vm341, %v1280
      %1289 = vrot.lane.b32.xlu0 %v285, 27
      %v1290 = vpop.permute.xlu0 %1289
      %1291 = vrot.lane.b32.xlu0 %v301, 27
      %v1292 = vpop.permute.xlu0 %1291
      %1293 = vrot.lane.b32.xlu0 %v286, 27
      %v1294 = vpop.permute.xlu0 %1293
      %1295 = vrot.lane.b32.xlu0 %v302, 27
      %v1296 = vpop.permute.xlu0 %1295
      %1297 = vrot.lane.b32.xlu0 %v287, 27
      %v1298 = vpop.permute.xlu0 %1297
      %1299 = vrot.lane.b32.xlu0 %v303, 27
      %v1300 = vpop.permute.xlu0 %1299
      %1301 = vrot.lane.b32.xlu0 %v288, 27
      %v1302 = vpop.permute.xlu0 %1301
      %1303 = vrot.lane.b32.xlu0 %v290, 27
      %v1304 = vpop.permute.xlu0 %1303
      %vm1305 = vcmask 220160
      %v1306 = vsel %vm1305, %v1290, %v1292
      %v1307 = vsel %vm1305, %v1292, %v1294
      %v1308 = vsel %vm1305, %v1294, %v1296
      %v1309 = vsel %vm1305, %v1296, %v1298
      %v1310 = vsel %vm1305, %v1298, %v1300
      %v1311 = vsel %vm1305, %v1300, %v1302
      %v1312 = vsel %vm1305, %v1302, %v1304
      %1321 = vrot.lane.b32.xlu0 %v285, 3
      %v1322 = vpop.permute.xlu0 %1321
      %vm1324 = vcmask 23552
      %v1325 = vsel %vm1324, %v1304, %v1322
      %1326 = vst [vmem:[#allocation2 + $0x5c0] sm:$0xf] %v1306
      %1327 = vst [vmem:[#allocation2 + $0x5c8] sm:$0xf] %v1307
      %1328 = vst [vmem:[#allocation2 + $0x5d0] sm:$0xf] %v1308
      %1329 = vst [vmem:[#allocation2 + $0x5d8] sm:$0xf] %v1309
      %1330 = vst [vmem:[#allocation2 + $0x5e0] sm:$0xf] %v1310
      %1331 = vst [vmem:[#allocation2 + $0x5e8] sm:$0xf] %v1311
      %1332 = vst [vmem:[#allocation2 + $0x5f0] sm:$0xf] %v1312
      %1333 = vst.msk [vmem:[#allocation2 + $0x5f8] sm:$0xf] %vm341, %v1325
      %1334 = vrot.lane.b32.xlu0 %v285, 19
      %v1335 = vpop.permute.xlu0 %1334
      %1336 = vrot.lane.b32.xlu0 %v301, 19
      %v1337 = vpop.permute.xlu0 %1336
      %1338 = vrot.lane.b32.xlu0 %v286, 19
      %v1339 = vpop.permute.xlu0 %1338
      %1340 = vrot.lane.b32.xlu0 %v302, 19
      %v1341 = vpop.permute.xlu0 %1340
      %1342 = vrot.lane.b32.xlu0 %v287, 19
      %v1343 = vpop.permute.xlu0 %1342
      %1344 = vrot.lane.b32.xlu0 %v303, 19
      %v1345 = vpop.permute.xlu0 %1344
      %1346 = vrot.lane.b32.xlu0 %v288, 19
      %v1347 = vpop.permute.xlu0 %1346
      %1348 = vrot.lane.b32.xlu0 %v290, 19
      %v1349 = vpop.permute.xlu0 %1348
      %vm1350 = vcmask 154624
      %v1351 = vsel %vm1350, %v1335, %v1337
      %v1352 = vsel %vm1350, %v1337, %v1339
      %v1353 = vsel %vm1350, %v1339, %v1341
      %v1354 = vsel %vm1350, %v1341, %v1343
      %v1355 = vsel %vm1350, %v1343, %v1345
      %v1356 = vsel %vm1350, %v1345, %v1347
      %v1357 = vsel %vm1350, %v1347, %v1349
      %1365 = vrot.lane.b32.xlu0 %v285, 123
      %v1366 = vpop.permute.xlu0 %1365
      %vm1368 = vcmask 1006592
      %v1369 = vsel %vm1368, %v1357, %v1366
      %1370 = vst [vmem:[#allocation2 + $0x600] sm:$0xf] %v1351
      %1371 = vst [vmem:[#allocation2 + $0x608] sm:$0xf] %v1352
      %1372 = vst [vmem:[#allocation2 + $0x610] sm:$0xf] %v1353
      %1373 = vst [vmem:[#allocation2 + $0x618] sm:$0xf] %v1354
      %1374 = vst [vmem:[#allocation2 + $0x620] sm:$0xf] %v1355
      %1375 = vst [vmem:[#allocation2 + $0x628] sm:$0xf] %v1356
      %1376 = vst [vmem:[#allocation2 + $0x630] sm:$0xf] %v1369
      %1377 = vst.msk [vmem:[#allocation2 + $0x638] sm:$0xf] %vm341, %v1366
      %1378 = vrot.lane.b32.xlu0 %v285, 18
      %v1379 = vpop.permute.xlu0 %1378
      %1380 = vrot.lane.b32.xlu0 %v301, 18
      %v1381 = vpop.permute.xlu0 %1380
      %1382 = vrot.lane.b32.xlu0 %v286, 18
      %v1383 = vpop.permute.xlu0 %1382
      %1384 = vrot.lane.b32.xlu0 %v302, 18
      %v1385 = vpop.permute.xlu0 %1384
      %1386 = vrot.lane.b32.xlu0 %v287, 18
      %v1387 = vpop.permute.xlu0 %1386
      %1388 = vrot.lane.b32.xlu0 %v303, 18
      %v1389 = vpop.permute.xlu0 %1388
      %1390 = vrot.lane.b32.xlu0 %v288, 18
      %v1391 = vpop.permute.xlu0 %1390
      %1392 = vrot.lane.b32.xlu0 %v290, 18
      %v1393 = vpop.permute.xlu0 %1392
      %vm1394 = vcmask 146432
      %v1395 = vsel %vm1394, %v1379, %v1381
      %v1396 = vsel %vm1394, %v1381, %v1383
      %v1397 = vsel %vm1394, %v1383, %v1385
      %v1398 = vsel %vm1394, %v1385, %v1387
      %v1399 = vsel %vm1394, %v1387, %v1389
      %v1400 = vsel %vm1394, %v1389, %v1391
      %v1401 = vsel %vm1394, %v1391, %v1393
      %1409 = vrot.lane.b32.xlu0 %v285, 122
      %v1410 = vpop.permute.xlu0 %1409
      %vm1412 = vcmask 998400
      %v1413 = vsel %vm1412, %v1401, %v1410
      %1414 = vst [vmem:[#allocation2 + $0x640] sm:$0xf] %v1395
      %1415 = vst [vmem:[#allocation2 + $0x648] sm:$0xf] %v1396
      %1416 = vst [vmem:[#allocation2 + $0x650] sm:$0xf] %v1397
      %1417 = vst [vmem:[#allocation2 + $0x658] sm:$0xf] %v1398
      %1418 = vst [vmem:[#allocation2 + $0x660] sm:$0xf] %v1399
      %1419 = vst [vmem:[#allocation2 + $0x668] sm:$0xf] %v1400
      %1420 = vst [vmem:[#allocation2 + $0x670] sm:$0xf] %v1413
      %1421 = vst.msk [vmem:[#allocation2 + $0x678] sm:$0xf] %vm341, %v1410
      %1422 = vrot.lane.b32.xlu0 %v285, 17
      %v1423 = vpop.permute.xlu0 %1422
      %1424 = vrot.lane.b32.xlu0 %v301, 17
      %v1425 = vpop.permute.xlu0 %1424
      %1426 = vrot.lane.b32.xlu0 %v286, 17
      %v1427 = vpop.permute.xlu0 %1426
      %1428 = vrot.lane.b32.xlu0 %v302, 17
      %v1429 = vpop.permute.xlu0 %1428
      %1430 = vrot.lane.b32.xlu0 %v287, 17
      %v1431 = vpop.permute.xlu0 %1430
      %1432 = vrot.lane.b32.xlu0 %v303, 17
      %v1433 = vpop.permute.xlu0 %1432
      %1434 = vrot.lane.b32.xlu0 %v288, 17
      %v1435 = vpop.permute.xlu0 %1434
      %1436 = vrot.lane.b32.xlu0 %v290, 17
      %v1437 = vpop.permute.xlu0 %1436
      %vm1438 = vcmask 138240
      %v1439 = vsel %vm1438, %v1423, %v1425
      %v1440 = vsel %vm1438, %v1425, %v1427
      %v1441 = vsel %vm1438, %v1427, %v1429
      %v1442 = vsel %vm1438, %v1429, %v1431
      %v1443 = vsel %vm1438, %v1431, %v1433
      %v1444 = vsel %vm1438, %v1433, %v1435
      %v1445 = vsel %vm1438, %v1435, %v1437
      %1453 = vrot.lane.b32.xlu0 %v285, 121
      %v1454 = vpop.permute.xlu0 %1453
      %vm1456 = vcmask 990208
      %v1457 = vsel %vm1456, %v1445, %v1454
      %1458 = vst [vmem:[#allocation2 + $0x680] sm:$0xf] %v1439
      %1459 = vst [vmem:[#allocation2 + $0x688] sm:$0xf] %v1440
      %1460 = vst [vmem:[#allocation2 + $0x690] sm:$0xf] %v1441
      %1461 = vst [vmem:[#allocation2 + $0x698] sm:$0xf] %v1442
      %1462 = vst [vmem:[#allocation2 + $0x6a0] sm:$0xf] %v1443
      %1463 = vst [vmem:[#allocation2 + $0x6a8] sm:$0xf] %v1444
      %1464 = vst [vmem:[#allocation2 + $0x6b0] sm:$0xf] %v1457
      %1465 = vst.msk [vmem:[#allocation2 + $0x6b8] sm:$0xf] %vm341, %v1454
      %v1466 = vld [vmem:[%s273] sm:$0xff]
      %v1467 = vld [vmem:[%s273 + $0x8] sm:$0xff]
      %v1468 = vld [vmem:[%s273 + $0x10] sm:$0xff]
      %v1469 = vld [vmem:[%s273 + $0x18] sm:$0xff]
      %v1471 = vcombine.high %v1469, %v1469
      %1472 = vrot.lane.b32.xlu0 %v1469, 7
      %v1473 = vpop.permute.xlu0 %1472
      %1474 = vrot.lane.b32.xlu0 %v1471, 7
      %v1475 = vpop.permute.xlu0 %1474
      %v1476 = vsel %vm295, %v1473, %v1475
      %v1481 = vcombine.high %v1466, %v1466
      %v1482 = vcombine.high %v1467, %v1467
      %v1483 = vcombine.high %v1468, %v1468
      %1484 = vrot.lane.b32.xlu0 %v1466, 111
      %v1485 = vpop.permute.xlu0 %1484
      %1486 = vrot.lane.b32.xlu0 %v1481, 111
      %v1487 = vpop.permute.xlu0 %1486
      %1488 = vrot.lane.b32.xlu0 %v1467, 111
      %v1489 = vpop.permute.xlu0 %1488
      %1490 = vrot.lane.b32.xlu0 %v1482, 111
      %v1491 = vpop.permute.xlu0 %1490
      %1492 = vrot.lane.b32.xlu0 %v1468, 111
      %v1493 = vpop.permute.xlu0 %1492
      %1494 = vrot.lane.b32.xlu0 %v1483, 111
      %v1495 = vpop.permute.xlu0 %1494
      %1496 = vrot.lane.b32.xlu0 %v1469, 111
      %v1497 = vpop.permute.xlu0 %1496
      %v1498 = vsel %vm318, %v1485, %v1487
      %v1499 = vsel %vm318, %v1487, %v1489
      %v1500 = vsel %vm318, %v1489, %v1491
      %v1501 = vsel %vm318, %v1491, %v1493
      %v1502 = vsel %vm318, %v1493, %v1495
      %v1503 = vsel %vm318, %v1495, %v1497
      %v1505 = vsel %vm318, %v1476, %v1485
      %v1507 = vrot.slane %v1505, 4
      %v1508 = vrot.slane %v1498, 4
      %v1509 = vrot.slane %v1499, 4
      %v1510 = vrot.slane %v1500, 4
      %v1511 = vrot.slane %v1501, 4
      %v1512 = vrot.slane %v1502, 4
      %v1513 = vrot.slane %v1503, 4
      %v1514 = vrot.slane %v1497, 4
      %1523 = vst [vmem:[#allocation2] sm:$0xf0] %v1507
      %1524 = vst [vmem:[#allocation2 + $0x8] sm:$0xf0] %v1508
      %1525 = vst [vmem:[#allocation2 + $0x10] sm:$0xf0] %v1509
      %1526 = vst [vmem:[#allocation2 + $0x18] sm:$0xf0] %v1510
      %1527 = vst [vmem:[#allocation2 + $0x20] sm:$0xf0] %v1511
      %1528 = vst [vmem:[#allocation2 + $0x28] sm:$0xf0] %v1512
      %1529 = vst [vmem:[#allocation2 + $0x30] sm:$0xf0] %v1513
      %vm1530 = vcmask 850948
      %1531 = vst.msk [vmem:[#allocation2 + $0x38] sm:$0xf0] %vm1530, %v1514
      %1532 = vrot.lane.b32.xlu0 %v1469, 6
      %v1533 = vpop.permute.xlu0 %1532
      %1534 = vrot.lane.b32.xlu0 %v1471, 6
      %v1535 = vpop.permute.xlu0 %1534
      %v1536 = vsel %vm347, %v1533, %v1535
      %1538 = vrot.lane.b32.xlu0 %v1466, 110
      %v1539 = vpop.permute.xlu0 %1538
      %1540 = vrot.lane.b32.xlu0 %v1481, 110
      %v1541 = vpop.permute.xlu0 %1540
      %1542 = vrot.lane.b32.xlu0 %v1467, 110
      %v1543 = vpop.permute.xlu0 %1542
      %1544 = vrot.lane.b32.xlu0 %v1482, 110
      %v1545 = vpop.permute.xlu0 %1544
      %1546 = vrot.lane.b32.xlu0 %v1468, 110
      %v1547 = vpop.permute.xlu0 %1546
      %1548 = vrot.lane.b32.xlu0 %v1483, 110
      %v1549 = vpop.permute.xlu0 %1548
      %1550 = vrot.lane.b32.xlu0 %v1469, 110
      %v1551 = vpop.permute.xlu0 %1550
      %v1552 = vsel %vm364, %v1539, %v1541
      %v1553 = vsel %vm364, %v1541, %v1543
      %v1554 = vsel %vm364, %v1543, %v1545
      %v1555 = vsel %vm364, %v1545, %v1547
      %v1556 = vsel %vm364, %v1547, %v1549
      %v1557 = vsel %vm364, %v1549, %v1551
      %v1559 = vsel %vm364, %v1536, %v1539
      %v1561 = vrot.slane %v1559, 4
      %v1562 = vrot.slane %v1552, 4
      %v1563 = vrot.slane %v1553, 4
      %v1564 = vrot.slane %v1554, 4
      %v1565 = vrot.slane %v1555, 4
      %v1566 = vrot.slane %v1556, 4
      %v1567 = vrot.slane %v1557, 4
      %v1568 = vrot.slane %v1551, 4
      %1577 = vst [vmem:[#allocation2 + $0x40] sm:$0xf0] %v1561
      %1578 = vst [vmem:[#allocation2 + $0x48] sm:$0xf0] %v1562
      %1579 = vst [vmem:[#allocation2 + $0x50] sm:$0xf0] %v1563
      %1580 = vst [vmem:[#allocation2 + $0x58] sm:$0xf0] %v1564
      %1581 = vst [vmem:[#allocation2 + $0x60] sm:$0xf0] %v1565
      %1582 = vst [vmem:[#allocation2 + $0x68] sm:$0xf0] %v1566
      %1583 = vst [vmem:[#allocation2 + $0x70] sm:$0xf0] %v1567
      %1584 = vst.msk [vmem:[#allocation2 + $0x78] sm:$0xf0] %vm1530, %v1568
      %1585 = vrot.lane.b32.xlu0 %v1469, 5
      %v1586 = vpop.permute.xlu0 %1585
      %1587 = vrot.lane.b32.xlu0 %v1471, 5
      %v1588 = vpop.permute.xlu0 %1587
      %v1589 = vsel %vm392, %v1586, %v1588
      %1591 = vrot.lane.b32.xlu0 %v1466, 109
      %v1592 = vpop.permute.xlu0 %1591
      %1593 = vrot.lane.b32.xlu0 %v1481, 109
      %v1594 = vpop.permute.xlu0 %1593
      %1595 = vrot.lane.b32.xlu0 %v1467, 109
      %v1596 = vpop.permute.xlu0 %1595
      %1597 = vrot.lane.b32.xlu0 %v1482, 109
      %v1598 = vpop.permute.xlu0 %1597
      %1599 = vrot.lane.b32.xlu0 %v1468, 109
      %v1600 = vpop.permute.xlu0 %1599
      %1601 = vrot.lane.b32.xlu0 %v1483, 109
      %v1602 = vpop.permute.xlu0 %1601
      %1603 = vrot.lane.b32.xlu0 %v1469, 109
      %v1604 = vpop.permute.xlu0 %1603
      %v1605 = vsel %vm409, %v1592, %v1594
      %v1606 = vsel %vm409, %v1594, %v1596
      %v1607 = vsel %vm409, %v1596, %v1598
      %v1608 = vsel %vm409, %v1598, %v1600
      %v1609 = vsel %vm409, %v1600, %v1602
      %v1610 = vsel %vm409, %v1602, %v1604
      %v1612 = vsel %vm409, %v1589, %v1592
      %v1614 = vrot.slane %v1612, 4
      %v1615 = vrot.slane %v1605, 4
      %v1616 = vrot.slane %v1606, 4
      %v1617 = vrot.slane %v1607, 4
      %v1618 = vrot.slane %v1608, 4
      %v1619 = vrot.slane %v1609, 4
      %v1620 = vrot.slane %v1610, 4
      %v1621 = vrot.slane %v1604, 4
      %1630 = vst [vmem:[#allocation2 + $0x80] sm:$0xf0] %v1614
      %1631 = vst [vmem:[#allocation2 + $0x88] sm:$0xf0] %v1615
      %1632 = vst [vmem:[#allocation2 + $0x90] sm:$0xf0] %v1616
      %1633 = vst [vmem:[#allocation2 + $0x98] sm:$0xf0] %v1617
      %1634 = vst [vmem:[#allocation2 + $0xa0] sm:$0xf0] %v1618
      %1635 = vst [vmem:[#allocation2 + $0xa8] sm:$0xf0] %v1619
      %1636 = vst [vmem:[#allocation2 + $0xb0] sm:$0xf0] %v1620
      %1637 = vst.msk [vmem:[#allocation2 + $0xb8] sm:$0xf0] %vm1530, %v1621
      %1638 = vrot.lane.b32.xlu0 %v1471, 125
      %v1639 = vpop.permute.xlu0 %1638
      %1641 = vrot.lane.b32.xlu0 %v1466, 101
      %v1642 = vpop.permute.xlu0 %1641
      %1643 = vrot.lane.b32.xlu0 %v1481, 101
      %v1644 = vpop.permute.xlu0 %1643
      %1645 = vrot.lane.b32.xlu0 %v1467, 101
      %v1646 = vpop.permute.xlu0 %1645
      %1647 = vrot.lane.b32.xlu0 %v1482, 101
      %v1648 = vpop.permute.xlu0 %1647
      %1649 = vrot.lane.b32.xlu0 %v1468, 101
      %v1650 = vpop.permute.xlu0 %1649
      %1651 = vrot.lane.b32.xlu0 %v1483, 101
      %v1652 = vpop.permute.xlu0 %1651
      %1653 = vrot.lane.b32.xlu0 %v1469, 101
      %v1654 = vpop.permute.xlu0 %1653
      %1655 = vrot.lane.b32.xlu0 %v1471, 101
      %v1656 = vpop.permute.xlu0 %1655
      %v1657 = vsel %vm452, %v1642, %v1644
      %v1658 = vsel %vm452, %v1644, %v1646
      %v1659 = vsel %vm452, %v1646, %v1648
      %v1660 = vsel %vm452, %v1648, %v1650
      %v1661 = vsel %vm452, %v1650, %v1652
      %v1662 = vsel %vm452, %v1652, %v1654
      %v1663 = vsel %vm452, %v1654, %v1656
      %v1665 = vsel %vm452, %v1639, %v1642
      %v1667 = vrot.slane %v1665, 4
      %v1668 = vrot.slane %v1657, 4
      %v1669 = vrot.slane %v1658, 4
      %v1670 = vrot.slane %v1659, 4
      %v1671 = vrot.slane %v1660, 4
      %v1672 = vrot.slane %v1661, 4
      %v1673 = vrot.slane %v1662, 4
      %v1674 = vrot.slane %v1663, 4
      %1683 = vst [vmem:[#allocation2 + $0xc0] sm:$0xf0] %v1667
      %1684 = vst [vmem:[#allocation2 + $0xc8] sm:$0xf0] %v1668
      %1685 = vst [vmem:[#allocation2 + $0xd0] sm:$0xf0] %v1669
      %1686 = vst [vmem:[#allocation2 + $0xd8] sm:$0xf0] %v1670
      %1687 = vst [vmem:[#allocation2 + $0xe0] sm:$0xf0] %v1671
      %1688 = vst [vmem:[#allocation2 + $0xe8] sm:$0xf0] %v1672
      %1689 = vst [vmem:[#allocation2 + $0xf0] sm:$0xf0] %v1673
      %1690 = vst.msk [vmem:[#allocation2 + $0xf8] sm:$0xf0] %vm1530, %v1674
      %1691 = vrot.lane.b32.xlu0 %v1471, 124
      %v1692 = vpop.permute.xlu0 %1691
      %1694 = vrot.lane.b32.xlu0 %v1466, 100
      %v1695 = vpop.permute.xlu0 %1694
      %1696 = vrot.lane.b32.xlu0 %v1481, 100
      %v1697 = vpop.permute.xlu0 %1696
      %1698 = vrot.lane.b32.xlu0 %v1467, 100
      %v1699 = vpop.permute.xlu0 %1698
      %1700 = vrot.lane.b32.xlu0 %v1482, 100
      %v1701 = vpop.permute.xlu0 %1700
      %1702 = vrot.lane.b32.xlu0 %v1468, 100
      %v1703 = vpop.permute.xlu0 %1702
      %1704 = vrot.lane.b32.xlu0 %v1483, 100
      %v1705 = vpop.permute.xlu0 %1704
      %1706 = vrot.lane.b32.xlu0 %v1469, 100
      %v1707 = vpop.permute.xlu0 %1706
      %1708 = vrot.lane.b32.xlu0 %v1471, 100
      %v1709 = vpop.permute.xlu0 %1708
      %v1710 = vsel %vm496, %v1695, %v1697
      %v1711 = vsel %vm496, %v1697, %v1699
      %v1712 = vsel %vm496, %v1699, %v1701
      %v1713 = vsel %vm496, %v1701, %v1703
      %v1714 = vsel %vm496, %v1703, %v1705
      %v1715 = vsel %vm496, %v1705, %v1707
      %v1716 = vsel %vm496, %v1707, %v1709
      %v1718 = vsel %vm496, %v1692, %v1695
      %v1720 = vrot.slane %v1718, 4
      %v1721 = vrot.slane %v1710, 4
      %v1722 = vrot.slane %v1711, 4
      %v1723 = vrot.slane %v1712, 4
      %v1724 = vrot.slane %v1713, 4
      %v1725 = vrot.slane %v1714, 4
      %v1726 = vrot.slane %v1715, 4
      %v1727 = vrot.slane %v1716, 4
      %1736 = vst [vmem:[#allocation2 + $0x100] sm:$0xf0] %v1720
      %1737 = vst [vmem:[#allocation2 + $0x108] sm:$0xf0] %v1721
      %1738 = vst [vmem:[#allocation2 + $0x110] sm:$0xf0] %v1722
      %1739 = vst [vmem:[#allocation2 + $0x118] sm:$0xf0] %v1723
      %1740 = vst [vmem:[#allocation2 + $0x120] sm:$0xf0] %v1724
      %1741 = vst [vmem:[#allocation2 + $0x128] sm:$0xf0] %v1725
      %1742 = vst [vmem:[#allocation2 + $0x130] sm:$0xf0] %v1726
      %1743 = vst.msk [vmem:[#allocation2 + $0x138] sm:$0xf0] %vm1530, %v1727
      %1744 = vrot.lane.b32.xlu0 %v1471, 123
      %v1745 = vpop.permute.xlu0 %1744
      %1747 = vrot.lane.b32.xlu0 %v1466, 99
      %v1748 = vpop.permute.xlu0 %1747
      %1749 = vrot.lane.b32.xlu0 %v1481, 99
      %v1750 = vpop.permute.xlu0 %1749
      %1751 = vrot.lane.b32.xlu0 %v1467, 99
      %v1752 = vpop.permute.xlu0 %1751
      %1753 = vrot.lane.b32.xlu0 %v1482, 99
      %v1754 = vpop.permute.xlu0 %1753
      %1755 = vrot.lane.b32.xlu0 %v1468, 99
      %v1756 = vpop.permute.xlu0 %1755
      %1757 = vrot.lane.b32.xlu0 %v1483, 99
      %v1758 = vpop.permute.xlu0 %1757
      %1759 = vrot.lane.b32.xlu0 %v1469, 99
      %v1760 = vpop.permute.xlu0 %1759
      %1761 = vrot.lane.b32.xlu0 %v1471, 99
      %v1762 = vpop.permute.xlu0 %1761
      %v1763 = vsel %vm540, %v1748, %v1750
      %v1764 = vsel %vm540, %v1750, %v1752
      %v1765 = vsel %vm540, %v1752, %v1754
      %v1766 = vsel %vm540, %v1754, %v1756
      %v1767 = vsel %vm540, %v1756, %v1758
      %v1768 = vsel %vm540, %v1758, %v1760
      %v1769 = vsel %vm540, %v1760, %v1762
      %v1771 = vsel %vm540, %v1745, %v1748
      %v1773 = vrot.slane %v1771, 4
      %v1774 = vrot.slane %v1763, 4
      %v1775 = vrot.slane %v1764, 4
      %v1776 = vrot.slane %v1765, 4
      %v1777 = vrot.slane %v1766, 4
      %v1778 = vrot.slane %v1767, 4
      %v1779 = vrot.slane %v1768, 4
      %v1780 = vrot.slane %v1769, 4
      %1789 = vst [vmem:[#allocation2 + $0x140] sm:$0xf0] %v1773
      %1790 = vst [vmem:[#allocation2 + $0x148] sm:$0xf0] %v1774
      %1791 = vst [vmem:[#allocation2 + $0x150] sm:$0xf0] %v1775
      %1792 = vst [vmem:[#allocation2 + $0x158] sm:$0xf0] %v1776
      %1793 = vst [vmem:[#allocation2 + $0x160] sm:$0xf0] %v1777
      %1794 = vst [vmem:[#allocation2 + $0x168] sm:$0xf0] %v1778
      %1795 = vst [vmem:[#allocation2 + $0x170] sm:$0xf0] %v1779
      %1796 = vst.msk [vmem:[#allocation2 + $0x178] sm:$0xf0] %vm1530, %v1780
      %1797 = vrot.lane.b32.xlu0 %v1471, 115
      %v1798 = vpop.permute.xlu0 %1797
      %1800 = vrot.lane.b32.xlu0 %v1466, 91
      %v1801 = vpop.permute.xlu0 %1800
      %1802 = vrot.lane.b32.xlu0 %v1481, 91
      %v1803 = vpop.permute.xlu0 %1802
      %1804 = vrot.lane.b32.xlu0 %v1467, 91
      %v1805 = vpop.permute.xlu0 %1804
      %1806 = vrot.lane.b32.xlu0 %v1482, 91
      %v1807 = vpop.permute.xlu0 %1806
      %1808 = vrot.lane.b32.xlu0 %v1468, 91
      %v1809 = vpop.permute.xlu0 %1808
      %1810 = vrot.lane.b32.xlu0 %v1483, 91
      %v1811 = vpop.permute.xlu0 %1810
      %1812 = vrot.lane.b32.xlu0 %v1469, 91
      %v1813 = vpop.permute.xlu0 %1812
      %1814 = vrot.lane.b32.xlu0 %v1471, 91
      %v1815 = vpop.permute.xlu0 %1814
      %v1816 = vsel %vm584, %v1801, %v1803
      %v1817 = vsel %vm584, %v1803, %v1805
      %v1818 = vsel %vm584, %v1805, %v1807
      %v1819 = vsel %vm584, %v1807, %v1809
      %v1820 = vsel %vm584, %v1809, %v1811
      %v1821 = vsel %vm584, %v1811, %v1813
      %v1822 = vsel %vm584, %v1813, %v1815
      %v1824 = vsel %vm584, %v1798, %v1801
      %v1826 = vrot.slane %v1824, 4
      %v1827 = vrot.slane %v1816, 4
      %v1828 = vrot.slane %v1817, 4
      %v1829 = vrot.slane %v1818, 4
      %v1830 = vrot.slane %v1819, 4
      %v1831 = vrot.slane %v1820, 4
      %v1832 = vrot.slane %v1821, 4
      %v1833 = vrot.slane %v1822, 4
      %1842 = vst [vmem:[#allocation2 + $0x180] sm:$0xf0] %v1826
      %1843 = vst [vmem:[#allocation2 + $0x188] sm:$0xf0] %v1827
      %1844 = vst [vmem:[#allocation2 + $0x190] sm:$0xf0] %v1828
      %1845 = vst [vmem:[#allocation2 + $0x198] sm:$0xf0] %v1829
      %1846 = vst [vmem:[#allocation2 + $0x1a0] sm:$0xf0] %v1830
      %1847 = vst [vmem:[#allocation2 + $0x1a8] sm:$0xf0] %v1831
      %1848 = vst [vmem:[#allocation2 + $0x1b0] sm:$0xf0] %v1832
      %1849 = vst.msk [vmem:[#allocation2 + $0x1b8] sm:$0xf0] %vm1530, %v1833
      %1850 = vrot.lane.b32.xlu0 %v1471, 114
      %v1851 = vpop.permute.xlu0 %1850
      %1853 = vrot.lane.b32.xlu0 %v1466, 90
      %v1854 = vpop.permute.xlu0 %1853
      %1855 = vrot.lane.b32.xlu0 %v1481, 90
      %v1856 = vpop.permute.xlu0 %1855
      %1857 = vrot.lane.b32.xlu0 %v1467, 90
      %v1858 = vpop.permute.xlu0 %1857
      %1859 = vrot.lane.b32.xlu0 %v1482, 90
      %v1860 = vpop.permute.xlu0 %1859
      %1861 = vrot.lane.b32.xlu0 %v1468, 90
      %v1862 = vpop.permute.xlu0 %1861
      %1863 = vrot.lane.b32.xlu0 %v1483, 90
      %v1864 = vpop.permute.xlu0 %1863
      %1865 = vrot.lane.b32.xlu0 %v1469, 90
      %v1866 = vpop.permute.xlu0 %1865
      %1867 = vrot.lane.b32.xlu0 %v1471, 90
      %v1868 = vpop.permute.xlu0 %1867
      %v1869 = vsel %vm628, %v1854, %v1856
      %v1870 = vsel %vm628, %v1856, %v1858
      %v1871 = vsel %vm628, %v1858, %v1860
      %v1872 = vsel %vm628, %v1860, %v1862
      %v1873 = vsel %vm628, %v1862, %v1864
      %v1874 = vsel %vm628, %v1864, %v1866
      %v1875 = vsel %vm628, %v1866, %v1868
      %v1877 = vsel %vm628, %v1851, %v1854
      %v1879 = vrot.slane %v1877, 4
      %v1880 = vrot.slane %v1869, 4
      %v1881 = vrot.slane %v1870, 4
      %v1882 = vrot.slane %v1871, 4
      %v1883 = vrot.slane %v1872, 4
      %v1884 = vrot.slane %v1873, 4
      %v1885 = vrot.slane %v1874, 4
      %v1886 = vrot.slane %v1875, 4
      %1895 = vst [vmem:[#allocation2 + $0x1c0] sm:$0xf0] %v1879
      %1896 = vst [vmem:[#allocation2 + $0x1c8] sm:$0xf0] %v1880
      %1897 = vst [vmem:[#allocation2 + $0x1d0] sm:$0xf0] %v1881
      %1898 = vst [vmem:[#allocation2 + $0x1d8] sm:$0xf0] %v1882
      %1899 = vst [vmem:[#allocation2 + $0x1e0] sm:$0xf0] %v1883
      %1900 = vst [vmem:[#allocation2 + $0x1e8] sm:$0xf0] %v1884
      %1901 = vst [vmem:[#allocation2 + $0x1f0] sm:$0xf0] %v1885
      %1902 = vst.msk [vmem:[#allocation2 + $0x1f8] sm:$0xf0] %vm1530, %v1886
      %1903 = vrot.lane.b32.xlu0 %v1471, 113
      %v1904 = vpop.permute.xlu0 %1903
      %1906 = vrot.lane.b32.xlu0 %v1466, 89
      %v1907 = vpop.permute.xlu0 %1906
      %1908 = vrot.lane.b32.xlu0 %v1481, 89
      %v1909 = vpop.permute.xlu0 %1908
      %1910 = vrot.lane.b32.xlu0 %v1467, 89
      %v1911 = vpop.permute.xlu0 %1910
      %1912 = vrot.lane.b32.xlu0 %v1482, 89
      %v1913 = vpop.permute.xlu0 %1912
      %1914 = vrot.lane.b32.xlu0 %v1468, 89
      %v1915 = vpop.permute.xlu0 %1914
      %1916 = vrot.lane.b32.xlu0 %v1483, 89
      %v1917 = vpop.permute.xlu0 %1916
      %1918 = vrot.lane.b32.xlu0 %v1469, 89
      %v1919 = vpop.permute.xlu0 %1918
      %1920 = vrot.lane.b32.xlu0 %v1471, 89
      %v1921 = vpop.permute.xlu0 %1920
      %v1922 = vsel %vm672, %v1907, %v1909
      %v1923 = vsel %vm672, %v1909, %v1911
      %v1924 = vsel %vm672, %v1911, %v1913
      %v1925 = vsel %vm672, %v1913, %v1915
      %v1926 = vsel %vm672, %v1915, %v1917
      %v1927 = vsel %vm672, %v1917, %v1919
      %v1928 = vsel %vm672, %v1919, %v1921
      %v1930 = vsel %vm672, %v1904, %v1907
      %v1932 = vrot.slane %v1930, 4
      %v1933 = vrot.slane %v1922, 4
      %v1934 = vrot.slane %v1923, 4
      %v1935 = vrot.slane %v1924, 4
      %v1936 = vrot.slane %v1925, 4
      %v1937 = vrot.slane %v1926, 4
      %v1938 = vrot.slane %v1927, 4
      %v1939 = vrot.slane %v1928, 4
      %1948 = vst [vmem:[#allocation2 + $0x200] sm:$0xf0] %v1932
      %1949 = vst [vmem:[#allocation2 + $0x208] sm:$0xf0] %v1933
      %1950 = vst [vmem:[#allocation2 + $0x210] sm:$0xf0] %v1934
      %1951 = vst [vmem:[#allocation2 + $0x218] sm:$0xf0] %v1935
      %1952 = vst [vmem:[#allocation2 + $0x220] sm:$0xf0] %v1936
      %1953 = vst [vmem:[#allocation2 + $0x228] sm:$0xf0] %v1937
      %1954 = vst [vmem:[#allocation2 + $0x230] sm:$0xf0] %v1938
      %1955 = vst.msk [vmem:[#allocation2 + $0x238] sm:$0xf0] %vm1530, %v1939
      %1956 = vrot.lane.b32.xlu0 %v1471, 35
      %v1957 = vpop.permute.xlu0 %1956
      %1959 = vrot.lane.b32.xlu0 %v1466, 11
      %v1960 = vpop.permute.xlu0 %1959
      %1961 = vrot.lane.b32.xlu0 %v1481, 11
      %v1962 = vpop.permute.xlu0 %1961
      %1963 = vrot.lane.b32.xlu0 %v1467, 11
      %v1964 = vpop.permute.xlu0 %1963
      %1965 = vrot.lane.b32.xlu0 %v1482, 11
      %v1966 = vpop.permute.xlu0 %1965
      %1967 = vrot.lane.b32.xlu0 %v1468, 11
      %v1968 = vpop.permute.xlu0 %1967
      %1969 = vrot.lane.b32.xlu0 %v1483, 11
      %v1970 = vpop.permute.xlu0 %1969
      %1971 = vrot.lane.b32.xlu0 %v1469, 11
      %v1972 = vpop.permute.xlu0 %1971
      %1973 = vrot.lane.b32.xlu0 %v1471, 11
      %v1974 = vpop.permute.xlu0 %1973
      %v1975 = vsel %vm716, %v1960, %v1962
      %v1976 = vsel %vm716, %v1962, %v1964
      %v1977 = vsel %vm716, %v1964, %v1966
      %v1978 = vsel %vm716, %v1966, %v1968
      %v1979 = vsel %vm716, %v1968, %v1970
      %v1980 = vsel %vm716, %v1970, %v1972
      %v1981 = vsel %vm716, %v1972, %v1974
      %v1983 = vsel %vm716, %v1957, %v1960
      %v1985 = vrot.slane %v1983, 4
      %v1986 = vrot.slane %v1975, 4
      %v1987 = vrot.slane %v1976, 4
      %v1988 = vrot.slane %v1977, 4
      %v1989 = vrot.slane %v1978, 4
      %v1990 = vrot.slane %v1979, 4
      %v1991 = vrot.slane %v1980, 4
      %v1992 = vrot.slane %v1981, 4
      %2001 = vst [vmem:[#allocation2 + $0x240] sm:$0xf0] %v1985
      %2002 = vst [vmem:[#allocation2 + $0x248] sm:$0xf0] %v1986
      %2003 = vst [vmem:[#allocation2 + $0x250] sm:$0xf0] %v1987
      %2004 = vst [vmem:[#allocation2 + $0x258] sm:$0xf0] %v1988
      %2005 = vst [vmem:[#allocation2 + $0x260] sm:$0xf0] %v1989
      %2006 = vst [vmem:[#allocation2 + $0x268] sm:$0xf0] %v1990
      %2007 = vst [vmem:[#allocation2 + $0x270] sm:$0xf0] %v1991
      %2008 = vst.msk [vmem:[#allocation2 + $0x278] sm:$0xf0] %vm1530, %v1992
      %2009 = vrot.lane.b32.xlu0 %v1471, 34
      %v2010 = vpop.permute.xlu0 %2009
      %2012 = vrot.lane.b32.xlu0 %v1466, 10
      %v2013 = vpop.permute.xlu0 %2012
      %2014 = vrot.lane.b32.xlu0 %v1481, 10
      %v2015 = vpop.permute.xlu0 %2014
      %2016 = vrot.lane.b32.xlu0 %v1467, 10
      %v2017 = vpop.permute.xlu0 %2016
      %2018 = vrot.lane.b32.xlu0 %v1482, 10
      %v2019 = vpop.permute.xlu0 %2018
      %2020 = vrot.lane.b32.xlu0 %v1468, 10
      %v2021 = vpop.permute.xlu0 %2020
      %2022 = vrot.lane.b32.xlu0 %v1483, 10
      %v2023 = vpop.permute.xlu0 %2022
      %2024 = vrot.lane.b32.xlu0 %v1469, 10
      %v2025 = vpop.permute.xlu0 %2024
      %2026 = vrot.lane.b32.xlu0 %v1471, 10
      %v2027 = vpop.permute.xlu0 %2026
      %v2028 = vsel %vm760, %v2013, %v2015
      %v2029 = vsel %vm760, %v2015, %v2017
      %v2030 = vsel %vm760, %v2017, %v2019
      %v2031 = vsel %vm760, %v2019, %v2021
      %v2032 = vsel %vm760, %v2021, %v2023
      %v2033 = vsel %vm760, %v2023, %v2025
      %v2034 = vsel %vm760, %v2025, %v2027
      %v2036 = vsel %vm760, %v2010, %v2013
      %v2038 = vrot.slane %v2036, 4
      %v2039 = vrot.slane %v2028, 4
      %v2040 = vrot.slane %v2029, 4
      %v2041 = vrot.slane %v2030, 4
      %v2042 = vrot.slane %v2031, 4
      %v2043 = vrot.slane %v2032, 4
      %v2044 = vrot.slane %v2033, 4
      %v2045 = vrot.slane %v2034, 4
      %2054 = vst [vmem:[#allocation2 + $0x280] sm:$0xf0] %v2038
      %2055 = vst [vmem:[#allocation2 + $0x288] sm:$0xf0] %v2039
      %2056 = vst [vmem:[#allocation2 + $0x290] sm:$0xf0] %v2040
      %2057 = vst [vmem:[#allocation2 + $0x298] sm:$0xf0] %v2041
      %2058 = vst [vmem:[#allocation2 + $0x2a0] sm:$0xf0] %v2042
      %2059 = vst [vmem:[#allocation2 + $0x2a8] sm:$0xf0] %v2043
      %2060 = vst [vmem:[#allocation2 + $0x2b0] sm:$0xf0] %v2044
      %2061 = vst.msk [vmem:[#allocation2 + $0x2b8] sm:$0xf0] %vm1530, %v2045
      %2062 = vrot.lane.b32.xlu0 %v1471, 33
      %v2063 = vpop.permute.xlu0 %2062
      %2065 = vrot.lane.b32.xlu0 %v1466, 9
      %v2066 = vpop.permute.xlu0 %2065
      %2067 = vrot.lane.b32.xlu0 %v1481, 9
      %v2068 = vpop.permute.xlu0 %2067
      %2069 = vrot.lane.b32.xlu0 %v1467, 9
      %v2070 = vpop.permute.xlu0 %2069
      %2071 = vrot.lane.b32.xlu0 %v1482, 9
      %v2072 = vpop.permute.xlu0 %2071
      %2073 = vrot.lane.b32.xlu0 %v1468, 9
      %v2074 = vpop.permute.xlu0 %2073
      %2075 = vrot.lane.b32.xlu0 %v1483, 9
      %v2076 = vpop.permute.xlu0 %2075
      %2077 = vrot.lane.b32.xlu0 %v1469, 9
      %v2078 = vpop.permute.xlu0 %2077
      %2079 = vrot.lane.b32.xlu0 %v1471, 9
      %v2080 = vpop.permute.xlu0 %2079
      %v2081 = vsel %vm804, %v2066, %v2068
      %v2082 = vsel %vm804, %v2068, %v2070
      %v2083 = vsel %vm804, %v2070, %v2072
      %v2084 = vsel %vm804, %v2072, %v2074
      %v2085 = vsel %vm804, %v2074, %v2076
      %v2086 = vsel %vm804, %v2076, %v2078
      %v2087 = vsel %vm804, %v2078, %v2080
      %v2089 = vsel %vm804, %v2063, %v2066
      %v2091 = vrot.slane %v2089, 4
      %v2092 = vrot.slane %v2081, 4
      %v2093 = vrot.slane %v2082, 4
      %v2094 = vrot.slane %v2083, 4
      %v2095 = vrot.slane %v2084, 4
      %v2096 = vrot.slane %v2085, 4
      %v2097 = vrot.slane %v2086, 4
      %v2098 = vrot.slane %v2087, 4
      %2107 = vst [vmem:[#allocation2 + $0x2c0] sm:$0xf0] %v2091
      %2108 = vst [vmem:[#allocation2 + $0x2c8] sm:$0xf0] %v2092
      %2109 = vst [vmem:[#allocation2 + $0x2d0] sm:$0xf0] %v2093
      %2110 = vst [vmem:[#allocation2 + $0x2d8] sm:$0xf0] %v2094
      %2111 = vst [vmem:[#allocation2 + $0x2e0] sm:$0xf0] %v2095
      %2112 = vst [vmem:[#allocation2 + $0x2e8] sm:$0xf0] %v2096
      %2113 = vst [vmem:[#allocation2 + $0x2f0] sm:$0xf0] %v2097
      %2114 = vst.msk [vmem:[#allocation2 + $0x2f8] sm:$0xf0] %vm1530, %v2098
      %2115 = vrot.lane.b32.xlu0 %v1471, 25
      %v2116 = vpop.permute.xlu0 %2115
      %2118 = vrot.lane.b32.xlu0 %v1466, 1
      %v2119 = vpop.permute.xlu0 %2118
      %2120 = vrot.lane.b32.xlu0 %v1481, 1
      %v2121 = vpop.permute.xlu0 %2120
      %2122 = vrot.lane.b32.xlu0 %v1467, 1
      %v2123 = vpop.permute.xlu0 %2122
      %2124 = vrot.lane.b32.xlu0 %v1482, 1
      %v2125 = vpop.permute.xlu0 %2124
      %2126 = vrot.lane.b32.xlu0 %v1468, 1
      %v2127 = vpop.permute.xlu0 %2126
      %2128 = vrot.lane.b32.xlu0 %v1483, 1
      %v2129 = vpop.permute.xlu0 %2128
      %2130 = vrot.lane.b32.xlu0 %v1469, 1
      %v2131 = vpop.permute.xlu0 %2130
      %2132 = vrot.lane.b32.xlu0 %v1471, 1
      %v2133 = vpop.permute.xlu0 %2132
      %v2134 = vsel %vm848, %v2119, %v2121
      %v2135 = vsel %vm848, %v2121, %v2123
      %v2136 = vsel %vm848, %v2123, %v2125
      %v2137 = vsel %vm848, %v2125, %v2127
      %v2138 = vsel %vm848, %v2127, %v2129
      %v2139 = vsel %vm848, %v2129, %v2131
      %v2140 = vsel %vm848, %v2131, %v2133
      %v2142 = vsel %vm848, %v2116, %v2119
      %v2144 = vrot.slane %v2142, 4
      %v2145 = vrot.slane %v2134, 4
      %v2146 = vrot.slane %v2135, 4
      %v2147 = vrot.slane %v2136, 4
      %v2148 = vrot.slane %v2137, 4
      %v2149 = vrot.slane %v2138, 4
      %v2150 = vrot.slane %v2139, 4
      %v2151 = vrot.slane %v2140, 4
      %2160 = vst [vmem:[#allocation2 + $0x300] sm:$0xf0] %v2144
      %2161 = vst [vmem:[#allocation2 + $0x308] sm:$0xf0] %v2145
      %2162 = vst [vmem:[#allocation2 + $0x310] sm:$0xf0] %v2146
      %2163 = vst [vmem:[#allocation2 + $0x318] sm:$0xf0] %v2147
      %2164 = vst [vmem:[#allocation2 + $0x320] sm:$0xf0] %v2148
      %2165 = vst [vmem:[#allocation2 + $0x328] sm:$0xf0] %v2149
      %2166 = vst [vmem:[#allocation2 + $0x330] sm:$0xf0] %v2150
      %2167 = vst.msk [vmem:[#allocation2 + $0x338] sm:$0xf0] %vm1530, %v2151
      %v2168 = vcombine.low %v1466, %v1466
      %v2169 = vcombine.low %v1467, %v1467
      %v2170 = vcombine.low %v1468, %v1468
      %v2171 = vcombine.low %v1469, %v1469
      %2176 = vst [vmem:[#allocation2 + $0x340] sm:$0xf0] %v2168
      %2177 = vst [vmem:[#allocation2 + $0x348] sm:$0xf0] %v1466
      %2178 = vst [vmem:[#allocation2 + $0x350] sm:$0xf0] %v2169
      %2179 = vst [vmem:[#allocation2 + $0x358] sm:$0xf0] %v1467
      %2180 = vst [vmem:[#allocation2 + $0x360] sm:$0xf0] %v2170
      %2181 = vst [vmem:[#allocation2 + $0x368] sm:$0xf0] %v1468
      %2182 = vst [vmem:[#allocation2 + $0x370] sm:$0xf0] %v2171
      %2183 = vst.msk [vmem:[#allocation2 + $0x378] sm:$0xf0] %vm1530, %v1469
      %2184 = vrot.lane.b32.xlu0 %v1466, 127
      %v2185 = vpop.permute.xlu0 %2184
      %2186 = vrot.lane.b32.xlu0 %v1481, 127
      %v2187 = vpop.permute.xlu0 %2186
      %2188 = vrot.lane.b32.xlu0 %v1467, 127
      %v2189 = vpop.permute.xlu0 %2188
      %2190 = vrot.lane.b32.xlu0 %v1482, 127
      %v2191 = vpop.permute.xlu0 %2190
      %2192 = vrot.lane.b32.xlu0 %v1468, 127
      %v2193 = vpop.permute.xlu0 %2192
      %2194 = vrot.lane.b32.xlu0 %v1483, 127
      %v2195 = vpop.permute.xlu0 %2194
      %2196 = vrot.lane.b32.xlu0 %v1469, 127
      %v2197 = vpop.permute.xlu0 %2196
      %2198 = vrot.lane.b32.xlu0 %v1471, 127
      %v2199 = vpop.permute.xlu0 %2198
      %v2200 = vsel %vm901, %v2185, %v2187
      %v2201 = vsel %vm901, %v2187, %v2189
      %v2202 = vsel %vm901, %v2189, %v2191
      %v2203 = vsel %vm901, %v2191, %v2193
      %v2204 = vsel %vm901, %v2193, %v2195
      %v2205 = vsel %vm901, %v2195, %v2197
      %v2206 = vsel %vm901, %v2197, %v2199
      %2208 = vrot.lane.b32.xlu0 %v1466, 103
      %v2209 = vpop.permute.xlu0 %2208
      %v2211 = vsel %vm920, %v2199, %v2209
      %v2213 = vrot.slane %v2200, 4
      %v2214 = vrot.slane %v2201, 4
      %v2215 = vrot.slane %v2202, 4
      %v2216 = vrot.slane %v2203, 4
      %v2217 = vrot.slane %v2204, 4
      %v2218 = vrot.slane %v2205, 4
      %v2219 = vrot.slane %v2206, 4
      %v2220 = vrot.slane %v2211, 4
      %2229 = vst [vmem:[#allocation2 + $0x380] sm:$0xf0] %v2213
      %2230 = vst [vmem:[#allocation2 + $0x388] sm:$0xf0] %v2214
      %2231 = vst [vmem:[#allocation2 + $0x390] sm:$0xf0] %v2215
      %2232 = vst [vmem:[#allocation2 + $0x398] sm:$0xf0] %v2216
      %2233 = vst [vmem:[#allocation2 + $0x3a0] sm:$0xf0] %v2217
      %2234 = vst [vmem:[#allocation2 + $0x3a8] sm:$0xf0] %v2218
      %2235 = vst [vmem:[#allocation2 + $0x3b0] sm:$0xf0] %v2219
      %2236 = vst.msk [vmem:[#allocation2 + $0x3b8] sm:$0xf0] %vm1530, %v2220
      %2237 = vrot.lane.b32.xlu0 %v1466, 119
      %v2238 = vpop.permute.xlu0 %2237
      %2239 = vrot.lane.b32.xlu0 %v1481, 119
      %v2240 = vpop.permute.xlu0 %2239
      %2241 = vrot.lane.b32.xlu0 %v1467, 119
      %v2242 = vpop.permute.xlu0 %2241
      %2243 = vrot.lane.b32.xlu0 %v1482, 119
      %v2244 = vpop.permute.xlu0 %2243
      %2245 = vrot.lane.b32.xlu0 %v1468, 119
      %v2246 = vpop.permute.xlu0 %2245
      %2247 = vrot.lane.b32.xlu0 %v1483, 119
      %v2248 = vpop.permute.xlu0 %2247
      %2249 = vrot.lane.b32.xlu0 %v1469, 119
      %v2250 = vpop.permute.xlu0 %2249
      %2251 = vrot.lane.b32.xlu0 %v1471, 119
      %v2252 = vpop.permute.xlu0 %2251
      %v2253 = vsel %vm946, %v2238, %v2240
      %v2254 = vsel %vm946, %v2240, %v2242
      %v2255 = vsel %vm946, %v2242, %v2244
      %v2256 = vsel %vm946, %v2244, %v2246
      %v2257 = vsel %vm946, %v2246, %v2248
      %v2258 = vsel %vm946, %v2248, %v2250
      %v2259 = vsel %vm946, %v2250, %v2252
      %2261 = vrot.lane.b32.xlu0 %v1466, 95
      %v2262 = vpop.permute.xlu0 %2261
      %v2264 = vsel %vm965, %v2252, %v2262
      %v2266 = vrot.slane %v2253, 4
      %v2267 = vrot.slane %v2254, 4
      %v2268 = vrot.slane %v2255, 4
      %v2269 = vrot.slane %v2256, 4
      %v2270 = vrot.slane %v2257, 4
      %v2271 = vrot.slane %v2258, 4
      %v2272 = vrot.slane %v2259, 4
      %v2273 = vrot.slane %v2264, 4
      %2282 = vst [vmem:[#allocation2 + $0x3c0] sm:$0xf0] %v2266
      %2283 = vst [vmem:[#allocation2 + $0x3c8] sm:$0xf0] %v2267
      %2284 = vst [vmem:[#allocation2 + $0x3d0] sm:$0xf0] %v2268
      %2285 = vst [vmem:[#allocation2 + $0x3d8] sm:$0xf0] %v2269
      %2286 = vst [vmem:[#allocation2 + $0x3e0] sm:$0xf0] %v2270
      %2287 = vst [vmem:[#allocation2 + $0x3e8] sm:$0xf0] %v2271
      %2288 = vst [vmem:[#allocation2 + $0x3f0] sm:$0xf0] %v2272
      %2289 = vst.msk [vmem:[#allocation2 + $0x3f8] sm:$0xf0] %vm1530, %v2273
      %2290 = vrot.lane.b32.xlu0 %v1466, 118
      %v2291 = vpop.permute.xlu0 %2290
      %2292 = vrot.lane.b32.xlu0 %v1481, 118
      %v2293 = vpop.permute.xlu0 %2292
      %2294 = vrot.lane.b32.xlu0 %v1467, 118
      %v2295 = vpop.permute.xlu0 %2294
      %2296 = vrot.lane.b32.xlu0 %v1482, 118
      %v2297 = vpop.permute.xlu0 %2296
      %2298 = vrot.lane.b32.xlu0 %v1468, 118
      %v2299 = vpop.permute.xlu0 %2298
      %2300 = vrot.lane.b32.xlu0 %v1483, 118
      %v2301 = vpop.permute.xlu0 %2300
      %2302 = vrot.lane.b32.xlu0 %v1469, 118
      %v2303 = vpop.permute.xlu0 %2302
      %2304 = vrot.lane.b32.xlu0 %v1471, 118
      %v2305 = vpop.permute.xlu0 %2304
      %v2306 = vsel %vm991, %v2291, %v2293
      %v2307 = vsel %vm991, %v2293, %v2295
      %v2308 = vsel %vm991, %v2295, %v2297
      %v2309 = vsel %vm991, %v2297, %v2299
      %v2310 = vsel %vm991, %v2299, %v2301
      %v2311 = vsel %vm991, %v2301, %v2303
      %v2312 = vsel %vm991, %v2303, %v2305
      %2314 = vrot.lane.b32.xlu0 %v1466, 94
      %v2315 = vpop.permute.xlu0 %2314
      %v2317 = vsel %vm1010, %v2305, %v2315
      %v2319 = vrot.slane %v2306, 4
      %v2320 = vrot.slane %v2307, 4
      %v2321 = vrot.slane %v2308, 4
      %v2322 = vrot.slane %v2309, 4
      %v2323 = vrot.slane %v2310, 4
      %v2324 = vrot.slane %v2311, 4
      %v2325 = vrot.slane %v2312, 4
      %v2326 = vrot.slane %v2317, 4
      %2335 = vst [vmem:[#allocation2 + $0x400] sm:$0xf0] %v2319
      %2336 = vst [vmem:[#allocation2 + $0x408] sm:$0xf0] %v2320
      %2337 = vst [vmem:[#allocation2 + $0x410] sm:$0xf0] %v2321
      %2338 = vst [vmem:[#allocation2 + $0x418] sm:$0xf0] %v2322
      %2339 = vst [vmem:[#allocation2 + $0x420] sm:$0xf0] %v2323
      %2340 = vst [vmem:[#allocation2 + $0x428] sm:$0xf0] %v2324
      %2341 = vst [vmem:[#allocation2 + $0x430] sm:$0xf0] %v2325
      %2342 = vst.msk [vmem:[#allocation2 + $0x438] sm:$0xf0] %vm1530, %v2326
      %2343 = vrot.lane.b32.xlu0 %v1466, 117
      %v2344 = vpop.permute.xlu0 %2343
      %2345 = vrot.lane.b32.xlu0 %v1481, 117
      %v2346 = vpop.permute.xlu0 %2345
      %2347 = vrot.lane.b32.xlu0 %v1467, 117
      %v2348 = vpop.permute.xlu0 %2347
      %2349 = vrot.lane.b32.xlu0 %v1482, 117
      %v2350 = vpop.permute.xlu0 %2349
      %2351 = vrot.lane.b32.xlu0 %v1468, 117
      %v2352 = vpop.permute.xlu0 %2351
      %2353 = vrot.lane.b32.xlu0 %v1483, 117
      %v2354 = vpop.permute.xlu0 %2353
      %2355 = vrot.lane.b32.xlu0 %v1469, 117
      %v2356 = vpop.permute.xlu0 %2355
      %2357 = vrot.lane.b32.xlu0 %v1471, 117
      %v2358 = vpop.permute.xlu0 %2357
      %v2359 = vsel %vm1036, %v2344, %v2346
      %v2360 = vsel %vm1036, %v2346, %v2348
      %v2361 = vsel %vm1036, %v2348, %v2350
      %v2362 = vsel %vm1036, %v2350, %v2352
      %v2363 = vsel %vm1036, %v2352, %v2354
      %v2364 = vsel %vm1036, %v2354, %v2356
      %v2365 = vsel %vm1036, %v2356, %v2358
      %2367 = vrot.lane.b32.xlu0 %v1466, 93
      %v2368 = vpop.permute.xlu0 %2367
      %v2370 = vsel %vm1055, %v2358, %v2368
      %v2372 = vrot.slane %v2359, 4
      %v2373 = vrot.slane %v2360, 4
      %v2374 = vrot.slane %v2361, 4
      %v2375 = vrot.slane %v2362, 4
      %v2376 = vrot.slane %v2363, 4
      %v2377 = vrot.slane %v2364, 4
      %v2378 = vrot.slane %v2365, 4
      %v2379 = vrot.slane %v2370, 4
      %2388 = vst [vmem:[#allocation2 + $0x440] sm:$0xf0] %v2372
      %2389 = vst [vmem:[#allocation2 + $0x448] sm:$0xf0] %v2373
      %2390 = vst [vmem:[#allocation2 + $0x450] sm:$0xf0] %v2374
      %2391 = vst [vmem:[#allocation2 + $0x458] sm:$0xf0] %v2375
      %2392 = vst [vmem:[#allocation2 + $0x460] sm:$0xf0] %v2376
      %2393 = vst [vmem:[#allocation2 + $0x468] sm:$0xf0] %v2377
      %2394 = vst [vmem:[#allocation2 + $0x470] sm:$0xf0] %v2378
      %2395 = vst.msk [vmem:[#allocation2 + $0x478] sm:$0xf0] %vm1530, %v2379
      %2396 = vrot.lane.b32.xlu0 %v1466, 39
      %v2397 = vpop.permute.xlu0 %2396
      %2398 = vrot.lane.b32.xlu0 %v1481, 39
      %v2399 = vpop.permute.xlu0 %2398
      %2400 = vrot.lane.b32.xlu0 %v1467, 39
      %v2401 = vpop.permute.xlu0 %2400
      %2402 = vrot.lane.b32.xlu0 %v1482, 39
      %v2403 = vpop.permute.xlu0 %2402
      %2404 = vrot.lane.b32.xlu0 %v1468, 39
      %v2405 = vpop.permute.xlu0 %2404
      %2406 = vrot.lane.b32.xlu0 %v1483, 39
      %v2407 = vpop.permute.xlu0 %2406
      %2408 = vrot.lane.b32.xlu0 %v1469, 39
      %v2409 = vpop.permute.xlu0 %2408
      %2410 = vrot.lane.b32.xlu0 %v1471, 39
      %v2411 = vpop.permute.xlu0 %2410
      %v2412 = vsel %vm1081, %v2397, %v2399
      %v2413 = vsel %vm1081, %v2399, %v2401
      %v2414 = vsel %vm1081, %v2401, %v2403
      %v2415 = vsel %vm1081, %v2403, %v2405
      %v2416 = vsel %vm1081, %v2405, %v2407
      %v2417 = vsel %vm1081, %v2407, %v2409
      %v2418 = vsel %vm1081, %v2409, %v2411
      %2420 = vrot.lane.b32.xlu0 %v1466, 15
      %v2421 = vpop.permute.xlu0 %2420
      %v2423 = vsel %vm1100, %v2411, %v2421
      %v2425 = vrot.slane %v2412, 4
      %v2426 = vrot.slane %v2413, 4
      %v2427 = vrot.slane %v2414, 4
      %v2428 = vrot.slane %v2415, 4
      %v2429 = vrot.slane %v2416, 4
      %v2430 = vrot.slane %v2417, 4
      %v2431 = vrot.slane %v2418, 4
      %v2432 = vrot.slane %v2423, 4
      %2441 = vst [vmem:[#allocation2 + $0x480] sm:$0xf0] %v2425
      %2442 = vst [vmem:[#allocation2 + $0x488] sm:$0xf0] %v2426
      %2443 = vst [vmem:[#allocation2 + $0x490] sm:$0xf0] %v2427
      %2444 = vst [vmem:[#allocation2 + $0x498] sm:$0xf0] %v2428
      %2445 = vst [vmem:[#allocation2 + $0x4a0] sm:$0xf0] %v2429
      %2446 = vst [vmem:[#allocation2 + $0x4a8] sm:$0xf0] %v2430
      %2447 = vst [vmem:[#allocation2 + $0x4b0] sm:$0xf0] %v2431
      %2448 = vst.msk [vmem:[#allocation2 + $0x4b8] sm:$0xf0] %vm1530, %v2432
      %2449 = vrot.lane.b32.xlu0 %v1466, 38
      %v2450 = vpop.permute.xlu0 %2449
      %2451 = vrot.lane.b32.xlu0 %v1481, 38
      %v2452 = vpop.permute.xlu0 %2451
      %2453 = vrot.lane.b32.xlu0 %v1467, 38
      %v2454 = vpop.permute.xlu0 %2453
      %2455 = vrot.lane.b32.xlu0 %v1482, 38
      %v2456 = vpop.permute.xlu0 %2455
      %2457 = vrot.lane.b32.xlu0 %v1468, 38
      %v2458 = vpop.permute.xlu0 %2457
      %2459 = vrot.lane.b32.xlu0 %v1483, 38
      %v2460 = vpop.permute.xlu0 %2459
      %2461 = vrot.lane.b32.xlu0 %v1469, 38
      %v2462 = vpop.permute.xlu0 %2461
      %2463 = vrot.lane.b32.xlu0 %v1471, 38
      %v2464 = vpop.permute.xlu0 %2463
      %v2465 = vsel %vm1126, %v2450, %v2452
      %v2466 = vsel %vm1126, %v2452, %v2454
      %v2467 = vsel %vm1126, %v2454, %v2456
      %v2468 = vsel %vm1126, %v2456, %v2458
      %v2469 = vsel %vm1126, %v2458, %v2460
      %v2470 = vsel %vm1126, %v2460, %v2462
      %v2471 = vsel %vm1126, %v2462, %v2464
      %2473 = vrot.lane.b32.xlu0 %v1466, 14
      %v2474 = vpop.permute.xlu0 %2473
      %v2476 = vsel %vm1145, %v2464, %v2474
      %v2478 = vrot.slane %v2465, 4
      %v2479 = vrot.slane %v2466, 4
      %v2480 = vrot.slane %v2467, 4
      %v2481 = vrot.slane %v2468, 4
      %v2482 = vrot.slane %v2469, 4
      %v2483 = vrot.slane %v2470, 4
      %v2484 = vrot.slane %v2471, 4
      %v2485 = vrot.slane %v2476, 4
      %2494 = vst [vmem:[#allocation2 + $0x4c0] sm:$0xf0] %v2478
      %2495 = vst [vmem:[#allocation2 + $0x4c8] sm:$0xf0] %v2479
      %2496 = vst [vmem:[#allocation2 + $0x4d0] sm:$0xf0] %v2480
      %2497 = vst [vmem:[#allocation2 + $0x4d8] sm:$0xf0] %v2481
      %2498 = vst [vmem:[#allocation2 + $0x4e0] sm:$0xf0] %v2482
      %2499 = vst [vmem:[#allocation2 + $0x4e8] sm:$0xf0] %v2483
      %2500 = vst [vmem:[#allocation2 + $0x4f0] sm:$0xf0] %v2484
      %2501 = vst.msk [vmem:[#allocation2 + $0x4f8] sm:$0xf0] %vm1530, %v2485
      %2502 = vrot.lane.b32.xlu0 %v1466, 37
      %v2503 = vpop.permute.xlu0 %2502
      %2504 = vrot.lane.b32.xlu0 %v1481, 37
      %v2505 = vpop.permute.xlu0 %2504
      %2506 = vrot.lane.b32.xlu0 %v1467, 37
      %v2507 = vpop.permute.xlu0 %2506
      %2508 = vrot.lane.b32.xlu0 %v1482, 37
      %v2509 = vpop.permute.xlu0 %2508
      %2510 = vrot.lane.b32.xlu0 %v1468, 37
      %v2511 = vpop.permute.xlu0 %2510
      %2512 = vrot.lane.b32.xlu0 %v1483, 37
      %v2513 = vpop.permute.xlu0 %2512
      %2514 = vrot.lane.b32.xlu0 %v1469, 37
      %v2515 = vpop.permute.xlu0 %2514
      %2516 = vrot.lane.b32.xlu0 %v1471, 37
      %v2517 = vpop.permute.xlu0 %2516
      %v2518 = vsel %vm1171, %v2503, %v2505
      %v2519 = vsel %vm1171, %v2505, %v2507
      %v2520 = vsel %vm1171, %v2507, %v2509
      %v2521 = vsel %vm1171, %v2509, %v2511
      %v2522 = vsel %vm1171, %v2511, %v2513
      %v2523 = vsel %vm1171, %v2513, %v2515
      %v2524 = vsel %vm1171, %v2515, %v2517
      %2526 = vrot.lane.b32.xlu0 %v1466, 13
      %v2527 = vpop.permute.xlu0 %2526
      %v2529 = vsel %vm1190, %v2517, %v2527
      %v2531 = vrot.slane %v2518, 4
      %v2532 = vrot.slane %v2519, 4
      %v2533 = vrot.slane %v2520, 4
      %v2534 = vrot.slane %v2521, 4
      %v2535 = vrot.slane %v2522, 4
      %v2536 = vrot.slane %v2523, 4
      %v2537 = vrot.slane %v2524, 4
      %v2538 = vrot.slane %v2529, 4
      %2547 = vst [vmem:[#allocation2 + $0x500] sm:$0xf0] %v2531
      %2548 = vst [vmem:[#allocation2 + $0x508] sm:$0xf0] %v2532
      %2549 = vst [vmem:[#allocation2 + $0x510] sm:$0xf0] %v2533
      %2550 = vst [vmem:[#allocation2 + $0x518] sm:$0xf0] %v2534
      %2551 = vst [vmem:[#allocation2 + $0x520] sm:$0xf0] %v2535
      %2552 = vst [vmem:[#allocation2 + $0x528] sm:$0xf0] %v2536
      %2553 = vst [vmem:[#allocation2 + $0x530] sm:$0xf0] %v2537
      %2554 = vst.msk [vmem:[#allocation2 + $0x538] sm:$0xf0] %vm1530, %v2538
      %2555 = vrot.lane.b32.xlu0 %v1466, 29
      %v2556 = vpop.permute.xlu0 %2555
      %2557 = vrot.lane.b32.xlu0 %v1481, 29
      %v2558 = vpop.permute.xlu0 %2557
      %2559 = vrot.lane.b32.xlu0 %v1467, 29
      %v2560 = vpop.permute.xlu0 %2559
      %2561 = vrot.lane.b32.xlu0 %v1482, 29
      %v2562 = vpop.permute.xlu0 %2561
      %2563 = vrot.lane.b32.xlu0 %v1468, 29
      %v2564 = vpop.permute.xlu0 %2563
      %2565 = vrot.lane.b32.xlu0 %v1483, 29
      %v2566 = vpop.permute.xlu0 %2565
      %2567 = vrot.lane.b32.xlu0 %v1469, 29
      %v2568 = vpop.permute.xlu0 %2567
      %2569 = vrot.lane.b32.xlu0 %v1471, 29
      %v2570 = vpop.permute.xlu0 %2569
      %v2571 = vsel %vm1216, %v2556, %v2558
      %v2572 = vsel %vm1216, %v2558, %v2560
      %v2573 = vsel %vm1216, %v2560, %v2562
      %v2574 = vsel %vm1216, %v2562, %v2564
      %v2575 = vsel %vm1216, %v2564, %v2566
      %v2576 = vsel %vm1216, %v2566, %v2568
      %v2577 = vsel %vm1216, %v2568, %v2570
      %2579 = vrot.lane.b32.xlu0 %v1466, 5
      %v2580 = vpop.permute.xlu0 %2579
      %v2582 = vsel %vm392, %v2570, %v2580
      %v2584 = vrot.slane %v2571, 4
      %v2585 = vrot.slane %v2572, 4
      %v2586 = vrot.slane %v2573, 4
      %v2587 = vrot.slane %v2574, 4
      %v2588 = vrot.slane %v2575, 4
      %v2589 = vrot.slane %v2576, 4
      %v2590 = vrot.slane %v2577, 4
      %v2591 = vrot.slane %v2582, 4
      %2600 = vst [vmem:[#allocation2 + $0x540] sm:$0xf0] %v2584
      %2601 = vst [vmem:[#allocation2 + $0x548] sm:$0xf0] %v2585
      %2602 = vst [vmem:[#allocation2 + $0x550] sm:$0xf0] %v2586
      %2603 = vst [vmem:[#allocation2 + $0x558] sm:$0xf0] %v2587
      %2604 = vst [vmem:[#allocation2 + $0x560] sm:$0xf0] %v2588
      %2605 = vst [vmem:[#allocation2 + $0x568] sm:$0xf0] %v2589
      %2606 = vst [vmem:[#allocation2 + $0x570] sm:$0xf0] %v2590
      %2607 = vst.msk [vmem:[#allocation2 + $0x578] sm:$0xf0] %vm1530, %v2591
      %2608 = vrot.lane.b32.xlu0 %v1466, 28
      %v2609 = vpop.permute.xlu0 %2608
      %2610 = vrot.lane.b32.xlu0 %v1481, 28
      %v2611 = vpop.permute.xlu0 %2610
      %2612 = vrot.lane.b32.xlu0 %v1467, 28
      %v2613 = vpop.permute.xlu0 %2612
      %2614 = vrot.lane.b32.xlu0 %v1482, 28
      %v2615 = vpop.permute.xlu0 %2614
      %2616 = vrot.lane.b32.xlu0 %v1468, 28
      %v2617 = vpop.permute.xlu0 %2616
      %2618 = vrot.lane.b32.xlu0 %v1483, 28
      %v2619 = vpop.permute.xlu0 %2618
      %2620 = vrot.lane.b32.xlu0 %v1469, 28
      %v2621 = vpop.permute.xlu0 %2620
      %2622 = vrot.lane.b32.xlu0 %v1471, 28
      %v2623 = vpop.permute.xlu0 %2622
      %v2624 = vsel %vm1260, %v2609, %v2611
      %v2625 = vsel %vm1260, %v2611, %v2613
      %v2626 = vsel %vm1260, %v2613, %v2615
      %v2627 = vsel %vm1260, %v2615, %v2617
      %v2628 = vsel %vm1260, %v2617, %v2619
      %v2629 = vsel %vm1260, %v2619, %v2621
      %v2630 = vsel %vm1260, %v2621, %v2623
      %2632 = vrot.lane.b32.xlu0 %v1466, 4
      %v2633 = vpop.permute.xlu0 %2632
      %v2635 = vsel %vm1279, %v2623, %v2633
      %v2637 = vrot.slane %v2624, 4
      %v2638 = vrot.slane %v2625, 4
      %v2639 = vrot.slane %v2626, 4
      %v2640 = vrot.slane %v2627, 4
      %v2641 = vrot.slane %v2628, 4
      %v2642 = vrot.slane %v2629, 4
      %v2643 = vrot.slane %v2630, 4
      %v2644 = vrot.slane %v2635, 4
      %2653 = vst [vmem:[#allocation2 + $0x580] sm:$0xf0] %v2637
      %2654 = vst [vmem:[#allocation2 + $0x588] sm:$0xf0] %v2638
      %2655 = vst [vmem:[#allocation2 + $0x590] sm:$0xf0] %v2639
      %2656 = vst [vmem:[#allocation2 + $0x598] sm:$0xf0] %v2640
      %2657 = vst [vmem:[#allocation2 + $0x5a0] sm:$0xf0] %v2641
      %2658 = vst [vmem:[#allocation2 + $0x5a8] sm:$0xf0] %v2642
      %2659 = vst [vmem:[#allocation2 + $0x5b0] sm:$0xf0] %v2643
      %2660 = vst.msk [vmem:[#allocation2 + $0x5b8] sm:$0xf0] %vm1530, %v2644
      %2661 = vrot.lane.b32.xlu0 %v1466, 27
      %v2662 = vpop.permute.xlu0 %2661
      %2663 = vrot.lane.b32.xlu0 %v1481, 27
      %v2664 = vpop.permute.xlu0 %2663
      %2665 = vrot.lane.b32.xlu0 %v1467, 27
      %v2666 = vpop.permute.xlu0 %2665
      %2667 = vrot.lane.b32.xlu0 %v1482, 27
      %v2668 = vpop.permute.xlu0 %2667
      %2669 = vrot.lane.b32.xlu0 %v1468, 27
      %v2670 = vpop.permute.xlu0 %2669
      %2671 = vrot.lane.b32.xlu0 %v1483, 27
      %v2672 = vpop.permute.xlu0 %2671
      %2673 = vrot.lane.b32.xlu0 %v1469, 27
      %v2674 = vpop.permute.xlu0 %2673
      %2675 = vrot.lane.b32.xlu0 %v1471, 27
      %v2676 = vpop.permute.xlu0 %2675
      %v2677 = vsel %vm1305, %v2662, %v2664
      %v2678 = vsel %vm1305, %v2664, %v2666
      %v2679 = vsel %vm1305, %v2666, %v2668
      %v2680 = vsel %vm1305, %v2668, %v2670
      %v2681 = vsel %vm1305, %v2670, %v2672
      %v2682 = vsel %vm1305, %v2672, %v2674
      %v2683 = vsel %vm1305, %v2674, %v2676
      %2685 = vrot.lane.b32.xlu0 %v1466, 3
      %v2686 = vpop.permute.xlu0 %2685
      %v2688 = vsel %vm1324, %v2676, %v2686
      %v2690 = vrot.slane %v2677, 4
      %v2691 = vrot.slane %v2678, 4
      %v2692 = vrot.slane %v2679, 4
      %v2693 = vrot.slane %v2680, 4
      %v2694 = vrot.slane %v2681, 4
      %v2695 = vrot.slane %v2682, 4
      %v2696 = vrot.slane %v2683, 4
      %v2697 = vrot.slane %v2688, 4
      %2706 = vst [vmem:[#allocation2 + $0x5c0] sm:$0xf0] %v2690
      %2707 = vst [vmem:[#allocation2 + $0x5c8] sm:$0xf0] %v2691
      %2708 = vst [vmem:[#allocation2 + $0x5d0] sm:$0xf0] %v2692
      %2709 = vst [vmem:[#allocation2 + $0x5d8] sm:$0xf0] %v2693
      %2710 = vst [vmem:[#allocation2 + $0x5e0] sm:$0xf0] %v2694
      %2711 = vst [vmem:[#allocation2 + $0x5e8] sm:$0xf0] %v2695
      %2712 = vst [vmem:[#allocation2 + $0x5f0] sm:$0xf0] %v2696
      %2713 = vst.msk [vmem:[#allocation2 + $0x5f8] sm:$0xf0] %vm1530, %v2697
      %2714 = vrot.lane.b32.xlu0 %v1466, 19
      %v2715 = vpop.permute.xlu0 %2714
      %2716 = vrot.lane.b32.xlu0 %v1481, 19
      %v2717 = vpop.permute.xlu0 %2716
      %2718 = vrot.lane.b32.xlu0 %v1467, 19
      %v2719 = vpop.permute.xlu0 %2718
      %2720 = vrot.lane.b32.xlu0 %v1482, 19
      %v2721 = vpop.permute.xlu0 %2720
      %2722 = vrot.lane.b32.xlu0 %v1468, 19
      %v2723 = vpop.permute.xlu0 %2722
      %2724 = vrot.lane.b32.xlu0 %v1483, 19
      %v2725 = vpop.permute.xlu0 %2724
      %2726 = vrot.lane.b32.xlu0 %v1469, 19
      %v2727 = vpop.permute.xlu0 %2726
      %2728 = vrot.lane.b32.xlu0 %v1471, 19
      %v2729 = vpop.permute.xlu0 %2728
      %v2730 = vsel %vm1350, %v2715, %v2717
      %v2731 = vsel %vm1350, %v2717, %v2719
      %v2732 = vsel %vm1350, %v2719, %v2721
      %v2733 = vsel %vm1350, %v2721, %v2723
      %v2734 = vsel %vm1350, %v2723, %v2725
      %v2735 = vsel %vm1350, %v2725, %v2727
      %v2736 = vsel %vm1350, %v2727, %v2729
      %2738 = vrot.lane.b32.xlu0 %v1466, 123
      %v2739 = vpop.permute.xlu0 %2738
      %v2741 = vsel %vm1368, %v2736, %v2739
      %v2743 = vrot.slane %v2730, 4
      %v2744 = vrot.slane %v2731, 4
      %v2745 = vrot.slane %v2732, 4
      %v2746 = vrot.slane %v2733, 4
      %v2747 = vrot.slane %v2734, 4
      %v2748 = vrot.slane %v2735, 4
      %v2749 = vrot.slane %v2741, 4
      %v2750 = vrot.slane %v2739, 4
      %2759 = vst [vmem:[#allocation2 + $0x600] sm:$0xf0] %v2743
      %2760 = vst [vmem:[#allocation2 + $0x608] sm:$0xf0] %v2744
      %2761 = vst [vmem:[#allocation2 + $0x610] sm:$0xf0] %v2745
      %2762 = vst [vmem:[#allocation2 + $0x618] sm:$0xf0] %v2746
      %2763 = vst [vmem:[#allocation2 + $0x620] sm:$0xf0] %v2747
      %2764 = vst [vmem:[#allocation2 + $0x628] sm:$0xf0] %v2748
      %2765 = vst [vmem:[#allocation2 + $0x630] sm:$0xf0] %v2749
      %2766 = vst.msk [vmem:[#allocation2 + $0x638] sm:$0xf0] %vm1530, %v2750
      %2767 = vrot.lane.b32.xlu0 %v1466, 18
      %v2768 = vpop.permute.xlu0 %2767
      %2769 = vrot.lane.b32.xlu0 %v1481, 18
      %v2770 = vpop.permute.xlu0 %2769
      %2771 = vrot.lane.b32.xlu0 %v1467, 18
      %v2772 = vpop.permute.xlu0 %2771
      %2773 = vrot.lane.b32.xlu0 %v1482, 18
      %v2774 = vpop.permute.xlu0 %2773
      %2775 = vrot.lane.b32.xlu0 %v1468, 18
      %v2776 = vpop.permute.xlu0 %2775
      %2777 = vrot.lane.b32.xlu0 %v1483, 18
      %v2778 = vpop.permute.xlu0 %2777
      %2779 = vrot.lane.b32.xlu0 %v1469, 18
      %v2780 = vpop.permute.xlu0 %2779
      %2781 = vrot.lane.b32.xlu0 %v1471, 18
      %v2782 = vpop.permute.xlu0 %2781
      %v2783 = vsel %vm1394, %v2768, %v2770
      %v2784 = vsel %vm1394, %v2770, %v2772
      %v2785 = vsel %vm1394, %v2772, %v2774
      %v2786 = vsel %vm1394, %v2774, %v2776
      %v2787 = vsel %vm1394, %v2776, %v2778
      %v2788 = vsel %vm1394, %v2778, %v2780
      %v2789 = vsel %vm1394, %v2780, %v2782
      %2791 = vrot.lane.b32.xlu0 %v1466, 122
      %v2792 = vpop.permute.xlu0 %2791
      %v2794 = vsel %vm1412, %v2789, %v2792
      %v2796 = vrot.slane %v2783, 4
      %v2797 = vrot.slane %v2784, 4
      %v2798 = vrot.slane %v2785, 4
      %v2799 = vrot.slane %v2786, 4
      %v2800 = vrot.slane %v2787, 4
      %v2801 = vrot.slane %v2788, 4
      %v2802 = vrot.slane %v2794, 4
      %v2803 = vrot.slane %v2792, 4
      %2812 = vst [vmem:[#allocation2 + $0x640] sm:$0xf0] %v2796
      %2813 = vst [vmem:[#allocation2 + $0x648] sm:$0xf0] %v2797
      %2814 = vst [vmem:[#allocation2 + $0x650] sm:$0xf0] %v2798
      %2815 = vst [vmem:[#allocation2 + $0x658] sm:$0xf0] %v2799
      %2816 = vst [vmem:[#allocation2 + $0x660] sm:$0xf0] %v2800
      %2817 = vst [vmem:[#allocation2 + $0x668] sm:$0xf0] %v2801
      %2818 = vst [vmem:[#allocation2 + $0x670] sm:$0xf0] %v2802
      %2819 = vst.msk [vmem:[#allocation2 + $0x678] sm:$0xf0] %vm1530, %v2803
      %2820 = vrot.lane.b32.xlu0 %v1466, 17
      %v2821 = vpop.permute.xlu0 %2820
      %2822 = vrot.lane.b32.xlu0 %v1481, 17
      %v2823 = vpop.permute.xlu0 %2822
      %2824 = vrot.lane.b32.xlu0 %v1467, 17
      %v2825 = vpop.permute.xlu0 %2824
      %2826 = vrot.lane.b32.xlu0 %v1482, 17
      %v2827 = vpop.permute.xlu0 %2826
      %2828 = vrot.lane.b32.xlu0 %v1468, 17
      %v2829 = vpop.permute.xlu0 %2828
      %2830 = vrot.lane.b32.xlu0 %v1483, 17
      %v2831 = vpop.permute.xlu0 %2830
      %2832 = vrot.lane.b32.xlu0 %v1469, 17
      %v2833 = vpop.permute.xlu0 %2832
      %2834 = vrot.lane.b32.xlu0 %v1471, 17
      %v2835 = vpop.permute.xlu0 %2834
      %v2836 = vsel %vm1438, %v2821, %v2823
      %v2837 = vsel %vm1438, %v2823, %v2825
      %v2838 = vsel %vm1438, %v2825, %v2827
      %v2839 = vsel %vm1438, %v2827, %v2829
      %v2840 = vsel %vm1438, %v2829, %v2831
      %v2841 = vsel %vm1438, %v2831, %v2833
      %v2842 = vsel %vm1438, %v2833, %v2835
      %2844 = vrot.lane.b32.xlu0 %v1466, 121
      %v2845 = vpop.permute.xlu0 %2844
      %v2847 = vsel %vm1456, %v2842, %v2845
      %v2849 = vrot.slane %v2836, 4
      %v2850 = vrot.slane %v2837, 4
      %v2851 = vrot.slane %v2838, 4
      %v2852 = vrot.slane %v2839, 4
      %v2853 = vrot.slane %v2840, 4
      %v2854 = vrot.slane %v2841, 4
      %v2855 = vrot.slane %v2847, 4
      %v2856 = vrot.slane %v2845, 4
      %2865 = vst [vmem:[#allocation2 + $0x680] sm:$0xf0] %v2849
      %2866 = vst [vmem:[#allocation2 + $0x688] sm:$0xf0] %v2850
      %2867 = vst [vmem:[#allocation2 + $0x690] sm:$0xf0] %v2851
      %2868 = vst [vmem:[#allocation2 + $0x698] sm:$0xf0] %v2852
      %2869 = vst [vmem:[#allocation2 + $0x6a0] sm:$0xf0] %v2853
      %2870 = vst [vmem:[#allocation2 + $0x6a8] sm:$0xf0] %v2854
      %2871 = vst [vmem:[#allocation2 + $0x6b0] sm:$0xf0] %v2855
      %2872 = vst.msk [vmem:[#allocation2 + $0x6b8] sm:$0xf0] %vm1530, %v2856
      %v2873 = vld [vmem:[%s3] sm:$0xf]
      %v2874 = vld [vmem:[#allocation2] sm:$0xff]
      %v2875 = vld [vmem:[#allocation2 + $0x8] sm:$0xff]
      %v2876 = vld [vmem:[#allocation2 + $0x10] sm:$0xff]
      %v2877 = vld [vmem:[#allocation2 + $0x18] sm:$0xff]
      %v2878 = vld [vmem:[#allocation2 + $0x20] sm:$0xff]
      %v2879 = vld [vmem:[#allocation2 + $0x28] sm:$0xff]
      %v2880 = vld [vmem:[#allocation2 + $0x30] sm:$0xff]
      %v2881 = vld [vmem:[#allocation2 + $0x38] sm:$0xff]
      %v2882 = vld [vmem:[#allocation2 + $0x40] sm:$0xff]
      %v2883 = vld [vmem:[#allocation2 + $0x48] sm:$0xff]
      %v2884 = vld [vmem:[#allocation2 + $0x50] sm:$0xff]
      %v2885 = vld [vmem:[#allocation2 + $0x58] sm:$0xff]
      %v2886 = vld [vmem:[#allocation2 + $0x60] sm:$0xff]
      %v2887 = vld [vmem:[#allocation2 + $0x68] sm:$0xff]
      %v2888 = vld [vmem:[#allocation2 + $0x70] sm:$0xff]
      %v2889 = vld [vmem:[#allocation2 + $0x78] sm:$0xff]
      %v2890 = vld [vmem:[#allocation2 + $0x80] sm:$0xff]
      %v2891 = vld [vmem:[#allocation2 + $0x88] sm:$0xff]
      %v2892 = vld [vmem:[#allocation2 + $0x90] sm:$0xff]
      %v2893 = vld [vmem:[#allocation2 + $0x98] sm:$0xff]
      %v2894 = vld [vmem:[#allocation2 + $0xa0] sm:$0xff]
      %v2895 = vld [vmem:[#allocation2 + $0xa8] sm:$0xff]
      %v2896 = vld [vmem:[#allocation2 + $0xb0] sm:$0xff]
      %v2897 = vld [vmem:[#allocation2 + $0xb8] sm:$0xff]
      %v2898 = vld [vmem:[#allocation2 + $0xc0] sm:$0xff]
      %v2899 = vld [vmem:[#allocation2 + $0xc8] sm:$0xff]
      %v2900 = vld [vmem:[#allocation2 + $0xd0] sm:$0xff]
      %v2901 = vld [vmem:[#allocation2 + $0xd8] sm:$0xff]
      %v2902 = vld [vmem:[#allocation2 + $0xe0] sm:$0xff]
      %v2903 = vld [vmem:[#allocation2 + $0xe8] sm:$0xff]
      %v2904 = vld [vmem:[#allocation2 + $0xf0] sm:$0xff]
      %v2905 = vld [vmem:[#allocation2 + $0xf8] sm:$0xff]
      %v2906 = vld [vmem:[#allocation2 + $0x100] sm:$0xff]
      %v2907 = vld [vmem:[#allocation2 + $0x108] sm:$0xff]
      %v2908 = vld [vmem:[#allocation2 + $0x110] sm:$0xff]
      %v2909 = vld [vmem:[#allocation2 + $0x118] sm:$0xff]
      %v2910 = vld [vmem:[#allocation2 + $0x120] sm:$0xff]
      %v2911 = vld [vmem:[#allocation2 + $0x128] sm:$0xff]
      %v2912 = vld [vmem:[#allocation2 + $0x130] sm:$0xff]
      %v2913 = vld [vmem:[#allocation2 + $0x138] sm:$0xff]
      %v2914 = vld [vmem:[#allocation2 + $0x140] sm:$0xff]
      %v2915 = vld [vmem:[#allocation2 + $0x148] sm:$0xff]
      %v2916 = vld [vmem:[#allocation2 + $0x150] sm:$0xff]
      %v2917 = vld [vmem:[#allocation2 + $0x158] sm:$0xff]
      %v2918 = vld [vmem:[#allocation2 + $0x160] sm:$0xff]
      %v2919 = vld [vmem:[#allocation2 + $0x168] sm:$0xff]
      %v2920 = vld [vmem:[#allocation2 + $0x170] sm:$0xff]
      %v2921 = vld [vmem:[#allocation2 + $0x178] sm:$0xff]
      %v2922 = vld [vmem:[#allocation2 + $0x180] sm:$0xff]
      %v2923 = vld [vmem:[#allocation2 + $0x188] sm:$0xff]
      %v2924 = vld [vmem:[#allocation2 + $0x190] sm:$0xff]
      %v2925 = vld [vmem:[#allocation2 + $0x198] sm:$0xff]
      %v2926 = vld [vmem:[#allocation2 + $0x1a0] sm:$0xff]
      %v2927 = vld [vmem:[#allocation2 + $0x1a8] sm:$0xff]
      %v2928 = vld [vmem:[#allocation2 + $0x1b0] sm:$0xff]
      %v2929 = vld [vmem:[#allocation2 + $0x1b8] sm:$0xff]
      %v2930 = vld [vmem:[#allocation2 + $0x1c0] sm:$0xff]
      %v2931 = vld [vmem:[#allocation2 + $0x1c8] sm:$0xff]
      %v2932 = vld [vmem:[#allocation2 + $0x1d0] sm:$0xff]
      %v2933 = vld [vmem:[#allocation2 + $0x1d8] sm:$0xff]
      %v2934 = vld [vmem:[#allocation2 + $0x1e0] sm:$0xff]
      %v2935 = vld [vmem:[#allocation2 + $0x1e8] sm:$0xff]
      %v2936 = vld [vmem:[#allocation2 + $0x1f0] sm:$0xff]
      %v2937 = vld [vmem:[#allocation2 + $0x1f8] sm:$0xff]
      %v2938 = vld [vmem:[#allocation2 + $0x200] sm:$0xff]
      %v2939 = vld [vmem:[#allocation2 + $0x208] sm:$0xff]
      %v2940 = vld [vmem:[#allocation2 + $0x210] sm:$0xff]
      %v2941 = vld [vmem:[#allocation2 + $0x218] sm:$0xff]
      %v2942 = vld [vmem:[#allocation2 + $0x220] sm:$0xff]
      %v2943 = vld [vmem:[#allocation2 + $0x228] sm:$0xff]
      %v2944 = vld [vmem:[#allocation2 + $0x230] sm:$0xff]
      %v2945 = vld [vmem:[#allocation2 + $0x238] sm:$0xff]
      %v2946 = vld [vmem:[#allocation2 + $0x240] sm:$0xff]
      %v2947 = vld [vmem:[#allocation2 + $0x248] sm:$0xff]
      %v2948 = vld [vmem:[#allocation2 + $0x250] sm:$0xff]
      %v2949 = vld [vmem:[#allocation2 + $0x258] sm:$0xff]
      %v2950 = vld [vmem:[#allocation2 + $0x260] sm:$0xff]
      %v2951 = vld [vmem:[#allocation2 + $0x268] sm:$0xff]
      %v2952 = vld [vmem:[#allocation2 + $0x270] sm:$0xff]
      %v2953 = vld [vmem:[#allocation2 + $0x278] sm:$0xff]
      %v2954 = vld [vmem:[#allocation2 + $0x280] sm:$0xff]
      %v2955 = vld [vmem:[#allocation2 + $0x288] sm:$0xff]
      %v2956 = vld [vmem:[#allocation2 + $0x290] sm:$0xff]
      %v2957 = vld [vmem:[#allocation2 + $0x298] sm:$0xff]
      %v2958 = vld [vmem:[#allocation2 + $0x2a0] sm:$0xff]
      %v2959 = vld [vmem:[#allocation2 + $0x2a8] sm:$0xff]
      %v2960 = vld [vmem:[#allocation2 + $0x2b0] sm:$0xff]
      %v2961 = vld [vmem:[#allocation2 + $0x2b8] sm:$0xff]
      %v2962 = vld [vmem:[#allocation2 + $0x2c0] sm:$0xff]
      %v2963 = vld [vmem:[#allocation2 + $0x2c8] sm:$0xff]
      %v2964 = vld [vmem:[#allocation2 + $0x2d0] sm:$0xff]
      %v2965 = vld [vmem:[#allocation2 + $0x2d8] sm:$0xff]
      %v2966 = vld [vmem:[#allocation2 + $0x2e0] sm:$0xff]
      %v2967 = vld [vmem:[#allocation2 + $0x2e8] sm:$0xff]
      %v2968 = vld [vmem:[#allocation2 + $0x2f0] sm:$0xff]
      %v2969 = vld [vmem:[#allocation2 + $0x2f8] sm:$0xff]
      %v2970 = vld [vmem:[#allocation2 + $0x300] sm:$0xff]
      %v2971 = vld [vmem:[#allocation2 + $0x308] sm:$0xff]
      %v2972 = vld [vmem:[#allocation2 + $0x310] sm:$0xff]
      %v2973 = vld [vmem:[#allocation2 + $0x318] sm:$0xff]
      %v2974 = vld [vmem:[#allocation2 + $0x320] sm:$0xff]
      %v2975 = vld [vmem:[#allocation2 + $0x328] sm:$0xff]
      %v2976 = vld [vmem:[#allocation2 + $0x330] sm:$0xff]
      %v2977 = vld [vmem:[#allocation2 + $0x338] sm:$0xff]
      %v2978 = vld [vmem:[#allocation2 + $0x340] sm:$0xff]
      %v2979 = vld [vmem:[#allocation2 + $0x348] sm:$0xff]
      %v2980 = vld [vmem:[#allocation2 + $0x350] sm:$0xff]
      %v2981 = vld [vmem:[#allocation2 + $0x358] sm:$0xff]
      %v2982 = vld [vmem:[#allocation2 + $0x360] sm:$0xff]
      %v2983 = vld [vmem:[#allocation2 + $0x368] sm:$0xff]
      %v2984 = vld [vmem:[#allocation2 + $0x370] sm:$0xff]
      %v2985 = vld [vmem:[#allocation2 + $0x378] sm:$0xff]
      %v2986 = vld [vmem:[#allocation2 + $0x380] sm:$0xff]
      %v2987 = vld [vmem:[#allocation2 + $0x388] sm:$0xff]
      %v2988 = vld [vmem:[#allocation2 + $0x390] sm:$0xff]
      %v2989 = vld [vmem:[#allocation2 + $0x398] sm:$0xff]
      %v2990 = vld [vmem:[#allocation2 + $0x3a0] sm:$0xff]
      %v2991 = vld [vmem:[#allocation2 + $0x3a8] sm:$0xff]
      %v2992 = vld [vmem:[#allocation2 + $0x3b0] sm:$0xff]
      %v2993 = vld [vmem:[#allocation2 + $0x3b8] sm:$0xff]
      %v2994 = vld [vmem:[#allocation2 + $0x3c0] sm:$0xff]
      %v2995 = vld [vmem:[#allocation2 + $0x3c8] sm:$0xff]
      %v2996 = vld [vmem:[#allocation2 + $0x3d0] sm:$0xff]
      %v2997 = vld [vmem:[#allocation2 + $0x3d8] sm:$0xff]
      %v2998 = vld [vmem:[#allocation2 + $0x3e0] sm:$0xff]
      %v2999 = vld [vmem:[#allocation2 + $0x3e8] sm:$0xff]
      %v3000 = vld [vmem:[#allocation2 + $0x3f0] sm:$0xff]
      %v3001 = vld [vmem:[#allocation2 + $0x3f8] sm:$0xff]
      %v3002 = vld [vmem:[#allocation2 + $0x400] sm:$0xff]
      %v3003 = vld [vmem:[#allocation2 + $0x408] sm:$0xff]
      %v3004 = vld [vmem:[#allocation2 + $0x410] sm:$0xff]
      %v3005 = vld [vmem:[#allocation2 + $0x418] sm:$0xff]
      %v3006 = vld [vmem:[#allocation2 + $0x420] sm:$0xff]
      %v3007 = vld [vmem:[#allocation2 + $0x428] sm:$0xff]
      %v3008 = vld [vmem:[#allocation2 + $0x430] sm:$0xff]
      %v3009 = vld [vmem:[#allocation2 + $0x438] sm:$0xff]
      %v3010 = vld [vmem:[#allocation2 + $0x440] sm:$0xff]
      %v3011 = vld [vmem:[#allocation2 + $0x448] sm:$0xff]
      %v3012 = vld [vmem:[#allocation2 + $0x450] sm:$0xff]
      %v3013 = vld [vmem:[#allocation2 + $0x458] sm:$0xff]
      %v3014 = vld [vmem:[#allocation2 + $0x460] sm:$0xff]
      %v3015 = vld [vmem:[#allocation2 + $0x468] sm:$0xff]
      %v3016 = vld [vmem:[#allocation2 + $0x470] sm:$0xff]
      %v3017 = vld [vmem:[#allocation2 + $0x478] sm:$0xff]
      %v3018 = vld [vmem:[#allocation2 + $0x480] sm:$0xff]
      %v3019 = vld [vmem:[#allocation2 + $0x488] sm:$0xff]
      %v3020 = vld [vmem:[#allocation2 + $0x490] sm:$0xff]
      %v3021 = vld [vmem:[#allocation2 + $0x498] sm:$0xff]
      %v3022 = vld [vmem:[#allocation2 + $0x4a0] sm:$0xff]
      %v3023 = vld [vmem:[#allocation2 + $0x4a8] sm:$0xff]
      %v3024 = vld [vmem:[#allocation2 + $0x4b0] sm:$0xff]
      %v3025 = vld [vmem:[#allocation2 + $0x4b8] sm:$0xff]
      %v3026 = vld [vmem:[#allocation2 + $0x4c0] sm:$0xff]
      %v3027 = vld [vmem:[#allocation2 + $0x4c8] sm:$0xff]
      %v3028 = vld [vmem:[#allocation2 + $0x4d0] sm:$0xff]
      %v3029 = vld [vmem:[#allocation2 + $0x4d8] sm:$0xff]
      %v3030 = vld [vmem:[#allocation2 + $0x4e0] sm:$0xff]
      %v3031 = vld [vmem:[#allocation2 + $0x4e8] sm:$0xff]
      %v3032 = vld [vmem:[#allocation2 + $0x4f0] sm:$0xff]
      %v3033 = vld [vmem:[#allocation2 + $0x4f8] sm:$0xff]
      %v3034 = vld [vmem:[#allocation2 + $0x500] sm:$0xff]
      %v3035 = vld [vmem:[#allocation2 + $0x508] sm:$0xff]
      %v3036 = vld [vmem:[#allocation2 + $0x510] sm:$0xff]
      %v3037 = vld [vmem:[#allocation2 + $0x518] sm:$0xff]
      %v3038 = vld [vmem:[#allocation2 + $0x520] sm:$0xff]
      %v3039 = vld [vmem:[#allocation2 + $0x528] sm:$0xff]
      %v3040 = vld [vmem:[#allocation2 + $0x530] sm:$0xff]
      %v3041 = vld [vmem:[#allocation2 + $0x538] sm:$0xff]
      %v3042 = vld [vmem:[#allocation2 + $0x540] sm:$0xff]
      %v3043 = vld [vmem:[#allocation2 + $0x548] sm:$0xff]
      %v3044 = vld [vmem:[#allocation2 + $0x550] sm:$0xff]
      %v3045 = vld [vmem:[#allocation2 + $0x558] sm:$0xff]
      %v3046 = vld [vmem:[#allocation2 + $0x560] sm:$0xff]
      %v3047 = vld [vmem:[#allocation2 + $0x568] sm:$0xff]
      %v3048 = vld [vmem:[#allocation2 + $0x570] sm:$0xff]
      %v3049 = vld [vmem:[#allocation2 + $0x578] sm:$0xff]
      %v3050 = vld [vmem:[#allocation2 + $0x580] sm:$0xff]
      %v3051 = vld [vmem:[#allocation2 + $0x588] sm:$0xff]
      %v3052 = vld [vmem:[#allocation2 + $0x590] sm:$0xff]
      %v3053 = vld [vmem:[#allocation2 + $0x598] sm:$0xff]
      %v3054 = vld [vmem:[#allocation2 + $0x5a0] sm:$0xff]
      %v3055 = vld [vmem:[#allocation2 + $0x5a8] sm:$0xff]
      %v3056 = vld [vmem:[#allocation2 + $0x5b0] sm:$0xff]
      %v3057 = vld [vmem:[#allocation2 + $0x5b8] sm:$0xff]
      %v3058 = vld [vmem:[#allocation2 + $0x5c0] sm:$0xff]
      %v3059 = vld [vmem:[#allocation2 + $0x5c8] sm:$0xff]
      %v3060 = vld [vmem:[#allocation2 + $0x5d0] sm:$0xff]
      %v3061 = vld [vmem:[#allocation2 + $0x5d8] sm:$0xff]
      %v3062 = vld [vmem:[#allocation2 + $0x5e0] sm:$0xff]
      %v3063 = vld [vmem:[#allocation2 + $0x5e8] sm:$0xff]
      %v3064 = vld [vmem:[#allocation2 + $0x5f0] sm:$0xff]
      %v3065 = vld [vmem:[#allocation2 + $0x5f8] sm:$0xff]
      %v3066 = vld [vmem:[#allocation2 + $0x600] sm:$0xff]
      %v3067 = vld [vmem:[#allocation2 + $0x608] sm:$0xff]
      %v3068 = vld [vmem:[#allocation2 + $0x610] sm:$0xff]
      %v3069 = vld [vmem:[#allocation2 + $0x618] sm:$0xff]
      %v3070 = vld [vmem:[#allocation2 + $0x620] sm:$0xff]
      %v3071 = vld [vmem:[#allocation2 + $0x628] sm:$0xff]
      %v3072 = vld [vmem:[#allocation2 + $0x630] sm:$0xff]
      %v3073 = vld [vmem:[#allocation2 + $0x638] sm:$0xff]
      %v3074 = vld [vmem:[#allocation2 + $0x640] sm:$0xff]
      %v3075 = vld [vmem:[#allocation2 + $0x648] sm:$0xff]
      %v3076 = vld [vmem:[#allocation2 + $0x650] sm:$0xff]
      %v3077 = vld [vmem:[#allocation2 + $0x658] sm:$0xff]
      %v3078 = vld [vmem:[#allocation2 + $0x660] sm:$0xff]
      %v3079 = vld [vmem:[#allocation2 + $0x668] sm:$0xff]
      %v3080 = vld [vmem:[#allocation2 + $0x670] sm:$0xff]
      %v3081 = vld [vmem:[#allocation2 + $0x678] sm:$0xff]
      %v3082 = vld [vmem:[#allocation2 + $0x680] sm:$0xff]
      %v3083 = vld [vmem:[#allocation2 + $0x688] sm:$0xff]
      %v3084 = vld [vmem:[#allocation2 + $0x690] sm:$0xff]
      %v3085 = vld [vmem:[#allocation2 + $0x698] sm:$0xff]
      %v3086 = vld [vmem:[#allocation2 + $0x6a0] sm:$0xff]
      %v3087 = vld [vmem:[#allocation2 + $0x6a8] sm:$0xff]
      %v3088 = vld [vmem:[#allocation2 + $0x6b0] sm:$0xff]
      %v3089 = vld [vmem:[#allocation2 + $0x6b8] sm:$0xff]
      %v3090 = vpack.c.bf16 %v2882, %v2874
      %v3091 = vpack.c.bf16 %v2883, %v2875
      %v3092 = vpack.c.bf16 %v2884, %v2876
      %v3093 = vpack.c.bf16 %v2885, %v2877
      %v3094 = vpack.c.bf16 %v2886, %v2878
      %v3095 = vpack.c.bf16 %v2887, %v2879
      %v3096 = vpack.c.bf16 %v2888, %v2880
      %v3097 = vpack.c.bf16 %v2889, %v2881
      %v3098 = vpack.c.bf16 %v2898, %v2890
      %v3099 = vpack.c.bf16 %v2899, %v2891
      %v3100 = vpack.c.bf16 %v2900, %v2892
      %v3101 = vpack.c.bf16 %v2901, %v2893
      %v3102 = vpack.c.bf16 %v2902, %v2894
      %v3103 = vpack.c.bf16 %v2903, %v2895
      %v3104 = vpack.c.bf16 %v2904, %v2896
      %v3105 = vpack.c.bf16 %v2905, %v2897
      %v3106 = vpack.c.bf16 %v2914, %v2906
      %v3107 = vpack.c.bf16 %v2915, %v2907
      %v3108 = vpack.c.bf16 %v2916, %v2908
      %v3109 = vpack.c.bf16 %v2917, %v2909
      %v3110 = vpack.c.bf16 %v2918, %v2910
      %v3111 = vpack.c.bf16 %v2919, %v2911
      %v3112 = vpack.c.bf16 %v2920, %v2912
      %v3113 = vpack.c.bf16 %v2921, %v2913
      %v3114 = vpack.c.bf16 %v2930, %v2922
      %v3115 = vpack.c.bf16 %v2931, %v2923
      %v3116 = vpack.c.bf16 %v2932, %v2924
      %v3117 = vpack.c.bf16 %v2933, %v2925
      %v3118 = vpack.c.bf16 %v2934, %v2926
      %v3119 = vpack.c.bf16 %v2935, %v2927
      %v3120 = vpack.c.bf16 %v2936, %v2928
      %v3121 = vpack.c.bf16 %v2937, %v2929
      %v3122 = vpack.c.bf16 %v2946, %v2938
      %v3123 = vpack.c.bf16 %v2947, %v2939
      %v3124 = vpack.c.bf16 %v2948, %v2940
      %v3125 = vpack.c.bf16 %v2949, %v2941
      %v3126 = vpack.c.bf16 %v2950, %v2942
      %v3127 = vpack.c.bf16 %v2951, %v2943
      %v3128 = vpack.c.bf16 %v2952, %v2944
      %v3129 = vpack.c.bf16 %v2953, %v2945
      %v3130 = vpack.c.bf16 %v2962, %v2954
      %v3131 = vpack.c.bf16 %v2963, %v2955
      %v3132 = vpack.c.bf16 %v2964, %v2956
      %v3133 = vpack.c.bf16 %v2965, %v2957
      %v3134 = vpack.c.bf16 %v2966, %v2958
      %v3135 = vpack.c.bf16 %v2967, %v2959
      %v3136 = vpack.c.bf16 %v2968, %v2960
      %v3137 = vpack.c.bf16 %v2969, %v2961
      %v3138 = vpack.c.bf16 %v2978, %v2970
      %v3139 = vpack.c.bf16 %v2979, %v2971
      %v3140 = vpack.c.bf16 %v2980, %v2972
      %v3141 = vpack.c.bf16 %v2981, %v2973
      %v3142 = vpack.c.bf16 %v2982, %v2974
      %v3143 = vpack.c.bf16 %v2983, %v2975
      %v3144 = vpack.c.bf16 %v2984, %v2976
      %v3145 = vpack.c.bf16 %v2985, %v2977
      %v3146 = vpack.c.bf16 %v2994, %v2986
      %v3147 = vpack.c.bf16 %v2995, %v2987
      %v3148 = vpack.c.bf16 %v2996, %v2988
      %v3149 = vpack.c.bf16 %v2997, %v2989
      %v3150 = vpack.c.bf16 %v2998, %v2990
      %v3151 = vpack.c.bf16 %v2999, %v2991
      %v3152 = vpack.c.bf16 %v3000, %v2992
      %v3153 = vpack.c.bf16 %v3001, %v2993
      %v3154 = vpack.c.bf16 %v3010, %v3002
      %v3155 = vpack.c.bf16 %v3011, %v3003
      %v3156 = vpack.c.bf16 %v3012, %v3004
      %v3157 = vpack.c.bf16 %v3013, %v3005
      %v3158 = vpack.c.bf16 %v3014, %v3006
      %v3159 = vpack.c.bf16 %v3015, %v3007
      %v3160 = vpack.c.bf16 %v3016, %v3008
      %v3161 = vpack.c.bf16 %v3017, %v3009
      %v3162 = vpack.c.bf16 %v3026, %v3018
      %v3163 = vpack.c.bf16 %v3027, %v3019
      %v3164 = vpack.c.bf16 %v3028, %v3020
      %v3165 = vpack.c.bf16 %v3029, %v3021
      %v3166 = vpack.c.bf16 %v3030, %v3022
      %v3167 = vpack.c.bf16 %v3031, %v3023
      %v3168 = vpack.c.bf16 %v3032, %v3024
      %v3169 = vpack.c.bf16 %v3033, %v3025
      %v3170 = vpack.c.bf16 %v3042, %v3034
      %v3171 = vpack.c.bf16 %v3043, %v3035
      %v3172 = vpack.c.bf16 %v3044, %v3036
      %v3173 = vpack.c.bf16 %v3045, %v3037
      %v3174 = vpack.c.bf16 %v3046, %v3038
      %v3175 = vpack.c.bf16 %v3047, %v3039
      %v3176 = vpack.c.bf16 %v3048, %v3040
      %v3177 = vpack.c.bf16 %v3049, %v3041
      %v3178 = vpack.c.bf16 %v3058, %v3050
      %v3179 = vpack.c.bf16 %v3059, %v3051
      %v3180 = vpack.c.bf16 %v3060, %v3052
      %v3181 = vpack.c.bf16 %v3061, %v3053
      %v3182 = vpack.c.bf16 %v3062, %v3054
      %v3183 = vpack.c.bf16 %v3063, %v3055
      %v3184 = vpack.c.bf16 %v3064, %v3056
      %v3185 = vpack.c.bf16 %v3065, %v3057
      %v3186 = vpack.c.bf16 %v3074, %v3066
      %v3187 = vpack.c.bf16 %v3075, %v3067
      %v3188 = vpack.c.bf16 %v3076, %v3068
      %v3189 = vpack.c.bf16 %v3077, %v3069
      %v3190 = vpack.c.bf16 %v3078, %v3070
      %v3191 = vpack.c.bf16 %v3079, %v3071
      %v3192 = vpack.c.bf16 %v3080, %v3072
      %v3193 = vpack.c.bf16 %v3081, %v3073
      %v3194 = vpack.c.bf16 %v3082, %v3082
      %v3195 = vpack.c.bf16 %v3083, %v3083
      %v3196 = vpack.c.bf16 %v3084, %v3084
      %v3197 = vpack.c.bf16 %v3085, %v3085
      %v3198 = vpack.c.bf16 %v3086, %v3086
      %v3199 = vpack.c.bf16 %v3087, %v3087
      %v3200 = vpack.c.bf16 %v3088, %v3088
      %v3201 = vpack.c.bf16 %v3089, %v3089
      %v3202 = vld [vmem:[%s4] sm:$0xf]
      %3204 = vset.pattern.permute.xlu0 0
      %3205 = vperm.xlu0 %3204, %v3202
      %v3206 = vpop.permute.xlu0 %3205
      %v3210 = vunpack.c.l.s4 1983009808
      %v3211 = vunpack.c.0.s8 %v3210
      %v3212 = vlaneseq
      %v3213 = vshrl.u32 %v3212, 7
      %v3214 = vsub.s32 %v3211, %v3213
      %v3215 = vrot.slane %v2873, %v3214
      %v3216 = vcombine.high %v3215, %v3215
      %vm3218 = vcmask 719872
      %v3220 = vsel %vm3218, %v3216, 0
      %vm3222 = vcmask 1043456
      %v3224 = vsel %vm3222, %v3194, 0
      %v3227 = vsel %vm3222, %v3195, 0
      %v3230 = vsel %vm3222, %v3196, 0
      %v3233 = vsel %vm3222, %v3197, 0
      %v3236 = vsel %vm3222, %v3198, 0
      %v3239 = vsel %vm3222, %v3199, 0
      %v3242 = vsel %vm3222, %v3200, 0
      %v3245 = vsel %vm3222, %v3201, 0
      %3247 = vmatprep.subr.bf16.mxu0 %v3091
      %3248 = vmatpush1.bf16.msra.mxu0 %v3090
      %3249 = vmatprep.subr.bf16.mxu0 %v3099
      %3250 = vmatpush1.bf16.msra.mxu0 %v3098
      %3251 = vmatprep.subr.bf16.mxu0 %v3107
      %3252 = vmatpush1.bf16.msra.mxu0 %v3106
      %3253 = vmatprep.subr.bf16.mxu0 %v3115
      %3254 = vmatpush1.bf16.msra.mxu0 %v3114
      %3255 = vmatprep.subr.bf16.mxu0 %v3123
      %3256 = vmatpush1.bf16.msra.mxu0 %v3122
      %3257 = vmatprep.subr.bf16.mxu0 %v3131
      %3258 = vmatpush1.bf16.msra.mxu0 %v3130
      %3259 = vmatprep.subr.bf16.mxu0 %v3139
      %3260 = vmatpush1.bf16.msra.mxu0 %v3138
      %3261 = vmatprep.subr.bf16.mxu0 %v3147
      %3262 = vmatpush1.bf16.msra.mxu0 %v3146
      %3263 = vmatprep.subr.bf16.mxu0 %v3155
      %3264 = vmatpush1.bf16.msra.mxu0 %v3154
      %3265 = vmatprep.subr.bf16.mxu0 %v3163
      %3266 = vmatpush1.bf16.msra.mxu0 %v3162
      %3267 = vmatprep.subr.bf16.mxu0 %v3171
      %3268 = vmatpush1.bf16.msra.mxu0 %v3170
      %3269 = vmatprep.subr.bf16.mxu0 %v3179
      %3270 = vmatpush1.bf16.msra.mxu0 %v3178
      %3271 = vmatprep.subr.bf16.mxu0 %v3187
      %3272 = vmatpush1.bf16.msra.mxu0 %v3186
      %3273 = vmatprep.subr.bf16.mxu0 %v3227
      %3274 = vmatpush1.bf16.msra.mxu0 %v3224
      %3275 = vmatprep.subr.bf16.mxu0 0
      %3276 = vmatpush1.bf16.msra.mxu0 0
      %3277 = vmatprep.subr.bf16.mxu0 0
      %3278 = vmatpush1.bf16.msra.mxu0 0
      %3279 = vmatprep.mubr.bf16.mxu0 %v3220
      %3280 = vmatmul.mubr.bf16.gmra.mrb[0].mxu0 %v3215
      %v3281 = vpop.f32.mrb[0].mxu0
      %v3282 = vadd.f32 %v3206, %v3281
      %v3283 = vpop.f32.mrb[0].mxu0
      %v3284 = vadd.f32 %v3206, %v3283
      %v3285 = vpop.f32.mrb[0].mxu0
      %v3286 = vpop.f32.mrb[0].mxu0
      %3287 = vdwg.mxu0
      %3288 = vmatprep.subr.bf16.mxu0 %v3093
      %3289 = vmatpush1.bf16.msra.mxu0 %v3092
      %3290 = vmatprep.subr.bf16.mxu0 %v3101
      %3291 = vmatpush1.bf16.msra.mxu0 %v3100
      %3292 = vmatprep.subr.bf16.mxu0 %v3109
      %3293 = vmatpush1.bf16.msra.mxu0 %v3108
      %3294 = vmatprep.subr.bf16.mxu0 %v3117
      %3295 = vmatpush1.bf16.msra.mxu0 %v3116
      %3296 = vmatprep.subr.bf16.mxu0 %v3125
      %3297 = vmatpush1.bf16.msra.mxu0 %v3124
      %3298 = vmatprep.subr.bf16.mxu0 %v3133
      %3299 = vmatpush1.bf16.msra.mxu0 %v3132
      %3300 = vmatprep.subr.bf16.mxu0 %v3141
      %3301 = vmatpush1.bf16.msra.mxu0 %v3140
      %3302 = vmatprep.subr.bf16.mxu0 %v3149
      %3303 = vmatpush1.bf16.msra.mxu0 %v3148
      %3304 = vmatprep.subr.bf16.mxu0 %v3157
      %3305 = vmatpush1.bf16.msra.mxu0 %v3156
      %3306 = vmatprep.subr.bf16.mxu0 %v3165
      %3307 = vmatpush1.bf16.msra.mxu0 %v3164
      %3308 = vmatprep.subr.bf16.mxu0 %v3173
      %3309 = vmatpush1.bf16.msra.mxu0 %v3172
      %3310 = vmatprep.subr.bf16.mxu0 %v3181
      %3311 = vmatpush1.bf16.msra.mxu0 %v3180
      %3312 = vmatprep.subr.bf16.mxu0 %v3189
      %3313 = vmatpush1.bf16.msra.mxu0 %v3188
      %3314 = vmatprep.subr.bf16.mxu0 %v3233
      %3315 = vmatpush1.bf16.msra.mxu0 %v3230
      %3316 = vmatprep.subr.bf16.mxu0 0
      %3317 = vmatpush1.bf16.msra.mxu0 0
      %3318 = vmatprep.subr.bf16.mxu0 0
      %3319 = vmatpush1.bf16.msra.mxu0 0
      %3320 = vmatprep.mubr.bf16.mxu0 %v3220
      %3321 = vmatmul.mubr.bf16.gmra.mrb[0].mxu0 %v3215
      %v3322 = vpop.f32.mrb[0].mxu0
      %v3323 = vadd.f32 %v3206, %v3322
      %v3324 = vpop.f32.mrb[0].mxu0
      %v3325 = vadd.f32 %v3206, %v3324
      %v3326 = vpop.f32.mrb[0].mxu0
      %v3327 = vpop.f32.mrb[0].mxu0
      %3328 = vdwg.mxu0
      %3329 = vmatprep.subr.bf16.mxu0 %v3095
      %3330 = vmatpush1.bf16.msra.mxu0 %v3094
      %3331 = vmatprep.subr.bf16.mxu0 %v3103
      %3332 = vmatpush1.bf16.msra.mxu0 %v3102
      %3333 = vmatprep.subr.bf16.mxu0 %v3111
      %3334 = vmatpush1.bf16.msra.mxu0 %v3110
      %3335 = vmatprep.subr.bf16.mxu0 %v3119
      %3336 = vmatpush1.bf16.msra.mxu0 %v3118
      %3337 = vmatprep.subr.bf16.mxu0 %v3127
      %3338 = vmatpush1.bf16.msra.mxu0 %v3126
      %3339 = vmatprep.subr.bf16.mxu0 %v3135
      %3340 = vmatpush1.bf16.msra.mxu0 %v3134
      %3341 = vmatprep.subr.bf16.mxu0 %v3143
      %3342 = vmatpush1.bf16.msra.mxu0 %v3142
      %3343 = vmatprep.subr.bf16.mxu0 %v3151
      %3344 = vmatpush1.bf16.msra.mxu0 %v3150
      %3345 = vmatprep.subr.bf16.mxu0 %v3159
      %3346 = vmatpush1.bf16.msra.mxu0 %v3158
      %3347 = vmatprep.subr.bf16.mxu0 %v3167
      %3348 = vmatpush1.bf16.msra.mxu0 %v3166
      %3349 = vmatprep.subr.bf16.mxu0 %v3175
      %3350 = vmatpush1.bf16.msra.mxu0 %v3174
      %3351 = vmatprep.subr.bf16.mxu0 %v3183
      %3352 = vmatpush1.bf16.msra.mxu0 %v3182
      %3353 = vmatprep.subr.bf16.mxu0 %v3191
      %3354 = vmatpush1.bf16.msra.mxu0 %v3190
      %3355 = vmatprep.subr.bf16.mxu0 %v3239
      %3356 = vmatpush1.bf16.msra.mxu0 %v3236
      %3357 = vmatprep.subr.bf16.mxu0 0
      %3358 = vmatpush1.bf16.msra.mxu0 0
      %3359 = vmatprep.subr.bf16.mxu0 0
      %3360 = vmatpush1.bf16.msra.mxu0 0
      %3361 = vmatprep.mubr.bf16.mxu0 %v3220
      %3362 = vmatmul.mubr.bf16.gmra.mrb[0].mxu0 %v3215
      %v3363 = vpop.f32.mrb[0].mxu0
      %v3364 = vadd.f32 %v3206, %v3363
      %v3365 = vpop.f32.mrb[0].mxu0
      %v3366 = vadd.f32 %v3206, %v3365
      %v3367 = vpop.f32.mrb[0].mxu0
      %v3368 = vpop.f32.mrb[0].mxu0
      %3369 = vdwg.mxu0
      %3370 = vmatprep.subr.bf16.mxu0 %v3097
      %3371 = vmatpush1.bf16.msra.mxu0 %v3096
      %3372 = vmatprep.subr.bf16.mxu0 %v3105
      %3373 = vmatpush1.bf16.msra.mxu0 %v3104
      %3374 = vmatprep.subr.bf16.mxu0 %v3113
      %3375 = vmatpush1.bf16.msra.mxu0 %v3112
      %3376 = vmatprep.subr.bf16.mxu0 %v3121
      %3377 = vmatpush1.bf16.msra.mxu0 %v3120
      %3378 = vmatprep.subr.bf16.mxu0 %v3129
      %3379 = vmatpush1.bf16.msra.mxu0 %v3128
      %3380 = vmatprep.subr.bf16.mxu0 %v3137
      %3381 = vmatpush1.bf16.msra.mxu0 %v3136
      %3382 = vmatprep.subr.bf16.mxu0 %v3145
      %3383 = vmatpush1.bf16.msra.mxu0 %v3144
      %3384 = vmatprep.subr.bf16.mxu0 %v3153
      %3385 = vmatpush1.bf16.msra.mxu0 %v3152
      %3386 = vmatprep.subr.bf16.mxu0 %v3161
      %3387 = vmatpush1.bf16.msra.mxu0 %v3160
      %3388 = vmatprep.subr.bf16.mxu0 %v3169
      %3389 = vmatpush1.bf16.msra.mxu0 %v3168
      %3390 = vmatprep.subr.bf16.mxu0 %v3177
      %3391 = vmatpush1.bf16.msra.mxu0 %v3176
      %3392 = vmatprep.subr.bf16.mxu0 %v3185
      %3393 = vmatpush1.bf16.msra.mxu0 %v3184
      %3394 = vmatprep.subr.bf16.mxu0 %v3193
      %3395 = vmatpush1.bf16.msra.mxu0 %v3192
      %3396 = vmatprep.subr.bf16.mxu0 %v3245
      %3397 = vmatpush1.bf16.msra.mxu0 %v3242
      %3398 = vmatprep.subr.bf16.mxu0 0
      %3399 = vmatpush1.bf16.msra.mxu0 0
      %3400 = vmatprep.subr.bf16.mxu0 0
      %3401 = vmatpush1.bf16.msra.mxu0 0
      %3402 = vmatprep.mubr.bf16.mxu0 %v3220
      %3403 = vmatmul.mubr.bf16.gmra.mrb[0].mxu0 %v3215
      %v3404 = vpop.f32.mrb[0].mxu0
      %v3405 = vadd.f32 %v3206, %v3404
      %v3406 = vpop.f32.mrb[0].mxu0
      %v3407 = vadd.f32 %v3206, %v3406
      %v3408 = vpop.f32.mrb[0].mxu0
      %v3409 = vpop.f32.mrb[0].mxu0
      %3410 = vdwg.mxu0
      %v3419 = vcombine.low %v3282, %v3284
      %v3420 = vcombine.low %v3323, %v3325
      %v3421 = vcombine.low %v3364, %v3366
      %v3422 = vcombine.low %v3405, %v3407
      %3427 = vst [vmem:[%s278] sm:$0xff] %v3419
      %3428 = vst [vmem:[%s278 + $0x8] sm:$0xff] %v3420
      %3429 = vst [vmem:[%s278 + $0x10] sm:$0xff] %v3421
      %vm3430 = vmor %vm1530, %vm3222
      %3431 = vst.msk [vmem:[%s278 + $0x18] sm:$0xff] %vm3430, %v3422
      %v3433 = vlaneseq
      %v3434 = vshrl.u32 %v3433, 7
      %v3435 = vsub.s32 0, %v3434
      %v3436 = vrot.slane %v284, %v3435
      %v3437 = vlaneseq
      %v3438 = vshrl.u32 %v3437, 7
      %v3439 = vsub.s32 1, %v3438
      %v3440 = vrot.slane %v284, %v3439
      %v3441 = vlaneseq
      %v3442 = vshrl.u32 %v3441, 7
      %v3443 = vsub.s32 2, %v3442
      %v3444 = vrot.slane %v284, %v3443
      %v3445 = vlaneseq
      %v3446 = vshrl.u32 %v3445, 7
      %v3447 = vsub.s32 3, %v3446
      %v3448 = vrot.slane %v284, %v3447
      %v3449 = vlaneseq
      %v3450 = vshrl.u32 %v3449, 7
      %v3451 = vsub.s32 4, %v3450
      %v3452 = vrot.slane %v284, %v3451
      %v3453 = vlaneseq
      %v3454 = vshrl.u32 %v3453, 7
      %v3455 = vsub.s32 5, %v3454
      %v3456 = vrot.slane %v284, %v3455
      %v3457 = vlaneseq
      %v3458 = vshrl.u32 %v3457, 7
      %v3459 = vsub.s32 6, %v3458
      %v3460 = vrot.slane %v284, %v3459
      %v3461 = vlaneseq
      %v3462 = vshrl.u32 %v3461, 7
      %v3463 = vsub.s32 7, %v3462
      %v3464 = vrot.slane %v284, %v3463
      %v3473 = vmul.f32 %v3282, %v3436
      %v3474 = vmul.f32 %v3284, %v3440
      %v3475 = vmul.f32 %v3323, %v3444
      %v3476 = vmul.f32 %v3325, %v3448
      %v3477 = vmul.f32 %v3364, %v3452
      %v3478 = vmul.f32 %v3366, %v3456
      %v3479 = vmul.f32 %v3405, %v3460
      %v3480 = vmul.f32 %v3407, %v3464
      %v3481 = vsel %vm3222, %v3473, 0.0
      %v3482 = vsel %vm3222, %v3474, 0.0
      %v3483 = vadd.f32 %v3481, %v3482
      %v3484 = vsel %vm3222, %v3475, 0.0
      %v3485 = vadd.f32 %v3483, %v3484
      %v3486 = vsel %vm3222, %v3476, 0.0
      %v3487 = vadd.f32 %v3485, %v3486
      %v3488 = vsel %vm3222, %v3477, 0.0
      %v3489 = vadd.f32 %v3487, %v3488
      %v3490 = vsel %vm3222, %v3478, 0.0
      %v3491 = vadd.f32 %v3489, %v3490
      %v3492 = vsel %vm3222, %v3479, 0.0
      %v3493 = vadd.f32 %v3491, %v3492
      %v3494 = vsel %vm341, %v3480, 0.0
      %v3495 = vadd.f32 %v3493, %v3494
      %3496 = vadd.xlane.f32.xlu0 %v3495
      %v3497 = vpop.xlane.xlu0 %3496
      %v3498 = vmul.f32 %v3473, %v3473
      %v3499 = vmul.f32 %v3474, %v3474
      %v3500 = vmul.f32 %v3475, %v3475
      %v3501 = vmul.f32 %v3476, %v3476
      %v3502 = vmul.f32 %v3477, %v3477
      %v3503 = vmul.f32 %v3478, %v3478
      %v3504 = vmul.f32 %v3479, %v3479
      %v3505 = vmul.f32 %v3480, %v3480
      %v3506 = vsel %vm3222, %v3498, 0.0
      %v3507 = vsel %vm3222, %v3499, 0.0
      %v3508 = vadd.f32 %v3506, %v3507
      %v3509 = vsel %vm3222, %v3500, 0.0
      %v3510 = vadd.f32 %v3508, %v3509
      %v3511 = vsel %vm3222, %v3501, 0.0
      %v3512 = vadd.f32 %v3510, %v3511
      %v3513 = vsel %vm3222, %v3502, 0.0
      %v3514 = vadd.f32 %v3512, %v3513
      %v3515 = vsel %vm3222, %v3503, 0.0
      %v3516 = vadd.f32 %v3514, %v3515
      %v3517 = vsel %vm3222, %v3504, 0.0
      %v3518 = vadd.f32 %v3516, %v3517
      %v3519 = vsel %vm341, %v3505, 0.0
      %v3520 = vadd.f32 %v3518, %v3519
      %3521 = vadd.xlane.f32.xlu0 %v3520
      %v3522 = vpop.xlane.xlu0 %3521
      %v3523 = vsel %vm848, %v3497, %v3522
      %vm3524 = vcmask 11264
      %3525 = vst.msk [vmem:[%s282] sm:$0xf] %vm3524, %v3523
      %p3526 = scmp.lt.s32.totalorder %s18, 1
      %s3527 = scalar_select %p3526, %s18, 1
      %s3528 = smul.addr %s3527, 8
      %s3529 = smul.addr %s3528, 4
      %s3530 = scalar_lea.vmem %s5, %s3529
      %p3531 = scmp.lt.s32.totalorder %s18, 1
      %s3532 = scalar_select %p3531, %s18, 1
      %s3533 = smul.addr %s3532, 4
      %s3534 = scalar_lea.vmem %s6, %s3533
      // Predicated region
      $region41: #{up_forward.5} parent=39 // pred_check
        %p3535 = pneg %p151
      $region42: #{up_forward.5} parent=39 // pred_check_branch
        %3537 = sbr.rel (%p3535) target = $region44
      $region43: #{up_forward.5} parent=39 // pred_region
        _
      $region44: #{up_forward.5} parent=39 // pred_fallthru
        _
      // Predicated region
      $region45: #{up_forward.5} parent=39 // pred_check
        %p3538 = pneg %p177
      $region46: #{up_forward.5} parent=39 // pred_check_branch
        %3540 = sbr.rel (%p3538) target = $region48
      $region47: #{up_forward.5} parent=39 // pred_region
        _
      $region48: #{up_forward.5} parent=39 // pred_fallthru
        _
    $region40: #{up_forward.5} parent=5 // pred_fallthru
      _
    %p3541 = scmp.le.s32.totalorder 2, %s13
    // Predicated region
    $region49: #{up_forward.5} parent=5 // pred_check
      %p3542 = pneg %p3541
    $region50: #{up_forward.5} parent=5 // pred_check_branch
      %3544 = sbr.rel (%p3542) target = $region52
    $region51: #{up_forward.5} parent=5 // pred_region
      %s3545 = ssub.s32 %s13, 2
      // Predicated region
      $region53: #{up_forward.5} parent=51 // pred_check
        %p3546 = pneg %p157
      $region54: #{up_forward.5} parent=51 // pred_check_branch
        %3548 = sbr.rel (%p3546) target = $region56
      $region55: #{up_forward.5} parent=51 // pred_region
        %p3549 = scmp.lt.s32.totalorder %s19, 1
        %s3550 = scalar_select %p3549, %s19, 1
        %s3551 = smul.addr %s3550, 8
        %s3552 = smul.addr %s3551, 4
        %s3553 = scalar_lea.vmem %s5, %s3552
      $region56: #{up_forward.5} parent=51 // pred_fallthru
        _
      // Predicated region
      $region57: #{up_forward.5} parent=51 // pred_check
        %p3554 = pneg %p183
      $region58: #{up_forward.5} parent=51 // pred_check_branch
        %3556 = sbr.rel (%p3554) target = $region60
      $region59: #{up_forward.5} parent=51 // pred_region
        %p3557 = scmp.lt.s32.totalorder %s19, 1
        %s3558 = scalar_select %p3557, %s19, 1
        %s3559 = smul.addr %s3558, 4
        %s3560 = scalar_lea.vmem %s6, %s3559
      $region60: #{up_forward.5} parent=51 // pred_fallthru
        _
    $region52: #{up_forward.5} parent=5 // pred_fallthru
      _
  $region6: #{up_forward.5} parent=0 // loop_footer
    %s17 = sadd.s32 1, %s13
  $region7: #{up_forward.5} parent=0 // loop_footer_branch
    %12 = sbr.rel target = $region3
  $region8: #{up_forward.5} parent=0 // loop_exit
    _

</llo_original>
